<compile_context>
chip_gen: v7x
topology: tpu7x:2x2x1
jax: 0.10.0
libtpu: 0.0.40
codegen_flags: <defaults>
</compile_context>

<pallas_src>
import math
import jax
import jax.numpy as jnp
from jax.experimental import pallas as pl
from jax.experimental.pallas import tpu as pltpu

# ----- hyperparameters (small but TPU-lane-friendly) -----
N_LAYERS = 2           # N decoder layers (6 in the paper; 2 for the small demo)
D_MODEL  = 128         # SubLayer's `size` -> lane-dense (one full 128-lane tile)
N_HEADS  = 4
D_HEAD   = D_MODEL // N_HEADS
D_FF     = 256
LN_EPS   = 1e-5        # nn.LayerNorm default eps

B, T, S = 2, 8, 8      # batch, target length, source length


# ------------------------------- Pallas kernel ------------------------------

def decoder_kernel(x_ref, mem_ref, src_bias_ref, dst_bias_ref,
                   sa_wqkv_ref, sa_bqkv_ref, sa_wo_ref, sa_bo_ref,
                   ca_wq_ref, ca_bq_ref, ca_wkv_ref, ca_bkv_ref,
                   ca_wo_ref, ca_bo_ref,
                   ffn_w1_ref, ffn_b1_ref, ffn_w2_ref, ffn_b2_ref,
                   ln_g_ref, ln_b_ref, fin_g_ref, fin_b_ref, out_ref):
    B_, T_, D_ = x_ref.shape
    S_ = mem_ref.shape[1]
    scale = 1.0 / math.sqrt(D_HEAD)

    # 2-D activations throughout; attention biases are additive and pre-tiled
    # over heads in the wrapper (shape (H*B, T, n_keys), head-major ordering).
    x2 = x_ref[...].reshape(B_ * T_, D_)
    mem2 = mem_ref[...].reshape(B_ * S_, D_)
    src_bias = src_bias_ref[...]          # (H*B, T, S)
    dst_bias = dst_bias_ref[...]          # (H*B, T, T)

    def layer_norm(z, g, b):
        mu = jnp.mean(z, axis=-1, keepdims=True)
        var = jnp.mean((z - mu) ** 2, axis=-1, keepdims=True)
        return (z - mu) * jax.lax.rsqrt(var + LN_EPS) * g + b

    def split_heads(z3, col0):
        # z3: (B, n_tok, n_cols) -> (H*B, n_tok, D_HEAD), head-major batch order.
        return jnp.concatenate(
            [z3[:, :, col0 + h * D_HEAD: col0 + (h + 1) * D_HEAD]
             for h in range(N_HEADS)], axis=0)

    def attention(qh, kh, vh, bias, wo, bo):
        # qh/kh/vh: (H*B, n_q/n_k, D_HEAD); bias: (H*B, n_q, n_k) additive.
        s = jnp.einsum('btd,bsd->bts', qh, kh,
                       preferred_element_type=jnp.float32) * scale + bias
        s = s - jnp.max(s, axis=-1, keepdims=True)
        e = jnp.exp(s)
        p = e * pl.reciprocal(jnp.sum(e, axis=-1, keepdims=True), approx=True)
        ctx = jnp.einsum('bts,bsd->btd', p, vh,
                         preferred_element_type=jnp.float32)   # (H*B, n_q, D_HEAD)
        n_q = ctx.shape[1]
        ctx = jnp.concatenate([ctx[h * B_:(h + 1) * B_] for h in range(N_HEADS)],
                              axis=-1)                          # (B, n_q, D)
        ctx2 = ctx.reshape(B_ * n_q, D_)
        return jnp.dot(ctx2, wo, preferred_element_type=jnp.float32) + bo

    # TODO(synk): nn.Dropout inside SubLayer is eval-mode identity here.
    for l in range(N_LAYERS):
        # Hoist this layer's params into locals (loaded once per unrolled layer).
        ln_g = ln_g_ref[l]
        ln_b = ln_b_ref[l]
        sa_wqkv, sa_bqkv = sa_wqkv_ref[l], sa_bqkv_ref[l]
        sa_wo, sa_bo = sa_wo_ref[l], sa_bo_ref[l]
        ca_wq, ca_bq = ca_wq_ref[l], ca_bq_ref[l]
        ca_wkv, ca_bkv = ca_wkv_ref[l], ca_bkv_ref[l]
        ca_wo, ca_bo = ca_wo_ref[l], ca_bo_ref[l]
        w1, b1 = ffn_w1_ref[l], ffn_b1_ref[l]
        w2, b2 = ffn_w2_ref[l], ffn_b2_ref[l]

        # --- SubLayer #0: masked self-attention  (x + fn(LN(x))) ---
        xn = layer_norm(x2, ln_g[0], ln_b[0])
        qkv = jnp.dot(xn, sa_wqkv, preferred_element_type=jnp.float32) + sa_bqkv
        qkv3 = qkv.reshape(B_, T_, 3 * D_)
        qh = split_heads(qkv3, 0)
        kh = split_heads(qkv3, D_)
        vh = split_heads(qkv3, 2 * D_)
        x2 = x2 + attention(qh, kh, vh, dst_bias, sa_wo, sa_bo)

        # --- SubLayer #1: cross-attention over encoder memory ---
        xn = layer_norm(x2, ln_g[1], ln_b[1])
        q = jnp.dot(xn, ca_wq, preferred_element_type=jnp.float32) + ca_bq
        kv = jnp.dot(mem2, ca_wkv, preferred_element_type=jnp.float32) + ca_bkv
        q3 = q.reshape(B_, T_, D_)
        kv3 = kv.reshape(B_, S_, 2 * D_)
        qh = split_heads(q3, 0)
        kh = split_heads(kv3, 0)
        vh = split_heads(kv3, D_)
        x2 = x2 + attention(qh, kh, vh, src_bias, ca_wo, ca_bo)

        # --- SubLayer #2: position-wise feed-forward ---
        xn = layer_norm(x2, ln_g[2], ln_b[2])
        hmid = jnp.maximum(jnp.dot(xn, w1, preferred_element_type=jnp.float32) + b1, 0.0)
        x2 = x2 + jnp.dot(hmid, w2, preferred_element_type=jnp.float32) + b2

    # final nn.LayerNorm(decode_layer.size)
    out2 = layer_norm(x2, fin_g_ref[...], fin_b_ref[...])
    out_ref[...] = out2.reshape(B_, T_, D_)


@jax.jit
def transformer_decoder(x, memory, src_mask, dst_mask, params):
    # Additive attention biases (0 = attend, -1e9 = masked), pre-tiled over heads
    # so the kernel only does `scores + bias`. Head-major (rows h*B + b) ordering
    # matches the kernel's head-split concatenation.
    src_bias = jnp.tile((src_mask - 1.0) * 1e9, (N_HEADS, 1, 1))   # (H*B, T, S)
    dst_bias = jnp.tile((dst_mask - 1.0) * 1e9, (N_HEADS, 1, 1))   # (H*B, T, T)

    inputs = (x, memory, src_bias, dst_bias,
              params['self_wqkv'], params['self_bqkv'],
              params['self_wo'], params['self_bo'],
              params['cross_wq'], params['cross_bq'],
              params['cross_wkv'], params['cross_bkv'],
              params['cross_wo'], params['cross_bo'],
              params['ffn_w1'], params['ffn_b1'],
              params['ffn_w2'], params['ffn_b2'],
              params['ln_g'], params['ln_b'],
              params['fin_g'], params['fin_b'])
    vmem = pl.BlockSpec(memory_space=pltpu.MemorySpace.VMEM)
    return pl.pallas_call(
        decoder_kernel,
        out_shape=jax.ShapeDtypeStruct(x.shape, jnp.float32),
        in_specs=[vmem] * len(inputs),
        out_specs=vmem,
    )(*inputs)


# --------------------------- deterministic params ---------------------------

def init_params(key):
    ks = jax.random.split(key, 14)
    sc = 0.02

    def nrm(k, shape):
        return sc * jax.random.normal(k, shape, jnp.float32)

    return dict(
        # fused [Wq | Wk | Wv] for self-attention, fused [Wk | Wv] for cross-attn
        self_wqkv=nrm(ks[0], (N_LAYERS, D_MODEL, 3 * D_MODEL)),
        self_bqkv=nrm(ks[1], (N_LAYERS, 1, 3 * D_MODEL)),
        self_wo=nrm(ks[2], (N_LAYERS, D_MODEL, D_MODEL)),
        self_bo=nrm(ks[3], (N_LAYERS, 1, D_MODEL)),
        cross_wq=nrm(ks[4], (N_LAYERS, D_MODEL, D_MODEL)),
        cross_bq=nrm(ks[5], (N_LAYERS, 1, D_MODEL)),
        cross_wkv=nrm(ks[6], (N_LAYERS, D_MODEL, 2 * D_MODEL)),
        cross_bkv=nrm(ks[7], (N_LAYERS, 1, 2 * D_MODEL)),
        cross_wo=nrm(ks[8], (N_LAYERS, D_MODEL, D_MODEL)),
        cross_bo=nrm(ks[9], (N_LAYERS, 1, D_MODEL)),
        ffn_w1=nrm(ks[10], (N_LAYERS, D_MODEL, D_FF)),
        ffn_b1=nrm(ks[11], (N_LAYERS, 1, D_FF)),
        ffn_w2=nrm(ks[12], (N_LAYERS, D_FF, D_MODEL)),
        ffn_b2=nrm(ks[13], (N_LAYERS, 1, D_MODEL)),
        # three SubLayer LayerNorms per layer (PyTorch default init)
        ln_g=jnp.ones((N_LAYERS, 3, 1, D_MODEL), jnp.float32),
        ln_b=jnp.zeros((N_LAYERS, 3, 1, D_MODEL), jnp.float32),
        # final nn.LayerNorm(decode_layer.size)
        fin_g=jnp.ones((1, D_MODEL), jnp.float32),
        fin_b=jnp.zeros((1, D_MODEL), jnp.float32),
    )


# -------------------- independent pure-JAX reference ------------------------
# Deliberately written in a different style (per-head loop, jnp.where masked fill,
# jax.nn.softmax, 3-D linears) so it does NOT share code with the kernel.

def reference_decoder(x, memory, src_mask, dst_mask, p):
    D = D_MODEL

    def linear(z, w, b):
        return jnp.einsum('btd,df->btf', z, w) + b

    def layer_norm(z, g, b):
        mu = z.mean(-1, keepdims=True)
        var = ((z - mu) ** 2).mean(-1, keepdims=True)
        return (z - mu) / jnp.sqrt(var + LN_EPS) * g + b

    def mha(q_in, kv_in, wq, bq, wk, bk, wv, bv, wo, bo, mask):
        q = linear(q_in, wq, bq)
        k = linear(kv_in, wk, bk)
        v = linear(kv_in, wv, bv)
        heads = []
        for h in range(N_HEADS):
            sl = slice(h * D_HEAD, (h + 1) * D_HEAD)
            s = jnp.einsum('btd,bsd->bts', q[..., sl], k[..., sl]) / math.sqrt(D_HEAD)
            s = jnp.where(mask > 0, s, -1e9)
            a = jax.nn.softmax(s, axis=-1)
            heads.append(jnp.einsum('bts,bsd->btd', a, v[..., sl]))
        return linear(jnp.concatenate(heads, axis=-1), wo, bo)

    for l in range(N_LAYERS):
        wqkv, bqkv = p['self_wqkv'][l], p['self_bqkv'][l]
        wq, wk, wv = wqkv[:, :D], wqkv[:, D:2 * D], wqkv[:, 2 * D:]
        bq, bk, bv = bqkv[:, :D], bqkv[:, D:2 * D], bqkv[:, 2 * D:]
        xn = layer_norm(x, p['ln_g'][l, 0], p['ln_b'][l, 0])
        x = x + mha(xn, xn, wq, bq, wk, bk, wv, bv,
                    p['self_wo'][l], p['self_bo'][l], dst_mask)

        wkv, bkv = p['cross_wkv'][l], p['cross_bkv'][l]
        wk_c, wv_c = wkv[:, :D], wkv[:, D:]
        bk_c, bv_c = bkv[:, :D], bkv[:, D:]
        xn = layer_norm(x, p['ln_g'][l, 1], p['ln_b'][l, 1])
        x = x + mha(xn, memory, p['cross_wq'][l], p['cross_bq'][l],
                    wk_c, bk_c, wv_c, bv_c,
                    p['cross_wo'][l], p['cross_bo'][l], src_mask)

        xn = layer_norm(x, p['ln_g'][l, 2], p['ln_b'][l, 2])
        hmid = jax.nn.relu(linear(xn, p['ffn_w1'][l], p['ffn_b1'][l]))
        x = x + linear(hmid, p['ffn_w2'][l], p['ffn_b2'][l])

    return layer_norm(x, p['fin_g'], p['fin_b'])


# ----------------------------------- main -----------------------------------

if __name__ == "__main__":
    key = jax.random.PRNGKey(0)
    k_x, k_m, k_p = jax.random.split(key, 3)

    x = jax.random.normal(k_x, (B, T, D_MODEL), jnp.float32)
    memory = jax.random.normal(k_m, (B, S, D_MODEL), jnp.float32)

    # causal (subsequent) mask for the target, broadcast to (B, T, T)
    causal = jnp.tril(jnp.ones((T, T), jnp.float32))
    dst_mask = jnp.broadcast_to(causal, (B, T, T))

    # source padding mask: batch 1 has its last two source positions padded
    src_valid = jnp.ones((B, S), jnp.float32).at[1, S - 2:].set(0.0)
    src_mask = jnp.broadcast_to(src_valid[:, None, :], (B, T, S))

    params = init_params(k_p)

    out = transformer_decoder(x, memory, src_mask, dst_mask, params)
    out = jax.block_until_ready(out)

    ref = reference_decoder(x, memory, src_mask, dst_mask, params)
    assert out.shape == (B, T, D_MODEL)
    assert jnp.allclose(out, ref, atol=2e-2, rtol=2e-2), "mismatch vs independent JAX reference"

    print("KERNEL_OK")
</pallas_src>

<mosaic_0001>
module attributes {stable_mosaic.version = 11 : i64} {
  func.func @decoder_kernel(%arg0: memref<2x8x128xf32, #tpu.memory_space<vmem>>, %arg1: memref<2x8x128xf32, #tpu.memory_space<vmem>>, %arg2: memref<8x8x8xf32, #tpu.memory_space<vmem>>, %arg3: memref<8x8x8xf32, #tpu.memory_space<vmem>>, %arg4: memref<2x128x384xf32, #tpu.memory_space<vmem>>, %arg5: memref<2x1x384xf32, #tpu.memory_space<vmem>>, %arg6: memref<2x128x128xf32, #tpu.memory_space<vmem>>, %arg7: memref<2x1x128xf32, #tpu.memory_space<vmem>>, %arg8: memref<2x128x128xf32, #tpu.memory_space<vmem>>, %arg9: memref<2x1x128xf32, #tpu.memory_space<vmem>>, %arg10: memref<2x128x256xf32, #tpu.memory_space<vmem>>, %arg11: memref<2x1x256xf32, #tpu.memory_space<vmem>>, %arg12: memref<2x128x128xf32, #tpu.memory_space<vmem>>, %arg13: memref<2x1x128xf32, #tpu.memory_space<vmem>>, %arg14: memref<2x128x256xf32, #tpu.memory_space<vmem>>, %arg15: memref<2x1x256xf32, #tpu.memory_space<vmem>>, %arg16: memref<2x256x128xf32, #tpu.memory_space<vmem>>, %arg17: memref<2x1x128xf32, #tpu.memory_space<vmem>>, %arg18: memref<2x3x1x128xf32, #tpu.memory_space<vmem>>, %arg19: memref<2x3x1x128xf32, #tpu.memory_space<vmem>>, %arg20: memref<1x128xf32, #tpu.memory_space<vmem>>, %arg21: memref<1x128xf32, #tpu.memory_space<vmem>>, %arg22: memref<2x8x128xf32, #tpu.memory_space<vmem>>) attributes {dimension_semantics = [], scalar_prefetch = 0 : i64, scratch_operands = 0 : i64, tpu.core_type = #tpu.core_type<tc>} {
    %c0 = arith.constant 0 : index
    %c0_0 = arith.constant 0 : index
    %c0_1 = arith.constant 0 : index
    %0 = vector.load %arg0[%c0, %c0_0, %c0_1] : memref<2x8x128xf32, #tpu.memory_space<vmem>>, vector<2x8x128xf32>
    %1 = vector.shape_cast %0 : vector<2x8x128xf32> to vector<16x128xf32>
    %c0_2 = arith.constant 0 : index
    %c0_3 = arith.constant 0 : index
    %c0_4 = arith.constant 0 : index
    %2 = vector.load %arg1[%c0_2, %c0_3, %c0_4] : memref<2x8x128xf32, #tpu.memory_space<vmem>>, vector<2x8x128xf32>
    %3 = vector.shape_cast %2 : vector<2x8x128xf32> to vector<16x128xf32>
    %c0_5 = arith.constant 0 : index
    %c0_6 = arith.constant 0 : index
    %c0_7 = arith.constant 0 : index
    %4 = vector.load %arg2[%c0_5, %c0_6, %c0_7] : memref<8x8x8xf32, #tpu.memory_space<vmem>>, vector<8x8x8xf32>
    %c0_8 = arith.constant 0 : index
    %c0_9 = arith.constant 0 : index
    %c0_10 = arith.constant 0 : index
    %5 = vector.load %arg3[%c0_8, %c0_9, %c0_10] : memref<8x8x8xf32, #tpu.memory_space<vmem>>, vector<8x8x8xf32>
    %c0_11 = arith.constant 0 : index
    %c0_12 = arith.constant 0 : index
    %c0_13 = arith.constant 0 : index
    %c0_14 = arith.constant 0 : index
    %6 = vector.load %arg18[%c0_11, %c0_12, %c0_13, %c0_14] : memref<2x3x1x128xf32, #tpu.memory_space<vmem>>, vector<1x3x1x128xf32>
    %7 = vector.shape_cast %6 : vector<1x3x1x128xf32> to vector<3x1x128xf32>
    %c0_15 = arith.constant 0 : index
    %c0_16 = arith.constant 0 : index
    %c0_17 = arith.constant 0 : index
    %c0_18 = arith.constant 0 : index
    %8 = vector.load %arg19[%c0_15, %c0_16, %c0_17, %c0_18] : memref<2x3x1x128xf32, #tpu.memory_space<vmem>>, vector<1x3x1x128xf32>
    %9 = vector.shape_cast %8 : vector<1x3x1x128xf32> to vector<3x1x128xf32>
    %c0_19 = arith.constant 0 : index
    %c0_20 = arith.constant 0 : index
    %c0_21 = arith.constant 0 : index
    %10 = vector.load %arg4[%c0_19, %c0_20, %c0_21] : memref<2x128x384xf32, #tpu.memory_space<vmem>>, vector<1x128x384xf32>
    %11 = vector.shape_cast %10 : vector<1x128x384xf32> to vector<128x384xf32>
    %c0_22 = arith.constant 0 : index
    %c0_23 = arith.constant 0 : index
    %c0_24 = arith.constant 0 : index
    %12 = vector.load %arg5[%c0_22, %c0_23, %c0_24] : memref<2x1x384xf32, #tpu.memory_space<vmem>>, vector<1x1x384xf32>
    %13 = vector.shape_cast %12 : vector<1x1x384xf32> to vector<1x384xf32>
    %c0_25 = arith.constant 0 : index
    %c0_26 = arith.constant 0 : index
    %c0_27 = arith.constant 0 : index
    %14 = vector.load %arg6[%c0_25, %c0_26, %c0_27] : memref<2x128x128xf32, #tpu.memory_space<vmem>>, vector<1x128x128xf32>
    %15 = vector.shape_cast %14 : vector<1x128x128xf32> to vector<128x128xf32>
    %c0_28 = arith.constant 0 : index
    %c0_29 = arith.constant 0 : index
    %c0_30 = arith.constant 0 : index
    %16 = vector.load %arg7[%c0_28, %c0_29, %c0_30] : memref<2x1x128xf32, #tpu.memory_space<vmem>>, vector<1x1x128xf32>
    %17 = vector.shape_cast %16 : vector<1x1x128xf32> to vector<1x128xf32>
    %c0_31 = arith.constant 0 : index
    %c0_32 = arith.constant 0 : index
    %c0_33 = arith.constant 0 : index
    %18 = vector.load %arg8[%c0_31, %c0_32, %c0_33] : memref<2x128x128xf32, #tpu.memory_space<vmem>>, vector<1x128x128xf32>
    %19 = vector.shape_cast %18 : vector<1x128x128xf32> to vector<128x128xf32>
    %c0_34 = arith.constant 0 : index
    %c0_35 = arith.constant 0 : index
    %c0_36 = arith.constant 0 : index
    %20 = vector.load %arg9[%c0_34, %c0_35, %c0_36] : memref<2x1x128xf32, #tpu.memory_space<vmem>>, vector<1x1x128xf32>
    %21 = vector.shape_cast %20 : vector<1x1x128xf32> to vector<1x128xf32>
    %c0_37 = arith.constant 0 : index
    %c0_38 = arith.constant 0 : index
    %c0_39 = arith.constant 0 : index
    %22 = vector.load %arg10[%c0_37, %c0_38, %c0_39] : memref<2x128x256xf32, #tpu.memory_space<vmem>>, vector<1x128x256xf32>
    %23 = vector.shape_cast %22 : vector<1x128x256xf32> to vector<128x256xf32>
    %c0_40 = arith.constant 0 : index
    %c0_41 = arith.constant 0 : index
    %c0_42 = arith.constant 0 : index
    %24 = vector.load %arg11[%c0_40, %c0_41, %c0_42] : memref<2x1x256xf32, #tpu.memory_space<vmem>>, vector<1x1x256xf32>
    %25 = vector.shape_cast %24 : vector<1x1x256xf32> to vector<1x256xf32>
    %c0_43 = arith.constant 0 : index
    %c0_44 = arith.constant 0 : index
    %c0_45 = arith.constant 0 : index
    %26 = vector.load %arg12[%c0_43, %c0_44, %c0_45] : memref<2x128x128xf32, #tpu.memory_space<vmem>>, vector<1x128x128xf32>
    %27 = vector.shape_cast %26 : vector<1x128x128xf32> to vector<128x128xf32>
    %c0_46 = arith.constant 0 : index
    %c0_47 = arith.constant 0 : index
    %c0_48 = arith.constant 0 : index
    %28 = vector.load %arg13[%c0_46, %c0_47, %c0_48] : memref<2x1x128xf32, #tpu.memory_space<vmem>>, vector<1x1x128xf32>
    %29 = vector.shape_cast %28 : vector<1x1x128xf32> to vector<1x128xf32>
    %c0_49 = arith.constant 0 : index
    %c0_50 = arith.constant 0 : index
    %c0_51 = arith.constant 0 : index
    %30 = vector.load %arg14[%c0_49, %c0_50, %c0_51] : memref<2x128x256xf32, #tpu.memory_space<vmem>>, vector<1x128x256xf32>
    %31 = vector.shape_cast %30 : vector<1x128x256xf32> to vector<128x256xf32>
    %c0_52 = arith.constant 0 : index
    %c0_53 = arith.constant 0 : index
    %c0_54 = arith.constant 0 : index
    %32 = vector.load %arg15[%c0_52, %c0_53, %c0_54] : memref<2x1x256xf32, #tpu.memory_space<vmem>>, vector<1x1x256xf32>
    %33 = vector.shape_cast %32 : vector<1x1x256xf32> to vector<1x256xf32>
    %c0_55 = arith.constant 0 : index
    %c0_56 = arith.constant 0 : index
    %c0_57 = arith.constant 0 : index
    %34 = vector.load %arg16[%c0_55, %c0_56, %c0_57] : memref<2x256x128xf32, #tpu.memory_space<vmem>>, vector<1x256x128xf32>
    %35 = vector.shape_cast %34 : vector<1x256x128xf32> to vector<256x128xf32>
    %c0_58 = arith.constant 0 : index
    %c0_59 = arith.constant 0 : index
    %c0_60 = arith.constant 0 : index
    %36 = vector.load %arg17[%c0_58, %c0_59, %c0_60] : memref<2x1x128xf32, #tpu.memory_space<vmem>>, vector<1x1x128xf32>
    %37 = vector.shape_cast %36 : vector<1x1x128xf32> to vector<1x128xf32>
    %38 = vector.extract_strided_slice %7 {offsets = [0, 0, 0], sizes = [1, 1, 128], strides = [1, 1, 1]} : vector<3x1x128xf32> to vector<1x1x128xf32>
    %39 = vector.shape_cast %38 : vector<1x1x128xf32> to vector<1x128xf32>
    %40 = vector.extract_strided_slice %9 {offsets = [0, 0, 0], sizes = [1, 1, 128], strides = [1, 1, 1]} : vector<3x1x128xf32> to vector<1x1x128xf32>
    %41 = vector.shape_cast %40 : vector<1x1x128xf32> to vector<1x128xf32>
    %cst = arith.constant dense<0.000000e+00> : vector<16xf32>
    %42 = vector.multi_reduction <add>, %1, %cst [1] : vector<16x128xf32> to vector<16xf32>
    %43 = vector.shape_cast %42 : vector<16xf32> to vector<16x1xf32>
    %cst_61 = arith.constant 1.280000e+02 : f32
    %44 = vector.broadcast %cst_61 : f32 to vector<16x1xf32>
    %45 = arith.divf %43, %44 : vector<16x1xf32>
    %46 = vector.broadcast %45 : vector<16x1xf32> to vector<16x128xf32>
    %47 = arith.subf %1, %46 : vector<16x128xf32>
    %48 = arith.mulf %47, %47 : vector<16x128xf32>
    %cst_62 = arith.constant dense<0.000000e+00> : vector<16xf32>
    %49 = vector.multi_reduction <add>, %48, %cst_62 [1] : vector<16x128xf32> to vector<16xf32>
    %50 = vector.shape_cast %49 : vector<16xf32> to vector<16x1xf32>
    %cst_63 = arith.constant 1.280000e+02 : f32
    %51 = vector.broadcast %cst_63 : f32 to vector<16x1xf32>
    %52 = arith.divf %50, %51 : vector<16x1xf32>
    %53 = vector.broadcast %45 : vector<16x1xf32> to vector<16x128xf32>
    %54 = arith.subf %1, %53 : vector<16x128xf32>
    %cst_64 = arith.constant 9.99999974E-6 : f32
    %55 = vector.broadcast %cst_64 : f32 to vector<16x1xf32>
    %56 = arith.addf %52, %55 : vector<16x1xf32>
    %57 = math.rsqrt %56 : vector<16x1xf32>
    %58 = vector.broadcast %57 : vector<16x1xf32> to vector<16x128xf32>
    %59 = arith.mulf %54, %58 : vector<16x128xf32>
    %60 = vector.broadcast %39 : vector<1x128xf32> to vector<16x128xf32>
    %61 = arith.mulf %59, %60 : vector<16x128xf32>
    %62 = vector.broadcast %41 : vector<1x128xf32> to vector<16x128xf32>
    %63 = arith.addf %61, %62 : vector<16x128xf32>
    %cst_65 = arith.constant dense<0.000000e+00> : vector<16x384xf32>
    %64 = tpu.matmul %63, %11, %cst_65 {dimension_numbers = #tpu.dot_dimension_numbers<[1], [0], [0], [1], [0, 0, 1, 1], [], []>} : vector<16x128xf32>, vector<128x384xf32>, vector<16x384xf32> -> vector<16x384xf32>
    %65 = vector.broadcast %13 : vector<1x384xf32> to vector<16x384xf32>
    %66 = arith.addf %64, %65 : vector<16x384xf32>
    %67 = vector.shape_cast %66 : vector<16x384xf32> to vector<2x8x384xf32>
    %68 = vector.extract_strided_slice %67 {offsets = [0, 0, 0], sizes = [2, 8, 32], strides = [1, 1, 1]} : vector<2x8x384xf32> to vector<2x8x32xf32>
    %69 = vector.extract_strided_slice %67 {offsets = [0, 0, 32], sizes = [2, 8, 32], strides = [1, 1, 1]} : vector<2x8x384xf32> to vector<2x8x32xf32>
    %70 = vector.extract_strided_slice %67 {offsets = [0, 0, 64], sizes = [2, 8, 32], strides = [1, 1, 1]} : vector<2x8x384xf32> to vector<2x8x32xf32>
    %71 = vector.extract_strided_slice %67 {offsets = [0, 0, 96], sizes = [2, 8, 32], strides = [1, 1, 1]} : vector<2x8x384xf32> to vector<2x8x32xf32>
    %72 = tpu.concatenate %68, %69, %70, %71 in 0 : vector<2x8x32xf32>, vector<2x8x32xf32>, vector<2x8x32xf32>, vector<2x8x32xf32> -> vector<8x8x32xf32>
    %73 = vector.extract_strided_slice %67 {offsets = [0, 0, 128], sizes = [2, 8, 32], strides = [1, 1, 1]} : vector<2x8x384xf32> to vector<2x8x32xf32>
    %74 = vector.extract_strided_slice %67 {offsets = [0, 0, 160], sizes = [2, 8, 32], strides = [1, 1, 1]} : vector<2x8x384xf32> to vector<2x8x32xf32>
    %75 = vector.extract_strided_slice %67 {offsets = [0, 0, 192], sizes = [2, 8, 32], strides = [1, 1, 1]} : vector<2x8x384xf32> to vector<2x8x32xf32>
    %76 = vector.extract_strided_slice %67 {offsets = [0, 0, 224], sizes = [2, 8, 32], strides = [1, 1, 1]} : vector<2x8x384xf32> to vector<2x8x32xf32>
    %77 = tpu.concatenate %73, %74, %75, %76 in 0 : vector<2x8x32xf32>, vector<2x8x32xf32>, vector<2x8x32xf32>, vector<2x8x32xf32> -> vector<8x8x32xf32>
    %78 = vector.extract_strided_slice %67 {offsets = [0, 0, 256], sizes = [2, 8, 32], strides = [1, 1, 1]} : vector<2x8x384xf32> to vector<2x8x32xf32>
    %79 = vector.extract_strided_slice %67 {offsets = [0, 0, 288], sizes = [2, 8, 32], strides = [1, 1, 1]} : vector<2x8x384xf32> to vector<2x8x32xf32>
    %80 = vector.extract_strided_slice %67 {offsets = [0, 0, 320], sizes = [2, 8, 32], strides = [1, 1, 1]} : vector<2x8x384xf32> to vector<2x8x32xf32>
    %81 = vector.extract_strided_slice %67 {offsets = [0, 0, 352], sizes = [2, 8, 32], strides = [1, 1, 1]} : vector<2x8x384xf32> to vector<2x8x32xf32>
    %82 = tpu.concatenate %78, %79, %80, %81 in 0 : vector<2x8x32xf32>, vector<2x8x32xf32>, vector<2x8x32xf32>, vector<2x8x32xf32> -> vector<8x8x32xf32>
    "tpu.trace_start"() <{level = 10 : i32, message = "btd,bsd->bts"}> : () -> ()
    %cst_66 = arith.constant dense<0.000000e+00> : vector<8x8x8xf32>
    %83 = tpu.matmul %72, %77, %cst_66 {dimension_numbers = #tpu.dot_dimension_numbers<[2], [2], [1], [1], [0, 0, 0, 1, 1, 1], [0], [0]>} : vector<8x8x32xf32>, vector<8x8x32xf32>, vector<8x8x8xf32> -> vector<8x8x8xf32>
    "tpu.trace_stop"() : () -> ()
    %cst_67 = arith.constant 0.176776692 : f32
    %84 = vector.broadcast %cst_67 : f32 to vector<8x8x8xf32>
    %85 = arith.mulf %83, %84 : vector<8x8x8xf32>
    %86 = arith.addf %85, %5 : vector<8x8x8xf32>
    %cst_68 = arith.constant dense<0xFF800000> : vector<8x8xf32>
    %87 = vector.multi_reduction <maximumf>, %86, %cst_68 [2] : vector<8x8x8xf32> to vector<8x8xf32>
    %88 = vector.shape_cast %87 : vector<8x8xf32> to vector<8x8x1xf32>
    %89 = vector.broadcast %88 : vector<8x8x1xf32> to vector<8x8x8xf32>
    %90 = arith.subf %86, %89 : vector<8x8x8xf32>
    %91 = math.exp %90 : vector<8x8x8xf32>
    %cst_69 = arith.constant dense<0.000000e+00> : vector<8x8xf32>
    %92 = vector.multi_reduction <add>, %91, %cst_69 [2] : vector<8x8x8xf32> to vector<8x8xf32>
    %93 = vector.shape_cast %92 : vector<8x8xf32> to vector<8x8x1xf32>
    %94 = tpu.reciprocal %93 {approx = true} : vector<8x8x1xf32> -> vector<8x8x1xf32>
    %95 = vector.broadcast %94 : vector<8x8x1xf32> to vector<8x8x8xf32>
    %96 = arith.mulf %91, %95 : vector<8x8x8xf32>
    "tpu.trace_start"() <{level = 10 : i32, message = "bts,bsd->btd"}> : () -> ()
    %cst_70 = arith.constant dense<0.000000e+00> : vector<8x8x32xf32>
    %97 = tpu.matmul %96, %82, %cst_70 {dimension_numbers = #tpu.dot_dimension_numbers<[2], [1], [1], [2], [0, 0, 0, 1, 1, 2], [0], [0]>} : vector<8x8x8xf32>, vector<8x8x32xf32>, vector<8x8x32xf32> -> vector<8x8x32xf32>
    "tpu.trace_stop"() : () -> ()
    %98 = vector.extract_strided_slice %97 {offsets = [0, 0, 0], sizes = [2, 8, 32], strides = [1, 1, 1]} : vector<8x8x32xf32> to vector<2x8x32xf32>
    %99 = vector.extract_strided_slice %97 {offsets = [2, 0, 0], sizes = [2, 8, 32], strides = [1, 1, 1]} : vector<8x8x32xf32> to vector<2x8x32xf32>
    %100 = vector.extract_strided_slice %97 {offsets = [4, 0, 0], sizes = [2, 8, 32], strides = [1, 1, 1]} : vector<8x8x32xf32> to vector<2x8x32xf32>
    %101 = vector.extract_strided_slice %97 {offsets = [6, 0, 0], sizes = [2, 8, 32], strides = [1, 1, 1]} : vector<8x8x32xf32> to vector<2x8x32xf32>
    %102 = tpu.concatenate %98, %99, %100, %101 in 2 : vector<2x8x32xf32>, vector<2x8x32xf32>, vector<2x8x32xf32>, vector<2x8x32xf32> -> vector<2x8x128xf32>
    %103 = vector.shape_cast %102 : vector<2x8x128xf32> to vector<16x128xf32>
    %cst_71 = arith.constant dense<0.000000e+00> : vector<16x128xf32>
    %104 = tpu.matmul %103, %15, %cst_71 {dimension_numbers = #tpu.dot_dimension_numbers<[1], [0], [0], [1], [0, 0, 1, 1], [], []>} : vector<16x128xf32>, vector<128x128xf32>, vector<16x128xf32> -> vector<16x128xf32>
    %105 = vector.broadcast %17 : vector<1x128xf32> to vector<16x128xf32>
    %106 = arith.addf %104, %105 : vector<16x128xf32>
    %107 = arith.addf %1, %106 : vector<16x128xf32>
    %108 = vector.extract_strided_slice %7 {offsets = [1, 0, 0], sizes = [1, 1, 128], strides = [1, 1, 1]} : vector<3x1x128xf32> to vector<1x1x128xf32>
    %109 = vector.shape_cast %108 : vector<1x1x128xf32> to vector<1x128xf32>
    %110 = vector.extract_strided_slice %9 {offsets = [1, 0, 0], sizes = [1, 1, 128], strides = [1, 1, 1]} : vector<3x1x128xf32> to vector<1x1x128xf32>
    %111 = vector.shape_cast %110 : vector<1x1x128xf32> to vector<1x128xf32>
    %cst_72 = arith.constant dense<0.000000e+00> : vector<16xf32>
    %112 = vector.multi_reduction <add>, %107, %cst_72 [1] : vector<16x128xf32> to vector<16xf32>
    %113 = vector.shape_cast %112 : vector<16xf32> to vector<16x1xf32>
    %cst_73 = arith.constant 1.280000e+02 : f32
    %114 = vector.broadcast %cst_73 : f32 to vector<16x1xf32>
    %115 = arith.divf %113, %114 : vector<16x1xf32>
    %116 = vector.broadcast %115 : vector<16x1xf32> to vector<16x128xf32>
    %117 = arith.subf %107, %116 : vector<16x128xf32>
    %118 = arith.mulf %117, %117 : vector<16x128xf32>
    %cst_74 = arith.constant dense<0.000000e+00> : vector<16xf32>
    %119 = vector.multi_reduction <add>, %118, %cst_74 [1] : vector<16x128xf32> to vector<16xf32>
    %120 = vector.shape_cast %119 : vector<16xf32> to vector<16x1xf32>
    %cst_75 = arith.constant 1.280000e+02 : f32
    %121 = vector.broadcast %cst_75 : f32 to vector<16x1xf32>
    %122 = arith.divf %120, %121 : vector<16x1xf32>
    %123 = vector.broadcast %115 : vector<16x1xf32> to vector<16x128xf32>
    %124 = arith.subf %107, %123 : vector<16x128xf32>
    %cst_76 = arith.constant 9.99999974E-6 : f32
    %125 = vector.broadcast %cst_76 : f32 to vector<16x1xf32>
    %126 = arith.addf %122, %125 : vector<16x1xf32>
    %127 = math.rsqrt %126 : vector<16x1xf32>
    %128 = vector.broadcast %127 : vector<16x1xf32> to vector<16x128xf32>
    %129 = arith.mulf %124, %128 : vector<16x128xf32>
    %130 = vector.broadcast %109 : vector<1x128xf32> to vector<16x128xf32>
    %131 = arith.mulf %129, %130 : vector<16x128xf32>
    %132 = vector.broadcast %111 : vector<1x128xf32> to vector<16x128xf32>
    %133 = arith.addf %131, %132 : vector<16x128xf32>
    %cst_77 = arith.constant dense<0.000000e+00> : vector<16x128xf32>
    %134 = tpu.matmul %133, %19, %cst_77 {dimension_numbers = #tpu.dot_dimension_numbers<[1], [0], [0], [1], [0, 0, 1, 1], [], []>} : vector<16x128xf32>, vector<128x128xf32>, vector<16x128xf32> -> vector<16x128xf32>
    %135 = vector.broadcast %21 : vector<1x128xf32> to vector<16x128xf32>
    %136 = arith.addf %134, %135 : vector<16x128xf32>
    %cst_78 = arith.constant dense<0.000000e+00> : vector<16x256xf32>
    %137 = tpu.matmul %3, %23, %cst_78 {dimension_numbers = #tpu.dot_dimension_numbers<[1], [0], [0], [1], [0, 0, 1, 1], [], []>} : vector<16x128xf32>, vector<128x256xf32>, vector<16x256xf32> -> vector<16x256xf32>
    %138 = vector.broadcast %25 : vector<1x256xf32> to vector<16x256xf32>
    %139 = arith.addf %137, %138 : vector<16x256xf32>
    %140 = vector.shape_cast %136 : vector<16x128xf32> to vector<2x8x128xf32>
    %141 = vector.shape_cast %139 : vector<16x256xf32> to vector<2x8x256xf32>
    %142 = vector.extract_strided_slice %140 {offsets = [0, 0, 0], sizes = [2, 8, 32], strides = [1, 1, 1]} : vector<2x8x128xf32> to vector<2x8x32xf32>
    %143 = vector.extract_strided_slice %140 {offsets = [0, 0, 32], sizes = [2, 8, 32], strides = [1, 1, 1]} : vector<2x8x128xf32> to vector<2x8x32xf32>
    %144 = vector.extract_strided_slice %140 {offsets = [0, 0, 64], sizes = [2, 8, 32], strides = [1, 1, 1]} : vector<2x8x128xf32> to vector<2x8x32xf32>
    %145 = vector.extract_strided_slice %140 {offsets = [0, 0, 96], sizes = [2, 8, 32], strides = [1, 1, 1]} : vector<2x8x128xf32> to vector<2x8x32xf32>
    %146 = tpu.concatenate %142, %143, %144, %145 in 0 : vector<2x8x32xf32>, vector<2x8x32xf32>, vector<2x8x32xf32>, vector<2x8x32xf32> -> vector<8x8x32xf32>
    %147 = vector.extract_strided_slice %141 {offsets = [0, 0, 0], sizes = [2, 8, 32], strides = [1, 1, 1]} : vector<2x8x256xf32> to vector<2x8x32xf32>
    %148 = vector.extract_strided_slice %141 {offsets = [0, 0, 32], sizes = [2, 8, 32], strides = [1, 1, 1]} : vector<2x8x256xf32> to vector<2x8x32xf32>
    %149 = vector.extract_strided_slice %141 {offsets = [0, 0, 64], sizes = [2, 8, 32], strides = [1, 1, 1]} : vector<2x8x256xf32> to vector<2x8x32xf32>
    %150 = vector.extract_strided_slice %141 {offsets = [0, 0, 96], sizes = [2, 8, 32], strides = [1, 1, 1]} : vector<2x8x256xf32> to vector<2x8x32xf32>
    %151 = tpu.concatenate %147, %148, %149, %150 in 0 : vector<2x8x32xf32>, vector<2x8x32xf32>, vector<2x8x32xf32>, vector<2x8x32xf32> -> vector<8x8x32xf32>
    %152 = vector.extract_strided_slice %141 {offsets = [0, 0, 128], sizes = [2, 8, 32], strides = [1, 1, 1]} : vector<2x8x256xf32> to vector<2x8x32xf32>
    %153 = vector.extract_strided_slice %141 {offsets = [0, 0, 160], sizes = [2, 8, 32], strides = [1, 1, 1]} : vector<2x8x256xf32> to vector<2x8x32xf32>
    %154 = vector.extract_strided_slice %141 {offsets = [0, 0, 192], sizes = [2, 8, 32], strides = [1, 1, 1]} : vector<2x8x256xf32> to vector<2x8x32xf32>
    %155 = vector.extract_strided_slice %141 {offsets = [0, 0, 224], sizes = [2, 8, 32], strides = [1, 1, 1]} : vector<2x8x256xf32> to vector<2x8x32xf32>
    %156 = tpu.concatenate %152, %153, %154, %155 in 0 : vector<2x8x32xf32>, vector<2x8x32xf32>, vector<2x8x32xf32>, vector<2x8x32xf32> -> vector<8x8x32xf32>
    "tpu.trace_start"() <{level = 10 : i32, message = "btd,bsd->bts"}> : () -> ()
    %cst_79 = arith.constant dense<0.000000e+00> : vector<8x8x8xf32>
    %157 = tpu.matmul %146, %151, %cst_79 {dimension_numbers = #tpu.dot_dimension_numbers<[2], [2], [1], [1], [0, 0, 0, 1, 1, 1], [0], [0]>} : vector<8x8x32xf32>, vector<8x8x32xf32>, vector<8x8x8xf32> -> vector<8x8x8xf32>
    "tpu.trace_stop"() : () -> ()
    %cst_80 = arith.constant 0.176776692 : f32
    %158 = vector.broadcast %cst_80 : f32 to vector<8x8x8xf32>
    %159 = arith.mulf %157, %158 : vector<8x8x8xf32>
    %160 = arith.addf %159, %4 : vector<8x8x8xf32>
    %cst_81 = arith.constant dense<0xFF800000> : vector<8x8xf32>
    %161 = vector.multi_reduction <maximumf>, %160, %cst_81 [2] : vector<8x8x8xf32> to vector<8x8xf32>
    %162 = vector.shape_cast %161 : vector<8x8xf32> to vector<8x8x1xf32>
    %163 = vector.broadcast %162 : vector<8x8x1xf32> to vector<8x8x8xf32>
    %164 = arith.subf %160, %163 : vector<8x8x8xf32>
    %165 = math.exp %164 : vector<8x8x8xf32>
    %cst_82 = arith.constant dense<0.000000e+00> : vector<8x8xf32>
    %166 = vector.multi_reduction <add>, %165, %cst_82 [2] : vector<8x8x8xf32> to vector<8x8xf32>
    %167 = vector.shape_cast %166 : vector<8x8xf32> to vector<8x8x1xf32>
    %168 = tpu.reciprocal %167 {approx = true} : vector<8x8x1xf32> -> vector<8x8x1xf32>
    %169 = vector.broadcast %168 : vector<8x8x1xf32> to vector<8x8x8xf32>
    %170 = arith.mulf %165, %169 : vector<8x8x8xf32>
    "tpu.trace_start"() <{level = 10 : i32, message = "bts,bsd->btd"}> : () -> ()
    %cst_83 = arith.constant dense<0.000000e+00> : vector<8x8x32xf32>
    %171 = tpu.matmul %170, %156, %cst_83 {dimension_numbers = #tpu.dot_dimension_numbers<[2], [1], [1], [2], [0, 0, 0, 1, 1, 2], [0], [0]>} : vector<8x8x8xf32>, vector<8x8x32xf32>, vector<8x8x32xf32> -> vector<8x8x32xf32>
    "tpu.trace_stop"() : () -> ()
    %172 = vector.extract_strided_slice %171 {offsets = [0, 0, 0], sizes = [2, 8, 32], strides = [1, 1, 1]} : vector<8x8x32xf32> to vector<2x8x32xf32>
    %173 = vector.extract_strided_slice %171 {offsets = [2, 0, 0], sizes = [2, 8, 32], strides = [1, 1, 1]} : vector<8x8x32xf32> to vector<2x8x32xf32>
    %174 = vector.extract_strided_slice %171 {offsets = [4, 0, 0], sizes = [2, 8, 32], strides = [1, 1, 1]} : vector<8x8x32xf32> to vector<2x8x32xf32>
    %175 = vector.extract_strided_slice %171 {offsets = [6, 0, 0], sizes = [2, 8, 32], strides = [1, 1, 1]} : vector<8x8x32xf32> to vector<2x8x32xf32>
    %176 = tpu.concatenate %172, %173, %174, %175 in 2 : vector<2x8x32xf32>, vector<2x8x32xf32>, vector<2x8x32xf32>, vector<2x8x32xf32> -> vector<2x8x128xf32>
    %177 = vector.shape_cast %176 : vector<2x8x128xf32> to vector<16x128xf32>
    %cst_84 = arith.constant dense<0.000000e+00> : vector<16x128xf32>
    %178 = tpu.matmul %177, %27, %cst_84 {dimension_numbers = #tpu.dot_dimension_numbers<[1], [0], [0], [1], [0, 0, 1, 1], [], []>} : vector<16x128xf32>, vector<128x128xf32>, vector<16x128xf32> -> vector<16x128xf32>
    %179 = vector.broadcast %29 : vector<1x128xf32> to vector<16x128xf32>
    %180 = arith.addf %178, %179 : vector<16x128xf32>
    %181 = arith.addf %107, %180 : vector<16x128xf32>
    %182 = vector.extract_strided_slice %7 {offsets = [2, 0, 0], sizes = [1, 1, 128], strides = [1, 1, 1]} : vector<3x1x128xf32> to vector<1x1x128xf32>
    %183 = vector.shape_cast %182 : vector<1x1x128xf32> to vector<1x128xf32>
    %184 = vector.extract_strided_slice %9 {offsets = [2, 0, 0], sizes = [1, 1, 128], strides = [1, 1, 1]} : vector<3x1x128xf32> to vector<1x1x128xf32>
    %185 = vector.shape_cast %184 : vector<1x1x128xf32> to vector<1x128xf32>
    %cst_85 = arith.constant dense<0.000000e+00> : vector<16xf32>
    %186 = vector.multi_reduction <add>, %181, %cst_85 [1] : vector<16x128xf32> to vector<16xf32>
    %187 = vector.shape_cast %186 : vector<16xf32> to vector<16x1xf32>
    %cst_86 = arith.constant 1.280000e+02 : f32
    %188 = vector.broadcast %cst_86 : f32 to vector<16x1xf32>
    %189 = arith.divf %187, %188 : vector<16x1xf32>
    %190 = vector.broadcast %189 : vector<16x1xf32> to vector<16x128xf32>
    %191 = arith.subf %181, %190 : vector<16x128xf32>
    %192 = arith.mulf %191, %191 : vector<16x128xf32>
    %cst_87 = arith.constant dense<0.000000e+00> : vector<16xf32>
    %193 = vector.multi_reduction <add>, %192, %cst_87 [1] : vector<16x128xf32> to vector<16xf32>
    %194 = vector.shape_cast %193 : vector<16xf32> to vector<16x1xf32>
    %cst_88 = arith.constant 1.280000e+02 : f32
    %195 = vector.broadcast %cst_88 : f32 to vector<16x1xf32>
    %196 = arith.divf %194, %195 : vector<16x1xf32>
    %197 = vector.broadcast %189 : vector<16x1xf32> to vector<16x128xf32>
    %198 = arith.subf %181, %197 : vector<16x128xf32>
    %cst_89 = arith.constant 9.99999974E-6 : f32
    %199 = vector.broadcast %cst_89 : f32 to vector<16x1xf32>
    %200 = arith.addf %196, %199 : vector<16x1xf32>
    %201 = math.rsqrt %200 : vector<16x1xf32>
    %202 = vector.broadcast %201 : vector<16x1xf32> to vector<16x128xf32>
    %203 = arith.mulf %198, %202 : vector<16x128xf32>
    %204 = vector.broadcast %183 : vector<1x128xf32> to vector<16x128xf32>
    %205 = arith.mulf %203, %204 : vector<16x128xf32>
    %206 = vector.broadcast %185 : vector<1x128xf32> to vector<16x128xf32>
    %207 = arith.addf %205, %206 : vector<16x128xf32>
    %cst_90 = arith.constant dense<0.000000e+00> : vector<16x256xf32>
    %208 = tpu.matmul %207, %31, %cst_90 {dimension_numbers = #tpu.dot_dimension_numbers<[1], [0], [0], [1], [0, 0, 1, 1], [], []>} : vector<16x128xf32>, vector<128x256xf32>, vector<16x256xf32> -> vector<16x256xf32>
    %209 = vector.broadcast %33 : vector<1x256xf32> to vector<16x256xf32>
    %210 = arith.addf %208, %209 : vector<16x256xf32>
    %cst_91 = arith.constant 0.000000e+00 : f32
    %211 = vector.broadcast %cst_91 : f32 to vector<16x256xf32>
    %212 = arith.maximumf %210, %211 : vector<16x256xf32>
    %cst_92 = arith.constant dense<0.000000e+00> : vector<16x128xf32>
    %213 = tpu.matmul %212, %35, %cst_92 {dimension_numbers = #tpu.dot_dimension_numbers<[1], [0], [0], [1], [0, 0, 1, 1], [], []>} : vector<16x256xf32>, vector<256x128xf32>, vector<16x128xf32> -> vector<16x128xf32>
    %214 = arith.addf %181, %213 : vector<16x128xf32>
    %215 = vector.broadcast %37 : vector<1x128xf32> to vector<16x128xf32>
    %216 = arith.addf %214, %215 : vector<16x128xf32>
    %c1 = arith.constant 1 : index
    %c0_93 = arith.constant 0 : index
    %c0_94 = arith.constant 0 : index
    %c0_95 = arith.constant 0 : index
    %217 = vector.load %arg18[%c1, %c0_93, %c0_94, %c0_95] : memref<2x3x1x128xf32, #tpu.memory_space<vmem>>, vector<1x3x1x128xf32>
    %218 = vector.shape_cast %217 : vector<1x3x1x128xf32> to vector<3x1x128xf32>
    %c1_96 = arith.constant 1 : index
    %c0_97 = arith.constant 0 : index
    %c0_98 = arith.constant 0 : index
    %c0_99 = arith.constant 0 : index
    %219 = vector.load %arg19[%c1_96, %c0_97, %c0_98, %c0_99] : memref<2x3x1x128xf32, #tpu.memory_space<vmem>>, vector<1x3x1x128xf32>
    %220 = vector.shape_cast %219 : vector<1x3x1x128xf32> to vector<3x1x128xf32>
    %c1_100 = arith.constant 1 : index
    %c0_101 = arith.constant 0 : index
    %c0_102 = arith.constant 0 : index
    %221 = vector.load %arg4[%c1_100, %c0_101, %c0_102] : memref<2x128x384xf32, #tpu.memory_space<vmem>>, vector<1x128x384xf32>
    %222 = vector.shape_cast %221 : vector<1x128x384xf32> to vector<128x384xf32>
    %c1_103 = arith.constant 1 : index
    %c0_104 = arith.constant 0 : index
    %c0_105 = arith.constant 0 : index
    %223 = vector.load %arg5[%c1_103, %c0_104, %c0_105] : memref<2x1x384xf32, #tpu.memory_space<vmem>>, vector<1x1x384xf32>
    %224 = vector.shape_cast %223 : vector<1x1x384xf32> to vector<1x384xf32>
    %c1_106 = arith.constant 1 : index
    %c0_107 = arith.constant 0 : index
    %c0_108 = arith.constant 0 : index
    %225 = vector.load %arg6[%c1_106, %c0_107, %c0_108] : memref<2x128x128xf32, #tpu.memory_space<vmem>>, vector<1x128x128xf32>
    %226 = vector.shape_cast %225 : vector<1x128x128xf32> to vector<128x128xf32>
    %c1_109 = arith.constant 1 : index
    %c0_110 = arith.constant 0 : index
    %c0_111 = arith.constant 0 : index
    %227 = vector.load %arg7[%c1_109, %c0_110, %c0_111] : memref<2x1x128xf32, #tpu.memory_space<vmem>>, vector<1x1x128xf32>
    %228 = vector.shape_cast %227 : vector<1x1x128xf32> to vector<1x128xf32>
    %c1_112 = arith.constant 1 : index
    %c0_113 = arith.constant 0 : index
    %c0_114 = arith.constant 0 : index
    %229 = vector.load %arg8[%c1_112, %c0_113, %c0_114] : memref<2x128x128xf32, #tpu.memory_space<vmem>>, vector<1x128x128xf32>
    %230 = vector.shape_cast %229 : vector<1x128x128xf32> to vector<128x128xf32>
    %c1_115 = arith.constant 1 : index
    %c0_116 = arith.constant 0 : index
    %c0_117 = arith.constant 0 : index
    %231 = vector.load %arg9[%c1_115, %c0_116, %c0_117] : memref<2x1x128xf32, #tpu.memory_space<vmem>>, vector<1x1x128xf32>
    %232 = vector.shape_cast %231 : vector<1x1x128xf32> to vector<1x128xf32>
    %c1_118 = arith.constant 1 : index
    %c0_119 = arith.constant 0 : index
    %c0_120 = arith.constant 0 : index
    %233 = vector.load %arg10[%c1_118, %c0_119, %c0_120] : memref<2x128x256xf32, #tpu.memory_space<vmem>>, vector<1x128x256xf32>
    %234 = vector.shape_cast %233 : vector<1x128x256xf32> to vector<128x256xf32>
    %c1_121 = arith.constant 1 : index
    %c0_122 = arith.constant 0 : index
    %c0_123 = arith.constant 0 : index
    %235 = vector.load %arg11[%c1_121, %c0_122, %c0_123] : memref<2x1x256xf32, #tpu.memory_space<vmem>>, vector<1x1x256xf32>
    %236 = vector.shape_cast %235 : vector<1x1x256xf32> to vector<1x256xf32>
    %c1_124 = arith.constant 1 : index
    %c0_125 = arith.constant 0 : index
    %c0_126 = arith.constant 0 : index
    %237 = vector.load %arg12[%c1_124, %c0_125, %c0_126] : memref<2x128x128xf32, #tpu.memory_space<vmem>>, vector<1x128x128xf32>
    %238 = vector.shape_cast %237 : vector<1x128x128xf32> to vector<128x128xf32>
    %c1_127 = arith.constant 1 : index
    %c0_128 = arith.constant 0 : index
    %c0_129 = arith.constant 0 : index
    %239 = vector.load %arg13[%c1_127, %c0_128, %c0_129] : memref<2x1x128xf32, #tpu.memory_space<vmem>>, vector<1x1x128xf32>
    %240 = vector.shape_cast %239 : vector<1x1x128xf32> to vector<1x128xf32>
    %c1_130 = arith.constant 1 : index
    %c0_131 = arith.constant 0 : index
    %c0_132 = arith.constant 0 : index
    %241 = vector.load %arg14[%c1_130, %c0_131, %c0_132] : memref<2x128x256xf32, #tpu.memory_space<vmem>>, vector<1x128x256xf32>
    %242 = vector.shape_cast %241 : vector<1x128x256xf32> to vector<128x256xf32>
    %c1_133 = arith.constant 1 : index
    %c0_134 = arith.constant 0 : index
    %c0_135 = arith.constant 0 : index
    %243 = vector.load %arg15[%c1_133, %c0_134, %c0_135] : memref<2x1x256xf32, #tpu.memory_space<vmem>>, vector<1x1x256xf32>
    %244 = vector.shape_cast %243 : vector<1x1x256xf32> to vector<1x256xf32>
    %c1_136 = arith.constant 1 : index
    %c0_137 = arith.constant 0 : index
    %c0_138 = arith.constant 0 : index
    %245 = vector.load %arg16[%c1_136, %c0_137, %c0_138] : memref<2x256x128xf32, #tpu.memory_space<vmem>>, vector<1x256x128xf32>
    %246 = vector.shape_cast %245 : vector<1x256x128xf32> to vector<256x128xf32>
    %c1_139 = arith.constant 1 : index
    %c0_140 = arith.constant 0 : index
    %c0_141 = arith.constant 0 : index
    %247 = vector.load %arg17[%c1_139, %c0_140, %c0_141] : memref<2x1x128xf32, #tpu.memory_space<vmem>>, vector<1x1x128xf32>
    %248 = vector.shape_cast %247 : vector<1x1x128xf32> to vector<1x128xf32>
    %249 = vector.extract_strided_slice %218 {offsets = [0, 0, 0], sizes = [1, 1, 128], strides = [1, 1, 1]} : vector<3x1x128xf32> to vector<1x1x128xf32>
    %250 = vector.shape_cast %249 : vector<1x1x128xf32> to vector<1x128xf32>
    %251 = vector.extract_strided_slice %220 {offsets = [0, 0, 0], sizes = [1, 1, 128], strides = [1, 1, 1]} : vector<3x1x128xf32> to vector<1x1x128xf32>
    %252 = vector.shape_cast %251 : vector<1x1x128xf32> to vector<1x128xf32>
    %cst_142 = arith.constant dense<0.000000e+00> : vector<16xf32>
    %253 = vector.multi_reduction <add>, %216, %cst_142 [1] : vector<16x128xf32> to vector<16xf32>
    %254 = vector.shape_cast %253 : vector<16xf32> to vector<16x1xf32>
    %cst_143 = arith.constant 1.280000e+02 : f32
    %255 = vector.broadcast %cst_143 : f32 to vector<16x1xf32>
    %256 = arith.divf %254, %255 : vector<16x1xf32>
    %257 = vector.broadcast %256 : vector<16x1xf32> to vector<16x128xf32>
    %258 = arith.subf %216, %257 : vector<16x128xf32>
    %259 = arith.mulf %258, %258 : vector<16x128xf32>
    %cst_144 = arith.constant dense<0.000000e+00> : vector<16xf32>
    %260 = vector.multi_reduction <add>, %259, %cst_144 [1] : vector<16x128xf32> to vector<16xf32>
    %261 = vector.shape_cast %260 : vector<16xf32> to vector<16x1xf32>
    %cst_145 = arith.constant 1.280000e+02 : f32
    %262 = vector.broadcast %cst_145 : f32 to vector<16x1xf32>
    %263 = arith.divf %261, %262 : vector<16x1xf32>
    %264 = vector.broadcast %256 : vector<16x1xf32> to vector<16x128xf32>
    %265 = arith.subf %216, %264 : vector<16x128xf32>
    %cst_146 = arith.constant 9.99999974E-6 : f32
    %266 = vector.broadcast %cst_146 : f32 to vector<16x1xf32>
    %267 = arith.addf %263, %266 : vector<16x1xf32>
    %268 = math.rsqrt %267 : vector<16x1xf32>
    %269 = vector.broadcast %268 : vector<16x1xf32> to vector<16x128xf32>
    %270 = arith.mulf %265, %269 : vector<16x128xf32>
    %271 = vector.broadcast %250 : vector<1x128xf32> to vector<16x128xf32>
    %272 = arith.mulf %270, %271 : vector<16x128xf32>
    %273 = vector.broadcast %252 : vector<1x128xf32> to vector<16x128xf32>
    %274 = arith.addf %272, %273 : vector<16x128xf32>
    %cst_147 = arith.constant dense<0.000000e+00> : vector<16x384xf32>
    %275 = tpu.matmul %274, %222, %cst_147 {dimension_numbers = #tpu.dot_dimension_numbers<[1], [0], [0], [1], [0, 0, 1, 1], [], []>} : vector<16x128xf32>, vector<128x384xf32>, vector<16x384xf32> -> vector<16x384xf32>
    %276 = vector.broadcast %224 : vector<1x384xf32> to vector<16x384xf32>
    %277 = arith.addf %275, %276 : vector<16x384xf32>
    %278 = vector.shape_cast %277 : vector<16x384xf32> to vector<2x8x384xf32>
    %279 = vector.extract_strided_slice %278 {offsets = [0, 0, 0], sizes = [2, 8, 32], strides = [1, 1, 1]} : vector<2x8x384xf32> to vector<2x8x32xf32>
    %280 = vector.extract_strided_slice %278 {offsets = [0, 0, 32], sizes = [2, 8, 32], strides = [1, 1, 1]} : vector<2x8x384xf32> to vector<2x8x32xf32>
    %281 = vector.extract_strided_slice %278 {offsets = [0, 0, 64], sizes = [2, 8, 32], strides = [1, 1, 1]} : vector<2x8x384xf32> to vector<2x8x32xf32>
    %282 = vector.extract_strided_slice %278 {offsets = [0, 0, 96], sizes = [2, 8, 32], strides = [1, 1, 1]} : vector<2x8x384xf32> to vector<2x8x32xf32>
    %283 = tpu.concatenate %279, %280, %281, %282 in 0 : vector<2x8x32xf32>, vector<2x8x32xf32>, vector<2x8x32xf32>, vector<2x8x32xf32> -> vector<8x8x32xf32>
    %284 = vector.extract_strided_slice %278 {offsets = [0, 0, 128], sizes = [2, 8, 32], strides = [1, 1, 1]} : vector<2x8x384xf32> to vector<2x8x32xf32>
    %285 = vector.extract_strided_slice %278 {offsets = [0, 0, 160], sizes = [2, 8, 32], strides = [1, 1, 1]} : vector<2x8x384xf32> to vector<2x8x32xf32>
    %286 = vector.extract_strided_slice %278 {offsets = [0, 0, 192], sizes = [2, 8, 32], strides = [1, 1, 1]} : vector<2x8x384xf32> to vector<2x8x32xf32>
    %287 = vector.extract_strided_slice %278 {offsets = [0, 0, 224], sizes = [2, 8, 32], strides = [1, 1, 1]} : vector<2x8x384xf32> to vector<2x8x32xf32>
    %288 = tpu.concatenate %284, %285, %286, %287 in 0 : vector<2x8x32xf32>, vector<2x8x32xf32>, vector<2x8x32xf32>, vector<2x8x32xf32> -> vector<8x8x32xf32>
    %289 = vector.extract_strided_slice %278 {offsets = [0, 0, 256], sizes = [2, 8, 32], strides = [1, 1, 1]} : vector<2x8x384xf32> to vector<2x8x32xf32>
    %290 = vector.extract_strided_slice %278 {offsets = [0, 0, 288], sizes = [2, 8, 32], strides = [1, 1, 1]} : vector<2x8x384xf32> to vector<2x8x32xf32>
    %291 = vector.extract_strided_slice %278 {offsets = [0, 0, 320], sizes = [2, 8, 32], strides = [1, 1, 1]} : vector<2x8x384xf32> to vector<2x8x32xf32>
    %292 = vector.extract_strided_slice %278 {offsets = [0, 0, 352], sizes = [2, 8, 32], strides = [1, 1, 1]} : vector<2x8x384xf32> to vector<2x8x32xf32>
    %293 = tpu.concatenate %289, %290, %291, %292 in 0 : vector<2x8x32xf32>, vector<2x8x32xf32>, vector<2x8x32xf32>, vector<2x8x32xf32> -> vector<8x8x32xf32>
    "tpu.trace_start"() <{level = 10 : i32, message = "btd,bsd->bts"}> : () -> ()
    %cst_148 = arith.constant dense<0.000000e+00> : vector<8x8x8xf32>
    %294 = tpu.matmul %283, %288, %cst_148 {dimension_numbers = #tpu.dot_dimension_numbers<[2], [2], [1], [1], [0, 0, 0, 1, 1, 1], [0], [0]>} : vector<8x8x32xf32>, vector<8x8x32xf32>, vector<8x8x8xf32> -> vector<8x8x8xf32>
    "tpu.trace_stop"() : () -> ()
    %cst_149 = arith.constant 0.176776692 : f32
    %295 = vector.broadcast %cst_149 : f32 to vector<8x8x8xf32>
    %296 = arith.mulf %294, %295 : vector<8x8x8xf32>
    %297 = arith.addf %296, %5 : vector<8x8x8xf32>
    %cst_150 = arith.constant dense<0xFF800000> : vector<8x8xf32>
    %298 = vector.multi_reduction <maximumf>, %297, %cst_150 [2] : vector<8x8x8xf32> to vector<8x8xf32>
    %299 = vector.shape_cast %298 : vector<8x8xf32> to vector<8x8x1xf32>
    %300 = vector.broadcast %299 : vector<8x8x1xf32> to vector<8x8x8xf32>
    %301 = arith.subf %297, %300 : vector<8x8x8xf32>
    %302 = math.exp %301 : vector<8x8x8xf32>
    %cst_151 = arith.constant dense<0.000000e+00> : vector<8x8xf32>
    %303 = vector.multi_reduction <add>, %302, %cst_151 [2] : vector<8x8x8xf32> to vector<8x8xf32>
    %304 = vector.shape_cast %303 : vector<8x8xf32> to vector<8x8x1xf32>
    %305 = tpu.reciprocal %304 {approx = true} : vector<8x8x1xf32> -> vector<8x8x1xf32>
    %306 = vector.broadcast %305 : vector<8x8x1xf32> to vector<8x8x8xf32>
    %307 = arith.mulf %302, %306 : vector<8x8x8xf32>
    "tpu.trace_start"() <{level = 10 : i32, message = "bts,bsd->btd"}> : () -> ()
    %cst_152 = arith.constant dense<0.000000e+00> : vector<8x8x32xf32>
    %308 = tpu.matmul %307, %293, %cst_152 {dimension_numbers = #tpu.dot_dimension_numbers<[2], [1], [1], [2], [0, 0, 0, 1, 1, 2], [0], [0]>} : vector<8x8x8xf32>, vector<8x8x32xf32>, vector<8x8x32xf32> -> vector<8x8x32xf32>
    "tpu.trace_stop"() : () -> ()
    %309 = vector.extract_strided_slice %308 {offsets = [0, 0, 0], sizes = [2, 8, 32], strides = [1, 1, 1]} : vector<8x8x32xf32> to vector<2x8x32xf32>
    %310 = vector.extract_strided_slice %308 {offsets = [2, 0, 0], sizes = [2, 8, 32], strides = [1, 1, 1]} : vector<8x8x32xf32> to vector<2x8x32xf32>
    %311 = vector.extract_strided_slice %308 {offsets = [4, 0, 0], sizes = [2, 8, 32], strides = [1, 1, 1]} : vector<8x8x32xf32> to vector<2x8x32xf32>
    %312 = vector.extract_strided_slice %308 {offsets = [6, 0, 0], sizes = [2, 8, 32], strides = [1, 1, 1]} : vector<8x8x32xf32> to vector<2x8x32xf32>
    %313 = tpu.concatenate %309, %310, %311, %312 in 2 : vector<2x8x32xf32>, vector<2x8x32xf32>, vector<2x8x32xf32>, vector<2x8x32xf32> -> vector<2x8x128xf32>
    %314 = vector.shape_cast %313 : vector<2x8x128xf32> to vector<16x128xf32>
    %cst_153 = arith.constant dense<0.000000e+00> : vector<16x128xf32>
    %315 = tpu.matmul %314, %226, %cst_153 {dimension_numbers = #tpu.dot_dimension_numbers<[1], [0], [0], [1], [0, 0, 1, 1], [], []>} : vector<16x128xf32>, vector<128x128xf32>, vector<16x128xf32> -> vector<16x128xf32>
    %316 = vector.broadcast %228 : vector<1x128xf32> to vector<16x128xf32>
    %317 = arith.addf %315, %316 : vector<16x128xf32>
    %318 = arith.addf %216, %317 : vector<16x128xf32>
    %319 = vector.extract_strided_slice %218 {offsets = [1, 0, 0], sizes = [1, 1, 128], strides = [1, 1, 1]} : vector<3x1x128xf32> to vector<1x1x128xf32>
    %320 = vector.shape_cast %319 : vector<1x1x128xf32> to vector<1x128xf32>
    %321 = vector.extract_strided_slice %220 {offsets = [1, 0, 0], sizes = [1, 1, 128], strides = [1, 1, 1]} : vector<3x1x128xf32> to vector<1x1x128xf32>
    %322 = vector.shape_cast %321 : vector<1x1x128xf32> to vector<1x128xf32>
    %cst_154 = arith.constant dense<0.000000e+00> : vector<16xf32>
    %323 = vector.multi_reduction <add>, %318, %cst_154 [1] : vector<16x128xf32> to vector<16xf32>
    %324 = vector.shape_cast %323 : vector<16xf32> to vector<16x1xf32>
    %cst_155 = arith.constant 1.280000e+02 : f32
    %325 = vector.broadcast %cst_155 : f32 to vector<16x1xf32>
    %326 = arith.divf %324, %325 : vector<16x1xf32>
    %327 = vector.broadcast %326 : vector<16x1xf32> to vector<16x128xf32>
    %328 = arith.subf %318, %327 : vector<16x128xf32>
    %329 = arith.mulf %328, %328 : vector<16x128xf32>
    %cst_156 = arith.constant dense<0.000000e+00> : vector<16xf32>
    %330 = vector.multi_reduction <add>, %329, %cst_156 [1] : vector<16x128xf32> to vector<16xf32>
    %331 = vector.shape_cast %330 : vector<16xf32> to vector<16x1xf32>
    %cst_157 = arith.constant 1.280000e+02 : f32
    %332 = vector.broadcast %cst_157 : f32 to vector<16x1xf32>
    %333 = arith.divf %331, %332 : vector<16x1xf32>
    %334 = vector.broadcast %326 : vector<16x1xf32> to vector<16x128xf32>
    %335 = arith.subf %318, %334 : vector<16x128xf32>
    %cst_158 = arith.constant 9.99999974E-6 : f32
    %336 = vector.broadcast %cst_158 : f32 to vector<16x1xf32>
    %337 = arith.addf %333, %336 : vector<16x1xf32>
    %338 = math.rsqrt %337 : vector<16x1xf32>
    %339 = vector.broadcast %338 : vector<16x1xf32> to vector<16x128xf32>
    %340 = arith.mulf %335, %339 : vector<16x128xf32>
    %341 = vector.broadcast %320 : vector<1x128xf32> to vector<16x128xf32>
    %342 = arith.mulf %340, %341 : vector<16x128xf32>
    %343 = vector.broadcast %322 : vector<1x128xf32> to vector<16x128xf32>
    %344 = arith.addf %342, %343 : vector<16x128xf32>
    %cst_159 = arith.constant dense<0.000000e+00> : vector<16x128xf32>
    %345 = tpu.matmul %344, %230, %cst_159 {dimension_numbers = #tpu.dot_dimension_numbers<[1], [0], [0], [1], [0, 0, 1, 1], [], []>} : vector<16x128xf32>, vector<128x128xf32>, vector<16x128xf32> -> vector<16x128xf32>
    %346 = vector.broadcast %232 : vector<1x128xf32> to vector<16x128xf32>
    %347 = arith.addf %345, %346 : vector<16x128xf32>
    %cst_160 = arith.constant dense<0.000000e+00> : vector<16x256xf32>
    %348 = tpu.matmul %3, %234, %cst_160 {dimension_numbers = #tpu.dot_dimension_numbers<[1], [0], [0], [1], [0, 0, 1, 1], [], []>} : vector<16x128xf32>, vector<128x256xf32>, vector<16x256xf32> -> vector<16x256xf32>
    %349 = vector.broadcast %236 : vector<1x256xf32> to vector<16x256xf32>
    %350 = arith.addf %348, %349 : vector<16x256xf32>
    %351 = vector.shape_cast %347 : vector<16x128xf32> to vector<2x8x128xf32>
    %352 = vector.shape_cast %350 : vector<16x256xf32> to vector<2x8x256xf32>
    %353 = vector.extract_strided_slice %351 {offsets = [0, 0, 0], sizes = [2, 8, 32], strides = [1, 1, 1]} : vector<2x8x128xf32> to vector<2x8x32xf32>
    %354 = vector.extract_strided_slice %351 {offsets = [0, 0, 32], sizes = [2, 8, 32], strides = [1, 1, 1]} : vector<2x8x128xf32> to vector<2x8x32xf32>
    %355 = vector.extract_strided_slice %351 {offsets = [0, 0, 64], sizes = [2, 8, 32], strides = [1, 1, 1]} : vector<2x8x128xf32> to vector<2x8x32xf32>
    %356 = vector.extract_strided_slice %351 {offsets = [0, 0, 96], sizes = [2, 8, 32], strides = [1, 1, 1]} : vector<2x8x128xf32> to vector<2x8x32xf32>
    %357 = tpu.concatenate %353, %354, %355, %356 in 0 : vector<2x8x32xf32>, vector<2x8x32xf32>, vector<2x8x32xf32>, vector<2x8x32xf32> -> vector<8x8x32xf32>
    %358 = vector.extract_strided_slice %352 {offsets = [0, 0, 0], sizes = [2, 8, 32], strides = [1, 1, 1]} : vector<2x8x256xf32> to vector<2x8x32xf32>
    %359 = vector.extract_strided_slice %352 {offsets = [0, 0, 32], sizes = [2, 8, 32], strides = [1, 1, 1]} : vector<2x8x256xf32> to vector<2x8x32xf32>
    %360 = vector.extract_strided_slice %352 {offsets = [0, 0, 64], sizes = [2, 8, 32], strides = [1, 1, 1]} : vector<2x8x256xf32> to vector<2x8x32xf32>
    %361 = vector.extract_strided_slice %352 {offsets = [0, 0, 96], sizes = [2, 8, 32], strides = [1, 1, 1]} : vector<2x8x256xf32> to vector<2x8x32xf32>
    %362 = tpu.concatenate %358, %359, %360, %361 in 0 : vector<2x8x32xf32>, vector<2x8x32xf32>, vector<2x8x32xf32>, vector<2x8x32xf32> -> vector<8x8x32xf32>
    %363 = vector.extract_strided_slice %352 {offsets = [0, 0, 128], sizes = [2, 8, 32], strides = [1, 1, 1]} : vector<2x8x256xf32> to vector<2x8x32xf32>
    %364 = vector.extract_strided_slice %352 {offsets = [0, 0, 160], sizes = [2, 8, 32], strides = [1, 1, 1]} : vector<2x8x256xf32> to vector<2x8x32xf32>
    %365 = vector.extract_strided_slice %352 {offsets = [0, 0, 192], sizes = [2, 8, 32], strides = [1, 1, 1]} : vector<2x8x256xf32> to vector<2x8x32xf32>
    %366 = vector.extract_strided_slice %352 {offsets = [0, 0, 224], sizes = [2, 8, 32], strides = [1, 1, 1]} : vector<2x8x256xf32> to vector<2x8x32xf32>
    %367 = tpu.concatenate %363, %364, %365, %366 in 0 : vector<2x8x32xf32>, vector<2x8x32xf32>, vector<2x8x32xf32>, vector<2x8x32xf32> -> vector<8x8x32xf32>
    "tpu.trace_start"() <{level = 10 : i32, message = "btd,bsd->bts"}> : () -> ()
    %cst_161 = arith.constant dense<0.000000e+00> : vector<8x8x8xf32>
    %368 = tpu.matmul %357, %362, %cst_161 {dimension_numbers = #tpu.dot_dimension_numbers<[2], [2], [1], [1], [0, 0, 0, 1, 1, 1], [0], [0]>} : vector<8x8x32xf32>, vector<8x8x32xf32>, vector<8x8x8xf32> -> vector<8x8x8xf32>
    "tpu.trace_stop"() : () -> ()
    %cst_162 = arith.constant 0.176776692 : f32
    %369 = vector.broadcast %cst_162 : f32 to vector<8x8x8xf32>
    %370 = arith.mulf %368, %369 : vector<8x8x8xf32>
    %371 = arith.addf %370, %4 : vector<8x8x8xf32>
    %cst_163 = arith.constant dense<0xFF800000> : vector<8x8xf32>
    %372 = vector.multi_reduction <maximumf>, %371, %cst_163 [2] : vector<8x8x8xf32> to vector<8x8xf32>
    %373 = vector.shape_cast %372 : vector<8x8xf32> to vector<8x8x1xf32>
    %374 = vector.broadcast %373 : vector<8x8x1xf32> to vector<8x8x8xf32>
    %375 = arith.subf %371, %374 : vector<8x8x8xf32>
    %376 = math.exp %375 : vector<8x8x8xf32>
    %cst_164 = arith.constant dense<0.000000e+00> : vector<8x8xf32>
    %377 = vector.multi_reduction <add>, %376, %cst_164 [2] : vector<8x8x8xf32> to vector<8x8xf32>
    %378 = vector.shape_cast %377 : vector<8x8xf32> to vector<8x8x1xf32>
    %379 = tpu.reciprocal %378 {approx = true} : vector<8x8x1xf32> -> vector<8x8x1xf32>
    %380 = vector.broadcast %379 : vector<8x8x1xf32> to vector<8x8x8xf32>
    %381 = arith.mulf %376, %380 : vector<8x8x8xf32>
    "tpu.trace_start"() <{level = 10 : i32, message = "bts,bsd->btd"}> : () -> ()
    %cst_165 = arith.constant dense<0.000000e+00> : vector<8x8x32xf32>
    %382 = tpu.matmul %381, %367, %cst_165 {dimension_numbers = #tpu.dot_dimension_numbers<[2], [1], [1], [2], [0, 0, 0, 1, 1, 2], [0], [0]>} : vector<8x8x8xf32>, vector<8x8x32xf32>, vector<8x8x32xf32> -> vector<8x8x32xf32>
    "tpu.trace_stop"() : () -> ()
    %383 = vector.extract_strided_slice %382 {offsets = [0, 0, 0], sizes = [2, 8, 32], strides = [1, 1, 1]} : vector<8x8x32xf32> to vector<2x8x32xf32>
    %384 = vector.extract_strided_slice %382 {offsets = [2, 0, 0], sizes = [2, 8, 32], strides = [1, 1, 1]} : vector<8x8x32xf32> to vector<2x8x32xf32>
    %385 = vector.extract_strided_slice %382 {offsets = [4, 0, 0], sizes = [2, 8, 32], strides = [1, 1, 1]} : vector<8x8x32xf32> to vector<2x8x32xf32>
    %386 = vector.extract_strided_slice %382 {offsets = [6, 0, 0], sizes = [2, 8, 32], strides = [1, 1, 1]} : vector<8x8x32xf32> to vector<2x8x32xf32>
    %387 = tpu.concatenate %383, %384, %385, %386 in 2 : vector<2x8x32xf32>, vector<2x8x32xf32>, vector<2x8x32xf32>, vector<2x8x32xf32> -> vector<2x8x128xf32>
    %388 = vector.shape_cast %387 : vector<2x8x128xf32> to vector<16x128xf32>
    %cst_166 = arith.constant dense<0.000000e+00> : vector<16x128xf32>
    %389 = tpu.matmul %388, %238, %cst_166 {dimension_numbers = #tpu.dot_dimension_numbers<[1], [0], [0], [1], [0, 0, 1, 1], [], []>} : vector<16x128xf32>, vector<128x128xf32>, vector<16x128xf32> -> vector<16x128xf32>
    %390 = vector.broadcast %240 : vector<1x128xf32> to vector<16x128xf32>
    %391 = arith.addf %389, %390 : vector<16x128xf32>
    %392 = arith.addf %318, %391 : vector<16x128xf32>
    %393 = vector.extract_strided_slice %218 {offsets = [2, 0, 0], sizes = [1, 1, 128], strides = [1, 1, 1]} : vector<3x1x128xf32> to vector<1x1x128xf32>
    %394 = vector.shape_cast %393 : vector<1x1x128xf32> to vector<1x128xf32>
    %395 = vector.extract_strided_slice %220 {offsets = [2, 0, 0], sizes = [1, 1, 128], strides = [1, 1, 1]} : vector<3x1x128xf32> to vector<1x1x128xf32>
    %396 = vector.shape_cast %395 : vector<1x1x128xf32> to vector<1x128xf32>
    %cst_167 = arith.constant dense<0.000000e+00> : vector<16xf32>
    %397 = vector.multi_reduction <add>, %392, %cst_167 [1] : vector<16x128xf32> to vector<16xf32>
    %398 = vector.shape_cast %397 : vector<16xf32> to vector<16x1xf32>
    %cst_168 = arith.constant 1.280000e+02 : f32
    %399 = vector.broadcast %cst_168 : f32 to vector<16x1xf32>
    %400 = arith.divf %398, %399 : vector<16x1xf32>
    %401 = vector.broadcast %400 : vector<16x1xf32> to vector<16x128xf32>
    %402 = arith.subf %392, %401 : vector<16x128xf32>
    %403 = arith.mulf %402, %402 : vector<16x128xf32>
    %cst_169 = arith.constant dense<0.000000e+00> : vector<16xf32>
    %404 = vector.multi_reduction <add>, %403, %cst_169 [1] : vector<16x128xf32> to vector<16xf32>
    %405 = vector.shape_cast %404 : vector<16xf32> to vector<16x1xf32>
    %cst_170 = arith.constant 1.280000e+02 : f32
    %406 = vector.broadcast %cst_170 : f32 to vector<16x1xf32>
    %407 = arith.divf %405, %406 : vector<16x1xf32>
    %408 = vector.broadcast %400 : vector<16x1xf32> to vector<16x128xf32>
    %409 = arith.subf %392, %408 : vector<16x128xf32>
    %cst_171 = arith.constant 9.99999974E-6 : f32
    %410 = vector.broadcast %cst_171 : f32 to vector<16x1xf32>
    %411 = arith.addf %407, %410 : vector<16x1xf32>
    %412 = math.rsqrt %411 : vector<16x1xf32>
    %413 = vector.broadcast %412 : vector<16x1xf32> to vector<16x128xf32>
    %414 = arith.mulf %409, %413 : vector<16x128xf32>
    %415 = vector.broadcast %394 : vector<1x128xf32> to vector<16x128xf32>
    %416 = arith.mulf %414, %415 : vector<16x128xf32>
    %417 = vector.broadcast %396 : vector<1x128xf32> to vector<16x128xf32>
    %418 = arith.addf %416, %417 : vector<16x128xf32>
    %cst_172 = arith.constant dense<0.000000e+00> : vector<16x256xf32>
    %419 = tpu.matmul %418, %242, %cst_172 {dimension_numbers = #tpu.dot_dimension_numbers<[1], [0], [0], [1], [0, 0, 1, 1], [], []>} : vector<16x128xf32>, vector<128x256xf32>, vector<16x256xf32> -> vector<16x256xf32>
    %420 = vector.broadcast %244 : vector<1x256xf32> to vector<16x256xf32>
    %421 = arith.addf %419, %420 : vector<16x256xf32>
    %cst_173 = arith.constant 0.000000e+00 : f32
    %422 = vector.broadcast %cst_173 : f32 to vector<16x256xf32>
    %423 = arith.maximumf %421, %422 : vector<16x256xf32>
    %cst_174 = arith.constant dense<0.000000e+00> : vector<16x128xf32>
    %424 = tpu.matmul %423, %246, %cst_174 {dimension_numbers = #tpu.dot_dimension_numbers<[1], [0], [0], [1], [0, 0, 1, 1], [], []>} : vector<16x256xf32>, vector<256x128xf32>, vector<16x128xf32> -> vector<16x128xf32>
    %425 = arith.addf %392, %424 : vector<16x128xf32>
    %426 = vector.broadcast %248 : vector<1x128xf32> to vector<16x128xf32>
    %427 = arith.addf %425, %426 : vector<16x128xf32>
    %c0_175 = arith.constant 0 : index
    %c0_176 = arith.constant 0 : index
    %428 = vector.load %arg20[%c0_175, %c0_176] : memref<1x128xf32, #tpu.memory_space<vmem>>, vector<1x128xf32>
    %c0_177 = arith.constant 0 : index
    %c0_178 = arith.constant 0 : index
    %429 = vector.load %arg21[%c0_177, %c0_178] : memref<1x128xf32, #tpu.memory_space<vmem>>, vector<1x128xf32>
    %cst_179 = arith.constant dense<0.000000e+00> : vector<16xf32>
    %430 = vector.multi_reduction <add>, %427, %cst_179 [1] : vector<16x128xf32> to vector<16xf32>
    %431 = vector.shape_cast %430 : vector<16xf32> to vector<16x1xf32>
    %cst_180 = arith.constant 1.280000e+02 : f32
    %432 = vector.broadcast %cst_180 : f32 to vector<16x1xf32>
    %433 = arith.divf %431, %432 : vector<16x1xf32>
    %434 = vector.broadcast %433 : vector<16x1xf32> to vector<16x128xf32>
    %435 = arith.subf %427, %434 : vector<16x128xf32>
    %436 = arith.mulf %435, %435 : vector<16x128xf32>
    %cst_181 = arith.constant dense<0.000000e+00> : vector<16xf32>
    %437 = vector.multi_reduction <add>, %436, %cst_181 [1] : vector<16x128xf32> to vector<16xf32>
    %438 = vector.shape_cast %437 : vector<16xf32> to vector<16x1xf32>
    %cst_182 = arith.constant 1.280000e+02 : f32
    %439 = vector.broadcast %cst_182 : f32 to vector<16x1xf32>
    %440 = arith.divf %438, %439 : vector<16x1xf32>
    %441 = vector.broadcast %433 : vector<16x1xf32> to vector<16x128xf32>
    %442 = arith.subf %427, %441 : vector<16x128xf32>
    %cst_183 = arith.constant 9.99999974E-6 : f32
    %443 = vector.broadcast %cst_183 : f32 to vector<16x1xf32>
    %444 = arith.addf %440, %443 : vector<16x1xf32>
    %445 = math.rsqrt %444 : vector<16x1xf32>
    %446 = vector.broadcast %445 : vector<16x1xf32> to vector<16x128xf32>
    %447 = arith.mulf %442, %446 : vector<16x128xf32>
    %448 = vector.broadcast %428 : vector<1x128xf32> to vector<16x128xf32>
    %449 = arith.mulf %447, %448 : vector<16x128xf32>
    %450 = vector.broadcast %429 : vector<1x128xf32> to vector<16x128xf32>
    %451 = arith.addf %449, %450 : vector<16x128xf32>
    %452 = vector.shape_cast %451 : vector<16x128xf32> to vector<2x8x128xf32>
    %c0_184 = arith.constant 0 : index
    %c0_185 = arith.constant 0 : index
    %c0_186 = arith.constant 0 : index
    %453 = vector.load %arg22[%c0_184, %c0_185, %c0_186] : memref<2x8x128xf32, #tpu.memory_space<vmem>>, vector<2x8x128xf32>
    tpu.vector_store %arg22[%c0_184, %c0_185, %c0_186], %452 {strides = array<i32>} : memref<2x8x128xf32, #tpu.memory_space<vmem>>, vector<2x8x128xf32>,
    return
  }
}

</mosaic_0001>

<llo_original>
// kernel: transformer_decoder.1
$region0: #{transformer_decoder.1}
  #allocation0 [shape = 'u32[]', space=smem, size = 0x4, offset = 0x4, fixed_abs, tag = 'smem constant byte address 0x4 - core index']
  #allocation1 [shape = 'u32[144,128]{1,0:T(1,128)}', space=vmem, size = 0x12000, scoped, tag = 'internal scratch']
  %s0 = inlined_call_operand.vmem [shape: f32[2,8,128], index: 0, kind: input, shape index: {}]
  %s1 = inlined_call_operand.vmem [shape: f32[2,8,128], index: 1, kind: input, shape index: {}]
  %s2 = inlined_call_operand.vmem [shape: f32[8,8,8], index: 2, kind: input, shape index: {}]
  %s3 = inlined_call_operand.vmem [shape: f32[8,8,8], index: 3, kind: input, shape index: {}]
  %s4 = inlined_call_operand.hbm [shape: f32[2,128,384], index: 4, kind: input, shape index: {}]
  %s5 = inlined_call_operand.vmem [shape: f32[2,1,384], index: 5, kind: input, shape index: {}]
  %s6 = inlined_call_operand.vmem [shape: f32[2,128,128], index: 6, kind: input, shape index: {}]
  %s7 = inlined_call_operand.hbm [shape: f32[2,1,128], index: 7, kind: input, shape index: {}]
  %s8 = inlined_call_operand.hbm [shape: f32[2,128,128], index: 8, kind: input, shape index: {}]
  %s9 = inlined_call_operand.hbm [shape: f32[2,1,128], index: 9, kind: input, shape index: {}]
  %s10 = inlined_call_operand.hbm [shape: f32[2,128,256], index: 10, kind: input, shape index: {}]
  %s11 = inlined_call_operand.hbm [shape: f32[2,1,256], index: 11, kind: input, shape index: {}]
  %s12 = inlined_call_operand.hbm [shape: f32[2,128,128], index: 12, kind: input, shape index: {}]
  %s13 = inlined_call_operand.hbm [shape: f32[2,1,128], index: 13, kind: input, shape index: {}]
  %s14 = inlined_call_operand.hbm [shape: f32[2,128,256], index: 14, kind: input, shape index: {}]
  %s15 = inlined_call_operand.hbm [shape: f32[2,1,256], index: 15, kind: input, shape index: {}]
  %s16 = inlined_call_operand.hbm [shape: f32[2,256,128], index: 16, kind: input, shape index: {}]
  %s17 = inlined_call_operand.hbm [shape: f32[2,1,128], index: 17, kind: input, shape index: {}]
  %s18 = inlined_call_operand.vmem [shape: f32[2,3,1,128], index: 18, kind: input, shape index: {}]
  %s19 = inlined_call_operand.vmem [shape: f32[2,3,1,128], index: 19, kind: input, shape index: {}]
  %s20 = inlined_call_operand.vmem [shape: f32[1,128], index: 20, kind: input, shape index: {}]
  %s21 = inlined_call_operand.hbm [shape: f32[1,128], index: 21, kind: input, shape index: {}]
  %s22 = inlined_call_operand.hbm [shape: f32[2,8,128], index: 22, kind: output, shape index: {}]
  %s23 = sld [smem:[#allocation0]]
  $region150: #{transformer_decoder.1} parent=0
    _
  %s25 = ssub.s32 1, %s23
  %s26 = scalar_select 0, %s25, %s23
  $region1: #{transformer_decoder.1} parent=0
    #allocation2 [shape = 'u8[393216]{0}', space=vmem, size = 0x60000, scoped, tag = 'input window, operand 4, single buffered']
    #allocation3 [shape = 's32[1]{0}', space=sflag, size = 0x4, scoped, tag = 'scoped memory for transformer_decoder.1']
    #allocation4 [shape = 's32[1]{0}', space=sflag, size = 0x4, scoped, tag = 'scoped memory for transformer_decoder.1']
    #allocation5 [shape = 'u8[1024]{0}', space=vmem, size = 0x400, scoped, tag = 'input window, operand 7, single buffered']
    #allocation6 [shape = 's32[1]{0}', space=sflag, size = 0x4, scoped, tag = 'scoped memory for transformer_decoder.1']
    #allocation7 [shape = 'u8[131072]{0}', space=vmem, size = 0x20000, scoped, tag = 'input window, operand 8, single buffered']
    #allocation8 [shape = 'u8[1024]{0}', space=vmem, size = 0x400, scoped, tag = 'input window, operand 9, single buffered']
    #allocation9 [shape = 's32[1]{0}', space=sflag, size = 0x4, scoped, tag = 'scoped memory for transformer_decoder.1']
    #allocation10 [shape = 'u8[262144]{0}', space=vmem, size = 0x40000, scoped, tag = 'input window, operand 10, single buffered']
    #allocation11 [shape = 'u8[2048]{0}', space=vmem, size = 0x800, scoped, tag = 'input window, operand 11, single buffered']
    #allocation12 [shape = 's32[1]{0}', space=sflag, size = 0x4, scoped, tag = 'scoped memory for transformer_decoder.1']
    #allocation13 [shape = 'u8[131072]{0}', space=vmem, size = 0x20000, scoped, tag = 'input window, operand 12, single buffered']
    #allocation14 [shape = 'u8[1024]{0}', space=vmem, size = 0x400, scoped, tag = 'input window, operand 13, single buffered']
    #allocation15 [shape = 's32[1]{0}', space=sflag, size = 0x4, scoped, tag = 'scoped memory for transformer_decoder.1']
    #allocation16 [shape = 'u8[262144]{0}', space=vmem, size = 0x40000, scoped, tag = 'input window, operand 14, single buffered']
    #allocation17 [shape = 'u8[2048]{0}', space=vmem, size = 0x800, scoped, tag = 'input window, operand 15, single buffered']
    #allocation18 [shape = 's32[1]{0}', space=sflag, size = 0x4, scoped, tag = 'scoped memory for transformer_decoder.1']
    #allocation19 [shape = 'u8[262144]{0}', space=vmem, size = 0x40000, scoped, tag = 'input window, operand 16, single buffered']
    #allocation20 [shape = 'u8[1024]{0}', space=vmem, size = 0x400, scoped, tag = 'input window, operand 17, single buffered']
    #allocation21 [shape = 's32[1]{0}', space=sflag, size = 0x4, scoped, tag = 'scoped memory for transformer_decoder.1']
    #allocation22 [shape = 'u8[512]{0}', space=vmem, size = 0x400, scoped, tag = 'input window, operand 21, single buffered']
    #allocation23 [shape = 'u8[8192]{0}', space=vmem, size = 0x2000, scoped, tag = 'output window, operand 0, single buffered']
    %27 = vsyncpa [#allocation3], 0
    %28 = vsyncpa [#allocation6], 0
    %29 = vsyncpa [#allocation9], 0
    %30 = vsyncpa [#allocation12], 0
    %31 = vsyncpa [#allocation15], 0
    %32 = vsyncpa [#allocation18], 0
    %33 = vsyncpa [#allocation21], 0
    %34 = vsyncpa [#allocation4], 0
    // Predicated region
    $region2: #{transformer_decoder.1} parent=1 // pred_check
      _
    $region3: #{transformer_decoder.1} parent=1 // pred_check_branch
      %36 = sbr.rel (0) target = $region5
    $region4: #{transformer_decoder.1} parent=1 // pred_region
      _
    $region5: #{transformer_decoder.1} parent=1 // pred_fallthru
      _
    // Predicated region
    $region6: #{transformer_decoder.1} parent=1 // pred_check
      _
    $region7: #{transformer_decoder.1} parent=1 // pred_check_branch
      %38 = sbr.rel (0) target = $region9
    $region8: #{transformer_decoder.1} parent=1 // pred_region
      _
    $region9: #{transformer_decoder.1} parent=1 // pred_fallthru
      _
    // Predicated region
    $region10: #{transformer_decoder.1} parent=1 // pred_check
      _
    $region11: #{transformer_decoder.1} parent=1 // pred_check_branch
      %40 = sbr.rel (0) target = $region13
    $region12: #{transformer_decoder.1} parent=1 // pred_region
      _
    $region13: #{transformer_decoder.1} parent=1 // pred_fallthru
      _
    // Predicated region
    $region14: #{transformer_decoder.1} parent=1 // pred_check
      _
    $region15: #{transformer_decoder.1} parent=1 // pred_check_branch
      %42 = sbr.rel (0) target = $region17
    $region16: #{transformer_decoder.1} parent=1 // pred_region
      _
    $region17: #{transformer_decoder.1} parent=1 // pred_fallthru
      _
    // Predicated region
    $region18: #{transformer_decoder.1} parent=1 // pred_check
      _
    $region19: #{transformer_decoder.1} parent=1 // pred_check_branch
      %44 = sbr.rel (0) target = $region21
    $region20: #{transformer_decoder.1} parent=1 // pred_region
      %s46 = ssub.s32 12288, 12288
      %47 = vsyncadd [#allocation3], %s46
      %s48 = sshll.u32 [#allocation2], 4
      %s49 = int_to_ptr.vmem [resolvable:$true] %s48
      %54 = dma.hbm_to_vmem [thread:$0]  %s4, 12288, %s49, [#allocation3], 384, 384, 24
    $region21: #{transformer_decoder.1} parent=1 // pred_fallthru
      _
    // Predicated region
    $region22: #{transformer_decoder.1} parent=1 // pred_check
      _
    $region23: #{transformer_decoder.1} parent=1 // pred_check_branch
      %56 = sbr.rel (0) target = $region25
    $region24: #{transformer_decoder.1} parent=1 // pred_region
      _
    $region25: #{transformer_decoder.1} parent=1 // pred_fallthru
      _
    // Predicated region
    $region26: #{transformer_decoder.1} parent=1 // pred_check
      _
    $region27: #{transformer_decoder.1} parent=1 // pred_check_branch
      %58 = sbr.rel (0) target = $region29
    $region28: #{transformer_decoder.1} parent=1 // pred_region
      _
    $region29: #{transformer_decoder.1} parent=1 // pred_fallthru
      _
    // Predicated region
    $region30: #{transformer_decoder.1} parent=1 // pred_check
      _
    $region31: #{transformer_decoder.1} parent=1 // pred_check_branch
      %60 = sbr.rel (0) target = $region33
    $region32: #{transformer_decoder.1} parent=1 // pred_region
      %s62 = ssub.s32 32, 32
      %63 = vsyncadd [#allocation6], %s62
      %s64 = sshll.u32 [#allocation5], 4
      %s65 = int_to_ptr.vmem [resolvable:$true] %s64
      %70 = dma.hbm_to_vmem [thread:$0]  %s7, 32, %s65, [#allocation6], 16, 16, 1
    $region33: #{transformer_decoder.1} parent=1 // pred_fallthru
      _
    // Predicated region
    $region34: #{transformer_decoder.1} parent=1 // pred_check
      _
    $region35: #{transformer_decoder.1} parent=1 // pred_check_branch
      %72 = sbr.rel (0) target = $region37
    $region36: #{transformer_decoder.1} parent=1 // pred_region
      %s74 = ssub.s32 4096, 4096
      %75 = vsyncadd [#allocation6], %s74
      %s76 = sshll.u32 [#allocation7], 4
      %s77 = int_to_ptr.vmem [resolvable:$true] %s76
      %82 = dma.hbm_to_vmem [thread:$0]  %s8, 4096, %s77, [#allocation6], 128, 128, 8
    $region37: #{transformer_decoder.1} parent=1 // pred_fallthru
      _
    // Predicated region
    $region38: #{transformer_decoder.1} parent=1 // pred_check
      _
    $region39: #{transformer_decoder.1} parent=1 // pred_check_branch
      %84 = sbr.rel (0) target = $region41
    $region40: #{transformer_decoder.1} parent=1 // pred_region
      %s86 = ssub.s32 32, 32
      %87 = vsyncadd [#allocation9], %s86
      %s88 = sshll.u32 [#allocation8], 4
      %s89 = int_to_ptr.vmem [resolvable:$true] %s88
      %94 = dma.hbm_to_vmem [thread:$0]  %s9, 32, %s89, [#allocation9], 16, 16, 1
    $region41: #{transformer_decoder.1} parent=1 // pred_fallthru
      _
    // Predicated region
    $region42: #{transformer_decoder.1} parent=1 // pred_check
      _
    $region43: #{transformer_decoder.1} parent=1 // pred_check_branch
      %96 = sbr.rel (0) target = $region45
    $region44: #{transformer_decoder.1} parent=1 // pred_region
      %s98 = ssub.s32 8192, 8192
      %99 = vsyncadd [#allocation9], %s98
      %s100 = sshll.u32 [#allocation10], 4
      %s101 = int_to_ptr.vmem [resolvable:$true] %s100
      %106 = dma.hbm_to_vmem [thread:$0]  %s10, 8192, %s101, [#allocation9], 256, 256, 16
    $region45: #{transformer_decoder.1} parent=1 // pred_fallthru
      _
    // Predicated region
    $region46: #{transformer_decoder.1} parent=1 // pred_check
      _
    $region47: #{transformer_decoder.1} parent=1 // pred_check_branch
      %108 = sbr.rel (0) target = $region49
    $region48: #{transformer_decoder.1} parent=1 // pred_region
      %s110 = ssub.s32 64, 64
      %111 = vsyncadd [#allocation12], %s110
      %s112 = sshll.u32 [#allocation11], 4
      %s113 = int_to_ptr.vmem [resolvable:$true] %s112
      %118 = dma.hbm_to_vmem [thread:$0]  %s11, 64, %s113, [#allocation12], 32, 32, 2
    $region49: #{transformer_decoder.1} parent=1 // pred_fallthru
      _
    // Predicated region
    $region50: #{transformer_decoder.1} parent=1 // pred_check
      _
    $region51: #{transformer_decoder.1} parent=1 // pred_check_branch
      %120 = sbr.rel (0) target = $region53
    $region52: #{transformer_decoder.1} parent=1 // pred_region
      %s122 = ssub.s32 4096, 4096
      %123 = vsyncadd [#allocation12], %s122
      %s124 = sshll.u32 [#allocation13], 4
      %s125 = int_to_ptr.vmem [resolvable:$true] %s124
      %130 = dma.hbm_to_vmem [thread:$0]  %s12, 4096, %s125, [#allocation12], 128, 128, 8
    $region53: #{transformer_decoder.1} parent=1 // pred_fallthru
      _
    // Predicated region
    $region54: #{transformer_decoder.1} parent=1 // pred_check
      _
    $region55: #{transformer_decoder.1} parent=1 // pred_check_branch
      %132 = sbr.rel (0) target = $region57
    $region56: #{transformer_decoder.1} parent=1 // pred_region
      %s134 = ssub.s32 32, 32
      %135 = vsyncadd [#allocation15], %s134
      %s136 = sshll.u32 [#allocation14], 4
      %s137 = int_to_ptr.vmem [resolvable:$true] %s136
      %142 = dma.hbm_to_vmem [thread:$0]  %s13, 32, %s137, [#allocation15], 16, 16, 1
    $region57: #{transformer_decoder.1} parent=1 // pred_fallthru
      _
    // Predicated region
    $region58: #{transformer_decoder.1} parent=1 // pred_check
      _
    $region59: #{transformer_decoder.1} parent=1 // pred_check_branch
      %144 = sbr.rel (0) target = $region61
    $region60: #{transformer_decoder.1} parent=1 // pred_region
      %s146 = ssub.s32 8192, 8192
      %147 = vsyncadd [#allocation15], %s146
      %s148 = sshll.u32 [#allocation16], 4
      %s149 = int_to_ptr.vmem [resolvable:$true] %s148
      %154 = dma.hbm_to_vmem [thread:$0]  %s14, 8192, %s149, [#allocation15], 256, 256, 16
    $region61: #{transformer_decoder.1} parent=1 // pred_fallthru
      _
    // Predicated region
    $region62: #{transformer_decoder.1} parent=1 // pred_check
      _
    $region63: #{transformer_decoder.1} parent=1 // pred_check_branch
      %156 = sbr.rel (0) target = $region65
    $region64: #{transformer_decoder.1} parent=1 // pred_region
      %s158 = ssub.s32 64, 64
      %159 = vsyncadd [#allocation18], %s158
      %s160 = sshll.u32 [#allocation17], 4
      %s161 = int_to_ptr.vmem [resolvable:$true] %s160
      %166 = dma.hbm_to_vmem [thread:$0]  %s15, 64, %s161, [#allocation18], 32, 32, 2
    $region65: #{transformer_decoder.1} parent=1 // pred_fallthru
      _
    // Predicated region
    $region66: #{transformer_decoder.1} parent=1 // pred_check
      _
    $region67: #{transformer_decoder.1} parent=1 // pred_check_branch
      %168 = sbr.rel (0) target = $region69
    $region68: #{transformer_decoder.1} parent=1 // pred_region
      %s170 = ssub.s32 8192, 8192
      %171 = vsyncadd [#allocation18], %s170
      %s172 = sshll.u32 [#allocation19], 4
      %s173 = int_to_ptr.vmem [resolvable:$true] %s172
      %178 = dma.hbm_to_vmem [thread:$0]  %s16, 8192, %s173, [#allocation18], 128, 128, 8
    $region69: #{transformer_decoder.1} parent=1 // pred_fallthru
      _
    // Predicated region
    $region70: #{transformer_decoder.1} parent=1 // pred_check
      _
    $region71: #{transformer_decoder.1} parent=1 // pred_check_branch
      %180 = sbr.rel (0) target = $region73
    $region72: #{transformer_decoder.1} parent=1 // pred_region
      %s182 = ssub.s32 32, 32
      %183 = vsyncadd [#allocation21], %s182
      %s184 = sshll.u32 [#allocation20], 4
      %s185 = int_to_ptr.vmem [resolvable:$true] %s184
      %190 = dma.hbm_to_vmem [thread:$0]  %s17, 32, %s185, [#allocation21], 16, 16, 1
    $region73: #{transformer_decoder.1} parent=1 // pred_fallthru
      _
    // Predicated region
    $region74: #{transformer_decoder.1} parent=1 // pred_check
      _
    $region75: #{transformer_decoder.1} parent=1 // pred_check_branch
      %192 = sbr.rel (0) target = $region77
    $region76: #{transformer_decoder.1} parent=1 // pred_region
      _
    $region77: #{transformer_decoder.1} parent=1 // pred_fallthru
      _
    // Predicated region
    $region78: #{transformer_decoder.1} parent=1 // pred_check
      _
    $region79: #{transformer_decoder.1} parent=1 // pred_check_branch
      %194 = sbr.rel (0) target = $region81
    $region80: #{transformer_decoder.1} parent=1 // pred_region
      _
    $region81: #{transformer_decoder.1} parent=1 // pred_fallthru
      _
    // Predicated region
    $region82: #{transformer_decoder.1} parent=1 // pred_check
      _
    $region83: #{transformer_decoder.1} parent=1 // pred_check_branch
      %196 = sbr.rel (0) target = $region85
    $region84: #{transformer_decoder.1} parent=1 // pred_region
      _
    $region85: #{transformer_decoder.1} parent=1 // pred_fallthru
      _
    // Predicated region
    $region86: #{transformer_decoder.1} parent=1 // pred_check
      _
    $region87: #{transformer_decoder.1} parent=1 // pred_check_branch
      %198 = sbr.rel (0) target = $region89
    $region88: #{transformer_decoder.1} parent=1 // pred_region
      %s200 = ssub.s32 16, 16
      %201 = vsyncadd [#allocation21], %s200
      %s203 = sshll.u32 [#allocation22], 4
      %s204 = int_to_ptr.vmem [resolvable:$true] %s203
      %206 = dma.hbm_to_vmem [thread:$0]  %s21, 16, %s204, [#allocation21]
    $region89: #{transformer_decoder.1} parent=1 // pred_fallthru
      _
    // Predicated region
    $region90: #{transformer_decoder.1} parent=1 // pred_check
      _
    $region91: #{transformer_decoder.1} parent=1 // pred_check_branch
      %208 = sbr.rel (0) target = $region93
    $region92: #{transformer_decoder.1} parent=1 // pred_region
      %209 = dma.done [#allocation3], 12288
    $region93: #{transformer_decoder.1} parent=1 // pred_fallthru
      _
    // Predicated region
    $region94: #{transformer_decoder.1} parent=1 // pred_check
      _
    $region95: #{transformer_decoder.1} parent=1 // pred_check_branch
      %211 = sbr.rel (0) target = $region97
    $region96: #{transformer_decoder.1} parent=1 // pred_region
      %212 = dma.done [#allocation6], 32
    $region97: #{transformer_decoder.1} parent=1 // pred_fallthru
      _
    // Predicated region
    $region98: #{transformer_decoder.1} parent=1 // pred_check
      _
    $region99: #{transformer_decoder.1} parent=1 // pred_check_branch
      %214 = sbr.rel (0) target = $region101
    $region100: #{transformer_decoder.1} parent=1 // pred_region
      %215 = dma.done [#allocation6], 4096
    $region101: #{transformer_decoder.1} parent=1 // pred_fallthru
      _
    // Predicated region
    $region102: #{transformer_decoder.1} parent=1 // pred_check
      _
    $region103: #{transformer_decoder.1} parent=1 // pred_check_branch
      %217 = sbr.rel (0) target = $region105
    $region104: #{transformer_decoder.1} parent=1 // pred_region
      %218 = dma.done [#allocation9], 32
    $region105: #{transformer_decoder.1} parent=1 // pred_fallthru
      _
    // Predicated region
    $region106: #{transformer_decoder.1} parent=1 // pred_check
      _
    $region107: #{transformer_decoder.1} parent=1 // pred_check_branch
      %220 = sbr.rel (0) target = $region109
    $region108: #{transformer_decoder.1} parent=1 // pred_region
      %221 = dma.done [#allocation9], 8192
    $region109: #{transformer_decoder.1} parent=1 // pred_fallthru
      _
    // Predicated region
    $region110: #{transformer_decoder.1} parent=1 // pred_check
      _
    $region111: #{transformer_decoder.1} parent=1 // pred_check_branch
      %223 = sbr.rel (0) target = $region113
    $region112: #{transformer_decoder.1} parent=1 // pred_region
      %224 = dma.done [#allocation12], 64
    $region113: #{transformer_decoder.1} parent=1 // pred_fallthru
      _
    // Predicated region
    $region114: #{transformer_decoder.1} parent=1 // pred_check
      _
    $region115: #{transformer_decoder.1} parent=1 // pred_check_branch
      %226 = sbr.rel (0) target = $region117
    $region116: #{transformer_decoder.1} parent=1 // pred_region
      %227 = dma.done [#allocation12], 4096
    $region117: #{transformer_decoder.1} parent=1 // pred_fallthru
      _
    // Predicated region
    $region118: #{transformer_decoder.1} parent=1 // pred_check
      _
    $region119: #{transformer_decoder.1} parent=1 // pred_check_branch
      %229 = sbr.rel (0) target = $region121
    $region120: #{transformer_decoder.1} parent=1 // pred_region
      %230 = dma.done [#allocation15], 32
    $region121: #{transformer_decoder.1} parent=1 // pred_fallthru
      _
    // Predicated region
    $region122: #{transformer_decoder.1} parent=1 // pred_check
      _
    $region123: #{transformer_decoder.1} parent=1 // pred_check_branch
      %232 = sbr.rel (0) target = $region125
    $region124: #{transformer_decoder.1} parent=1 // pred_region
      %233 = dma.done [#allocation15], 8192
    $region125: #{transformer_decoder.1} parent=1 // pred_fallthru
      _
    // Predicated region
    $region126: #{transformer_decoder.1} parent=1 // pred_check
      _
    $region127: #{transformer_decoder.1} parent=1 // pred_check_branch
      %235 = sbr.rel (0) target = $region129
    $region128: #{transformer_decoder.1} parent=1 // pred_region
      %236 = dma.done [#allocation18], 64
    $region129: #{transformer_decoder.1} parent=1 // pred_fallthru
      _
    // Predicated region
    $region130: #{transformer_decoder.1} parent=1 // pred_check
      _
    $region131: #{transformer_decoder.1} parent=1 // pred_check_branch
      %238 = sbr.rel (0) target = $region133
    $region132: #{transformer_decoder.1} parent=1 // pred_region
      %239 = dma.done [#allocation18], 8192
    $region133: #{transformer_decoder.1} parent=1 // pred_fallthru
      _
    // Predicated region
    $region134: #{transformer_decoder.1} parent=1 // pred_check
      _
    $region135: #{transformer_decoder.1} parent=1 // pred_check_branch
      %241 = sbr.rel (0) target = $region137
    $region136: #{transformer_decoder.1} parent=1 // pred_region
      %242 = dma.done [#allocation21], 32
    $region137: #{transformer_decoder.1} parent=1 // pred_fallthru
      _
    // Predicated region
    $region138: #{transformer_decoder.1} parent=1 // pred_check
      _
    $region139: #{transformer_decoder.1} parent=1 // pred_check_branch
      %244 = sbr.rel (0) target = $region141
    $region140: #{transformer_decoder.1} parent=1 // pred_region
      %245 = dma.done [#allocation21], 16
    $region141: #{transformer_decoder.1} parent=1 // pred_fallthru
      _
    %v246 = vld [vmem:[%s0] sm:$0xff]
    %v247 = vld [vmem:[%s0 + $0x8] sm:$0xff]
    %v248 = vld [vmem:[%s1] sm:$0xff]
    %v249 = vld [vmem:[%s1 + $0x8] sm:$0xff]
    %v250 = vld [vmem:[%s2] sm:$0xff]
    %v251 = vld [vmem:[%s2 + $0x8] sm:$0xff]
    %v252 = vld [vmem:[%s2 + $0x10] sm:$0xff]
    %v253 = vld [vmem:[%s2 + $0x18] sm:$0xff]
    %v254 = vld [vmem:[%s2 + $0x20] sm:$0xff]
    %v255 = vld [vmem:[%s2 + $0x28] sm:$0xff]
    %v256 = vld [vmem:[%s2 + $0x30] sm:$0xff]
    %v257 = vld [vmem:[%s2 + $0x38] sm:$0xff]
    %v258 = vld [vmem:[%s3] sm:$0xff]
    %v259 = vld [vmem:[%s3 + $0x8] sm:$0xff]
    %v260 = vld [vmem:[%s3 + $0x10] sm:$0xff]
    %v261 = vld [vmem:[%s3 + $0x18] sm:$0xff]
    %v262 = vld [vmem:[%s3 + $0x20] sm:$0xff]
    %v263 = vld [vmem:[%s3 + $0x28] sm:$0xff]
    %v264 = vld [vmem:[%s3 + $0x30] sm:$0xff]
    %v265 = vld [vmem:[%s3 + $0x38] sm:$0xff]
    %v266 = vld [vmem:[%s18] sm:$0x1]
    %v267 = vld [vmem:[%s18 + $0x1] sm:$0x1]
    %v268 = vld [vmem:[%s18 + $0x2] sm:$0x1]
    %v269 = vld [vmem:[%s19] sm:$0x1]
    %v270 = vld [vmem:[%s19 + $0x1] sm:$0x1]
    %v271 = vld [vmem:[%s19 + $0x2] sm:$0x1]
    %v272 = vld [vmem:[#allocation2] sm:$0xff]
    %v273 = vld [vmem:[#allocation2 + $0x8] sm:$0xff]
    %v274 = vld [vmem:[#allocation2 + $0x10] sm:$0xff]
    %v275 = vld [vmem:[#allocation2 + $0x18] sm:$0xff]
    %v276 = vld [vmem:[#allocation2 + $0x20] sm:$0xff]
    %v277 = vld [vmem:[#allocation2 + $0x28] sm:$0xff]
    %v278 = vld [vmem:[#allocation2 + $0x30] sm:$0xff]
    %v279 = vld [vmem:[#allocation2 + $0x38] sm:$0xff]
    %v280 = vld [vmem:[#allocation2 + $0x40] sm:$0xff]
    %v281 = vld [vmem:[#allocation2 + $0x48] sm:$0xff]
    %v282 = vld [vmem:[#allocation2 + $0x50] sm:$0xff]
    %v283 = vld [vmem:[#allocation2 + $0x58] sm:$0xff]
    %v284 = vld [vmem:[#allocation2 + $0x60] sm:$0xff]
    %v285 = vld [vmem:[#allocation2 + $0x68] sm:$0xff]
    %v286 = vld [vmem:[#allocation2 + $0x70] sm:$0xff]
    %v287 = vld [vmem:[#allocation2 + $0x78] sm:$0xff]
    %v288 = vld [vmem:[#allocation2 + $0x80] sm:$0xff]
    %v289 = vld [vmem:[#allocation2 + $0x88] sm:$0xff]
    %v290 = vld [vmem:[#allocation2 + $0x90] sm:$0xff]
    %v291 = vld [vmem:[#allocation2 + $0x98] sm:$0xff]
    %v292 = vld [vmem:[#allocation2 + $0xa0] sm:$0xff]
    %v293 = vld [vmem:[#allocation2 + $0xa8] sm:$0xff]
    %v294 = vld [vmem:[#allocation2 + $0xb0] sm:$0xff]
    %v295 = vld [vmem:[#allocation2 + $0xb8] sm:$0xff]
    %v296 = vld [vmem:[#allocation2 + $0xc0] sm:$0xff]
    %v297 = vld [vmem:[#allocation2 + $0xc8] sm:$0xff]
    %v298 = vld [vmem:[#allocation2 + $0xd0] sm:$0xff]
    %v299 = vld [vmem:[#allocation2 + $0xd8] sm:$0xff]
    %v300 = vld [vmem:[#allocation2 + $0xe0] sm:$0xff]
    %v301 = vld [vmem:[#allocation2 + $0xe8] sm:$0xff]
    %v302 = vld [vmem:[#allocation2 + $0xf0] sm:$0xff]
    %v303 = vld [vmem:[#allocation2 + $0xf8] sm:$0xff]
    %v304 = vld [vmem:[#allocation2 + $0x100] sm:$0xff]
    %v305 = vld [vmem:[#allocation2 + $0x108] sm:$0xff]
    %v306 = vld [vmem:[#allocation2 + $0x110] sm:$0xff]
    %v307 = vld [vmem:[#allocation2 + $0x118] sm:$0xff]
    %v308 = vld [vmem:[#allocation2 + $0x120] sm:$0xff]
    %v309 = vld [vmem:[#allocation2 + $0x128] sm:$0xff]
    %v310 = vld [vmem:[#allocation2 + $0x130] sm:$0xff]
    %v311 = vld [vmem:[#allocation2 + $0x138] sm:$0xff]
    %v312 = vld [vmem:[#allocation2 + $0x140] sm:$0xff]
    %v313 = vld [vmem:[#allocation2 + $0x148] sm:$0xff]
    %v314 = vld [vmem:[#allocation2 + $0x150] sm:$0xff]
    %v315 = vld [vmem:[#allocation2 + $0x158] sm:$0xff]
    %v316 = vld [vmem:[#allocation2 + $0x160] sm:$0xff]
    %v317 = vld [vmem:[#allocation2 + $0x168] sm:$0xff]
    %v318 = vld [vmem:[#allocation2 + $0x170] sm:$0xff]
    %v319 = vld [vmem:[#allocation2 + $0x178] sm:$0xff]
    %v320 = vld [vmem:[%s5] sm:$0x7]
    %v321 = vld [vmem:[%s6] sm:$0xff]
    %v322 = vld [vmem:[%s6 + $0x8] sm:$0xff]
    %v323 = vld [vmem:[%s6 + $0x10] sm:$0xff]
    %v324 = vld [vmem:[%s6 + $0x18] sm:$0xff]
    %v325 = vld [vmem:[%s6 + $0x20] sm:$0xff]
    %v326 = vld [vmem:[%s6 + $0x28] sm:$0xff]
    %v327 = vld [vmem:[%s6 + $0x30] sm:$0xff]
    %v328 = vld [vmem:[%s6 + $0x38] sm:$0xff]
    %v329 = vld [vmem:[%s6 + $0x40] sm:$0xff]
    %v330 = vld [vmem:[%s6 + $0x48] sm:$0xff]
    %v331 = vld [vmem:[%s6 + $0x50] sm:$0xff]
    %v332 = vld [vmem:[%s6 + $0x58] sm:$0xff]
    %v333 = vld [vmem:[%s6 + $0x60] sm:$0xff]
    %v334 = vld [vmem:[%s6 + $0x68] sm:$0xff]
    %v335 = vld [vmem:[%s6 + $0x70] sm:$0xff]
    %v336 = vld [vmem:[%s6 + $0x78] sm:$0xff]
    %v337 = vld [vmem:[#allocation5] sm:$0x1]
    %v338 = vld [vmem:[#allocation7] sm:$0xff]
    %v339 = vld [vmem:[#allocation7 + $0x8] sm:$0xff]
    %v340 = vld [vmem:[#allocation7 + $0x10] sm:$0xff]
    %v341 = vld [vmem:[#allocation7 + $0x18] sm:$0xff]
    %v342 = vld [vmem:[#allocation7 + $0x20] sm:$0xff]
    %v343 = vld [vmem:[#allocation7 + $0x28] sm:$0xff]
    %v344 = vld [vmem:[#allocation7 + $0x30] sm:$0xff]
    %v345 = vld [vmem:[#allocation7 + $0x38] sm:$0xff]
    %v346 = vld [vmem:[#allocation7 + $0x40] sm:$0xff]
    %v347 = vld [vmem:[#allocation7 + $0x48] sm:$0xff]
    %v348 = vld [vmem:[#allocation7 + $0x50] sm:$0xff]
    %v349 = vld [vmem:[#allocation7 + $0x58] sm:$0xff]
    %v350 = vld [vmem:[#allocation7 + $0x60] sm:$0xff]
    %v351 = vld [vmem:[#allocation7 + $0x68] sm:$0xff]
    %v352 = vld [vmem:[#allocation7 + $0x70] sm:$0xff]
    %v353 = vld [vmem:[#allocation7 + $0x78] sm:$0xff]
    %v354 = vld [vmem:[#allocation8] sm:$0x1]
    %v355 = vld [vmem:[#allocation10] sm:$0xff]
    %v356 = vld [vmem:[#allocation10 + $0x8] sm:$0xff]
    %v357 = vld [vmem:[#allocation10 + $0x10] sm:$0xff]
    %v358 = vld [vmem:[#allocation10 + $0x18] sm:$0xff]
    %v359 = vld [vmem:[#allocation10 + $0x20] sm:$0xff]
    %v360 = vld [vmem:[#allocation10 + $0x28] sm:$0xff]
    %v361 = vld [vmem:[#allocation10 + $0x30] sm:$0xff]
    %v362 = vld [vmem:[#allocation10 + $0x38] sm:$0xff]
    %v363 = vld [vmem:[#allocation10 + $0x40] sm:$0xff]
    %v364 = vld [vmem:[#allocation10 + $0x48] sm:$0xff]
    %v365 = vld [vmem:[#allocation10 + $0x50] sm:$0xff]
    %v366 = vld [vmem:[#allocation10 + $0x58] sm:$0xff]
    %v367 = vld [vmem:[#allocation10 + $0x60] sm:$0xff]
    %v368 = vld [vmem:[#allocation10 + $0x68] sm:$0xff]
    %v369 = vld [vmem:[#allocation10 + $0x70] sm:$0xff]
    %v370 = vld [vmem:[#allocation10 + $0x78] sm:$0xff]
    %v371 = vld [vmem:[#allocation10 + $0x80] sm:$0xff]
    %v372 = vld [vmem:[#allocation10 + $0x88] sm:$0xff]
    %v373 = vld [vmem:[#allocation10 + $0x90] sm:$0xff]
    %v374 = vld [vmem:[#allocation10 + $0x98] sm:$0xff]
    %v375 = vld [vmem:[#allocation10 + $0xa0] sm:$0xff]
    %v376 = vld [vmem:[#allocation10 + $0xa8] sm:$0xff]
    %v377 = vld [vmem:[#allocation10 + $0xb0] sm:$0xff]
    %v378 = vld [vmem:[#allocation10 + $0xb8] sm:$0xff]
    %v379 = vld [vmem:[#allocation10 + $0xc0] sm:$0xff]
    %v380 = vld [vmem:[#allocation10 + $0xc8] sm:$0xff]
    %v381 = vld [vmem:[#allocation10 + $0xd0] sm:$0xff]
    %v382 = vld [vmem:[#allocation10 + $0xd8] sm:$0xff]
    %v383 = vld [vmem:[#allocation10 + $0xe0] sm:$0xff]
    %v384 = vld [vmem:[#allocation10 + $0xe8] sm:$0xff]
    %v385 = vld [vmem:[#allocation10 + $0xf0] sm:$0xff]
    %v386 = vld [vmem:[#allocation10 + $0xf8] sm:$0xff]
    %v387 = vld [vmem:[#allocation11] sm:$0x3]
    %v388 = vld [vmem:[#allocation13] sm:$0xff]
    %v389 = vld [vmem:[#allocation13 + $0x8] sm:$0xff]
    %v390 = vld [vmem:[#allocation13 + $0x10] sm:$0xff]
    %v391 = vld [vmem:[#allocation13 + $0x18] sm:$0xff]
    %v392 = vld [vmem:[#allocation13 + $0x20] sm:$0xff]
    %v393 = vld [vmem:[#allocation13 + $0x28] sm:$0xff]
    %v394 = vld [vmem:[#allocation13 + $0x30] sm:$0xff]
    %v395 = vld [vmem:[#allocation13 + $0x38] sm:$0xff]
    %v396 = vld [vmem:[#allocation13 + $0x40] sm:$0xff]
    %v397 = vld [vmem:[#allocation13 + $0x48] sm:$0xff]
    %v398 = vld [vmem:[#allocation13 + $0x50] sm:$0xff]
    %v399 = vld [vmem:[#allocation13 + $0x58] sm:$0xff]
    %v400 = vld [vmem:[#allocation13 + $0x60] sm:$0xff]
    %v401 = vld [vmem:[#allocation13 + $0x68] sm:$0xff]
    %v402 = vld [vmem:[#allocation13 + $0x70] sm:$0xff]
    %v403 = vld [vmem:[#allocation13 + $0x78] sm:$0xff]
    %v404 = vld [vmem:[#allocation14] sm:$0x1]
    %v405 = vld [vmem:[#allocation16] sm:$0xff]
    %v406 = vld [vmem:[#allocation16 + $0x8] sm:$0xff]
    %v407 = vld [vmem:[#allocation16 + $0x10] sm:$0xff]
    %v408 = vld [vmem:[#allocation16 + $0x18] sm:$0xff]
    %v409 = vld [vmem:[#allocation16 + $0x20] sm:$0xff]
    %v410 = vld [vmem:[#allocation16 + $0x28] sm:$0xff]
    %v411 = vld [vmem:[#allocation16 + $0x30] sm:$0xff]
    %v412 = vld [vmem:[#allocation16 + $0x38] sm:$0xff]
    %v413 = vld [vmem:[#allocation16 + $0x40] sm:$0xff]
    %v414 = vld [vmem:[#allocation16 + $0x48] sm:$0xff]
    %v415 = vld [vmem:[#allocation16 + $0x50] sm:$0xff]
    %v416 = vld [vmem:[#allocation16 + $0x58] sm:$0xff]
    %v417 = vld [vmem:[#allocation16 + $0x60] sm:$0xff]
    %v418 = vld [vmem:[#allocation16 + $0x68] sm:$0xff]
    %v419 = vld [vmem:[#allocation16 + $0x70] sm:$0xff]
    %v420 = vld [vmem:[#allocation16 + $0x78] sm:$0xff]
    %v421 = vld [vmem:[#allocation16 + $0x80] sm:$0xff]
    %v422 = vld [vmem:[#allocation16 + $0x88] sm:$0xff]
    %v423 = vld [vmem:[#allocation16 + $0x90] sm:$0xff]
    %v424 = vld [vmem:[#allocation16 + $0x98] sm:$0xff]
    %v425 = vld [vmem:[#allocation16 + $0xa0] sm:$0xff]
    %v426 = vld [vmem:[#allocation16 + $0xa8] sm:$0xff]
    %v427 = vld [vmem:[#allocation16 + $0xb0] sm:$0xff]
    %v428 = vld [vmem:[#allocation16 + $0xb8] sm:$0xff]
    %v429 = vld [vmem:[#allocation16 + $0xc0] sm:$0xff]
    %v430 = vld [vmem:[#allocation16 + $0xc8] sm:$0xff]
    %v431 = vld [vmem:[#allocation16 + $0xd0] sm:$0xff]
    %v432 = vld [vmem:[#allocation16 + $0xd8] sm:$0xff]
    %v433 = vld [vmem:[#allocation16 + $0xe0] sm:$0xff]
    %v434 = vld [vmem:[#allocation16 + $0xe8] sm:$0xff]
    %v435 = vld [vmem:[#allocation16 + $0xf0] sm:$0xff]
    %v436 = vld [vmem:[#allocation16 + $0xf8] sm:$0xff]
    %v437 = vld [vmem:[#allocation17] sm:$0x3]
    %v438 = vld [vmem:[#allocation19] sm:$0xff]
    %v439 = vld [vmem:[#allocation19 + $0x8] sm:$0xff]
    %v440 = vld [vmem:[#allocation19 + $0x10] sm:$0xff]
    %v441 = vld [vmem:[#allocation19 + $0x18] sm:$0xff]
    %v442 = vld [vmem:[#allocation19 + $0x20] sm:$0xff]
    %v443 = vld [vmem:[#allocation19 + $0x28] sm:$0xff]
    %v444 = vld [vmem:[#allocation19 + $0x30] sm:$0xff]
    %v445 = vld [vmem:[#allocation19 + $0x38] sm:$0xff]
    %v446 = vld [vmem:[#allocation19 + $0x40] sm:$0xff]
    %v447 = vld [vmem:[#allocation19 + $0x48] sm:$0xff]
    %v448 = vld [vmem:[#allocation19 + $0x50] sm:$0xff]
    %v449 = vld [vmem:[#allocation19 + $0x58] sm:$0xff]
    %v450 = vld [vmem:[#allocation19 + $0x60] sm:$0xff]
    %v451 = vld [vmem:[#allocation19 + $0x68] sm:$0xff]
    %v452 = vld [vmem:[#allocation19 + $0x70] sm:$0xff]
    %v453 = vld [vmem:[#allocation19 + $0x78] sm:$0xff]
    %v454 = vld [vmem:[#allocation19 + $0x80] sm:$0xff]
    %v455 = vld [vmem:[#allocation19 + $0x88] sm:$0xff]
    %v456 = vld [vmem:[#allocation19 + $0x90] sm:$0xff]
    %v457 = vld [vmem:[#allocation19 + $0x98] sm:$0xff]
    %v458 = vld [vmem:[#allocation19 + $0xa0] sm:$0xff]
    %v459 = vld [vmem:[#allocation19 + $0xa8] sm:$0xff]
    %v460 = vld [vmem:[#allocation19 + $0xb0] sm:$0xff]
    %v461 = vld [vmem:[#allocation19 + $0xb8] sm:$0xff]
    %v462 = vld [vmem:[#allocation19 + $0xc0] sm:$0xff]
    %v463 = vld [vmem:[#allocation19 + $0xc8] sm:$0xff]
    %v464 = vld [vmem:[#allocation19 + $0xd0] sm:$0xff]
    %v465 = vld [vmem:[#allocation19 + $0xd8] sm:$0xff]
    %v466 = vld [vmem:[#allocation19 + $0xe0] sm:$0xff]
    %v467 = vld [vmem:[#allocation19 + $0xe8] sm:$0xff]
    %v468 = vld [vmem:[#allocation19 + $0xf0] sm:$0xff]
    %v469 = vld [vmem:[#allocation19 + $0xf8] sm:$0xff]
    %v470 = vld [vmem:[#allocation20] sm:$0x1]
    %471 = vadd.xlane.f32.xlu0 %v246
    %v472 = vpop.xlane.xlu0 %471
    %473 = vadd.xlane.f32.xlu0 %v247
    %v474 = vpop.xlane.xlu0 %473
    %v475 = vrcp.pop 128.0
    %v476 = vmul.f32 %v472, %v475
    %v477 = vmul.f32 %v474, %v475
    %v478 = vsub.f32 %v246, %v476
    %v479 = vsub.f32 %v247, %v477
    %v480 = vmul.f32 %v478, %v478
    %v481 = vmul.f32 %v479, %v479
    %482 = vadd.xlane.f32.xlu0 %v480
    %v483 = vpop.xlane.xlu0 %482
    %484 = vadd.xlane.f32.xlu0 %v481
    %v485 = vpop.xlane.xlu0 %484
    %v486 = vmul.f32 %v483, %v475
    %v487 = vmul.f32 %v485, %v475
    %v488 = vadd.f32 %v486, 1e-05
    %v489 = vadd.f32 %v487, 1e-05
    %v490 = vrsqrt.pop %v488
    %v491 = vrsqrt.pop %v489
    %v492 = vmul.f32 %v478, %v490
    %v493 = vmul.f32 %v479, %v491
    %v495 = vlaneseq
    %v496 = vshrl.u32 %v495, 7
    %v497 = vsub.s32 0, %v496
    %v498 = vrot.slane %v266, %v497
    %v500 = vmul.f32 %v492, %v498
    %v501 = vmul.f32 %v493, %v498
    %v503 = vlaneseq
    %v504 = vshrl.u32 %v503, 7
    %v505 = vsub.s32 0, %v504
    %v506 = vrot.slane %v269, %v505
    %v508 = vadd.f32 %v500, %v506
    %v509 = vadd.f32 %v501, %v506
    %v511 = vlaneseq
    %v512 = vshrl.u32 %v511, 7
    %v513 = vsub.s32 0, %v512
    %v514 = vrot.slane %v320, %v513
    %v515 = vlaneseq
    %v516 = vshrl.u32 %v515, 7
    %v517 = vsub.s32 1, %v516
    %v518 = vrot.slane %v320, %v517
    %v519 = vlaneseq
    %v520 = vshrl.u32 %v519, 7
    %v521 = vsub.s32 2, %v520
    %v522 = vrot.slane %v320, %v521
    %526 = vmatprep.subr.mxu0 %v273
    %527 = vmatpush1.msra.mxu0 %v272
    %528 = vmatprep.subr.mxu0 %v276
    %529 = vmatpush1.msra.mxu0 %v275
    %530 = vmatprep.subr.mxu0 %v279
    %531 = vmatpush1.msra.mxu0 %v278
    %532 = vmatprep.subr.mxu0 %v282
    %533 = vmatpush1.msra.mxu0 %v281
    %534 = vmatprep.subr.mxu0 %v285
    %535 = vmatpush1.msra.mxu0 %v284
    %536 = vmatprep.subr.mxu0 %v288
    %537 = vmatpush1.msra.mxu0 %v287
    %538 = vmatprep.subr.mxu0 %v291
    %539 = vmatpush1.msra.mxu0 %v290
    %540 = vmatprep.subr.mxu0 %v294
    %541 = vmatpush1.msra.mxu0 %v293
    %542 = vmatprep.subr.mxu0 %v297
    %543 = vmatpush1.msra.mxu0 %v296
    %544 = vmatprep.subr.mxu0 %v300
    %545 = vmatpush1.msra.mxu0 %v299
    %546 = vmatprep.subr.mxu0 %v303
    %547 = vmatpush1.msra.mxu0 %v302
    %548 = vmatprep.subr.mxu0 %v306
    %549 = vmatpush1.msra.mxu0 %v305
    %550 = vmatprep.subr.mxu0 %v309
    %551 = vmatpush1.msra.mxu0 %v308
    %552 = vmatprep.subr.mxu0 %v312
    %553 = vmatpush1.msra.mxu0 %v311
    %554 = vmatprep.subr.mxu0 %v315
    %555 = vmatpush1.msra.mxu0 %v314
    %556 = vmatprep.subr.mxu0 %v318
    %557 = vmatpush1.msra.mxu0 %v317
    %558 = vmatprep.subr.mxu0 0.0
    %559 = vmatpush1.msra.mxu0 0.0
    %560 = vmatprep.subr.mxu0 0.0
    %561 = vmatpush1.msra.mxu0 0.0
    %562 = vmatprep.subr.mxu0 0.0
    %563 = vmatpush1.msra.mxu0 0.0
    %564 = vmatprep.subr.mxu0 0.0
    %565 = vmatpush1.msra.mxu0 0.0
    %566 = vmatprep.subr.mxu0 0.0
    %567 = vmatpush1.msra.mxu0 0.0
    %568 = vmatprep.subr.mxu0 0.0
    %569 = vmatpush1.msra.mxu0 0.0
    %570 = vmatprep.subr.mxu0 0.0
    %571 = vmatpush1.msra.mxu0 0.0
    %572 = vmatprep.subr.mxu0 0.0
    %573 = vmatpush1.msra.mxu0 0.0
    %574 = vmatprep.subr.mxu0 0.0
    %575 = vmatpush1.msra.mxu0 0.0
    %576 = vmatprep.subr.mxu0 0.0
    %577 = vmatpush1.msra.mxu0 0.0
    %578 = vmatprep.subr.mxu0 0.0
    %579 = vmatpush1.msra.mxu0 0.0
    %580 = vmatprep.subr.mxu0 0.0
    %581 = vmatpush1.msra.mxu0 0.0
    %582 = vmatprep.subr.mxu0 0.0
    %583 = vmatpush1.msra.mxu0 0.0
    %584 = vmatprep.subr.mxu0 0.0
    %585 = vmatpush1.msra.mxu0 0.0
    %586 = vmatprep.subr.mxu0 0.0
    %587 = vmatpush1.msra.mxu0 0.0
    %588 = vmatprep.subr.mxu0 0.0
    %589 = vmatpush1.msra.mxu0 0.0
    %590 = vmatprep.mubr.f32.mxu0 0.0
    %591 = vmatmul.mubr.f32.gmra.mrb[0].mxu0 %v508
    %v592 = vpop.f32.mrb[0].mxu0
    %v593 = vadd.f32 %v514, %v592
    %v594 = vpop.f32.mrb[0].mxu0
    %v595 = vadd.f32 %v518, %v594
    %596 = vmatprep.mubr.f32.mxu0 0.0
    %597 = vmatmul.mubr.f32.gmra.mrb[0].mxu0 %v509
    %v598 = vpop.f32.mrb[0].mxu0
    %v599 = vadd.f32 %v514, %v598
    %v600 = vpop.f32.mrb[0].mxu0
    %v601 = vadd.f32 %v518, %v600
    %602 = vdwg.mxu0
    %603 = vmatprep.subr.mxu0 0.0
    %604 = vmatpush1.msra.mxu0 %v274
    %605 = vmatprep.subr.mxu0 0.0
    %606 = vmatpush1.msra.mxu0 %v277
    %607 = vmatprep.subr.mxu0 0.0
    %608 = vmatpush1.msra.mxu0 %v280
    %609 = vmatprep.subr.mxu0 0.0
    %610 = vmatpush1.msra.mxu0 %v283
    %611 = vmatprep.subr.mxu0 0.0
    %612 = vmatpush1.msra.mxu0 %v286
    %613 = vmatprep.subr.mxu0 0.0
    %614 = vmatpush1.msra.mxu0 %v289
    %615 = vmatprep.subr.mxu0 0.0
    %616 = vmatpush1.msra.mxu0 %v292
    %617 = vmatprep.subr.mxu0 0.0
    %618 = vmatpush1.msra.mxu0 %v295
    %619 = vmatprep.subr.mxu0 0.0
    %620 = vmatpush1.msra.mxu0 %v298
    %621 = vmatprep.subr.mxu0 0.0
    %622 = vmatpush1.msra.mxu0 %v301
    %623 = vmatprep.subr.mxu0 0.0
    %624 = vmatpush1.msra.mxu0 %v304
    %625 = vmatprep.subr.mxu0 0.0
    %626 = vmatpush1.msra.mxu0 %v307
    %627 = vmatprep.subr.mxu0 0.0
    %628 = vmatpush1.msra.mxu0 %v310
    %629 = vmatprep.subr.mxu0 0.0
    %630 = vmatpush1.msra.mxu0 %v313
    %631 = vmatprep.subr.mxu0 0.0
    %632 = vmatpush1.msra.mxu0 %v316
    %633 = vmatprep.subr.mxu0 0.0
    %634 = vmatpush1.msra.mxu0 %v319
    %635 = vmatprep.subr.mxu0 0.0
    %636 = vmatpush1.msra.mxu0 0.0
    %637 = vmatprep.subr.mxu0 0.0
    %638 = vmatpush1.msra.mxu0 0.0
    %639 = vmatprep.subr.mxu0 0.0
    %640 = vmatpush1.msra.mxu0 0.0
    %641 = vmatprep.subr.mxu0 0.0
    %642 = vmatpush1.msra.mxu0 0.0
    %643 = vmatprep.subr.mxu0 0.0
    %644 = vmatpush1.msra.mxu0 0.0
    %645 = vmatprep.subr.mxu0 0.0
    %646 = vmatpush1.msra.mxu0 0.0
    %647 = vmatprep.subr.mxu0 0.0
    %648 = vmatpush1.msra.mxu0 0.0
    %649 = vmatprep.subr.mxu0 0.0
    %650 = vmatpush1.msra.mxu0 0.0
    %651 = vmatprep.subr.mxu0 0.0
    %652 = vmatpush1.msra.mxu0 0.0
    %653 = vmatprep.subr.mxu0 0.0
    %654 = vmatpush1.msra.mxu0 0.0
    %655 = vmatprep.subr.mxu0 0.0
    %656 = vmatpush1.msra.mxu0 0.0
    %657 = vmatprep.subr.mxu0 0.0
    %658 = vmatpush1.msra.mxu0 0.0
    %659 = vmatprep.subr.mxu0 0.0
    %660 = vmatpush1.msra.mxu0 0.0
    %661 = vmatprep.subr.mxu0 0.0
    %662 = vmatpush1.msra.mxu0 0.0
    %663 = vmatprep.subr.mxu0 0.0
    %664 = vmatpush1.msra.mxu0 0.0
    %665 = vmatprep.subr.mxu0 0.0
    %666 = vmatpush1.msra.mxu0 0.0
    %667 = vmatprep.mubr.f32.mxu0 0.0
    %668 = vmatmul.mubr.f32.gmra.mrb[0].mxu0 %v508
    %v669 = vpop.f32.mrb[0].mxu0
    %v670 = vadd.f32 %v522, %v669
    %v671 = vpop.f32.mrb[0].mxu0
    %672 = vmatprep.mubr.f32.mxu0 0.0
    %673 = vmatmul.mubr.f32.gmra.mrb[0].mxu0 %v509
    %v674 = vpop.f32.mrb[0].mxu0
    %v675 = vadd.f32 %v522, %v674
    %v676 = vpop.f32.mrb[0].mxu0
    %677 = vdwg.mxu0
    %680 = vrot.lane.b32.xlu0 %v593, 96
    %v681 = vpop.permute.xlu0 %680
    %682 = vrot.lane.b32.xlu0 %v599, 96
    %v683 = vpop.permute.xlu0 %682
    %684 = vrot.lane.b32.xlu0 %v593, 64
    %v685 = vpop.permute.xlu0 %684
    %686 = vrot.lane.b32.xlu0 %v599, 64
    %v687 = vpop.permute.xlu0 %686
    %688 = vrot.lane.b32.xlu0 %v593, 32
    %v689 = vpop.permute.xlu0 %688
    %690 = vrot.lane.b32.xlu0 %v599, 32
    %v691 = vpop.permute.xlu0 %690
    %694 = vrot.lane.b32.xlu0 %v595, 96
    %v695 = vpop.permute.xlu0 %694
    %696 = vrot.lane.b32.xlu0 %v601, 96
    %v697 = vpop.permute.xlu0 %696
    %698 = vrot.lane.b32.xlu0 %v595, 64
    %v699 = vpop.permute.xlu0 %698
    %700 = vrot.lane.b32.xlu0 %v601, 64
    %v701 = vpop.permute.xlu0 %700
    %702 = vrot.lane.b32.xlu0 %v595, 32
    %v703 = vpop.permute.xlu0 %702
    %704 = vrot.lane.b32.xlu0 %v601, 32
    %v705 = vpop.permute.xlu0 %704
    %708 = vrot.lane.b32.xlu0 %v670, 96
    %v709 = vpop.permute.xlu0 %708
    %710 = vrot.lane.b32.xlu0 %v675, 96
    %v711 = vpop.permute.xlu0 %710
    %714 = vrot.lane.b32.xlu0 %v670, 64
    %v715 = vpop.permute.xlu0 %714
    %716 = vrot.lane.b32.xlu0 %v675, 64
    %v717 = vpop.permute.xlu0 %716
    %720 = vrot.lane.b32.xlu0 %v670, 32
    %v721 = vpop.permute.xlu0 %720
    %722 = vrot.lane.b32.xlu0 %v675, 32
    %v723 = vpop.permute.xlu0 %722
    %vm726 = vcmask 261120
    %v727 = vsel %vm726, %v593, 0
    %v729 = vsel %vm726, %v595, 0
    %731 = vmatprep.subr.mxu0 0.0
    %732 = vmatpush1.xpose.msra.mxu0 %v729
    %733 = vmatprep.subr.mxu0 0.0
    %734 = vmatpush1.xpose.msra.mxu0 0.0
    %735 = vmatprep.subr.mxu0 0.0
    %736 = vmatpush1.xpose.msra.mxu0 0.0
    %737 = vmatprep.subr.mxu0 0.0
    %738 = vmatpush1.xpose.msra.mxu0 0.0
    %739 = vmatprep.subr.mxu0 0.0
    %740 = vmatpush1.xpose.msra.mxu0 0.0
    %741 = vmatprep.subr.mxu0 0.0
    %742 = vmatpush1.xpose.msra.mxu0 0.0
    %743 = vmatprep.subr.mxu0 0.0
    %744 = vmatpush1.xpose.msra.mxu0 0.0
    %745 = vmatprep.subr.mxu0 0.0
    %746 = vmatpush1.xpose.msra.mxu0 0.0
    %747 = vmatprep.subr.mxu0 0.0
    %748 = vmatpush1.xpose.msra.mxu0 0.0
    %749 = vmatprep.subr.mxu0 0.0
    %750 = vmatpush1.xpose.msra.mxu0 0.0
    %751 = vmatprep.subr.mxu0 0.0
    %752 = vmatpush1.xpose.msra.mxu0 0.0
    %753 = vmatprep.subr.mxu0 0.0
    %754 = vmatpush1.xpose.msra.mxu0 0.0
    %755 = vmatprep.subr.mxu0 0.0
    %756 = vmatpush1.xpose.msra.mxu0 0.0
    %757 = vmatprep.subr.mxu0 0.0
    %758 = vmatpush1.xpose.msra.mxu0 0.0
    %759 = vmatprep.subr.mxu0 0.0
    %760 = vmatpush1.xpose.msra.mxu0 0.0
    %761 = vmatprep.subr.mxu0 0.0
    %762 = vmatpush1.xpose.msra.mxu0 0.0
    %763 = vmatprep.subr.mxu0 0.0
    %764 = vmatpush1.xpose.msra.mxu0 0.0
    %765 = vmatprep.subr.mxu0 0.0
    %766 = vmatpush1.xpose.msra.mxu0 0.0
    %767 = vmatprep.subr.mxu0 0.0
    %768 = vmatpush1.xpose.msra.mxu0 0.0
    %769 = vmatprep.subr.mxu0 0.0
    %770 = vmatpush1.xpose.msra.mxu0 0.0
    %771 = vmatprep.subr.mxu0 0.0
    %772 = vmatpush1.xpose.msra.mxu0 0.0
    %773 = vmatprep.subr.mxu0 0.0
    %774 = vmatpush1.xpose.msra.mxu0 0.0
    %775 = vmatprep.subr.mxu0 0.0
    %776 = vmatpush1.xpose.msra.mxu0 0.0
    %777 = vmatprep.subr.mxu0 0.0
    %778 = vmatpush1.xpose.msra.mxu0 0.0
    %779 = vmatprep.subr.mxu0 0.0
    %780 = vmatpush1.xpose.msra.mxu0 0.0
    %781 = vmatprep.subr.mxu0 0.0
    %782 = vmatpush1.xpose.msra.mxu0 0.0
    %783 = vmatprep.subr.mxu0 0.0
    %784 = vmatpush1.xpose.msra.mxu0 0.0
    %785 = vmatprep.subr.mxu0 0.0
    %786 = vmatpush1.xpose.msra.mxu0 0.0
    %787 = vmatprep.subr.mxu0 0.0
    %788 = vmatpush1.xpose.msra.mxu0 0.0
    %789 = vmatprep.subr.mxu0 0.0
    %790 = vmatpush1.xpose.msra.mxu0 0.0
    %791 = vmatprep.subr.mxu0 0.0
    %792 = vmatpush1.xpose.msra.mxu0 0.0
    %793 = vmatprep.subr.mxu0 0.0
    %794 = vmatpush1.xpose.msra.mxu0 0.0
    %795 = vmatprep.mubr.f32.mxu0 0.0
    %796 = vmatmul.mubr.f32.gmra.mrb[0].mxu0 %v727
    %v797 = vpop.f32.mrb[0].mxu0
    %v798 = vadd.f32 0.0, %v797
    %v799 = vpop.f32.mrb[0].mxu0
    %800 = vdwg.mxu0
    %v801 = vsel %vm726, %v599, 0
    %v803 = vsel %vm726, %v601, 0
    %805 = vmatprep.subr.mxu0 0.0
    %806 = vmatpush1.xpose.msra.mxu0 %v803
    %807 = vmatprep.subr.mxu0 0.0
    %808 = vmatpush1.xpose.msra.mxu0 0.0
    %809 = vmatprep.subr.mxu0 0.0
    %810 = vmatpush1.xpose.msra.mxu0 0.0
    %811 = vmatprep.subr.mxu0 0.0
    %812 = vmatpush1.xpose.msra.mxu0 0.0
    %813 = vmatprep.subr.mxu0 0.0
    %814 = vmatpush1.xpose.msra.mxu0 0.0
    %815 = vmatprep.subr.mxu0 0.0
    %816 = vmatpush1.xpose.msra.mxu0 0.0
    %817 = vmatprep.subr.mxu0 0.0
    %818 = vmatpush1.xpose.msra.mxu0 0.0
    %819 = vmatprep.subr.mxu0 0.0
    %820 = vmatpush1.xpose.msra.mxu0 0.0
    %821 = vmatprep.subr.mxu0 0.0
    %822 = vmatpush1.xpose.msra.mxu0 0.0
    %823 = vmatprep.subr.mxu0 0.0
    %824 = vmatpush1.xpose.msra.mxu0 0.0
    %825 = vmatprep.subr.mxu0 0.0
    %826 = vmatpush1.xpose.msra.mxu0 0.0
    %827 = vmatprep.subr.mxu0 0.0
    %828 = vmatpush1.xpose.msra.mxu0 0.0
    %829 = vmatprep.subr.mxu0 0.0
    %830 = vmatpush1.xpose.msra.mxu0 0.0
    %831 = vmatprep.subr.mxu0 0.0
    %832 = vmatpush1.xpose.msra.mxu0 0.0
    %833 = vmatprep.subr.mxu0 0.0
    %834 = vmatpush1.xpose.msra.mxu0 0.0
    %835 = vmatprep.subr.mxu0 0.0
    %836 = vmatpush1.xpose.msra.mxu0 0.0
    %837 = vmatprep.subr.mxu0 0.0
    %838 = vmatpush1.xpose.msra.mxu0 0.0
    %839 = vmatprep.subr.mxu0 0.0
    %840 = vmatpush1.xpose.msra.mxu0 0.0
    %841 = vmatprep.subr.mxu0 0.0
    %842 = vmatpush1.xpose.msra.mxu0 0.0
    %843 = vmatprep.subr.mxu0 0.0
    %844 = vmatpush1.xpose.msra.mxu0 0.0
    %845 = vmatprep.subr.mxu0 0.0
    %846 = vmatpush1.xpose.msra.mxu0 0.0
    %847 = vmatprep.subr.mxu0 0.0
    %848 = vmatpush1.xpose.msra.mxu0 0.0
    %849 = vmatprep.subr.mxu0 0.0
    %850 = vmatpush1.xpose.msra.mxu0 0.0
    %851 = vmatprep.subr.mxu0 0.0
    %852 = vmatpush1.xpose.msra.mxu0 0.0
    %853 = vmatprep.subr.mxu0 0.0
    %854 = vmatpush1.xpose.msra.mxu0 0.0
    %855 = vmatprep.subr.mxu0 0.0
    %856 = vmatpush1.xpose.msra.mxu0 0.0
    %857 = vmatprep.subr.mxu0 0.0
    %858 = vmatpush1.xpose.msra.mxu0 0.0
    %859 = vmatprep.subr.mxu0 0.0
    %860 = vmatpush1.xpose.msra.mxu0 0.0
    %861 = vmatprep.subr.mxu0 0.0
    %862 = vmatpush1.xpose.msra.mxu0 0.0
    %863 = vmatprep.subr.mxu0 0.0
    %864 = vmatpush1.xpose.msra.mxu0 0.0
    %865 = vmatprep.subr.mxu0 0.0
    %866 = vmatpush1.xpose.msra.mxu0 0.0
    %867 = vmatprep.subr.mxu0 0.0
    %868 = vmatpush1.xpose.msra.mxu0 0.0
    %869 = vmatprep.mubr.f32.mxu0 0.0
    %870 = vmatmul.mubr.f32.gmra.mrb[0].mxu0 %v801
    %v871 = vpop.f32.mrb[0].mxu0
    %v872 = vadd.f32 0.0, %v871
    %v873 = vpop.f32.mrb[0].mxu0
    %874 = vdwg.mxu0
    %v875 = vsel %vm726, %v681, 0
    %v877 = vsel %vm726, %v695, 0
    %879 = vmatprep.subr.mxu0 0.0
    %880 = vmatpush1.xpose.msra.mxu0 %v877
    %881 = vmatprep.subr.mxu0 0.0
    %882 = vmatpush1.xpose.msra.mxu0 0.0
    %883 = vmatprep.subr.mxu0 0.0
    %884 = vmatpush1.xpose.msra.mxu0 0.0
    %885 = vmatprep.subr.mxu0 0.0
    %886 = vmatpush1.xpose.msra.mxu0 0.0
    %887 = vmatprep.subr.mxu0 0.0
    %888 = vmatpush1.xpose.msra.mxu0 0.0
    %889 = vmatprep.subr.mxu0 0.0
    %890 = vmatpush1.xpose.msra.mxu0 0.0
    %891 = vmatprep.subr.mxu0 0.0
    %892 = vmatpush1.xpose.msra.mxu0 0.0
    %893 = vmatprep.subr.mxu0 0.0
    %894 = vmatpush1.xpose.msra.mxu0 0.0
    %895 = vmatprep.subr.mxu0 0.0
    %896 = vmatpush1.xpose.msra.mxu0 0.0
    %897 = vmatprep.subr.mxu0 0.0
    %898 = vmatpush1.xpose.msra.mxu0 0.0
    %899 = vmatprep.subr.mxu0 0.0
    %900 = vmatpush1.xpose.msra.mxu0 0.0
    %901 = vmatprep.subr.mxu0 0.0
    %902 = vmatpush1.xpose.msra.mxu0 0.0
    %903 = vmatprep.subr.mxu0 0.0
    %904 = vmatpush1.xpose.msra.mxu0 0.0
    %905 = vmatprep.subr.mxu0 0.0
    %906 = vmatpush1.xpose.msra.mxu0 0.0
    %907 = vmatprep.subr.mxu0 0.0
    %908 = vmatpush1.xpose.msra.mxu0 0.0
    %909 = vmatprep.subr.mxu0 0.0
    %910 = vmatpush1.xpose.msra.mxu0 0.0
    %911 = vmatprep.subr.mxu0 0.0
    %912 = vmatpush1.xpose.msra.mxu0 0.0
    %913 = vmatprep.subr.mxu0 0.0
    %914 = vmatpush1.xpose.msra.mxu0 0.0
    %915 = vmatprep.subr.mxu0 0.0
    %916 = vmatpush1.xpose.msra.mxu0 0.0
    %917 = vmatprep.subr.mxu0 0.0
    %918 = vmatpush1.xpose.msra.mxu0 0.0
    %919 = vmatprep.subr.mxu0 0.0
    %920 = vmatpush1.xpose.msra.mxu0 0.0
    %921 = vmatprep.subr.mxu0 0.0
    %922 = vmatpush1.xpose.msra.mxu0 0.0
    %923 = vmatprep.subr.mxu0 0.0
    %924 = vmatpush1.xpose.msra.mxu0 0.0
    %925 = vmatprep.subr.mxu0 0.0
    %926 = vmatpush1.xpose.msra.mxu0 0.0
    %927 = vmatprep.subr.mxu0 0.0
    %928 = vmatpush1.xpose.msra.mxu0 0.0
    %929 = vmatprep.subr.mxu0 0.0
    %930 = vmatpush1.xpose.msra.mxu0 0.0
    %931 = vmatprep.subr.mxu0 0.0
    %932 = vmatpush1.xpose.msra.mxu0 0.0
    %933 = vmatprep.subr.mxu0 0.0
    %934 = vmatpush1.xpose.msra.mxu0 0.0
    %935 = vmatprep.subr.mxu0 0.0
    %936 = vmatpush1.xpose.msra.mxu0 0.0
    %937 = vmatprep.subr.mxu0 0.0
    %938 = vmatpush1.xpose.msra.mxu0 0.0
    %939 = vmatprep.subr.mxu0 0.0
    %940 = vmatpush1.xpose.msra.mxu0 0.0
    %941 = vmatprep.subr.mxu0 0.0
    %942 = vmatpush1.xpose.msra.mxu0 0.0
    %943 = vmatprep.mubr.f32.mxu0 0.0
    %944 = vmatmul.mubr.f32.gmra.mrb[0].mxu0 %v875
    %v945 = vpop.f32.mrb[0].mxu0
    %v946 = vadd.f32 0.0, %v945
    %v947 = vpop.f32.mrb[0].mxu0
    %948 = vdwg.mxu0
    %v949 = vsel %vm726, %v683, 0
    %v951 = vsel %vm726, %v697, 0
    %953 = vmatprep.subr.mxu0 0.0
    %954 = vmatpush1.xpose.msra.mxu0 %v951
    %955 = vmatprep.subr.mxu0 0.0
    %956 = vmatpush1.xpose.msra.mxu0 0.0
    %957 = vmatprep.subr.mxu0 0.0
    %958 = vmatpush1.xpose.msra.mxu0 0.0
    %959 = vmatprep.subr.mxu0 0.0
    %960 = vmatpush1.xpose.msra.mxu0 0.0
    %961 = vmatprep.subr.mxu0 0.0
    %962 = vmatpush1.xpose.msra.mxu0 0.0
    %963 = vmatprep.subr.mxu0 0.0
    %964 = vmatpush1.xpose.msra.mxu0 0.0
    %965 = vmatprep.subr.mxu0 0.0
    %966 = vmatpush1.xpose.msra.mxu0 0.0
    %967 = vmatprep.subr.mxu0 0.0
    %968 = vmatpush1.xpose.msra.mxu0 0.0
    %969 = vmatprep.subr.mxu0 0.0
    %970 = vmatpush1.xpose.msra.mxu0 0.0
    %971 = vmatprep.subr.mxu0 0.0
    %972 = vmatpush1.xpose.msra.mxu0 0.0
    %973 = vmatprep.subr.mxu0 0.0
    %974 = vmatpush1.xpose.msra.mxu0 0.0
    %975 = vmatprep.subr.mxu0 0.0
    %976 = vmatpush1.xpose.msra.mxu0 0.0
    %977 = vmatprep.subr.mxu0 0.0
    %978 = vmatpush1.xpose.msra.mxu0 0.0
    %979 = vmatprep.subr.mxu0 0.0
    %980 = vmatpush1.xpose.msra.mxu0 0.0
    %981 = vmatprep.subr.mxu0 0.0
    %982 = vmatpush1.xpose.msra.mxu0 0.0
    %983 = vmatprep.subr.mxu0 0.0
    %984 = vmatpush1.xpose.msra.mxu0 0.0
    %985 = vmatprep.subr.mxu0 0.0
    %986 = vmatpush1.xpose.msra.mxu0 0.0
    %987 = vmatprep.subr.mxu0 0.0
    %988 = vmatpush1.xpose.msra.mxu0 0.0
    %989 = vmatprep.subr.mxu0 0.0
    %990 = vmatpush1.xpose.msra.mxu0 0.0
    %991 = vmatprep.subr.mxu0 0.0
    %992 = vmatpush1.xpose.msra.mxu0 0.0
    %993 = vmatprep.subr.mxu0 0.0
    %994 = vmatpush1.xpose.msra.mxu0 0.0
    %995 = vmatprep.subr.mxu0 0.0
    %996 = vmatpush1.xpose.msra.mxu0 0.0
    %997 = vmatprep.subr.mxu0 0.0
    %998 = vmatpush1.xpose.msra.mxu0 0.0
    %999 = vmatprep.subr.mxu0 0.0
    %1000 = vmatpush1.xpose.msra.mxu0 0.0
    %1001 = vmatprep.subr.mxu0 0.0
    %1002 = vmatpush1.xpose.msra.mxu0 0.0
    %1003 = vmatprep.subr.mxu0 0.0
    %1004 = vmatpush1.xpose.msra.mxu0 0.0
    %1005 = vmatprep.subr.mxu0 0.0
    %1006 = vmatpush1.xpose.msra.mxu0 0.0
    %1007 = vmatprep.subr.mxu0 0.0
    %1008 = vmatpush1.xpose.msra.mxu0 0.0
    %1009 = vmatprep.subr.mxu0 0.0
    %1010 = vmatpush1.xpose.msra.mxu0 0.0
    %1011 = vmatprep.subr.mxu0 0.0
    %1012 = vmatpush1.xpose.msra.mxu0 0.0
    %1013 = vmatprep.subr.mxu0 0.0
    %1014 = vmatpush1.xpose.msra.mxu0 0.0
    %1015 = vmatprep.subr.mxu0 0.0
    %1016 = vmatpush1.xpose.msra.mxu0 0.0
    %1017 = vmatprep.mubr.f32.mxu0 0.0
    %1018 = vmatmul.mubr.f32.gmra.mrb[0].mxu0 %v949
    %v1019 = vpop.f32.mrb[0].mxu0
    %v1020 = vadd.f32 0.0, %v1019
    %v1021 = vpop.f32.mrb[0].mxu0
    %1022 = vdwg.mxu0
    %v1023 = vsel %vm726, %v685, 0
    %v1025 = vsel %vm726, %v699, 0
    %1027 = vmatprep.subr.mxu0 0.0
    %1028 = vmatpush1.xpose.msra.mxu0 %v1025
    %1029 = vmatprep.subr.mxu0 0.0
    %1030 = vmatpush1.xpose.msra.mxu0 0.0
    %1031 = vmatprep.subr.mxu0 0.0
    %1032 = vmatpush1.xpose.msra.mxu0 0.0
    %1033 = vmatprep.subr.mxu0 0.0
    %1034 = vmatpush1.xpose.msra.mxu0 0.0
    %1035 = vmatprep.subr.mxu0 0.0
    %1036 = vmatpush1.xpose.msra.mxu0 0.0
    %1037 = vmatprep.subr.mxu0 0.0
    %1038 = vmatpush1.xpose.msra.mxu0 0.0
    %1039 = vmatprep.subr.mxu0 0.0
    %1040 = vmatpush1.xpose.msra.mxu0 0.0
    %1041 = vmatprep.subr.mxu0 0.0
    %1042 = vmatpush1.xpose.msra.mxu0 0.0
    %1043 = vmatprep.subr.mxu0 0.0
    %1044 = vmatpush1.xpose.msra.mxu0 0.0
    %1045 = vmatprep.subr.mxu0 0.0
    %1046 = vmatpush1.xpose.msra.mxu0 0.0
    %1047 = vmatprep.subr.mxu0 0.0
    %1048 = vmatpush1.xpose.msra.mxu0 0.0
    %1049 = vmatprep.subr.mxu0 0.0
    %1050 = vmatpush1.xpose.msra.mxu0 0.0
    %1051 = vmatprep.subr.mxu0 0.0
    %1052 = vmatpush1.xpose.msra.mxu0 0.0
    %1053 = vmatprep.subr.mxu0 0.0
    %1054 = vmatpush1.xpose.msra.mxu0 0.0
    %1055 = vmatprep.subr.mxu0 0.0
    %1056 = vmatpush1.xpose.msra.mxu0 0.0
    %1057 = vmatprep.subr.mxu0 0.0
    %1058 = vmatpush1.xpose.msra.mxu0 0.0
    %1059 = vmatprep.subr.mxu0 0.0
    %1060 = vmatpush1.xpose.msra.mxu0 0.0
    %1061 = vmatprep.subr.mxu0 0.0
    %1062 = vmatpush1.xpose.msra.mxu0 0.0
    %1063 = vmatprep.subr.mxu0 0.0
    %1064 = vmatpush1.xpose.msra.mxu0 0.0
    %1065 = vmatprep.subr.mxu0 0.0
    %1066 = vmatpush1.xpose.msra.mxu0 0.0
    %1067 = vmatprep.subr.mxu0 0.0
    %1068 = vmatpush1.xpose.msra.mxu0 0.0
    %1069 = vmatprep.subr.mxu0 0.0
    %1070 = vmatpush1.xpose.msra.mxu0 0.0
    %1071 = vmatprep.subr.mxu0 0.0
    %1072 = vmatpush1.xpose.msra.mxu0 0.0
    %1073 = vmatprep.subr.mxu0 0.0
    %1074 = vmatpush1.xpose.msra.mxu0 0.0
    %1075 = vmatprep.subr.mxu0 0.0
    %1076 = vmatpush1.xpose.msra.mxu0 0.0
    %1077 = vmatprep.subr.mxu0 0.0
    %1078 = vmatpush1.xpose.msra.mxu0 0.0
    %1079 = vmatprep.subr.mxu0 0.0
    %1080 = vmatpush1.xpose.msra.mxu0 0.0
    %1081 = vmatprep.subr.mxu0 0.0
    %1082 = vmatpush1.xpose.msra.mxu0 0.0
    %1083 = vmatprep.subr.mxu0 0.0
    %1084 = vmatpush1.xpose.msra.mxu0 0.0
    %1085 = vmatprep.subr.mxu0 0.0
    %1086 = vmatpush1.xpose.msra.mxu0 0.0
    %1087 = vmatprep.subr.mxu0 0.0
    %1088 = vmatpush1.xpose.msra.mxu0 0.0
    %1089 = vmatprep.subr.mxu0 0.0
    %1090 = vmatpush1.xpose.msra.mxu0 0.0
    %1091 = vmatprep.mubr.f32.mxu0 0.0
    %1092 = vmatmul.mubr.f32.gmra.mrb[0].mxu0 %v1023
    %v1093 = vpop.f32.mrb[0].mxu0
    %v1094 = vadd.f32 0.0, %v1093
    %v1095 = vpop.f32.mrb[0].mxu0
    %1096 = vdwg.mxu0
    %v1097 = vsel %vm726, %v687, 0
    %v1099 = vsel %vm726, %v701, 0
    %1101 = vmatprep.subr.mxu0 0.0
    %1102 = vmatpush1.xpose.msra.mxu0 %v1099
    %1103 = vmatprep.subr.mxu0 0.0
    %1104 = vmatpush1.xpose.msra.mxu0 0.0
    %1105 = vmatprep.subr.mxu0 0.0
    %1106 = vmatpush1.xpose.msra.mxu0 0.0
    %1107 = vmatprep.subr.mxu0 0.0
    %1108 = vmatpush1.xpose.msra.mxu0 0.0
    %1109 = vmatprep.subr.mxu0 0.0
    %1110 = vmatpush1.xpose.msra.mxu0 0.0
    %1111 = vmatprep.subr.mxu0 0.0
    %1112 = vmatpush1.xpose.msra.mxu0 0.0
    %1113 = vmatprep.subr.mxu0 0.0
    %1114 = vmatpush1.xpose.msra.mxu0 0.0
    %1115 = vmatprep.subr.mxu0 0.0
    %1116 = vmatpush1.xpose.msra.mxu0 0.0
    %1117 = vmatprep.subr.mxu0 0.0
    %1118 = vmatpush1.xpose.msra.mxu0 0.0
    %1119 = vmatprep.subr.mxu0 0.0
    %1120 = vmatpush1.xpose.msra.mxu0 0.0
    %1121 = vmatprep.subr.mxu0 0.0
    %1122 = vmatpush1.xpose.msra.mxu0 0.0
    %1123 = vmatprep.subr.mxu0 0.0
    %1124 = vmatpush1.xpose.msra.mxu0 0.0
    %1125 = vmatprep.subr.mxu0 0.0
    %1126 = vmatpush1.xpose.msra.mxu0 0.0
    %1127 = vmatprep.subr.mxu0 0.0
    %1128 = vmatpush1.xpose.msra.mxu0 0.0
    %1129 = vmatprep.subr.mxu0 0.0
    %1130 = vmatpush1.xpose.msra.mxu0 0.0
    %1131 = vmatprep.subr.mxu0 0.0
    %1132 = vmatpush1.xpose.msra.mxu0 0.0
    %1133 = vmatprep.subr.mxu0 0.0
    %1134 = vmatpush1.xpose.msra.mxu0 0.0
    %1135 = vmatprep.subr.mxu0 0.0
    %1136 = vmatpush1.xpose.msra.mxu0 0.0
    %1137 = vmatprep.subr.mxu0 0.0
    %1138 = vmatpush1.xpose.msra.mxu0 0.0
    %1139 = vmatprep.subr.mxu0 0.0
    %1140 = vmatpush1.xpose.msra.mxu0 0.0
    %1141 = vmatprep.subr.mxu0 0.0
    %1142 = vmatpush1.xpose.msra.mxu0 0.0
    %1143 = vmatprep.subr.mxu0 0.0
    %1144 = vmatpush1.xpose.msra.mxu0 0.0
    %1145 = vmatprep.subr.mxu0 0.0
    %1146 = vmatpush1.xpose.msra.mxu0 0.0
    %1147 = vmatprep.subr.mxu0 0.0
    %1148 = vmatpush1.xpose.msra.mxu0 0.0
    %1149 = vmatprep.subr.mxu0 0.0
    %1150 = vmatpush1.xpose.msra.mxu0 0.0
    %1151 = vmatprep.subr.mxu0 0.0
    %1152 = vmatpush1.xpose.msra.mxu0 0.0
    %1153 = vmatprep.subr.mxu0 0.0
    %1154 = vmatpush1.xpose.msra.mxu0 0.0
    %1155 = vmatprep.subr.mxu0 0.0
    %1156 = vmatpush1.xpose.msra.mxu0 0.0
    %1157 = vmatprep.subr.mxu0 0.0
    %1158 = vmatpush1.xpose.msra.mxu0 0.0
    %1159 = vmatprep.subr.mxu0 0.0
    %1160 = vmatpush1.xpose.msra.mxu0 0.0
    %1161 = vmatprep.subr.mxu0 0.0
    %1162 = vmatpush1.xpose.msra.mxu0 0.0
    %1163 = vmatprep.subr.mxu0 0.0
    %1164 = vmatpush1.xpose.msra.mxu0 0.0
    %1165 = vmatprep.mubr.f32.mxu0 0.0
    %1166 = vmatmul.mubr.f32.gmra.mrb[0].mxu0 %v1097
    %v1167 = vpop.f32.mrb[0].mxu0
    %v1168 = vadd.f32 0.0, %v1167
    %v1169 = vpop.f32.mrb[0].mxu0
    %1170 = vdwg.mxu0
    %v1171 = vsel %vm726, %v689, 0
    %v1173 = vsel %vm726, %v703, 0
    %1175 = vmatprep.subr.mxu0 0.0
    %1176 = vmatpush1.xpose.msra.mxu0 %v1173
    %1177 = vmatprep.subr.mxu0 0.0
    %1178 = vmatpush1.xpose.msra.mxu0 0.0
    %1179 = vmatprep.subr.mxu0 0.0
    %1180 = vmatpush1.xpose.msra.mxu0 0.0
    %1181 = vmatprep.subr.mxu0 0.0
    %1182 = vmatpush1.xpose.msra.mxu0 0.0
    %1183 = vmatprep.subr.mxu0 0.0
    %1184 = vmatpush1.xpose.msra.mxu0 0.0
    %1185 = vmatprep.subr.mxu0 0.0
    %1186 = vmatpush1.xpose.msra.mxu0 0.0
    %1187 = vmatprep.subr.mxu0 0.0
    %1188 = vmatpush1.xpose.msra.mxu0 0.0
    %1189 = vmatprep.subr.mxu0 0.0
    %1190 = vmatpush1.xpose.msra.mxu0 0.0
    %1191 = vmatprep.subr.mxu0 0.0
    %1192 = vmatpush1.xpose.msra.mxu0 0.0
    %1193 = vmatprep.subr.mxu0 0.0
    %1194 = vmatpush1.xpose.msra.mxu0 0.0
    %1195 = vmatprep.subr.mxu0 0.0
    %1196 = vmatpush1.xpose.msra.mxu0 0.0
    %1197 = vmatprep.subr.mxu0 0.0
    %1198 = vmatpush1.xpose.msra.mxu0 0.0
    %1199 = vmatprep.subr.mxu0 0.0
    %1200 = vmatpush1.xpose.msra.mxu0 0.0
    %1201 = vmatprep.subr.mxu0 0.0
    %1202 = vmatpush1.xpose.msra.mxu0 0.0
    %1203 = vmatprep.subr.mxu0 0.0
    %1204 = vmatpush1.xpose.msra.mxu0 0.0
    %1205 = vmatprep.subr.mxu0 0.0
    %1206 = vmatpush1.xpose.msra.mxu0 0.0
    %1207 = vmatprep.subr.mxu0 0.0
    %1208 = vmatpush1.xpose.msra.mxu0 0.0
    %1209 = vmatprep.subr.mxu0 0.0
    %1210 = vmatpush1.xpose.msra.mxu0 0.0
    %1211 = vmatprep.subr.mxu0 0.0
    %1212 = vmatpush1.xpose.msra.mxu0 0.0
    %1213 = vmatprep.subr.mxu0 0.0
    %1214 = vmatpush1.xpose.msra.mxu0 0.0
    %1215 = vmatprep.subr.mxu0 0.0
    %1216 = vmatpush1.xpose.msra.mxu0 0.0
    %1217 = vmatprep.subr.mxu0 0.0
    %1218 = vmatpush1.xpose.msra.mxu0 0.0
    %1219 = vmatprep.subr.mxu0 0.0
    %1220 = vmatpush1.xpose.msra.mxu0 0.0
    %1221 = vmatprep.subr.mxu0 0.0
    %1222 = vmatpush1.xpose.msra.mxu0 0.0
    %1223 = vmatprep.subr.mxu0 0.0
    %1224 = vmatpush1.xpose.msra.mxu0 0.0
    %1225 = vmatprep.subr.mxu0 0.0
    %1226 = vmatpush1.xpose.msra.mxu0 0.0
    %1227 = vmatprep.subr.mxu0 0.0
    %1228 = vmatpush1.xpose.msra.mxu0 0.0
    %1229 = vmatprep.subr.mxu0 0.0
    %1230 = vmatpush1.xpose.msra.mxu0 0.0
    %1231 = vmatprep.subr.mxu0 0.0
    %1232 = vmatpush1.xpose.msra.mxu0 0.0
    %1233 = vmatprep.subr.mxu0 0.0
    %1234 = vmatpush1.xpose.msra.mxu0 0.0
    %1235 = vmatprep.subr.mxu0 0.0
    %1236 = vmatpush1.xpose.msra.mxu0 0.0
    %1237 = vmatprep.subr.mxu0 0.0
    %1238 = vmatpush1.xpose.msra.mxu0 0.0
    %1239 = vmatprep.mubr.f32.mxu0 0.0
    %1240 = vmatmul.mubr.f32.gmra.mrb[0].mxu0 %v1171
    %v1241 = vpop.f32.mrb[0].mxu0
    %v1242 = vadd.f32 0.0, %v1241
    %v1243 = vpop.f32.mrb[0].mxu0
    %1244 = vdwg.mxu0
    %v1245 = vsel %vm726, %v691, 0
    %v1247 = vsel %vm726, %v705, 0
    %1249 = vmatprep.subr.mxu0 0.0
    %1250 = vmatpush1.xpose.msra.mxu0 %v1247
    %1251 = vmatprep.subr.mxu0 0.0
    %1252 = vmatpush1.xpose.msra.mxu0 0.0
    %1253 = vmatprep.subr.mxu0 0.0
    %1254 = vmatpush1.xpose.msra.mxu0 0.0
    %1255 = vmatprep.subr.mxu0 0.0
    %1256 = vmatpush1.xpose.msra.mxu0 0.0
    %1257 = vmatprep.subr.mxu0 0.0
    %1258 = vmatpush1.xpose.msra.mxu0 0.0
    %1259 = vmatprep.subr.mxu0 0.0
    %1260 = vmatpush1.xpose.msra.mxu0 0.0
    %1261 = vmatprep.subr.mxu0 0.0
    %1262 = vmatpush1.xpose.msra.mxu0 0.0
    %1263 = vmatprep.subr.mxu0 0.0
    %1264 = vmatpush1.xpose.msra.mxu0 0.0
    %1265 = vmatprep.subr.mxu0 0.0
    %1266 = vmatpush1.xpose.msra.mxu0 0.0
    %1267 = vmatprep.subr.mxu0 0.0
    %1268 = vmatpush1.xpose.msra.mxu0 0.0
    %1269 = vmatprep.subr.mxu0 0.0
    %1270 = vmatpush1.xpose.msra.mxu0 0.0
    %1271 = vmatprep.subr.mxu0 0.0
    %1272 = vmatpush1.xpose.msra.mxu0 0.0
    %1273 = vmatprep.subr.mxu0 0.0
    %1274 = vmatpush1.xpose.msra.mxu0 0.0
    %1275 = vmatprep.subr.mxu0 0.0
    %1276 = vmatpush1.xpose.msra.mxu0 0.0
    %1277 = vmatprep.subr.mxu0 0.0
    %1278 = vmatpush1.xpose.msra.mxu0 0.0
    %1279 = vmatprep.subr.mxu0 0.0
    %1280 = vmatpush1.xpose.msra.mxu0 0.0
    %1281 = vmatprep.subr.mxu0 0.0
    %1282 = vmatpush1.xpose.msra.mxu0 0.0
    %1283 = vmatprep.subr.mxu0 0.0
    %1284 = vmatpush1.xpose.msra.mxu0 0.0
    %1285 = vmatprep.subr.mxu0 0.0
    %1286 = vmatpush1.xpose.msra.mxu0 0.0
    %1287 = vmatprep.subr.mxu0 0.0
    %1288 = vmatpush1.xpose.msra.mxu0 0.0
    %1289 = vmatprep.subr.mxu0 0.0
    %1290 = vmatpush1.xpose.msra.mxu0 0.0
    %1291 = vmatprep.subr.mxu0 0.0
    %1292 = vmatpush1.xpose.msra.mxu0 0.0
    %1293 = vmatprep.subr.mxu0 0.0
    %1294 = vmatpush1.xpose.msra.mxu0 0.0
    %1295 = vmatprep.subr.mxu0 0.0
    %1296 = vmatpush1.xpose.msra.mxu0 0.0
    %1297 = vmatprep.subr.mxu0 0.0
    %1298 = vmatpush1.xpose.msra.mxu0 0.0
    %1299 = vmatprep.subr.mxu0 0.0
    %1300 = vmatpush1.xpose.msra.mxu0 0.0
    %1301 = vmatprep.subr.mxu0 0.0
    %1302 = vmatpush1.xpose.msra.mxu0 0.0
    %1303 = vmatprep.subr.mxu0 0.0
    %1304 = vmatpush1.xpose.msra.mxu0 0.0
    %1305 = vmatprep.subr.mxu0 0.0
    %1306 = vmatpush1.xpose.msra.mxu0 0.0
    %1307 = vmatprep.subr.mxu0 0.0
    %1308 = vmatpush1.xpose.msra.mxu0 0.0
    %1309 = vmatprep.subr.mxu0 0.0
    %1310 = vmatpush1.xpose.msra.mxu0 0.0
    %1311 = vmatprep.subr.mxu0 0.0
    %1312 = vmatpush1.xpose.msra.mxu0 0.0
    %1313 = vmatprep.mubr.f32.mxu0 0.0
    %1314 = vmatmul.mubr.f32.gmra.mrb[0].mxu0 %v1245
    %v1315 = vpop.f32.mrb[0].mxu0
    %v1316 = vadd.f32 0.0, %v1315
    %v1317 = vpop.f32.mrb[0].mxu0
    %1318 = vdwg.mxu0
    %v1319 = vmul.f32 %v798, 0.17677669
    %v1320 = vmul.f32 %v872, 0.17677669
    %v1321 = vmul.f32 %v946, 0.17677669
    %v1322 = vmul.f32 %v1020, 0.17677669
    %v1323 = vmul.f32 %v1094, 0.17677669
    %v1324 = vmul.f32 %v1168, 0.17677669
    %v1325 = vmul.f32 %v1242, 0.17677669
    %v1326 = vmul.f32 %v1316, 0.17677669
    %v1327 = vadd.f32 %v1319, %v258
    %v1328 = vadd.f32 %v1320, %v259
    %v1329 = vadd.f32 %v1321, %v260
    %v1330 = vadd.f32 %v1322, %v261
    %v1331 = vadd.f32 %v1323, %v262
    %v1332 = vadd.f32 %v1324, %v263
    %v1333 = vadd.f32 %v1325, %v264
    %v1334 = vadd.f32 %v1326, %v265
    %vm1335 = vcmask 64512
    %v1336 = vsel %vm1335, %v1327, -inf
    %1337 = vmax.xlane.f32.xlu0 %v1336
    %v1338 = vpop.xlane.xlu0 %1337
    %v1339 = vsel %vm1335, %v1328, -inf
    %1340 = vmax.xlane.f32.xlu0 %v1339
    %v1341 = vpop.xlane.xlu0 %1340
    %v1342 = vsel %vm1335, %v1329, -inf
    %1343 = vmax.xlane.f32.xlu0 %v1342
    %v1344 = vpop.xlane.xlu0 %1343
    %v1345 = vsel %vm1335, %v1330, -inf
    %1346 = vmax.xlane.f32.xlu0 %v1345
    %v1347 = vpop.xlane.xlu0 %1346
    %v1348 = vsel %vm1335, %v1331, -inf
    %1349 = vmax.xlane.f32.xlu0 %v1348
    %v1350 = vpop.xlane.xlu0 %1349
    %v1351 = vsel %vm1335, %v1332, -inf
    %1352 = vmax.xlane.f32.xlu0 %v1351
    %v1353 = vpop.xlane.xlu0 %1352
    %v1354 = vsel %vm1335, %v1333, -inf
    %1355 = vmax.xlane.f32.xlu0 %v1354
    %v1356 = vpop.xlane.xlu0 %1355
    %v1357 = vsel %vm1335, %v1334, -inf
    %1358 = vmax.xlane.f32.xlu0 %v1357
    %v1359 = vpop.xlane.xlu0 %1358
    %v1360 = vsub.f32 %v1327, %v1338
    %v1361 = vsub.f32 %v1328, %v1341
    %v1362 = vsub.f32 %v1329, %v1344
    %v1363 = vsub.f32 %v1330, %v1347
    %v1364 = vsub.f32 %v1331, %v1350
    %v1365 = vsub.f32 %v1332, %v1353
    %v1366 = vsub.f32 %v1333, %v1356
    %v1367 = vsub.f32 %v1334, %v1359
    %v1368 = vmul.f32 %v1360, 1.442695
    %v1369 = vpow.pop %v1368
    %v1370 = vmul.f32 %v1361, 1.442695
    %v1371 = vpow.pop %v1370
    %v1372 = vmul.f32 %v1362, 1.442695
    %v1373 = vpow.pop %v1372
    %v1374 = vmul.f32 %v1363, 1.442695
    %v1375 = vpow.pop %v1374
    %v1376 = vmul.f32 %v1364, 1.442695
    %v1377 = vpow.pop %v1376
    %v1378 = vmul.f32 %v1365, 1.442695
    %v1379 = vpow.pop %v1378
    %v1380 = vmul.f32 %v1366, 1.442695
    %v1381 = vpow.pop %v1380
    %v1382 = vmul.f32 %v1367, 1.442695
    %v1383 = vpow.pop %v1382
    %v1384 = vsel %vm1335, %v1369, 0.0
    %1385 = vadd.xlane.f32.xlu0 %v1384
    %v1386 = vpop.xlane.xlu0 %1385
    %v1387 = vsel %vm1335, %v1371, 0.0
    %1388 = vadd.xlane.f32.xlu0 %v1387
    %v1389 = vpop.xlane.xlu0 %1388
    %v1390 = vsel %vm1335, %v1373, 0.0
    %1391 = vadd.xlane.f32.xlu0 %v1390
    %v1392 = vpop.xlane.xlu0 %1391
    %v1393 = vsel %vm1335, %v1375, 0.0
    %1394 = vadd.xlane.f32.xlu0 %v1393
    %v1395 = vpop.xlane.xlu0 %1394
    %v1396 = vsel %vm1335, %v1377, 0.0
    %1397 = vadd.xlane.f32.xlu0 %v1396
    %v1398 = vpop.xlane.xlu0 %1397
    %v1399 = vsel %vm1335, %v1379, 0.0
    %1400 = vadd.xlane.f32.xlu0 %v1399
    %v1401 = vpop.xlane.xlu0 %1400
    %v1402 = vsel %vm1335, %v1381, 0.0
    %1403 = vadd.xlane.f32.xlu0 %v1402
    %v1404 = vpop.xlane.xlu0 %1403
    %v1405 = vsel %vm1335, %v1383, 0.0
    %1406 = vadd.xlane.f32.xlu0 %v1405
    %v1407 = vpop.xlane.xlu0 %1406
    %v1408 = vrcp.pop %v1386
    %v1409 = vrcp.pop %v1389
    %v1410 = vrcp.pop %v1392
    %v1411 = vrcp.pop %v1395
    %v1412 = vrcp.pop %v1398
    %v1413 = vrcp.pop %v1401
    %v1414 = vrcp.pop %v1404
    %v1415 = vrcp.pop %v1407
    %v1416 = vmul.f32 %v1369, %v1408
    %v1417 = vmul.f32 %v1371, %v1409
    %v1418 = vmul.f32 %v1373, %v1410
    %v1419 = vmul.f32 %v1375, %v1411
    %v1420 = vmul.f32 %v1377, %v1412
    %v1421 = vmul.f32 %v1379, %v1413
    %v1422 = vmul.f32 %v1381, %v1414
    %v1423 = vmul.f32 %v1383, %v1415
    %v1425 = vsel %vm1335, %v1416, 0
    %1427 = vmatprep.subr.mxu0 0.0
    %1428 = vmatpush1.msra.mxu0 %v670
    %1429 = vmatprep.subr.mxu0 0.0
    %1430 = vmatpush1.msra.mxu0 0.0
    %1431 = vmatprep.subr.mxu0 0.0
    %1432 = vmatpush1.msra.mxu0 0.0
    %1433 = vmatprep.subr.mxu0 0.0
    %1434 = vmatpush1.msra.mxu0 0.0
    %1435 = vmatprep.subr.mxu0 0.0
    %1436 = vmatpush1.msra.mxu0 0.0
    %1437 = vmatprep.subr.mxu0 0.0
    %1438 = vmatpush1.msra.mxu0 0.0
    %1439 = vmatprep.subr.mxu0 0.0
    %1440 = vmatpush1.msra.mxu0 0.0
    %1441 = vmatprep.subr.mxu0 0.0
    %1442 = vmatpush1.msra.mxu0 0.0
    %1443 = vmatprep.subr.mxu0 0.0
    %1444 = vmatpush1.msra.mxu0 0.0
    %1445 = vmatprep.subr.mxu0 0.0
    %1446 = vmatpush1.msra.mxu0 0.0
    %1447 = vmatprep.subr.mxu0 0.0
    %1448 = vmatpush1.msra.mxu0 0.0
    %1449 = vmatprep.subr.mxu0 0.0
    %1450 = vmatpush1.msra.mxu0 0.0
    %1451 = vmatprep.subr.mxu0 0.0
    %1452 = vmatpush1.msra.mxu0 0.0
    %1453 = vmatprep.subr.mxu0 0.0
    %1454 = vmatpush1.msra.mxu0 0.0
    %1455 = vmatprep.subr.mxu0 0.0
    %1456 = vmatpush1.msra.mxu0 0.0
    %1457 = vmatprep.subr.mxu0 0.0
    %1458 = vmatpush1.msra.mxu0 0.0
    %1459 = vmatprep.subr.mxu0 0.0
    %1460 = vmatpush1.msra.mxu0 0.0
    %1461 = vmatprep.subr.mxu0 0.0
    %1462 = vmatpush1.msra.mxu0 0.0
    %1463 = vmatprep.subr.mxu0 0.0
    %1464 = vmatpush1.msra.mxu0 0.0
    %1465 = vmatprep.subr.mxu0 0.0
    %1466 = vmatpush1.msra.mxu0 0.0
    %1467 = vmatprep.subr.mxu0 0.0
    %1468 = vmatpush1.msra.mxu0 0.0
    %1469 = vmatprep.subr.mxu0 0.0
    %1470 = vmatpush1.msra.mxu0 0.0
    %1471 = vmatprep.subr.mxu0 0.0
    %1472 = vmatpush1.msra.mxu0 0.0
    %1473 = vmatprep.subr.mxu0 0.0
    %1474 = vmatpush1.msra.mxu0 0.0
    %1475 = vmatprep.subr.mxu0 0.0
    %1476 = vmatpush1.msra.mxu0 0.0
    %1477 = vmatprep.subr.mxu0 0.0
    %1478 = vmatpush1.msra.mxu0 0.0
    %1479 = vmatprep.subr.mxu0 0.0
    %1480 = vmatpush1.msra.mxu0 0.0
    %1481 = vmatprep.subr.mxu0 0.0
    %1482 = vmatpush1.msra.mxu0 0.0
    %1483 = vmatprep.subr.mxu0 0.0
    %1484 = vmatpush1.msra.mxu0 0.0
    %1485 = vmatprep.subr.mxu0 0.0
    %1486 = vmatpush1.msra.mxu0 0.0
    %1487 = vmatprep.subr.mxu0 0.0
    %1488 = vmatpush1.msra.mxu0 0.0
    %1489 = vmatprep.subr.mxu0 0.0
    %1490 = vmatpush1.msra.mxu0 0.0
    %1491 = vmatprep.mubr.f32.mxu0 0.0
    %1492 = vmatmul.mubr.f32.gmra.mrb[0].mxu0 %v1425
    %v1493 = vpop.f32.mrb[0].mxu0
    %v1494 = vadd.f32 0.0, %v1493
    %v1495 = vpop.f32.mrb[0].mxu0
    %1496 = vdwg.mxu0
    %v1498 = vsel %vm1335, %v1417, 0
    %1500 = vmatprep.subr.mxu0 0.0
    %1501 = vmatpush1.msra.mxu0 %v675
    %1502 = vmatprep.subr.mxu0 0.0
    %1503 = vmatpush1.msra.mxu0 0.0
    %1504 = vmatprep.subr.mxu0 0.0
    %1505 = vmatpush1.msra.mxu0 0.0
    %1506 = vmatprep.subr.mxu0 0.0
    %1507 = vmatpush1.msra.mxu0 0.0
    %1508 = vmatprep.subr.mxu0 0.0
    %1509 = vmatpush1.msra.mxu0 0.0
    %1510 = vmatprep.subr.mxu0 0.0
    %1511 = vmatpush1.msra.mxu0 0.0
    %1512 = vmatprep.subr.mxu0 0.0
    %1513 = vmatpush1.msra.mxu0 0.0
    %1514 = vmatprep.subr.mxu0 0.0
    %1515 = vmatpush1.msra.mxu0 0.0
    %1516 = vmatprep.subr.mxu0 0.0
    %1517 = vmatpush1.msra.mxu0 0.0
    %1518 = vmatprep.subr.mxu0 0.0
    %1519 = vmatpush1.msra.mxu0 0.0
    %1520 = vmatprep.subr.mxu0 0.0
    %1521 = vmatpush1.msra.mxu0 0.0
    %1522 = vmatprep.subr.mxu0 0.0
    %1523 = vmatpush1.msra.mxu0 0.0
    %1524 = vmatprep.subr.mxu0 0.0
    %1525 = vmatpush1.msra.mxu0 0.0
    %1526 = vmatprep.subr.mxu0 0.0
    %1527 = vmatpush1.msra.mxu0 0.0
    %1528 = vmatprep.subr.mxu0 0.0
    %1529 = vmatpush1.msra.mxu0 0.0
    %1530 = vmatprep.subr.mxu0 0.0
    %1531 = vmatpush1.msra.mxu0 0.0
    %1532 = vmatprep.subr.mxu0 0.0
    %1533 = vmatpush1.msra.mxu0 0.0
    %1534 = vmatprep.subr.mxu0 0.0
    %1535 = vmatpush1.msra.mxu0 0.0
    %1536 = vmatprep.subr.mxu0 0.0
    %1537 = vmatpush1.msra.mxu0 0.0
    %1538 = vmatprep.subr.mxu0 0.0
    %1539 = vmatpush1.msra.mxu0 0.0
    %1540 = vmatprep.subr.mxu0 0.0
    %1541 = vmatpush1.msra.mxu0 0.0
    %1542 = vmatprep.subr.mxu0 0.0
    %1543 = vmatpush1.msra.mxu0 0.0
    %1544 = vmatprep.subr.mxu0 0.0
    %1545 = vmatpush1.msra.mxu0 0.0
    %1546 = vmatprep.subr.mxu0 0.0
    %1547 = vmatpush1.msra.mxu0 0.0
    %1548 = vmatprep.subr.mxu0 0.0
    %1549 = vmatpush1.msra.mxu0 0.0
    %1550 = vmatprep.subr.mxu0 0.0
    %1551 = vmatpush1.msra.mxu0 0.0
    %1552 = vmatprep.subr.mxu0 0.0
    %1553 = vmatpush1.msra.mxu0 0.0
    %1554 = vmatprep.subr.mxu0 0.0
    %1555 = vmatpush1.msra.mxu0 0.0
    %1556 = vmatprep.subr.mxu0 0.0
    %1557 = vmatpush1.msra.mxu0 0.0
    %1558 = vmatprep.subr.mxu0 0.0
    %1559 = vmatpush1.msra.mxu0 0.0
    %1560 = vmatprep.subr.mxu0 0.0
    %1561 = vmatpush1.msra.mxu0 0.0
    %1562 = vmatprep.subr.mxu0 0.0
    %1563 = vmatpush1.msra.mxu0 0.0
    %1564 = vmatprep.mubr.f32.mxu0 0.0
    %1565 = vmatmul.mubr.f32.gmra.mrb[0].mxu0 %v1498
    %v1566 = vpop.f32.mrb[0].mxu0
    %v1567 = vadd.f32 0.0, %v1566
    %v1568 = vpop.f32.mrb[0].mxu0
    %1569 = vdwg.mxu0
    %v1571 = vsel %vm1335, %v1418, 0
    %1573 = vmatprep.subr.mxu0 0.0
    %1574 = vmatpush1.msra.mxu0 %v709
    %1575 = vmatprep.subr.mxu0 0.0
    %1576 = vmatpush1.msra.mxu0 0.0
    %1577 = vmatprep.subr.mxu0 0.0
    %1578 = vmatpush1.msra.mxu0 0.0
    %1579 = vmatprep.subr.mxu0 0.0
    %1580 = vmatpush1.msra.mxu0 0.0
    %1581 = vmatprep.subr.mxu0 0.0
    %1582 = vmatpush1.msra.mxu0 0.0
    %1583 = vmatprep.subr.mxu0 0.0
    %1584 = vmatpush1.msra.mxu0 0.0
    %1585 = vmatprep.subr.mxu0 0.0
    %1586 = vmatpush1.msra.mxu0 0.0
    %1587 = vmatprep.subr.mxu0 0.0
    %1588 = vmatpush1.msra.mxu0 0.0
    %1589 = vmatprep.subr.mxu0 0.0
    %1590 = vmatpush1.msra.mxu0 0.0
    %1591 = vmatprep.subr.mxu0 0.0
    %1592 = vmatpush1.msra.mxu0 0.0
    %1593 = vmatprep.subr.mxu0 0.0
    %1594 = vmatpush1.msra.mxu0 0.0
    %1595 = vmatprep.subr.mxu0 0.0
    %1596 = vmatpush1.msra.mxu0 0.0
    %1597 = vmatprep.subr.mxu0 0.0
    %1598 = vmatpush1.msra.mxu0 0.0
    %1599 = vmatprep.subr.mxu0 0.0
    %1600 = vmatpush1.msra.mxu0 0.0
    %1601 = vmatprep.subr.mxu0 0.0
    %1602 = vmatpush1.msra.mxu0 0.0
    %1603 = vmatprep.subr.mxu0 0.0
    %1604 = vmatpush1.msra.mxu0 0.0
    %1605 = vmatprep.subr.mxu0 0.0
    %1606 = vmatpush1.msra.mxu0 0.0
    %1607 = vmatprep.subr.mxu0 0.0
    %1608 = vmatpush1.msra.mxu0 0.0
    %1609 = vmatprep.subr.mxu0 0.0
    %1610 = vmatpush1.msra.mxu0 0.0
    %1611 = vmatprep.subr.mxu0 0.0
    %1612 = vmatpush1.msra.mxu0 0.0
    %1613 = vmatprep.subr.mxu0 0.0
    %1614 = vmatpush1.msra.mxu0 0.0
    %1615 = vmatprep.subr.mxu0 0.0
    %1616 = vmatpush1.msra.mxu0 0.0
    %1617 = vmatprep.subr.mxu0 0.0
    %1618 = vmatpush1.msra.mxu0 0.0
    %1619 = vmatprep.subr.mxu0 0.0
    %1620 = vmatpush1.msra.mxu0 0.0
    %1621 = vmatprep.subr.mxu0 0.0
    %1622 = vmatpush1.msra.mxu0 0.0
    %1623 = vmatprep.subr.mxu0 0.0
    %1624 = vmatpush1.msra.mxu0 0.0
    %1625 = vmatprep.subr.mxu0 0.0
    %1626 = vmatpush1.msra.mxu0 0.0
    %1627 = vmatprep.subr.mxu0 0.0
    %1628 = vmatpush1.msra.mxu0 0.0
    %1629 = vmatprep.subr.mxu0 0.0
    %1630 = vmatpush1.msra.mxu0 0.0
    %1631 = vmatprep.subr.mxu0 0.0
    %1632 = vmatpush1.msra.mxu0 0.0
    %1633 = vmatprep.subr.mxu0 0.0
    %1634 = vmatpush1.msra.mxu0 0.0
    %1635 = vmatprep.subr.mxu0 0.0
    %1636 = vmatpush1.msra.mxu0 0.0
    %1637 = vmatprep.mubr.f32.mxu0 0.0
    %1638 = vmatmul.mubr.f32.gmra.mrb[0].mxu0 %v1571
    %v1639 = vpop.f32.mrb[0].mxu0
    %v1640 = vadd.f32 0.0, %v1639
    %v1641 = vpop.f32.mrb[0].mxu0
    %1642 = vdwg.mxu0
    %v1644 = vsel %vm1335, %v1419, 0
    %1646 = vmatprep.subr.mxu0 0.0
    %1647 = vmatpush1.msra.mxu0 %v711
    %1648 = vmatprep.subr.mxu0 0.0
    %1649 = vmatpush1.msra.mxu0 0.0
    %1650 = vmatprep.subr.mxu0 0.0
    %1651 = vmatpush1.msra.mxu0 0.0
    %1652 = vmatprep.subr.mxu0 0.0
    %1653 = vmatpush1.msra.mxu0 0.0
    %1654 = vmatprep.subr.mxu0 0.0
    %1655 = vmatpush1.msra.mxu0 0.0
    %1656 = vmatprep.subr.mxu0 0.0
    %1657 = vmatpush1.msra.mxu0 0.0
    %1658 = vmatprep.subr.mxu0 0.0
    %1659 = vmatpush1.msra.mxu0 0.0
    %1660 = vmatprep.subr.mxu0 0.0
    %1661 = vmatpush1.msra.mxu0 0.0
    %1662 = vmatprep.subr.mxu0 0.0
    %1663 = vmatpush1.msra.mxu0 0.0
    %1664 = vmatprep.subr.mxu0 0.0
    %1665 = vmatpush1.msra.mxu0 0.0
    %1666 = vmatprep.subr.mxu0 0.0
    %1667 = vmatpush1.msra.mxu0 0.0
    %1668 = vmatprep.subr.mxu0 0.0
    %1669 = vmatpush1.msra.mxu0 0.0
    %1670 = vmatprep.subr.mxu0 0.0
    %1671 = vmatpush1.msra.mxu0 0.0
    %1672 = vmatprep.subr.mxu0 0.0
    %1673 = vmatpush1.msra.mxu0 0.0
    %1674 = vmatprep.subr.mxu0 0.0
    %1675 = vmatpush1.msra.mxu0 0.0
    %1676 = vmatprep.subr.mxu0 0.0
    %1677 = vmatpush1.msra.mxu0 0.0
    %1678 = vmatprep.subr.mxu0 0.0
    %1679 = vmatpush1.msra.mxu0 0.0
    %1680 = vmatprep.subr.mxu0 0.0
    %1681 = vmatpush1.msra.mxu0 0.0
    %1682 = vmatprep.subr.mxu0 0.0
    %1683 = vmatpush1.msra.mxu0 0.0
    %1684 = vmatprep.subr.mxu0 0.0
    %1685 = vmatpush1.msra.mxu0 0.0
    %1686 = vmatprep.subr.mxu0 0.0
    %1687 = vmatpush1.msra.mxu0 0.0
    %1688 = vmatprep.subr.mxu0 0.0
    %1689 = vmatpush1.msra.mxu0 0.0
    %1690 = vmatprep.subr.mxu0 0.0
    %1691 = vmatpush1.msra.mxu0 0.0
    %1692 = vmatprep.subr.mxu0 0.0
    %1693 = vmatpush1.msra.mxu0 0.0
    %1694 = vmatprep.subr.mxu0 0.0
    %1695 = vmatpush1.msra.mxu0 0.0
    %1696 = vmatprep.subr.mxu0 0.0
    %1697 = vmatpush1.msra.mxu0 0.0
    %1698 = vmatprep.subr.mxu0 0.0
    %1699 = vmatpush1.msra.mxu0 0.0
    %1700 = vmatprep.subr.mxu0 0.0
    %1701 = vmatpush1.msra.mxu0 0.0
    %1702 = vmatprep.subr.mxu0 0.0
    %1703 = vmatpush1.msra.mxu0 0.0
    %1704 = vmatprep.subr.mxu0 0.0
    %1705 = vmatpush1.msra.mxu0 0.0
    %1706 = vmatprep.subr.mxu0 0.0
    %1707 = vmatpush1.msra.mxu0 0.0
    %1708 = vmatprep.subr.mxu0 0.0
    %1709 = vmatpush1.msra.mxu0 0.0
    %1710 = vmatprep.mubr.f32.mxu0 0.0
    %1711 = vmatmul.mubr.f32.gmra.mrb[0].mxu0 %v1644
    %v1712 = vpop.f32.mrb[0].mxu0
    %v1713 = vadd.f32 0.0, %v1712
    %v1714 = vpop.f32.mrb[0].mxu0
    %1715 = vdwg.mxu0
    %v1717 = vsel %vm1335, %v1420, 0
    %1719 = vmatprep.subr.mxu0 0.0
    %1720 = vmatpush1.msra.mxu0 %v715
    %1721 = vmatprep.subr.mxu0 0.0
    %1722 = vmatpush1.msra.mxu0 0.0
    %1723 = vmatprep.subr.mxu0 0.0
    %1724 = vmatpush1.msra.mxu0 0.0
    %1725 = vmatprep.subr.mxu0 0.0
    %1726 = vmatpush1.msra.mxu0 0.0
    %1727 = vmatprep.subr.mxu0 0.0
    %1728 = vmatpush1.msra.mxu0 0.0
    %1729 = vmatprep.subr.mxu0 0.0
    %1730 = vmatpush1.msra.mxu0 0.0
    %1731 = vmatprep.subr.mxu0 0.0
    %1732 = vmatpush1.msra.mxu0 0.0
    %1733 = vmatprep.subr.mxu0 0.0
    %1734 = vmatpush1.msra.mxu0 0.0
    %1735 = vmatprep.subr.mxu0 0.0
    %1736 = vmatpush1.msra.mxu0 0.0
    %1737 = vmatprep.subr.mxu0 0.0
    %1738 = vmatpush1.msra.mxu0 0.0
    %1739 = vmatprep.subr.mxu0 0.0
    %1740 = vmatpush1.msra.mxu0 0.0
    %1741 = vmatprep.subr.mxu0 0.0
    %1742 = vmatpush1.msra.mxu0 0.0
    %1743 = vmatprep.subr.mxu0 0.0
    %1744 = vmatpush1.msra.mxu0 0.0
    %1745 = vmatprep.subr.mxu0 0.0
    %1746 = vmatpush1.msra.mxu0 0.0
    %1747 = vmatprep.subr.mxu0 0.0
    %1748 = vmatpush1.msra.mxu0 0.0
    %1749 = vmatprep.subr.mxu0 0.0
    %1750 = vmatpush1.msra.mxu0 0.0
    %1751 = vmatprep.subr.mxu0 0.0
    %1752 = vmatpush1.msra.mxu0 0.0
    %1753 = vmatprep.subr.mxu0 0.0
    %1754 = vmatpush1.msra.mxu0 0.0
    %1755 = vmatprep.subr.mxu0 0.0
    %1756 = vmatpush1.msra.mxu0 0.0
    %1757 = vmatprep.subr.mxu0 0.0
    %1758 = vmatpush1.msra.mxu0 0.0
    %1759 = vmatprep.subr.mxu0 0.0
    %1760 = vmatpush1.msra.mxu0 0.0
    %1761 = vmatprep.subr.mxu0 0.0
    %1762 = vmatpush1.msra.mxu0 0.0
    %1763 = vmatprep.subr.mxu0 0.0
    %1764 = vmatpush1.msra.mxu0 0.0
    %1765 = vmatprep.subr.mxu0 0.0
    %1766 = vmatpush1.msra.mxu0 0.0
    %1767 = vmatprep.subr.mxu0 0.0
    %1768 = vmatpush1.msra.mxu0 0.0
    %1769 = vmatprep.subr.mxu0 0.0
    %1770 = vmatpush1.msra.mxu0 0.0
    %1771 = vmatprep.subr.mxu0 0.0
    %1772 = vmatpush1.msra.mxu0 0.0
    %1773 = vmatprep.subr.mxu0 0.0
    %1774 = vmatpush1.msra.mxu0 0.0
    %1775 = vmatprep.subr.mxu0 0.0
    %1776 = vmatpush1.msra.mxu0 0.0
    %1777 = vmatprep.subr.mxu0 0.0
    %1778 = vmatpush1.msra.mxu0 0.0
    %1779 = vmatprep.subr.mxu0 0.0
    %1780 = vmatpush1.msra.mxu0 0.0
    %1781 = vmatprep.subr.mxu0 0.0
    %1782 = vmatpush1.msra.mxu0 0.0
    %1783 = vmatprep.mubr.f32.mxu0 0.0
    %1784 = vmatmul.mubr.f32.gmra.mrb[0].mxu0 %v1717
    %v1785 = vpop.f32.mrb[0].mxu0
    %v1786 = vadd.f32 0.0, %v1785
    %v1787 = vpop.f32.mrb[0].mxu0
    %1788 = vdwg.mxu0
    %v1790 = vsel %vm1335, %v1421, 0
    %1792 = vmatprep.subr.mxu0 0.0
    %1793 = vmatpush1.msra.mxu0 %v717
    %1794 = vmatprep.subr.mxu0 0.0
    %1795 = vmatpush1.msra.mxu0 0.0
    %1796 = vmatprep.subr.mxu0 0.0
    %1797 = vmatpush1.msra.mxu0 0.0
    %1798 = vmatprep.subr.mxu0 0.0
    %1799 = vmatpush1.msra.mxu0 0.0
    %1800 = vmatprep.subr.mxu0 0.0
    %1801 = vmatpush1.msra.mxu0 0.0
    %1802 = vmatprep.subr.mxu0 0.0
    %1803 = vmatpush1.msra.mxu0 0.0
    %1804 = vmatprep.subr.mxu0 0.0
    %1805 = vmatpush1.msra.mxu0 0.0
    %1806 = vmatprep.subr.mxu0 0.0
    %1807 = vmatpush1.msra.mxu0 0.0
    %1808 = vmatprep.subr.mxu0 0.0
    %1809 = vmatpush1.msra.mxu0 0.0
    %1810 = vmatprep.subr.mxu0 0.0
    %1811 = vmatpush1.msra.mxu0 0.0
    %1812 = vmatprep.subr.mxu0 0.0
    %1813 = vmatpush1.msra.mxu0 0.0
    %1814 = vmatprep.subr.mxu0 0.0
    %1815 = vmatpush1.msra.mxu0 0.0
    %1816 = vmatprep.subr.mxu0 0.0
    %1817 = vmatpush1.msra.mxu0 0.0
    %1818 = vmatprep.subr.mxu0 0.0
    %1819 = vmatpush1.msra.mxu0 0.0
    %1820 = vmatprep.subr.mxu0 0.0
    %1821 = vmatpush1.msra.mxu0 0.0
    %1822 = vmatprep.subr.mxu0 0.0
    %1823 = vmatpush1.msra.mxu0 0.0
    %1824 = vmatprep.subr.mxu0 0.0
    %1825 = vmatpush1.msra.mxu0 0.0
    %1826 = vmatprep.subr.mxu0 0.0
    %1827 = vmatpush1.msra.mxu0 0.0
    %1828 = vmatprep.subr.mxu0 0.0
    %1829 = vmatpush1.msra.mxu0 0.0
    %1830 = vmatprep.subr.mxu0 0.0
    %1831 = vmatpush1.msra.mxu0 0.0
    %1832 = vmatprep.subr.mxu0 0.0
    %1833 = vmatpush1.msra.mxu0 0.0
    %1834 = vmatprep.subr.mxu0 0.0
    %1835 = vmatpush1.msra.mxu0 0.0
    %1836 = vmatprep.subr.mxu0 0.0
    %1837 = vmatpush1.msra.mxu0 0.0
    %1838 = vmatprep.subr.mxu0 0.0
    %1839 = vmatpush1.msra.mxu0 0.0
    %1840 = vmatprep.subr.mxu0 0.0
    %1841 = vmatpush1.msra.mxu0 0.0
    %1842 = vmatprep.subr.mxu0 0.0
    %1843 = vmatpush1.msra.mxu0 0.0
    %1844 = vmatprep.subr.mxu0 0.0
    %1845 = vmatpush1.msra.mxu0 0.0
    %1846 = vmatprep.subr.mxu0 0.0
    %1847 = vmatpush1.msra.mxu0 0.0
    %1848 = vmatprep.subr.mxu0 0.0
    %1849 = vmatpush1.msra.mxu0 0.0
    %1850 = vmatprep.subr.mxu0 0.0
    %1851 = vmatpush1.msra.mxu0 0.0
    %1852 = vmatprep.subr.mxu0 0.0
    %1853 = vmatpush1.msra.mxu0 0.0
    %1854 = vmatprep.subr.mxu0 0.0
    %1855 = vmatpush1.msra.mxu0 0.0
    %1856 = vmatprep.mubr.f32.mxu0 0.0
    %1857 = vmatmul.mubr.f32.gmra.mrb[0].mxu0 %v1790
    %v1858 = vpop.f32.mrb[0].mxu0
    %v1859 = vadd.f32 0.0, %v1858
    %v1860 = vpop.f32.mrb[0].mxu0
    %1861 = vdwg.mxu0
    %v1863 = vsel %vm1335, %v1422, 0
    %1865 = vmatprep.subr.mxu0 0.0
    %1866 = vmatpush1.msra.mxu0 %v721
    %1867 = vmatprep.subr.mxu0 0.0
    %1868 = vmatpush1.msra.mxu0 0.0
    %1869 = vmatprep.subr.mxu0 0.0
    %1870 = vmatpush1.msra.mxu0 0.0
    %1871 = vmatprep.subr.mxu0 0.0
    %1872 = vmatpush1.msra.mxu0 0.0
    %1873 = vmatprep.subr.mxu0 0.0
    %1874 = vmatpush1.msra.mxu0 0.0
    %1875 = vmatprep.subr.mxu0 0.0
    %1876 = vmatpush1.msra.mxu0 0.0
    %1877 = vmatprep.subr.mxu0 0.0
    %1878 = vmatpush1.msra.mxu0 0.0
    %1879 = vmatprep.subr.mxu0 0.0
    %1880 = vmatpush1.msra.mxu0 0.0
    %1881 = vmatprep.subr.mxu0 0.0
    %1882 = vmatpush1.msra.mxu0 0.0
    %1883 = vmatprep.subr.mxu0 0.0
    %1884 = vmatpush1.msra.mxu0 0.0
    %1885 = vmatprep.subr.mxu0 0.0
    %1886 = vmatpush1.msra.mxu0 0.0
    %1887 = vmatprep.subr.mxu0 0.0
    %1888 = vmatpush1.msra.mxu0 0.0
    %1889 = vmatprep.subr.mxu0 0.0
    %1890 = vmatpush1.msra.mxu0 0.0
    %1891 = vmatprep.subr.mxu0 0.0
    %1892 = vmatpush1.msra.mxu0 0.0
    %1893 = vmatprep.subr.mxu0 0.0
    %1894 = vmatpush1.msra.mxu0 0.0
    %1895 = vmatprep.subr.mxu0 0.0
    %1896 = vmatpush1.msra.mxu0 0.0
    %1897 = vmatprep.subr.mxu0 0.0
    %1898 = vmatpush1.msra.mxu0 0.0
    %1899 = vmatprep.subr.mxu0 0.0
    %1900 = vmatpush1.msra.mxu0 0.0
    %1901 = vmatprep.subr.mxu0 0.0
    %1902 = vmatpush1.msra.mxu0 0.0
    %1903 = vmatprep.subr.mxu0 0.0
    %1904 = vmatpush1.msra.mxu0 0.0
    %1905 = vmatprep.subr.mxu0 0.0
    %1906 = vmatpush1.msra.mxu0 0.0
    %1907 = vmatprep.subr.mxu0 0.0
    %1908 = vmatpush1.msra.mxu0 0.0
    %1909 = vmatprep.subr.mxu0 0.0
    %1910 = vmatpush1.msra.mxu0 0.0
    %1911 = vmatprep.subr.mxu0 0.0
    %1912 = vmatpush1.msra.mxu0 0.0
    %1913 = vmatprep.subr.mxu0 0.0
    %1914 = vmatpush1.msra.mxu0 0.0
    %1915 = vmatprep.subr.mxu0 0.0
    %1916 = vmatpush1.msra.mxu0 0.0
    %1917 = vmatprep.subr.mxu0 0.0
    %1918 = vmatpush1.msra.mxu0 0.0
    %1919 = vmatprep.subr.mxu0 0.0
    %1920 = vmatpush1.msra.mxu0 0.0
    %1921 = vmatprep.subr.mxu0 0.0
    %1922 = vmatpush1.msra.mxu0 0.0
    %1923 = vmatprep.subr.mxu0 0.0
    %1924 = vmatpush1.msra.mxu0 0.0
    %1925 = vmatprep.subr.mxu0 0.0
    %1926 = vmatpush1.msra.mxu0 0.0
    %1927 = vmatprep.subr.mxu0 0.0
    %1928 = vmatpush1.msra.mxu0 0.0
    %1929 = vmatprep.mubr.f32.mxu0 0.0
    %1930 = vmatmul.mubr.f32.gmra.mrb[0].mxu0 %v1863
    %v1931 = vpop.f32.mrb[0].mxu0
    %v1932 = vadd.f32 0.0, %v1931
    %v1933 = vpop.f32.mrb[0].mxu0
    %1934 = vdwg.mxu0
    %v1936 = vsel %vm1335, %v1423, 0
    %1938 = vmatprep.subr.mxu0 0.0
    %1939 = vmatpush1.msra.mxu0 %v723
    %1940 = vmatprep.subr.mxu0 0.0
    %1941 = vmatpush1.msra.mxu0 0.0
    %1942 = vmatprep.subr.mxu0 0.0
    %1943 = vmatpush1.msra.mxu0 0.0
    %1944 = vmatprep.subr.mxu0 0.0
    %1945 = vmatpush1.msra.mxu0 0.0
    %1946 = vmatprep.subr.mxu0 0.0
    %1947 = vmatpush1.msra.mxu0 0.0
    %1948 = vmatprep.subr.mxu0 0.0
    %1949 = vmatpush1.msra.mxu0 0.0
    %1950 = vmatprep.subr.mxu0 0.0
    %1951 = vmatpush1.msra.mxu0 0.0
    %1952 = vmatprep.subr.mxu0 0.0
    %1953 = vmatpush1.msra.mxu0 0.0
    %1954 = vmatprep.subr.mxu0 0.0
    %1955 = vmatpush1.msra.mxu0 0.0
    %1956 = vmatprep.subr.mxu0 0.0
    %1957 = vmatpush1.msra.mxu0 0.0
    %1958 = vmatprep.subr.mxu0 0.0
    %1959 = vmatpush1.msra.mxu0 0.0
    %1960 = vmatprep.subr.mxu0 0.0
    %1961 = vmatpush1.msra.mxu0 0.0
    %1962 = vmatprep.subr.mxu0 0.0
    %1963 = vmatpush1.msra.mxu0 0.0
    %1964 = vmatprep.subr.mxu0 0.0
    %1965 = vmatpush1.msra.mxu0 0.0
    %1966 = vmatprep.subr.mxu0 0.0
    %1967 = vmatpush1.msra.mxu0 0.0
    %1968 = vmatprep.subr.mxu0 0.0
    %1969 = vmatpush1.msra.mxu0 0.0
    %1970 = vmatprep.subr.mxu0 0.0
    %1971 = vmatpush1.msra.mxu0 0.0
    %1972 = vmatprep.subr.mxu0 0.0
    %1973 = vmatpush1.msra.mxu0 0.0
    %1974 = vmatprep.subr.mxu0 0.0
    %1975 = vmatpush1.msra.mxu0 0.0
    %1976 = vmatprep.subr.mxu0 0.0
    %1977 = vmatpush1.msra.mxu0 0.0
    %1978 = vmatprep.subr.mxu0 0.0
    %1979 = vmatpush1.msra.mxu0 0.0
    %1980 = vmatprep.subr.mxu0 0.0
    %1981 = vmatpush1.msra.mxu0 0.0
    %1982 = vmatprep.subr.mxu0 0.0
    %1983 = vmatpush1.msra.mxu0 0.0
    %1984 = vmatprep.subr.mxu0 0.0
    %1985 = vmatpush1.msra.mxu0 0.0
    %1986 = vmatprep.subr.mxu0 0.0
    %1987 = vmatpush1.msra.mxu0 0.0
    %1988 = vmatprep.subr.mxu0 0.0
    %1989 = vmatpush1.msra.mxu0 0.0
    %1990 = vmatprep.subr.mxu0 0.0
    %1991 = vmatpush1.msra.mxu0 0.0
    %1992 = vmatprep.subr.mxu0 0.0
    %1993 = vmatpush1.msra.mxu0 0.0
    %1994 = vmatprep.subr.mxu0 0.0
    %1995 = vmatpush1.msra.mxu0 0.0
    %1996 = vmatprep.subr.mxu0 0.0
    %1997 = vmatpush1.msra.mxu0 0.0
    %1998 = vmatprep.subr.mxu0 0.0
    %1999 = vmatpush1.msra.mxu0 0.0
    %2000 = vmatprep.subr.mxu0 0.0
    %2001 = vmatpush1.msra.mxu0 0.0
    %2002 = vmatprep.mubr.f32.mxu0 0.0
    %2003 = vmatmul.mubr.f32.gmra.mrb[0].mxu0 %v1936
    %v2004 = vpop.f32.mrb[0].mxu0
    %v2005 = vadd.f32 0.0, %v2004
    %v2006 = vpop.f32.mrb[0].mxu0
    %2007 = vdwg.mxu0
    %2010 = vrot.lane.b32.xlu0 %v1640, 32
    %v2011 = vpop.permute.xlu0 %2010
    %2012 = vrot.lane.b32.xlu0 %v1713, 32
    %v2013 = vpop.permute.xlu0 %2012
    %2018 = vrot.lane.b32.xlu0 %v1786, 64
    %v2019 = vpop.permute.xlu0 %2018
    %2020 = vrot.lane.b32.xlu0 %v1859, 64
    %v2021 = vpop.permute.xlu0 %2020
    %2026 = vrot.lane.b32.xlu0 %v1932, 96
    %v2027 = vpop.permute.xlu0 %2026
    %2028 = vrot.lane.b32.xlu0 %v2005, 96
    %v2029 = vpop.permute.xlu0 %2028
    %v2032 = vsel %vm726, %v1494, %v2011
    %v2033 = vsel %vm726, %v1567, %v2013
    %vm2034 = vcmask 523264
    %v2035 = vsel %vm2034, %v2032, %v2019
    %v2036 = vsel %vm2034, %v2033, %v2021
    %vm2037 = vcmask 785408
    %v2038 = vsel %vm2037, %v2035, %v2027
    %v2039 = vsel %vm2037, %v2036, %v2029
    %v2041 = vlaneseq
    %v2042 = vshrl.u32 %v2041, 7
    %v2043 = vsub.s32 0, %v2042
    %v2044 = vrot.slane %v337, %v2043
    %2046 = vmatprep.subr.mxu0 0.0
    %2047 = vmatpush1.msra.mxu0 %v321
    %2048 = vmatprep.subr.mxu0 0.0
    %2049 = vmatpush1.msra.mxu0 %v322
    %2050 = vmatprep.subr.mxu0 0.0
    %2051 = vmatpush1.msra.mxu0 %v323
    %2052 = vmatprep.subr.mxu0 0.0
    %2053 = vmatpush1.msra.mxu0 %v324
    %2054 = vmatprep.subr.mxu0 0.0
    %2055 = vmatpush1.msra.mxu0 %v325
    %2056 = vmatprep.subr.mxu0 0.0
    %2057 = vmatpush1.msra.mxu0 %v326
    %2058 = vmatprep.subr.mxu0 0.0
    %2059 = vmatpush1.msra.mxu0 %v327
    %2060 = vmatprep.subr.mxu0 0.0
    %2061 = vmatpush1.msra.mxu0 %v328
    %2062 = vmatprep.subr.mxu0 0.0
    %2063 = vmatpush1.msra.mxu0 %v329
    %2064 = vmatprep.subr.mxu0 0.0
    %2065 = vmatpush1.msra.mxu0 %v330
    %2066 = vmatprep.subr.mxu0 0.0
    %2067 = vmatpush1.msra.mxu0 %v331
    %2068 = vmatprep.subr.mxu0 0.0
    %2069 = vmatpush1.msra.mxu0 %v332
    %2070 = vmatprep.subr.mxu0 0.0
    %2071 = vmatpush1.msra.mxu0 %v333
    %2072 = vmatprep.subr.mxu0 0.0
    %2073 = vmatpush1.msra.mxu0 %v334
    %2074 = vmatprep.subr.mxu0 0.0
    %2075 = vmatpush1.msra.mxu0 %v335
    %2076 = vmatprep.subr.mxu0 0.0
    %2077 = vmatpush1.msra.mxu0 %v336
    %2078 = vmatprep.subr.mxu0 0.0
    %2079 = vmatpush1.msra.mxu0 0.0
    %2080 = vmatprep.subr.mxu0 0.0
    %2081 = vmatpush1.msra.mxu0 0.0
    %2082 = vmatprep.subr.mxu0 0.0
    %2083 = vmatpush1.msra.mxu0 0.0
    %2084 = vmatprep.subr.mxu0 0.0
    %2085 = vmatpush1.msra.mxu0 0.0
    %2086 = vmatprep.subr.mxu0 0.0
    %2087 = vmatpush1.msra.mxu0 0.0
    %2088 = vmatprep.subr.mxu0 0.0
    %2089 = vmatpush1.msra.mxu0 0.0
    %2090 = vmatprep.subr.mxu0 0.0
    %2091 = vmatpush1.msra.mxu0 0.0
    %2092 = vmatprep.subr.mxu0 0.0
    %2093 = vmatpush1.msra.mxu0 0.0
    %2094 = vmatprep.subr.mxu0 0.0
    %2095 = vmatpush1.msra.mxu0 0.0
    %2096 = vmatprep.subr.mxu0 0.0
    %2097 = vmatpush1.msra.mxu0 0.0
    %2098 = vmatprep.subr.mxu0 0.0
    %2099 = vmatpush1.msra.mxu0 0.0
    %2100 = vmatprep.subr.mxu0 0.0
    %2101 = vmatpush1.msra.mxu0 0.0
    %2102 = vmatprep.subr.mxu0 0.0
    %2103 = vmatpush1.msra.mxu0 0.0
    %2104 = vmatprep.subr.mxu0 0.0
    %2105 = vmatpush1.msra.mxu0 0.0
    %2106 = vmatprep.subr.mxu0 0.0
    %2107 = vmatpush1.msra.mxu0 0.0
    %2108 = vmatprep.subr.mxu0 0.0
    %2109 = vmatpush1.msra.mxu0 0.0
    %2110 = vmatprep.mubr.f32.mxu0 0.0
    %2111 = vmatmul.mubr.f32.gmra.mrb[0].mxu0 %v2038
    %v2112 = vpop.f32.mrb[0].mxu0
    %v2113 = vadd.f32 %v2044, %v2112
    %v2114 = vpop.f32.mrb[0].mxu0
    %2115 = vmatprep.mubr.f32.mxu0 0.0
    %2116 = vmatmul.mubr.f32.gmra.mrb[0].mxu0 %v2039
    %v2117 = vpop.f32.mrb[0].mxu0
    %v2118 = vadd.f32 %v2044, %v2117
    %v2119 = vpop.f32.mrb[0].mxu0
    %2120 = vdwg.mxu0
    %v2121 = vadd.f32 %v246, %v2113
    %v2122 = vadd.f32 %v247, %v2118
    %2123 = vadd.xlane.f32.xlu0 %v2121
    %v2124 = vpop.xlane.xlu0 %2123
    %2125 = vadd.xlane.f32.xlu0 %v2122
    %v2126 = vpop.xlane.xlu0 %2125
    %v2127 = vmul.f32 %v2124, %v475
    %v2128 = vmul.f32 %v2126, %v475
    %v2129 = vsub.f32 %v2121, %v2127
    %v2130 = vsub.f32 %v2122, %v2128
    %v2131 = vmul.f32 %v2129, %v2129
    %v2132 = vmul.f32 %v2130, %v2130
    %2133 = vadd.xlane.f32.xlu0 %v2131
    %v2134 = vpop.xlane.xlu0 %2133
    %2135 = vadd.xlane.f32.xlu0 %v2132
    %v2136 = vpop.xlane.xlu0 %2135
    %v2137 = vmul.f32 %v2134, %v475
    %v2138 = vmul.f32 %v2136, %v475
    %v2139 = vadd.f32 %v2137, 1e-05
    %v2140 = vadd.f32 %v2138, 1e-05
    %v2141 = vrsqrt.pop %v2139
    %v2142 = vrsqrt.pop %v2140
    %v2143 = vmul.f32 %v2129, %v2141
    %v2144 = vmul.f32 %v2130, %v2142
    %v2146 = vlaneseq
    %v2147 = vshrl.u32 %v2146, 7
    %v2148 = vsub.s32 0, %v2147
    %v2149 = vrot.slane %v267, %v2148
    %v2151 = vmul.f32 %v2143, %v2149
    %v2152 = vmul.f32 %v2144, %v2149
    %v2154 = vlaneseq
    %v2155 = vshrl.u32 %v2154, 7
    %v2156 = vsub.s32 0, %v2155
    %v2157 = vrot.slane %v270, %v2156
    %v2159 = vadd.f32 %v2151, %v2157
    %v2160 = vadd.f32 %v2152, %v2157
    %v2162 = vlaneseq
    %v2163 = vshrl.u32 %v2162, 7
    %v2164 = vsub.s32 0, %v2163
    %v2165 = vrot.slane %v354, %v2164
    %2167 = vmatprep.subr.mxu0 0.0
    %2168 = vmatpush1.msra.mxu0 %v338
    %2169 = vmatprep.subr.mxu0 0.0
    %2170 = vmatpush1.msra.mxu0 %v339
    %2171 = vmatprep.subr.mxu0 0.0
    %2172 = vmatpush1.msra.mxu0 %v340
    %2173 = vmatprep.subr.mxu0 0.0
    %2174 = vmatpush1.msra.mxu0 %v341
    %2175 = vmatprep.subr.mxu0 0.0
    %2176 = vmatpush1.msra.mxu0 %v342
    %2177 = vmatprep.subr.mxu0 0.0
    %2178 = vmatpush1.msra.mxu0 %v343
    %2179 = vmatprep.subr.mxu0 0.0
    %2180 = vmatpush1.msra.mxu0 %v344
    %2181 = vmatprep.subr.mxu0 0.0
    %2182 = vmatpush1.msra.mxu0 %v345
    %2183 = vmatprep.subr.mxu0 0.0
    %2184 = vmatpush1.msra.mxu0 %v346
    %2185 = vmatprep.subr.mxu0 0.0
    %2186 = vmatpush1.msra.mxu0 %v347
    %2187 = vmatprep.subr.mxu0 0.0
    %2188 = vmatpush1.msra.mxu0 %v348
    %2189 = vmatprep.subr.mxu0 0.0
    %2190 = vmatpush1.msra.mxu0 %v349
    %2191 = vmatprep.subr.mxu0 0.0
    %2192 = vmatpush1.msra.mxu0 %v350
    %2193 = vmatprep.subr.mxu0 0.0
    %2194 = vmatpush1.msra.mxu0 %v351
    %2195 = vmatprep.subr.mxu0 0.0
    %2196 = vmatpush1.msra.mxu0 %v352
    %2197 = vmatprep.subr.mxu0 0.0
    %2198 = vmatpush1.msra.mxu0 %v353
    %2199 = vmatprep.subr.mxu0 0.0
    %2200 = vmatpush1.msra.mxu0 0.0
    %2201 = vmatprep.subr.mxu0 0.0
    %2202 = vmatpush1.msra.mxu0 0.0
    %2203 = vmatprep.subr.mxu0 0.0
    %2204 = vmatpush1.msra.mxu0 0.0
    %2205 = vmatprep.subr.mxu0 0.0
    %2206 = vmatpush1.msra.mxu0 0.0
    %2207 = vmatprep.subr.mxu0 0.0
    %2208 = vmatpush1.msra.mxu0 0.0
    %2209 = vmatprep.subr.mxu0 0.0
    %2210 = vmatpush1.msra.mxu0 0.0
    %2211 = vmatprep.subr.mxu0 0.0
    %2212 = vmatpush1.msra.mxu0 0.0
    %2213 = vmatprep.subr.mxu0 0.0
    %2214 = vmatpush1.msra.mxu0 0.0
    %2215 = vmatprep.subr.mxu0 0.0
    %2216 = vmatpush1.msra.mxu0 0.0
    %2217 = vmatprep.subr.mxu0 0.0
    %2218 = vmatpush1.msra.mxu0 0.0
    %2219 = vmatprep.subr.mxu0 0.0
    %2220 = vmatpush1.msra.mxu0 0.0
    %2221 = vmatprep.subr.mxu0 0.0
    %2222 = vmatpush1.msra.mxu0 0.0
    %2223 = vmatprep.subr.mxu0 0.0
    %2224 = vmatpush1.msra.mxu0 0.0
    %2225 = vmatprep.subr.mxu0 0.0
    %2226 = vmatpush1.msra.mxu0 0.0
    %2227 = vmatprep.subr.mxu0 0.0
    %2228 = vmatpush1.msra.mxu0 0.0
    %2229 = vmatprep.subr.mxu0 0.0
    %2230 = vmatpush1.msra.mxu0 0.0
    %2231 = vmatprep.mubr.f32.mxu0 0.0
    %2232 = vmatmul.mubr.f32.gmra.mrb[0].mxu0 %v2159
    %v2233 = vpop.f32.mrb[0].mxu0
    %v2234 = vadd.f32 %v2165, %v2233
    %v2235 = vpop.f32.mrb[0].mxu0
    %2236 = vmatprep.mubr.f32.mxu0 0.0
    %2237 = vmatmul.mubr.f32.gmra.mrb[0].mxu0 %v2160
    %v2238 = vpop.f32.mrb[0].mxu0
    %v2239 = vadd.f32 %v2165, %v2238
    %v2240 = vpop.f32.mrb[0].mxu0
    %2241 = vdwg.mxu0
    %v2243 = vlaneseq
    %v2244 = vshrl.u32 %v2243, 7
    %v2245 = vsub.s32 0, %v2244
    %v2246 = vrot.slane %v387, %v2245
    %v2247 = vlaneseq
    %v2248 = vshrl.u32 %v2247, 7
    %v2249 = vsub.s32 1, %v2248
    %v2250 = vrot.slane %v387, %v2249
    %2253 = vmatprep.subr.mxu0 %v356
    %2254 = vmatpush1.msra.mxu0 %v355
    %2255 = vmatprep.subr.mxu0 %v358
    %2256 = vmatpush1.msra.mxu0 %v357
    %2257 = vmatprep.subr.mxu0 %v360
    %2258 = vmatpush1.msra.mxu0 %v359
    %2259 = vmatprep.subr.mxu0 %v362
    %2260 = vmatpush1.msra.mxu0 %v361
    %2261 = vmatprep.subr.mxu0 %v364
    %2262 = vmatpush1.msra.mxu0 %v363
    %2263 = vmatprep.subr.mxu0 %v366
    %2264 = vmatpush1.msra.mxu0 %v365
    %2265 = vmatprep.subr.mxu0 %v368
    %2266 = vmatpush1.msra.mxu0 %v367
    %2267 = vmatprep.subr.mxu0 %v370
    %2268 = vmatpush1.msra.mxu0 %v369
    %2269 = vmatprep.subr.mxu0 %v372
    %2270 = vmatpush1.msra.mxu0 %v371
    %2271 = vmatprep.subr.mxu0 %v374
    %2272 = vmatpush1.msra.mxu0 %v373
    %2273 = vmatprep.subr.mxu0 %v376
    %2274 = vmatpush1.msra.mxu0 %v375
    %2275 = vmatprep.subr.mxu0 %v378
    %2276 = vmatpush1.msra.mxu0 %v377
    %2277 = vmatprep.subr.mxu0 %v380
    %2278 = vmatpush1.msra.mxu0 %v379
    %2279 = vmatprep.subr.mxu0 %v382
    %2280 = vmatpush1.msra.mxu0 %v381
    %2281 = vmatprep.subr.mxu0 %v384
    %2282 = vmatpush1.msra.mxu0 %v383
    %2283 = vmatprep.subr.mxu0 %v386
    %2284 = vmatpush1.msra.mxu0 %v385
    %2285 = vmatprep.subr.mxu0 0.0
    %2286 = vmatpush1.msra.mxu0 0.0
    %2287 = vmatprep.subr.mxu0 0.0
    %2288 = vmatpush1.msra.mxu0 0.0
    %2289 = vmatprep.subr.mxu0 0.0
    %2290 = vmatpush1.msra.mxu0 0.0
    %2291 = vmatprep.subr.mxu0 0.0
    %2292 = vmatpush1.msra.mxu0 0.0
    %2293 = vmatprep.subr.mxu0 0.0
    %2294 = vmatpush1.msra.mxu0 0.0
    %2295 = vmatprep.subr.mxu0 0.0
    %2296 = vmatpush1.msra.mxu0 0.0
    %2297 = vmatprep.subr.mxu0 0.0
    %2298 = vmatpush1.msra.mxu0 0.0
    %2299 = vmatprep.subr.mxu0 0.0
    %2300 = vmatpush1.msra.mxu0 0.0
    %2301 = vmatprep.subr.mxu0 0.0
    %2302 = vmatpush1.msra.mxu0 0.0
    %2303 = vmatprep.subr.mxu0 0.0
    %2304 = vmatpush1.msra.mxu0 0.0
    %2305 = vmatprep.subr.mxu0 0.0
    %2306 = vmatpush1.msra.mxu0 0.0
    %2307 = vmatprep.subr.mxu0 0.0
    %2308 = vmatpush1.msra.mxu0 0.0
    %2309 = vmatprep.subr.mxu0 0.0
    %2310 = vmatpush1.msra.mxu0 0.0
    %2311 = vmatprep.subr.mxu0 0.0
    %2312 = vmatpush1.msra.mxu0 0.0
    %2313 = vmatprep.subr.mxu0 0.0
    %2314 = vmatpush1.msra.mxu0 0.0
    %2315 = vmatprep.subr.mxu0 0.0
    %2316 = vmatpush1.msra.mxu0 0.0
    %2317 = vmatprep.mubr.f32.mxu0 0.0
    %2318 = vmatmul.mubr.f32.gmra.mrb[0].mxu0 %v248
    %v2319 = vpop.f32.mrb[0].mxu0
    %v2320 = vadd.f32 %v2246, %v2319
    %v2321 = vpop.f32.mrb[0].mxu0
    %v2322 = vadd.f32 %v2250, %v2321
    %2323 = vmatprep.mubr.f32.mxu0 0.0
    %2324 = vmatmul.mubr.f32.gmra.mrb[0].mxu0 %v249
    %v2325 = vpop.f32.mrb[0].mxu0
    %v2326 = vadd.f32 %v2246, %v2325
    %v2327 = vpop.f32.mrb[0].mxu0
    %v2328 = vadd.f32 %v2250, %v2327
    %2329 = vdwg.mxu0
    %2332 = vrot.lane.b32.xlu0 %v2234, 96
    %v2333 = vpop.permute.xlu0 %2332
    %2334 = vrot.lane.b32.xlu0 %v2239, 96
    %v2335 = vpop.permute.xlu0 %2334
    %2336 = vrot.lane.b32.xlu0 %v2234, 64
    %v2337 = vpop.permute.xlu0 %2336
    %2338 = vrot.lane.b32.xlu0 %v2239, 64
    %v2339 = vpop.permute.xlu0 %2338
    %2340 = vrot.lane.b32.xlu0 %v2234, 32
    %v2341 = vpop.permute.xlu0 %2340
    %2342 = vrot.lane.b32.xlu0 %v2239, 32
    %v2343 = vpop.permute.xlu0 %2342
    %2346 = vrot.lane.b32.xlu0 %v2320, 96
    %v2347 = vpop.permute.xlu0 %2346
    %2348 = vrot.lane.b32.xlu0 %v2326, 96
    %v2349 = vpop.permute.xlu0 %2348
    %2350 = vrot.lane.b32.xlu0 %v2320, 64
    %v2351 = vpop.permute.xlu0 %2350
    %2352 = vrot.lane.b32.xlu0 %v2326, 64
    %v2353 = vpop.permute.xlu0 %2352
    %2354 = vrot.lane.b32.xlu0 %v2320, 32
    %v2355 = vpop.permute.xlu0 %2354
    %2356 = vrot.lane.b32.xlu0 %v2326, 32
    %v2357 = vpop.permute.xlu0 %2356
    %2360 = vrot.lane.b32.xlu0 %v2322, 96
    %v2361 = vpop.permute.xlu0 %2360
    %2362 = vrot.lane.b32.xlu0 %v2328, 96
    %v2363 = vpop.permute.xlu0 %2362
    %2366 = vrot.lane.b32.xlu0 %v2322, 64
    %v2367 = vpop.permute.xlu0 %2366
    %2368 = vrot.lane.b32.xlu0 %v2328, 64
    %v2369 = vpop.permute.xlu0 %2368
    %2372 = vrot.lane.b32.xlu0 %v2322, 32
    %v2373 = vpop.permute.xlu0 %2372
    %2374 = vrot.lane.b32.xlu0 %v2328, 32
    %v2375 = vpop.permute.xlu0 %2374
    %v2378 = vsel %vm726, %v2234, 0
    %v2380 = vsel %vm726, %v2320, 0
    %2382 = vmatprep.subr.mxu0 0.0
    %2383 = vmatpush1.xpose.msra.mxu0 %v2380
    %2384 = vmatprep.subr.mxu0 0.0
    %2385 = vmatpush1.xpose.msra.mxu0 0.0
    %2386 = vmatprep.subr.mxu0 0.0
    %2387 = vmatpush1.xpose.msra.mxu0 0.0
    %2388 = vmatprep.subr.mxu0 0.0
    %2389 = vmatpush1.xpose.msra.mxu0 0.0
    %2390 = vmatprep.subr.mxu0 0.0
    %2391 = vmatpush1.xpose.msra.mxu0 0.0
    %2392 = vmatprep.subr.mxu0 0.0
    %2393 = vmatpush1.xpose.msra.mxu0 0.0
    %2394 = vmatprep.subr.mxu0 0.0
    %2395 = vmatpush1.xpose.msra.mxu0 0.0
    %2396 = vmatprep.subr.mxu0 0.0
    %2397 = vmatpush1.xpose.msra.mxu0 0.0
    %2398 = vmatprep.subr.mxu0 0.0
    %2399 = vmatpush1.xpose.msra.mxu0 0.0
    %2400 = vmatprep.subr.mxu0 0.0
    %2401 = vmatpush1.xpose.msra.mxu0 0.0
    %2402 = vmatprep.subr.mxu0 0.0
    %2403 = vmatpush1.xpose.msra.mxu0 0.0
    %2404 = vmatprep.subr.mxu0 0.0
    %2405 = vmatpush1.xpose.msra.mxu0 0.0
    %2406 = vmatprep.subr.mxu0 0.0
    %2407 = vmatpush1.xpose.msra.mxu0 0.0
    %2408 = vmatprep.subr.mxu0 0.0
    %2409 = vmatpush1.xpose.msra.mxu0 0.0
    %2410 = vmatprep.subr.mxu0 0.0
    %2411 = vmatpush1.xpose.msra.mxu0 0.0
    %2412 = vmatprep.subr.mxu0 0.0
    %2413 = vmatpush1.xpose.msra.mxu0 0.0
    %2414 = vmatprep.subr.mxu0 0.0
    %2415 = vmatpush1.xpose.msra.mxu0 0.0
    %2416 = vmatprep.subr.mxu0 0.0
    %2417 = vmatpush1.xpose.msra.mxu0 0.0
    %2418 = vmatprep.subr.mxu0 0.0
    %2419 = vmatpush1.xpose.msra.mxu0 0.0
    %2420 = vmatprep.subr.mxu0 0.0
    %2421 = vmatpush1.xpose.msra.mxu0 0.0
    %2422 = vmatprep.subr.mxu0 0.0
    %2423 = vmatpush1.xpose.msra.mxu0 0.0
    %2424 = vmatprep.subr.mxu0 0.0
    %2425 = vmatpush1.xpose.msra.mxu0 0.0
    %2426 = vmatprep.subr.mxu0 0.0
    %2427 = vmatpush1.xpose.msra.mxu0 0.0
    %2428 = vmatprep.subr.mxu0 0.0
    %2429 = vmatpush1.xpose.msra.mxu0 0.0
    %2430 = vmatprep.subr.mxu0 0.0
    %2431 = vmatpush1.xpose.msra.mxu0 0.0
    %2432 = vmatprep.subr.mxu0 0.0
    %2433 = vmatpush1.xpose.msra.mxu0 0.0
    %2434 = vmatprep.subr.mxu0 0.0
    %2435 = vmatpush1.xpose.msra.mxu0 0.0
    %2436 = vmatprep.subr.mxu0 0.0
    %2437 = vmatpush1.xpose.msra.mxu0 0.0
    %2438 = vmatprep.subr.mxu0 0.0
    %2439 = vmatpush1.xpose.msra.mxu0 0.0
    %2440 = vmatprep.subr.mxu0 0.0
    %2441 = vmatpush1.xpose.msra.mxu0 0.0
    %2442 = vmatprep.subr.mxu0 0.0
    %2443 = vmatpush1.xpose.msra.mxu0 0.0
    %2444 = vmatprep.subr.mxu0 0.0
    %2445 = vmatpush1.xpose.msra.mxu0 0.0
    %2446 = vmatprep.mubr.f32.mxu0 0.0
    %2447 = vmatmul.mubr.f32.gmra.mrb[0].mxu0 %v2378
    %v2448 = vpop.f32.mrb[0].mxu0
    %v2449 = vadd.f32 0.0, %v2448
    %v2450 = vpop.f32.mrb[0].mxu0
    %2451 = vdwg.mxu0
    %v2452 = vsel %vm726, %v2239, 0
    %v2454 = vsel %vm726, %v2326, 0
    %2456 = vmatprep.subr.mxu0 0.0
    %2457 = vmatpush1.xpose.msra.mxu0 %v2454
    %2458 = vmatprep.subr.mxu0 0.0
    %2459 = vmatpush1.xpose.msra.mxu0 0.0
    %2460 = vmatprep.subr.mxu0 0.0
    %2461 = vmatpush1.xpose.msra.mxu0 0.0
    %2462 = vmatprep.subr.mxu0 0.0
    %2463 = vmatpush1.xpose.msra.mxu0 0.0
    %2464 = vmatprep.subr.mxu0 0.0
    %2465 = vmatpush1.xpose.msra.mxu0 0.0
    %2466 = vmatprep.subr.mxu0 0.0
    %2467 = vmatpush1.xpose.msra.mxu0 0.0
    %2468 = vmatprep.subr.mxu0 0.0
    %2469 = vmatpush1.xpose.msra.mxu0 0.0
    %2470 = vmatprep.subr.mxu0 0.0
    %2471 = vmatpush1.xpose.msra.mxu0 0.0
    %2472 = vmatprep.subr.mxu0 0.0
    %2473 = vmatpush1.xpose.msra.mxu0 0.0
    %2474 = vmatprep.subr.mxu0 0.0
    %2475 = vmatpush1.xpose.msra.mxu0 0.0
    %2476 = vmatprep.subr.mxu0 0.0
    %2477 = vmatpush1.xpose.msra.mxu0 0.0
    %2478 = vmatprep.subr.mxu0 0.0
    %2479 = vmatpush1.xpose.msra.mxu0 0.0
    %2480 = vmatprep.subr.mxu0 0.0
    %2481 = vmatpush1.xpose.msra.mxu0 0.0
    %2482 = vmatprep.subr.mxu0 0.0
    %2483 = vmatpush1.xpose.msra.mxu0 0.0
    %2484 = vmatprep.subr.mxu0 0.0
    %2485 = vmatpush1.xpose.msra.mxu0 0.0
    %2486 = vmatprep.subr.mxu0 0.0
    %2487 = vmatpush1.xpose.msra.mxu0 0.0
    %2488 = vmatprep.subr.mxu0 0.0
    %2489 = vmatpush1.xpose.msra.mxu0 0.0
    %2490 = vmatprep.subr.mxu0 0.0
    %2491 = vmatpush1.xpose.msra.mxu0 0.0
    %2492 = vmatprep.subr.mxu0 0.0
    %2493 = vmatpush1.xpose.msra.mxu0 0.0
    %2494 = vmatprep.subr.mxu0 0.0
    %2495 = vmatpush1.xpose.msra.mxu0 0.0
    %2496 = vmatprep.subr.mxu0 0.0
    %2497 = vmatpush1.xpose.msra.mxu0 0.0
    %2498 = vmatprep.subr.mxu0 0.0
    %2499 = vmatpush1.xpose.msra.mxu0 0.0
    %2500 = vmatprep.subr.mxu0 0.0
    %2501 = vmatpush1.xpose.msra.mxu0 0.0
    %2502 = vmatprep.subr.mxu0 0.0
    %2503 = vmatpush1.xpose.msra.mxu0 0.0
    %2504 = vmatprep.subr.mxu0 0.0
    %2505 = vmatpush1.xpose.msra.mxu0 0.0
    %2506 = vmatprep.subr.mxu0 0.0
    %2507 = vmatpush1.xpose.msra.mxu0 0.0
    %2508 = vmatprep.subr.mxu0 0.0
    %2509 = vmatpush1.xpose.msra.mxu0 0.0
    %2510 = vmatprep.subr.mxu0 0.0
    %2511 = vmatpush1.xpose.msra.mxu0 0.0
    %2512 = vmatprep.subr.mxu0 0.0
    %2513 = vmatpush1.xpose.msra.mxu0 0.0
    %2514 = vmatprep.subr.mxu0 0.0
    %2515 = vmatpush1.xpose.msra.mxu0 0.0
    %2516 = vmatprep.subr.mxu0 0.0
    %2517 = vmatpush1.xpose.msra.mxu0 0.0
    %2518 = vmatprep.subr.mxu0 0.0
    %2519 = vmatpush1.xpose.msra.mxu0 0.0
    %2520 = vmatprep.mubr.f32.mxu0 0.0
    %2521 = vmatmul.mubr.f32.gmra.mrb[0].mxu0 %v2452
    %v2522 = vpop.f32.mrb[0].mxu0
    %v2523 = vadd.f32 0.0, %v2522
    %v2524 = vpop.f32.mrb[0].mxu0
    %2525 = vdwg.mxu0
    %v2526 = vsel %vm726, %v2333, 0
    %v2528 = vsel %vm726, %v2347, 0
    %2530 = vmatprep.subr.mxu0 0.0
    %2531 = vmatpush1.xpose.msra.mxu0 %v2528
    %2532 = vmatprep.subr.mxu0 0.0
    %2533 = vmatpush1.xpose.msra.mxu0 0.0
    %2534 = vmatprep.subr.mxu0 0.0
    %2535 = vmatpush1.xpose.msra.mxu0 0.0
    %2536 = vmatprep.subr.mxu0 0.0
    %2537 = vmatpush1.xpose.msra.mxu0 0.0
    %2538 = vmatprep.subr.mxu0 0.0
    %2539 = vmatpush1.xpose.msra.mxu0 0.0
    %2540 = vmatprep.subr.mxu0 0.0
    %2541 = vmatpush1.xpose.msra.mxu0 0.0
    %2542 = vmatprep.subr.mxu0 0.0
    %2543 = vmatpush1.xpose.msra.mxu0 0.0
    %2544 = vmatprep.subr.mxu0 0.0
    %2545 = vmatpush1.xpose.msra.mxu0 0.0
    %2546 = vmatprep.subr.mxu0 0.0
    %2547 = vmatpush1.xpose.msra.mxu0 0.0
    %2548 = vmatprep.subr.mxu0 0.0
    %2549 = vmatpush1.xpose.msra.mxu0 0.0
    %2550 = vmatprep.subr.mxu0 0.0
    %2551 = vmatpush1.xpose.msra.mxu0 0.0
    %2552 = vmatprep.subr.mxu0 0.0
    %2553 = vmatpush1.xpose.msra.mxu0 0.0
    %2554 = vmatprep.subr.mxu0 0.0
    %2555 = vmatpush1.xpose.msra.mxu0 0.0
    %2556 = vmatprep.subr.mxu0 0.0
    %2557 = vmatpush1.xpose.msra.mxu0 0.0
    %2558 = vmatprep.subr.mxu0 0.0
    %2559 = vmatpush1.xpose.msra.mxu0 0.0
    %2560 = vmatprep.subr.mxu0 0.0
    %2561 = vmatpush1.xpose.msra.mxu0 0.0
    %2562 = vmatprep.subr.mxu0 0.0
    %2563 = vmatpush1.xpose.msra.mxu0 0.0
    %2564 = vmatprep.subr.mxu0 0.0
    %2565 = vmatpush1.xpose.msra.mxu0 0.0
    %2566 = vmatprep.subr.mxu0 0.0
    %2567 = vmatpush1.xpose.msra.mxu0 0.0
    %2568 = vmatprep.subr.mxu0 0.0
    %2569 = vmatpush1.xpose.msra.mxu0 0.0
    %2570 = vmatprep.subr.mxu0 0.0
    %2571 = vmatpush1.xpose.msra.mxu0 0.0
    %2572 = vmatprep.subr.mxu0 0.0
    %2573 = vmatpush1.xpose.msra.mxu0 0.0
    %2574 = vmatprep.subr.mxu0 0.0
    %2575 = vmatpush1.xpose.msra.mxu0 0.0
    %2576 = vmatprep.subr.mxu0 0.0
    %2577 = vmatpush1.xpose.msra.mxu0 0.0
    %2578 = vmatprep.subr.mxu0 0.0
    %2579 = vmatpush1.xpose.msra.mxu0 0.0
    %2580 = vmatprep.subr.mxu0 0.0
    %2581 = vmatpush1.xpose.msra.mxu0 0.0
    %2582 = vmatprep.subr.mxu0 0.0
    %2583 = vmatpush1.xpose.msra.mxu0 0.0
    %2584 = vmatprep.subr.mxu0 0.0
    %2585 = vmatpush1.xpose.msra.mxu0 0.0
    %2586 = vmatprep.subr.mxu0 0.0
    %2587 = vmatpush1.xpose.msra.mxu0 0.0
    %2588 = vmatprep.subr.mxu0 0.0
    %2589 = vmatpush1.xpose.msra.mxu0 0.0
    %2590 = vmatprep.subr.mxu0 0.0
    %2591 = vmatpush1.xpose.msra.mxu0 0.0
    %2592 = vmatprep.subr.mxu0 0.0
    %2593 = vmatpush1.xpose.msra.mxu0 0.0
    %2594 = vmatprep.mubr.f32.mxu0 0.0
    %2595 = vmatmul.mubr.f32.gmra.mrb[0].mxu0 %v2526
    %v2596 = vpop.f32.mrb[0].mxu0
    %v2597 = vadd.f32 0.0, %v2596
    %v2598 = vpop.f32.mrb[0].mxu0
    %2599 = vdwg.mxu0
    %v2600 = vsel %vm726, %v2335, 0
    %v2602 = vsel %vm726, %v2349, 0
    %2604 = vmatprep.subr.mxu0 0.0
    %2605 = vmatpush1.xpose.msra.mxu0 %v2602
    %2606 = vmatprep.subr.mxu0 0.0
    %2607 = vmatpush1.xpose.msra.mxu0 0.0
    %2608 = vmatprep.subr.mxu0 0.0
    %2609 = vmatpush1.xpose.msra.mxu0 0.0
    %2610 = vmatprep.subr.mxu0 0.0
    %2611 = vmatpush1.xpose.msra.mxu0 0.0
    %2612 = vmatprep.subr.mxu0 0.0
    %2613 = vmatpush1.xpose.msra.mxu0 0.0
    %2614 = vmatprep.subr.mxu0 0.0
    %2615 = vmatpush1.xpose.msra.mxu0 0.0
    %2616 = vmatprep.subr.mxu0 0.0
    %2617 = vmatpush1.xpose.msra.mxu0 0.0
    %2618 = vmatprep.subr.mxu0 0.0
    %2619 = vmatpush1.xpose.msra.mxu0 0.0
    %2620 = vmatprep.subr.mxu0 0.0
    %2621 = vmatpush1.xpose.msra.mxu0 0.0
    %2622 = vmatprep.subr.mxu0 0.0
    %2623 = vmatpush1.xpose.msra.mxu0 0.0
    %2624 = vmatprep.subr.mxu0 0.0
    %2625 = vmatpush1.xpose.msra.mxu0 0.0
    %2626 = vmatprep.subr.mxu0 0.0
    %2627 = vmatpush1.xpose.msra.mxu0 0.0
    %2628 = vmatprep.subr.mxu0 0.0
    %2629 = vmatpush1.xpose.msra.mxu0 0.0
    %2630 = vmatprep.subr.mxu0 0.0
    %2631 = vmatpush1.xpose.msra.mxu0 0.0
    %2632 = vmatprep.subr.mxu0 0.0
    %2633 = vmatpush1.xpose.msra.mxu0 0.0
    %2634 = vmatprep.subr.mxu0 0.0
    %2635 = vmatpush1.xpose.msra.mxu0 0.0
    %2636 = vmatprep.subr.mxu0 0.0
    %2637 = vmatpush1.xpose.msra.mxu0 0.0
    %2638 = vmatprep.subr.mxu0 0.0
    %2639 = vmatpush1.xpose.msra.mxu0 0.0
    %2640 = vmatprep.subr.mxu0 0.0
    %2641 = vmatpush1.xpose.msra.mxu0 0.0
    %2642 = vmatprep.subr.mxu0 0.0
    %2643 = vmatpush1.xpose.msra.mxu0 0.0
    %2644 = vmatprep.subr.mxu0 0.0
    %2645 = vmatpush1.xpose.msra.mxu0 0.0
    %2646 = vmatprep.subr.mxu0 0.0
    %2647 = vmatpush1.xpose.msra.mxu0 0.0
    %2648 = vmatprep.subr.mxu0 0.0
    %2649 = vmatpush1.xpose.msra.mxu0 0.0
    %2650 = vmatprep.subr.mxu0 0.0
    %2651 = vmatpush1.xpose.msra.mxu0 0.0
    %2652 = vmatprep.subr.mxu0 0.0
    %2653 = vmatpush1.xpose.msra.mxu0 0.0
    %2654 = vmatprep.subr.mxu0 0.0
    %2655 = vmatpush1.xpose.msra.mxu0 0.0
    %2656 = vmatprep.subr.mxu0 0.0
    %2657 = vmatpush1.xpose.msra.mxu0 0.0
    %2658 = vmatprep.subr.mxu0 0.0
    %2659 = vmatpush1.xpose.msra.mxu0 0.0
    %2660 = vmatprep.subr.mxu0 0.0
    %2661 = vmatpush1.xpose.msra.mxu0 0.0
    %2662 = vmatprep.subr.mxu0 0.0
    %2663 = vmatpush1.xpose.msra.mxu0 0.0
    %2664 = vmatprep.subr.mxu0 0.0
    %2665 = vmatpush1.xpose.msra.mxu0 0.0
    %2666 = vmatprep.subr.mxu0 0.0
    %2667 = vmatpush1.xpose.msra.mxu0 0.0
    %2668 = vmatprep.mubr.f32.mxu0 0.0
    %2669 = vmatmul.mubr.f32.gmra.mrb[0].mxu0 %v2600
    %v2670 = vpop.f32.mrb[0].mxu0
    %v2671 = vadd.f32 0.0, %v2670
    %v2672 = vpop.f32.mrb[0].mxu0
    %2673 = vdwg.mxu0
    %v2674 = vsel %vm726, %v2337, 0
    %v2676 = vsel %vm726, %v2351, 0
    %2678 = vmatprep.subr.mxu0 0.0
    %2679 = vmatpush1.xpose.msra.mxu0 %v2676
    %2680 = vmatprep.subr.mxu0 0.0
    %2681 = vmatpush1.xpose.msra.mxu0 0.0
    %2682 = vmatprep.subr.mxu0 0.0
    %2683 = vmatpush1.xpose.msra.mxu0 0.0
    %2684 = vmatprep.subr.mxu0 0.0
    %2685 = vmatpush1.xpose.msra.mxu0 0.0
    %2686 = vmatprep.subr.mxu0 0.0
    %2687 = vmatpush1.xpose.msra.mxu0 0.0
    %2688 = vmatprep.subr.mxu0 0.0
    %2689 = vmatpush1.xpose.msra.mxu0 0.0
    %2690 = vmatprep.subr.mxu0 0.0
    %2691 = vmatpush1.xpose.msra.mxu0 0.0
    %2692 = vmatprep.subr.mxu0 0.0
    %2693 = vmatpush1.xpose.msra.mxu0 0.0
    %2694 = vmatprep.subr.mxu0 0.0
    %2695 = vmatpush1.xpose.msra.mxu0 0.0
    %2696 = vmatprep.subr.mxu0 0.0
    %2697 = vmatpush1.xpose.msra.mxu0 0.0
    %2698 = vmatprep.subr.mxu0 0.0
    %2699 = vmatpush1.xpose.msra.mxu0 0.0
    %2700 = vmatprep.subr.mxu0 0.0
    %2701 = vmatpush1.xpose.msra.mxu0 0.0
    %2702 = vmatprep.subr.mxu0 0.0
    %2703 = vmatpush1.xpose.msra.mxu0 0.0
    %2704 = vmatprep.subr.mxu0 0.0
    %2705 = vmatpush1.xpose.msra.mxu0 0.0
    %2706 = vmatprep.subr.mxu0 0.0
    %2707 = vmatpush1.xpose.msra.mxu0 0.0
    %2708 = vmatprep.subr.mxu0 0.0
    %2709 = vmatpush1.xpose.msra.mxu0 0.0
    %2710 = vmatprep.subr.mxu0 0.0
    %2711 = vmatpush1.xpose.msra.mxu0 0.0
    %2712 = vmatprep.subr.mxu0 0.0
    %2713 = vmatpush1.xpose.msra.mxu0 0.0
    %2714 = vmatprep.subr.mxu0 0.0
    %2715 = vmatpush1.xpose.msra.mxu0 0.0
    %2716 = vmatprep.subr.mxu0 0.0
    %2717 = vmatpush1.xpose.msra.mxu0 0.0
    %2718 = vmatprep.subr.mxu0 0.0
    %2719 = vmatpush1.xpose.msra.mxu0 0.0
    %2720 = vmatprep.subr.mxu0 0.0
    %2721 = vmatpush1.xpose.msra.mxu0 0.0
    %2722 = vmatprep.subr.mxu0 0.0
    %2723 = vmatpush1.xpose.msra.mxu0 0.0
    %2724 = vmatprep.subr.mxu0 0.0
    %2725 = vmatpush1.xpose.msra.mxu0 0.0
    %2726 = vmatprep.subr.mxu0 0.0
    %2727 = vmatpush1.xpose.msra.mxu0 0.0
    %2728 = vmatprep.subr.mxu0 0.0
    %2729 = vmatpush1.xpose.msra.mxu0 0.0
    %2730 = vmatprep.subr.mxu0 0.0
    %2731 = vmatpush1.xpose.msra.mxu0 0.0
    %2732 = vmatprep.subr.mxu0 0.0
    %2733 = vmatpush1.xpose.msra.mxu0 0.0
    %2734 = vmatprep.subr.mxu0 0.0
    %2735 = vmatpush1.xpose.msra.mxu0 0.0
    %2736 = vmatprep.subr.mxu0 0.0
    %2737 = vmatpush1.xpose.msra.mxu0 0.0
    %2738 = vmatprep.subr.mxu0 0.0
    %2739 = vmatpush1.xpose.msra.mxu0 0.0
    %2740 = vmatprep.subr.mxu0 0.0
    %2741 = vmatpush1.xpose.msra.mxu0 0.0
    %2742 = vmatprep.mubr.f32.mxu0 0.0
    %2743 = vmatmul.mubr.f32.gmra.mrb[0].mxu0 %v2674
    %v2744 = vpop.f32.mrb[0].mxu0
    %v2745 = vadd.f32 0.0, %v2744
    %v2746 = vpop.f32.mrb[0].mxu0
    %2747 = vdwg.mxu0
    %v2748 = vsel %vm726, %v2339, 0
    %v2750 = vsel %vm726, %v2353, 0
    %2752 = vmatprep.subr.mxu0 0.0
    %2753 = vmatpush1.xpose.msra.mxu0 %v2750
    %2754 = vmatprep.subr.mxu0 0.0
    %2755 = vmatpush1.xpose.msra.mxu0 0.0
    %2756 = vmatprep.subr.mxu0 0.0
    %2757 = vmatpush1.xpose.msra.mxu0 0.0
    %2758 = vmatprep.subr.mxu0 0.0
    %2759 = vmatpush1.xpose.msra.mxu0 0.0
    %2760 = vmatprep.subr.mxu0 0.0
    %2761 = vmatpush1.xpose.msra.mxu0 0.0
    %2762 = vmatprep.subr.mxu0 0.0
    %2763 = vmatpush1.xpose.msra.mxu0 0.0
    %2764 = vmatprep.subr.mxu0 0.0
    %2765 = vmatpush1.xpose.msra.mxu0 0.0
    %2766 = vmatprep.subr.mxu0 0.0
    %2767 = vmatpush1.xpose.msra.mxu0 0.0
    %2768 = vmatprep.subr.mxu0 0.0
    %2769 = vmatpush1.xpose.msra.mxu0 0.0
    %2770 = vmatprep.subr.mxu0 0.0
    %2771 = vmatpush1.xpose.msra.mxu0 0.0
    %2772 = vmatprep.subr.mxu0 0.0
    %2773 = vmatpush1.xpose.msra.mxu0 0.0
    %2774 = vmatprep.subr.mxu0 0.0
    %2775 = vmatpush1.xpose.msra.mxu0 0.0
    %2776 = vmatprep.subr.mxu0 0.0
    %2777 = vmatpush1.xpose.msra.mxu0 0.0
    %2778 = vmatprep.subr.mxu0 0.0
    %2779 = vmatpush1.xpose.msra.mxu0 0.0
    %2780 = vmatprep.subr.mxu0 0.0
    %2781 = vmatpush1.xpose.msra.mxu0 0.0
    %2782 = vmatprep.subr.mxu0 0.0
    %2783 = vmatpush1.xpose.msra.mxu0 0.0
    %2784 = vmatprep.subr.mxu0 0.0
    %2785 = vmatpush1.xpose.msra.mxu0 0.0
    %2786 = vmatprep.subr.mxu0 0.0
    %2787 = vmatpush1.xpose.msra.mxu0 0.0
    %2788 = vmatprep.subr.mxu0 0.0
    %2789 = vmatpush1.xpose.msra.mxu0 0.0
    %2790 = vmatprep.subr.mxu0 0.0
    %2791 = vmatpush1.xpose.msra.mxu0 0.0
    %2792 = vmatprep.subr.mxu0 0.0
    %2793 = vmatpush1.xpose.msra.mxu0 0.0
    %2794 = vmatprep.subr.mxu0 0.0
    %2795 = vmatpush1.xpose.msra.mxu0 0.0
    %2796 = vmatprep.subr.mxu0 0.0
    %2797 = vmatpush1.xpose.msra.mxu0 0.0
    %2798 = vmatprep.subr.mxu0 0.0
    %2799 = vmatpush1.xpose.msra.mxu0 0.0
    %2800 = vmatprep.subr.mxu0 0.0
    %2801 = vmatpush1.xpose.msra.mxu0 0.0
    %2802 = vmatprep.subr.mxu0 0.0
    %2803 = vmatpush1.xpose.msra.mxu0 0.0
    %2804 = vmatprep.subr.mxu0 0.0
    %2805 = vmatpush1.xpose.msra.mxu0 0.0
    %2806 = vmatprep.subr.mxu0 0.0
    %2807 = vmatpush1.xpose.msra.mxu0 0.0
    %2808 = vmatprep.subr.mxu0 0.0
    %2809 = vmatpush1.xpose.msra.mxu0 0.0
    %2810 = vmatprep.subr.mxu0 0.0
    %2811 = vmatpush1.xpose.msra.mxu0 0.0
    %2812 = vmatprep.subr.mxu0 0.0
    %2813 = vmatpush1.xpose.msra.mxu0 0.0
    %2814 = vmatprep.subr.mxu0 0.0
    %2815 = vmatpush1.xpose.msra.mxu0 0.0
    %2816 = vmatprep.mubr.f32.mxu0 0.0
    %2817 = vmatmul.mubr.f32.gmra.mrb[0].mxu0 %v2748
    %v2818 = vpop.f32.mrb[0].mxu0
    %v2819 = vadd.f32 0.0, %v2818
    %v2820 = vpop.f32.mrb[0].mxu0
    %2821 = vdwg.mxu0
    %v2822 = vsel %vm726, %v2341, 0
    %v2824 = vsel %vm726, %v2355, 0
    %2826 = vmatprep.subr.mxu0 0.0
    %2827 = vmatpush1.xpose.msra.mxu0 %v2824
    %2828 = vmatprep.subr.mxu0 0.0
    %2829 = vmatpush1.xpose.msra.mxu0 0.0
    %2830 = vmatprep.subr.mxu0 0.0
    %2831 = vmatpush1.xpose.msra.mxu0 0.0
    %2832 = vmatprep.subr.mxu0 0.0
    %2833 = vmatpush1.xpose.msra.mxu0 0.0
    %2834 = vmatprep.subr.mxu0 0.0
    %2835 = vmatpush1.xpose.msra.mxu0 0.0
    %2836 = vmatprep.subr.mxu0 0.0
    %2837 = vmatpush1.xpose.msra.mxu0 0.0
    %2838 = vmatprep.subr.mxu0 0.0
    %2839 = vmatpush1.xpose.msra.mxu0 0.0
    %2840 = vmatprep.subr.mxu0 0.0
    %2841 = vmatpush1.xpose.msra.mxu0 0.0
    %2842 = vmatprep.subr.mxu0 0.0
    %2843 = vmatpush1.xpose.msra.mxu0 0.0
    %2844 = vmatprep.subr.mxu0 0.0
    %2845 = vmatpush1.xpose.msra.mxu0 0.0
    %2846 = vmatprep.subr.mxu0 0.0
    %2847 = vmatpush1.xpose.msra.mxu0 0.0
    %2848 = vmatprep.subr.mxu0 0.0
    %2849 = vmatpush1.xpose.msra.mxu0 0.0
    %2850 = vmatprep.subr.mxu0 0.0
    %2851 = vmatpush1.xpose.msra.mxu0 0.0
    %2852 = vmatprep.subr.mxu0 0.0
    %2853 = vmatpush1.xpose.msra.mxu0 0.0
    %2854 = vmatprep.subr.mxu0 0.0
    %2855 = vmatpush1.xpose.msra.mxu0 0.0
    %2856 = vmatprep.subr.mxu0 0.0
    %2857 = vmatpush1.xpose.msra.mxu0 0.0
    %2858 = vmatprep.subr.mxu0 0.0
    %2859 = vmatpush1.xpose.msra.mxu0 0.0
    %2860 = vmatprep.subr.mxu0 0.0
    %2861 = vmatpush1.xpose.msra.mxu0 0.0
    %2862 = vmatprep.subr.mxu0 0.0
    %2863 = vmatpush1.xpose.msra.mxu0 0.0
    %2864 = vmatprep.subr.mxu0 0.0
    %2865 = vmatpush1.xpose.msra.mxu0 0.0
    %2866 = vmatprep.subr.mxu0 0.0
    %2867 = vmatpush1.xpose.msra.mxu0 0.0
    %2868 = vmatprep.subr.mxu0 0.0
    %2869 = vmatpush1.xpose.msra.mxu0 0.0
    %2870 = vmatprep.subr.mxu0 0.0
    %2871 = vmatpush1.xpose.msra.mxu0 0.0
    %2872 = vmatprep.subr.mxu0 0.0
    %2873 = vmatpush1.xpose.msra.mxu0 0.0
    %2874 = vmatprep.subr.mxu0 0.0
    %2875 = vmatpush1.xpose.msra.mxu0 0.0
    %2876 = vmatprep.subr.mxu0 0.0
    %2877 = vmatpush1.xpose.msra.mxu0 0.0
    %2878 = vmatprep.subr.mxu0 0.0
    %2879 = vmatpush1.xpose.msra.mxu0 0.0
    %2880 = vmatprep.subr.mxu0 0.0
    %2881 = vmatpush1.xpose.msra.mxu0 0.0
    %2882 = vmatprep.subr.mxu0 0.0
    %2883 = vmatpush1.xpose.msra.mxu0 0.0
    %2884 = vmatprep.subr.mxu0 0.0
    %2885 = vmatpush1.xpose.msra.mxu0 0.0
    %2886 = vmatprep.subr.mxu0 0.0
    %2887 = vmatpush1.xpose.msra.mxu0 0.0
    %2888 = vmatprep.subr.mxu0 0.0
    %2889 = vmatpush1.xpose.msra.mxu0 0.0
    %2890 = vmatprep.mubr.f32.mxu0 0.0
    %2891 = vmatmul.mubr.f32.gmra.mrb[0].mxu0 %v2822
    %v2892 = vpop.f32.mrb[0].mxu0
    %v2893 = vadd.f32 0.0, %v2892
    %v2894 = vpop.f32.mrb[0].mxu0
    %2895 = vdwg.mxu0
    %v2896 = vsel %vm726, %v2343, 0
    %v2898 = vsel %vm726, %v2357, 0
    %2900 = vmatprep.subr.mxu0 0.0
    %2901 = vmatpush1.xpose.msra.mxu0 %v2898
    %2902 = vmatprep.subr.mxu0 0.0
    %2903 = vmatpush1.xpose.msra.mxu0 0.0
    %2904 = vmatprep.subr.mxu0 0.0
    %2905 = vmatpush1.xpose.msra.mxu0 0.0
    %2906 = vmatprep.subr.mxu0 0.0
    %2907 = vmatpush1.xpose.msra.mxu0 0.0
    %2908 = vmatprep.subr.mxu0 0.0
    %2909 = vmatpush1.xpose.msra.mxu0 0.0
    %2910 = vmatprep.subr.mxu0 0.0
    %2911 = vmatpush1.xpose.msra.mxu0 0.0
    %2912 = vmatprep.subr.mxu0 0.0
    %2913 = vmatpush1.xpose.msra.mxu0 0.0
    %2914 = vmatprep.subr.mxu0 0.0
    %2915 = vmatpush1.xpose.msra.mxu0 0.0
    %2916 = vmatprep.subr.mxu0 0.0
    %2917 = vmatpush1.xpose.msra.mxu0 0.0
    %2918 = vmatprep.subr.mxu0 0.0
    %2919 = vmatpush1.xpose.msra.mxu0 0.0
    %2920 = vmatprep.subr.mxu0 0.0
    %2921 = vmatpush1.xpose.msra.mxu0 0.0
    %2922 = vmatprep.subr.mxu0 0.0
    %2923 = vmatpush1.xpose.msra.mxu0 0.0
    %2924 = vmatprep.subr.mxu0 0.0
    %2925 = vmatpush1.xpose.msra.mxu0 0.0
    %2926 = vmatprep.subr.mxu0 0.0
    %2927 = vmatpush1.xpose.msra.mxu0 0.0
    %2928 = vmatprep.subr.mxu0 0.0
    %2929 = vmatpush1.xpose.msra.mxu0 0.0
    %2930 = vmatprep.subr.mxu0 0.0
    %2931 = vmatpush1.xpose.msra.mxu0 0.0
    %2932 = vmatprep.subr.mxu0 0.0
    %2933 = vmatpush1.xpose.msra.mxu0 0.0
    %2934 = vmatprep.subr.mxu0 0.0
    %2935 = vmatpush1.xpose.msra.mxu0 0.0
    %2936 = vmatprep.subr.mxu0 0.0
    %2937 = vmatpush1.xpose.msra.mxu0 0.0
    %2938 = vmatprep.subr.mxu0 0.0
    %2939 = vmatpush1.xpose.msra.mxu0 0.0
    %2940 = vmatprep.subr.mxu0 0.0
    %2941 = vmatpush1.xpose.msra.mxu0 0.0
    %2942 = vmatprep.subr.mxu0 0.0
    %2943 = vmatpush1.xpose.msra.mxu0 0.0
    %2944 = vmatprep.subr.mxu0 0.0
    %2945 = vmatpush1.xpose.msra.mxu0 0.0
    %2946 = vmatprep.subr.mxu0 0.0
    %2947 = vmatpush1.xpose.msra.mxu0 0.0
    %2948 = vmatprep.subr.mxu0 0.0
    %2949 = vmatpush1.xpose.msra.mxu0 0.0
    %2950 = vmatprep.subr.mxu0 0.0
    %2951 = vmatpush1.xpose.msra.mxu0 0.0
    %2952 = vmatprep.subr.mxu0 0.0
    %2953 = vmatpush1.xpose.msra.mxu0 0.0
    %2954 = vmatprep.subr.mxu0 0.0
    %2955 = vmatpush1.xpose.msra.mxu0 0.0
    %2956 = vmatprep.subr.mxu0 0.0
    %2957 = vmatpush1.xpose.msra.mxu0 0.0
    %2958 = vmatprep.subr.mxu0 0.0
    %2959 = vmatpush1.xpose.msra.mxu0 0.0
    %2960 = vmatprep.subr.mxu0 0.0
    %2961 = vmatpush1.xpose.msra.mxu0 0.0
    %2962 = vmatprep.subr.mxu0 0.0
    %2963 = vmatpush1.xpose.msra.mxu0 0.0
    %2964 = vmatprep.mubr.f32.mxu0 0.0
    %2965 = vmatmul.mubr.f32.gmra.mrb[0].mxu0 %v2896
    %v2966 = vpop.f32.mrb[0].mxu0
    %v2967 = vadd.f32 0.0, %v2966
    %v2968 = vpop.f32.mrb[0].mxu0
    %2969 = vdwg.mxu0
    %v2970 = vmul.f32 %v2449, 0.17677669
    %v2971 = vmul.f32 %v2523, 0.17677669
    %v2972 = vmul.f32 %v2597, 0.17677669
    %v2973 = vmul.f32 %v2671, 0.17677669
    %v2974 = vmul.f32 %v2745, 0.17677669
    %v2975 = vmul.f32 %v2819, 0.17677669
    %v2976 = vmul.f32 %v2893, 0.17677669
    %v2977 = vmul.f32 %v2967, 0.17677669
    %v2978 = vadd.f32 %v2970, %v250
    %v2979 = vadd.f32 %v2971, %v251
    %v2980 = vadd.f32 %v2972, %v252
    %v2981 = vadd.f32 %v2973, %v253
    %v2982 = vadd.f32 %v2974, %v254
    %v2983 = vadd.f32 %v2975, %v255
    %v2984 = vadd.f32 %v2976, %v256
    %v2985 = vadd.f32 %v2977, %v257
    %v2986 = vsel %vm1335, %v2978, -inf
    %2987 = vmax.xlane.f32.xlu0 %v2986
    %v2988 = vpop.xlane.xlu0 %2987
    %v2989 = vsel %vm1335, %v2979, -inf
    %2990 = vmax.xlane.f32.xlu0 %v2989
    %v2991 = vpop.xlane.xlu0 %2990
    %v2992 = vsel %vm1335, %v2980, -inf
    %2993 = vmax.xlane.f32.xlu0 %v2992
    %v2994 = vpop.xlane.xlu0 %2993
    %v2995 = vsel %vm1335, %v2981, -inf
    %2996 = vmax.xlane.f32.xlu0 %v2995
    %v2997 = vpop.xlane.xlu0 %2996
    %v2998 = vsel %vm1335, %v2982, -inf
    %2999 = vmax.xlane.f32.xlu0 %v2998
    %v3000 = vpop.xlane.xlu0 %2999
    %v3001 = vsel %vm1335, %v2983, -inf
    %3002 = vmax.xlane.f32.xlu0 %v3001
    %v3003 = vpop.xlane.xlu0 %3002
    %v3004 = vsel %vm1335, %v2984, -inf
    %3005 = vmax.xlane.f32.xlu0 %v3004
    %v3006 = vpop.xlane.xlu0 %3005
    %v3007 = vsel %vm1335, %v2985, -inf
    %3008 = vmax.xlane.f32.xlu0 %v3007
    %v3009 = vpop.xlane.xlu0 %3008
    %v3010 = vsub.f32 %v2978, %v2988
    %v3011 = vsub.f32 %v2979, %v2991
    %v3012 = vsub.f32 %v2980, %v2994
    %v3013 = vsub.f32 %v2981, %v2997
    %v3014 = vsub.f32 %v2982, %v3000
    %v3015 = vsub.f32 %v2983, %v3003
    %v3016 = vsub.f32 %v2984, %v3006
    %v3017 = vsub.f32 %v2985, %v3009
    %v3018 = vmul.f32 %v3010, 1.442695
    %v3019 = vpow.pop %v3018
    %v3020 = vmul.f32 %v3011, 1.442695
    %v3021 = vpow.pop %v3020
    %v3022 = vmul.f32 %v3012, 1.442695
    %v3023 = vpow.pop %v3022
    %v3024 = vmul.f32 %v3013, 1.442695
    %v3025 = vpow.pop %v3024
    %v3026 = vmul.f32 %v3014, 1.442695
    %v3027 = vpow.pop %v3026
    %v3028 = vmul.f32 %v3015, 1.442695
    %v3029 = vpow.pop %v3028
    %v3030 = vmul.f32 %v3016, 1.442695
    %v3031 = vpow.pop %v3030
    %v3032 = vmul.f32 %v3017, 1.442695
    %v3033 = vpow.pop %v3032
    %v3034 = vsel %vm1335, %v3019, 0.0
    %3035 = vadd.xlane.f32.xlu0 %v3034
    %v3036 = vpop.xlane.xlu0 %3035
    %v3037 = vsel %vm1335, %v3021, 0.0
    %3038 = vadd.xlane.f32.xlu0 %v3037
    %v3039 = vpop.xlane.xlu0 %3038
    %v3040 = vsel %vm1335, %v3023, 0.0
    %3041 = vadd.xlane.f32.xlu0 %v3040
    %v3042 = vpop.xlane.xlu0 %3041
    %v3043 = vsel %vm1335, %v3025, 0.0
    %3044 = vadd.xlane.f32.xlu0 %v3043
    %v3045 = vpop.xlane.xlu0 %3044
    %v3046 = vsel %vm1335, %v3027, 0.0
    %3047 = vadd.xlane.f32.xlu0 %v3046
    %v3048 = vpop.xlane.xlu0 %3047
    %v3049 = vsel %vm1335, %v3029, 0.0
    %3050 = vadd.xlane.f32.xlu0 %v3049
    %v3051 = vpop.xlane.xlu0 %3050
    %v3052 = vsel %vm1335, %v3031, 0.0
    %3053 = vadd.xlane.f32.xlu0 %v3052
    %v3054 = vpop.xlane.xlu0 %3053
    %v3055 = vsel %vm1335, %v3033, 0.0
    %3056 = vadd.xlane.f32.xlu0 %v3055
    %v3057 = vpop.xlane.xlu0 %3056
    %v3058 = vrcp.pop %v3036
    %v3059 = vrcp.pop %v3039
    %v3060 = vrcp.pop %v3042
    %v3061 = vrcp.pop %v3045
    %v3062 = vrcp.pop %v3048
    %v3063 = vrcp.pop %v3051
    %v3064 = vrcp.pop %v3054
    %v3065 = vrcp.pop %v3057
    %v3066 = vmul.f32 %v3019, %v3058
    %v3067 = vmul.f32 %v3021, %v3059
    %v3068 = vmul.f32 %v3023, %v3060
    %v3069 = vmul.f32 %v3025, %v3061
    %v3070 = vmul.f32 %v3027, %v3062
    %v3071 = vmul.f32 %v3029, %v3063
    %v3072 = vmul.f32 %v3031, %v3064
    %v3073 = vmul.f32 %v3033, %v3065
    %v3075 = vsel %vm1335, %v3066, 0
    %3077 = vmatprep.subr.mxu0 0.0
    %3078 = vmatpush1.msra.mxu0 %v2322
    %3079 = vmatprep.subr.mxu0 0.0
    %3080 = vmatpush1.msra.mxu0 0.0
    %3081 = vmatprep.subr.mxu0 0.0
    %3082 = vmatpush1.msra.mxu0 0.0
    %3083 = vmatprep.subr.mxu0 0.0
    %3084 = vmatpush1.msra.mxu0 0.0
    %3085 = vmatprep.subr.mxu0 0.0
    %3086 = vmatpush1.msra.mxu0 0.0
    %3087 = vmatprep.subr.mxu0 0.0
    %3088 = vmatpush1.msra.mxu0 0.0
    %3089 = vmatprep.subr.mxu0 0.0
    %3090 = vmatpush1.msra.mxu0 0.0
    %3091 = vmatprep.subr.mxu0 0.0
    %3092 = vmatpush1.msra.mxu0 0.0
    %3093 = vmatprep.subr.mxu0 0.0
    %3094 = vmatpush1.msra.mxu0 0.0
    %3095 = vmatprep.subr.mxu0 0.0
    %3096 = vmatpush1.msra.mxu0 0.0
    %3097 = vmatprep.subr.mxu0 0.0
    %3098 = vmatpush1.msra.mxu0 0.0
    %3099 = vmatprep.subr.mxu0 0.0
    %3100 = vmatpush1.msra.mxu0 0.0
    %3101 = vmatprep.subr.mxu0 0.0
    %3102 = vmatpush1.msra.mxu0 0.0
    %3103 = vmatprep.subr.mxu0 0.0
    %3104 = vmatpush1.msra.mxu0 0.0
    %3105 = vmatprep.subr.mxu0 0.0
    %3106 = vmatpush1.msra.mxu0 0.0
    %3107 = vmatprep.subr.mxu0 0.0
    %3108 = vmatpush1.msra.mxu0 0.0
    %3109 = vmatprep.subr.mxu0 0.0
    %3110 = vmatpush1.msra.mxu0 0.0
    %3111 = vmatprep.subr.mxu0 0.0
    %3112 = vmatpush1.msra.mxu0 0.0
    %3113 = vmatprep.subr.mxu0 0.0
    %3114 = vmatpush1.msra.mxu0 0.0
    %3115 = vmatprep.subr.mxu0 0.0
    %3116 = vmatpush1.msra.mxu0 0.0
    %3117 = vmatprep.subr.mxu0 0.0
    %3118 = vmatpush1.msra.mxu0 0.0
    %3119 = vmatprep.subr.mxu0 0.0
    %3120 = vmatpush1.msra.mxu0 0.0
    %3121 = vmatprep.subr.mxu0 0.0
    %3122 = vmatpush1.msra.mxu0 0.0
    %3123 = vmatprep.subr.mxu0 0.0
    %3124 = vmatpush1.msra.mxu0 0.0
    %3125 = vmatprep.subr.mxu0 0.0
    %3126 = vmatpush1.msra.mxu0 0.0
    %3127 = vmatprep.subr.mxu0 0.0
    %3128 = vmatpush1.msra.mxu0 0.0
    %3129 = vmatprep.subr.mxu0 0.0
    %3130 = vmatpush1.msra.mxu0 0.0
    %3131 = vmatprep.subr.mxu0 0.0
    %3132 = vmatpush1.msra.mxu0 0.0
    %3133 = vmatprep.subr.mxu0 0.0
    %3134 = vmatpush1.msra.mxu0 0.0
    %3135 = vmatprep.subr.mxu0 0.0
    %3136 = vmatpush1.msra.mxu0 0.0
    %3137 = vmatprep.subr.mxu0 0.0
    %3138 = vmatpush1.msra.mxu0 0.0
    %3139 = vmatprep.subr.mxu0 0.0
    %3140 = vmatpush1.msra.mxu0 0.0
    %3141 = vmatprep.mubr.f32.mxu0 0.0
    %3142 = vmatmul.mubr.f32.gmra.mrb[0].mxu0 %v3075
    %v3143 = vpop.f32.mrb[0].mxu0
    %v3144 = vadd.f32 0.0, %v3143
    %v3145 = vpop.f32.mrb[0].mxu0
    %3146 = vdwg.mxu0
    %v3148 = vsel %vm1335, %v3067, 0
    %3150 = vmatprep.subr.mxu0 0.0
    %3151 = vmatpush1.msra.mxu0 %v2328
    %3152 = vmatprep.subr.mxu0 0.0
    %3153 = vmatpush1.msra.mxu0 0.0
    %3154 = vmatprep.subr.mxu0 0.0
    %3155 = vmatpush1.msra.mxu0 0.0
    %3156 = vmatprep.subr.mxu0 0.0
    %3157 = vmatpush1.msra.mxu0 0.0
    %3158 = vmatprep.subr.mxu0 0.0
    %3159 = vmatpush1.msra.mxu0 0.0
    %3160 = vmatprep.subr.mxu0 0.0
    %3161 = vmatpush1.msra.mxu0 0.0
    %3162 = vmatprep.subr.mxu0 0.0
    %3163 = vmatpush1.msra.mxu0 0.0
    %3164 = vmatprep.subr.mxu0 0.0
    %3165 = vmatpush1.msra.mxu0 0.0
    %3166 = vmatprep.subr.mxu0 0.0
    %3167 = vmatpush1.msra.mxu0 0.0
    %3168 = vmatprep.subr.mxu0 0.0
    %3169 = vmatpush1.msra.mxu0 0.0
    %3170 = vmatprep.subr.mxu0 0.0
    %3171 = vmatpush1.msra.mxu0 0.0
    %3172 = vmatprep.subr.mxu0 0.0
    %3173 = vmatpush1.msra.mxu0 0.0
    %3174 = vmatprep.subr.mxu0 0.0
    %3175 = vmatpush1.msra.mxu0 0.0
    %3176 = vmatprep.subr.mxu0 0.0
    %3177 = vmatpush1.msra.mxu0 0.0
    %3178 = vmatprep.subr.mxu0 0.0
    %3179 = vmatpush1.msra.mxu0 0.0
    %3180 = vmatprep.subr.mxu0 0.0
    %3181 = vmatpush1.msra.mxu0 0.0
    %3182 = vmatprep.subr.mxu0 0.0
    %3183 = vmatpush1.msra.mxu0 0.0
    %3184 = vmatprep.subr.mxu0 0.0
    %3185 = vmatpush1.msra.mxu0 0.0
    %3186 = vmatprep.subr.mxu0 0.0
    %3187 = vmatpush1.msra.mxu0 0.0
    %3188 = vmatprep.subr.mxu0 0.0
    %3189 = vmatpush1.msra.mxu0 0.0
    %3190 = vmatprep.subr.mxu0 0.0
    %3191 = vmatpush1.msra.mxu0 0.0
    %3192 = vmatprep.subr.mxu0 0.0
    %3193 = vmatpush1.msra.mxu0 0.0
    %3194 = vmatprep.subr.mxu0 0.0
    %3195 = vmatpush1.msra.mxu0 0.0
    %3196 = vmatprep.subr.mxu0 0.0
    %3197 = vmatpush1.msra.mxu0 0.0
    %3198 = vmatprep.subr.mxu0 0.0
    %3199 = vmatpush1.msra.mxu0 0.0
    %3200 = vmatprep.subr.mxu0 0.0
    %3201 = vmatpush1.msra.mxu0 0.0
    %3202 = vmatprep.subr.mxu0 0.0
    %3203 = vmatpush1.msra.mxu0 0.0
    %3204 = vmatprep.subr.mxu0 0.0
    %3205 = vmatpush1.msra.mxu0 0.0
    %3206 = vmatprep.subr.mxu0 0.0
    %3207 = vmatpush1.msra.mxu0 0.0
    %3208 = vmatprep.subr.mxu0 0.0
    %3209 = vmatpush1.msra.mxu0 0.0
    %3210 = vmatprep.subr.mxu0 0.0
    %3211 = vmatpush1.msra.mxu0 0.0
    %3212 = vmatprep.subr.mxu0 0.0
    %3213 = vmatpush1.msra.mxu0 0.0
    %3214 = vmatprep.mubr.f32.mxu0 0.0
    %3215 = vmatmul.mubr.f32.gmra.mrb[0].mxu0 %v3148
    %v3216 = vpop.f32.mrb[0].mxu0
    %v3217 = vadd.f32 0.0, %v3216
    %v3218 = vpop.f32.mrb[0].mxu0
    %3219 = vdwg.mxu0
    %v3221 = vsel %vm1335, %v3068, 0
    %3223 = vmatprep.subr.mxu0 0.0
    %3224 = vmatpush1.msra.mxu0 %v2361
    %3225 = vmatprep.subr.mxu0 0.0
    %3226 = vmatpush1.msra.mxu0 0.0
    %3227 = vmatprep.subr.mxu0 0.0
    %3228 = vmatpush1.msra.mxu0 0.0
    %3229 = vmatprep.subr.mxu0 0.0
    %3230 = vmatpush1.msra.mxu0 0.0
    %3231 = vmatprep.subr.mxu0 0.0
    %3232 = vmatpush1.msra.mxu0 0.0
    %3233 = vmatprep.subr.mxu0 0.0
    %3234 = vmatpush1.msra.mxu0 0.0
    %3235 = vmatprep.subr.mxu0 0.0
    %3236 = vmatpush1.msra.mxu0 0.0
    %3237 = vmatprep.subr.mxu0 0.0
    %3238 = vmatpush1.msra.mxu0 0.0
    %3239 = vmatprep.subr.mxu0 0.0
    %3240 = vmatpush1.msra.mxu0 0.0
    %3241 = vmatprep.subr.mxu0 0.0
    %3242 = vmatpush1.msra.mxu0 0.0
    %3243 = vmatprep.subr.mxu0 0.0
    %3244 = vmatpush1.msra.mxu0 0.0
    %3245 = vmatprep.subr.mxu0 0.0
    %3246 = vmatpush1.msra.mxu0 0.0
    %3247 = vmatprep.subr.mxu0 0.0
    %3248 = vmatpush1.msra.mxu0 0.0
    %3249 = vmatprep.subr.mxu0 0.0
    %3250 = vmatpush1.msra.mxu0 0.0
    %3251 = vmatprep.subr.mxu0 0.0
    %3252 = vmatpush1.msra.mxu0 0.0
    %3253 = vmatprep.subr.mxu0 0.0
    %3254 = vmatpush1.msra.mxu0 0.0
    %3255 = vmatprep.subr.mxu0 0.0
    %3256 = vmatpush1.msra.mxu0 0.0
    %3257 = vmatprep.subr.mxu0 0.0
    %3258 = vmatpush1.msra.mxu0 0.0
    %3259 = vmatprep.subr.mxu0 0.0
    %3260 = vmatpush1.msra.mxu0 0.0
    %3261 = vmatprep.subr.mxu0 0.0
    %3262 = vmatpush1.msra.mxu0 0.0
    %3263 = vmatprep.subr.mxu0 0.0
    %3264 = vmatpush1.msra.mxu0 0.0
    %3265 = vmatprep.subr.mxu0 0.0
    %3266 = vmatpush1.msra.mxu0 0.0
    %3267 = vmatprep.subr.mxu0 0.0
    %3268 = vmatpush1.msra.mxu0 0.0
    %3269 = vmatprep.subr.mxu0 0.0
    %3270 = vmatpush1.msra.mxu0 0.0
    %3271 = vmatprep.subr.mxu0 0.0
    %3272 = vmatpush1.msra.mxu0 0.0
    %3273 = vmatprep.subr.mxu0 0.0
    %3274 = vmatpush1.msra.mxu0 0.0
    %3275 = vmatprep.subr.mxu0 0.0
    %3276 = vmatpush1.msra.mxu0 0.0
    %3277 = vmatprep.subr.mxu0 0.0
    %3278 = vmatpush1.msra.mxu0 0.0
    %3279 = vmatprep.subr.mxu0 0.0
    %3280 = vmatpush1.msra.mxu0 0.0
    %3281 = vmatprep.subr.mxu0 0.0
    %3282 = vmatpush1.msra.mxu0 0.0
    %3283 = vmatprep.subr.mxu0 0.0
    %3284 = vmatpush1.msra.mxu0 0.0
    %3285 = vmatprep.subr.mxu0 0.0
    %3286 = vmatpush1.msra.mxu0 0.0
    %3287 = vmatprep.mubr.f32.mxu0 0.0
    %3288 = vmatmul.mubr.f32.gmra.mrb[0].mxu0 %v3221
    %v3289 = vpop.f32.mrb[0].mxu0
    %v3290 = vadd.f32 0.0, %v3289
    %v3291 = vpop.f32.mrb[0].mxu0
    %3292 = vdwg.mxu0
    %v3294 = vsel %vm1335, %v3069, 0
    %3296 = vmatprep.subr.mxu0 0.0
    %3297 = vmatpush1.msra.mxu0 %v2363
    %3298 = vmatprep.subr.mxu0 0.0
    %3299 = vmatpush1.msra.mxu0 0.0
    %3300 = vmatprep.subr.mxu0 0.0
    %3301 = vmatpush1.msra.mxu0 0.0
    %3302 = vmatprep.subr.mxu0 0.0
    %3303 = vmatpush1.msra.mxu0 0.0
    %3304 = vmatprep.subr.mxu0 0.0
    %3305 = vmatpush1.msra.mxu0 0.0
    %3306 = vmatprep.subr.mxu0 0.0
    %3307 = vmatpush1.msra.mxu0 0.0
    %3308 = vmatprep.subr.mxu0 0.0
    %3309 = vmatpush1.msra.mxu0 0.0
    %3310 = vmatprep.subr.mxu0 0.0
    %3311 = vmatpush1.msra.mxu0 0.0
    %3312 = vmatprep.subr.mxu0 0.0
    %3313 = vmatpush1.msra.mxu0 0.0
    %3314 = vmatprep.subr.mxu0 0.0
    %3315 = vmatpush1.msra.mxu0 0.0
    %3316 = vmatprep.subr.mxu0 0.0
    %3317 = vmatpush1.msra.mxu0 0.0
    %3318 = vmatprep.subr.mxu0 0.0
    %3319 = vmatpush1.msra.mxu0 0.0
    %3320 = vmatprep.subr.mxu0 0.0
    %3321 = vmatpush1.msra.mxu0 0.0
    %3322 = vmatprep.subr.mxu0 0.0
    %3323 = vmatpush1.msra.mxu0 0.0
    %3324 = vmatprep.subr.mxu0 0.0
    %3325 = vmatpush1.msra.mxu0 0.0
    %3326 = vmatprep.subr.mxu0 0.0
    %3327 = vmatpush1.msra.mxu0 0.0
    %3328 = vmatprep.subr.mxu0 0.0
    %3329 = vmatpush1.msra.mxu0 0.0
    %3330 = vmatprep.subr.mxu0 0.0
    %3331 = vmatpush1.msra.mxu0 0.0
    %3332 = vmatprep.subr.mxu0 0.0
    %3333 = vmatpush1.msra.mxu0 0.0
    %3334 = vmatprep.subr.mxu0 0.0
    %3335 = vmatpush1.msra.mxu0 0.0
    %3336 = vmatprep.subr.mxu0 0.0
    %3337 = vmatpush1.msra.mxu0 0.0
    %3338 = vmatprep.subr.mxu0 0.0
    %3339 = vmatpush1.msra.mxu0 0.0
    %3340 = vmatprep.subr.mxu0 0.0
    %3341 = vmatpush1.msra.mxu0 0.0
    %3342 = vmatprep.subr.mxu0 0.0
    %3343 = vmatpush1.msra.mxu0 0.0
    %3344 = vmatprep.subr.mxu0 0.0
    %3345 = vmatpush1.msra.mxu0 0.0
    %3346 = vmatprep.subr.mxu0 0.0
    %3347 = vmatpush1.msra.mxu0 0.0
    %3348 = vmatprep.subr.mxu0 0.0
    %3349 = vmatpush1.msra.mxu0 0.0
    %3350 = vmatprep.subr.mxu0 0.0
    %3351 = vmatpush1.msra.mxu0 0.0
    %3352 = vmatprep.subr.mxu0 0.0
    %3353 = vmatpush1.msra.mxu0 0.0
    %3354 = vmatprep.subr.mxu0 0.0
    %3355 = vmatpush1.msra.mxu0 0.0
    %3356 = vmatprep.subr.mxu0 0.0
    %3357 = vmatpush1.msra.mxu0 0.0
    %3358 = vmatprep.subr.mxu0 0.0
    %3359 = vmatpush1.msra.mxu0 0.0
    %3360 = vmatprep.mubr.f32.mxu0 0.0
    %3361 = vmatmul.mubr.f32.gmra.mrb[0].mxu0 %v3294
    %v3362 = vpop.f32.mrb[0].mxu0
    %v3363 = vadd.f32 0.0, %v3362
    %v3364 = vpop.f32.mrb[0].mxu0
    %3365 = vdwg.mxu0
    %v3367 = vsel %vm1335, %v3070, 0
    %3369 = vmatprep.subr.mxu0 0.0
    %3370 = vmatpush1.msra.mxu0 %v2367
    %3371 = vmatprep.subr.mxu0 0.0
    %3372 = vmatpush1.msra.mxu0 0.0
    %3373 = vmatprep.subr.mxu0 0.0
    %3374 = vmatpush1.msra.mxu0 0.0
    %3375 = vmatprep.subr.mxu0 0.0
    %3376 = vmatpush1.msra.mxu0 0.0
    %3377 = vmatprep.subr.mxu0 0.0
    %3378 = vmatpush1.msra.mxu0 0.0
    %3379 = vmatprep.subr.mxu0 0.0
    %3380 = vmatpush1.msra.mxu0 0.0
    %3381 = vmatprep.subr.mxu0 0.0
    %3382 = vmatpush1.msra.mxu0 0.0
    %3383 = vmatprep.subr.mxu0 0.0
    %3384 = vmatpush1.msra.mxu0 0.0
    %3385 = vmatprep.subr.mxu0 0.0
    %3386 = vmatpush1.msra.mxu0 0.0
    %3387 = vmatprep.subr.mxu0 0.0
    %3388 = vmatpush1.msra.mxu0 0.0
    %3389 = vmatprep.subr.mxu0 0.0
    %3390 = vmatpush1.msra.mxu0 0.0
    %3391 = vmatprep.subr.mxu0 0.0
    %3392 = vmatpush1.msra.mxu0 0.0
    %3393 = vmatprep.subr.mxu0 0.0
    %3394 = vmatpush1.msra.mxu0 0.0
    %3395 = vmatprep.subr.mxu0 0.0
    %3396 = vmatpush1.msra.mxu0 0.0
    %3397 = vmatprep.subr.mxu0 0.0
    %3398 = vmatpush1.msra.mxu0 0.0
    %3399 = vmatprep.subr.mxu0 0.0
    %3400 = vmatpush1.msra.mxu0 0.0
    %3401 = vmatprep.subr.mxu0 0.0
    %3402 = vmatpush1.msra.mxu0 0.0
    %3403 = vmatprep.subr.mxu0 0.0
    %3404 = vmatpush1.msra.mxu0 0.0
    %3405 = vmatprep.subr.mxu0 0.0
    %3406 = vmatpush1.msra.mxu0 0.0
    %3407 = vmatprep.subr.mxu0 0.0
    %3408 = vmatpush1.msra.mxu0 0.0
    %3409 = vmatprep.subr.mxu0 0.0
    %3410 = vmatpush1.msra.mxu0 0.0
    %3411 = vmatprep.subr.mxu0 0.0
    %3412 = vmatpush1.msra.mxu0 0.0
    %3413 = vmatprep.subr.mxu0 0.0
    %3414 = vmatpush1.msra.mxu0 0.0
    %3415 = vmatprep.subr.mxu0 0.0
    %3416 = vmatpush1.msra.mxu0 0.0
    %3417 = vmatprep.subr.mxu0 0.0
    %3418 = vmatpush1.msra.mxu0 0.0
    %3419 = vmatprep.subr.mxu0 0.0
    %3420 = vmatpush1.msra.mxu0 0.0
    %3421 = vmatprep.subr.mxu0 0.0
    %3422 = vmatpush1.msra.mxu0 0.0
    %3423 = vmatprep.subr.mxu0 0.0
    %3424 = vmatpush1.msra.mxu0 0.0
    %3425 = vmatprep.subr.mxu0 0.0
    %3426 = vmatpush1.msra.mxu0 0.0
    %3427 = vmatprep.subr.mxu0 0.0
    %3428 = vmatpush1.msra.mxu0 0.0
    %3429 = vmatprep.subr.mxu0 0.0
    %3430 = vmatpush1.msra.mxu0 0.0
    %3431 = vmatprep.subr.mxu0 0.0
    %3432 = vmatpush1.msra.mxu0 0.0
    %3433 = vmatprep.mubr.f32.mxu0 0.0
    %3434 = vmatmul.mubr.f32.gmra.mrb[0].mxu0 %v3367
    %v3435 = vpop.f32.mrb[0].mxu0
    %v3436 = vadd.f32 0.0, %v3435
    %v3437 = vpop.f32.mrb[0].mxu0
    %3438 = vdwg.mxu0
    %v3440 = vsel %vm1335, %v3071, 0
    %3442 = vmatprep.subr.mxu0 0.0
    %3443 = vmatpush1.msra.mxu0 %v2369
    %3444 = vmatprep.subr.mxu0 0.0
    %3445 = vmatpush1.msra.mxu0 0.0
    %3446 = vmatprep.subr.mxu0 0.0
    %3447 = vmatpush1.msra.mxu0 0.0
    %3448 = vmatprep.subr.mxu0 0.0
    %3449 = vmatpush1.msra.mxu0 0.0
    %3450 = vmatprep.subr.mxu0 0.0
    %3451 = vmatpush1.msra.mxu0 0.0
    %3452 = vmatprep.subr.mxu0 0.0
    %3453 = vmatpush1.msra.mxu0 0.0
    %3454 = vmatprep.subr.mxu0 0.0
    %3455 = vmatpush1.msra.mxu0 0.0
    %3456 = vmatprep.subr.mxu0 0.0
    %3457 = vmatpush1.msra.mxu0 0.0
    %3458 = vmatprep.subr.mxu0 0.0
    %3459 = vmatpush1.msra.mxu0 0.0
    %3460 = vmatprep.subr.mxu0 0.0
    %3461 = vmatpush1.msra.mxu0 0.0
    %3462 = vmatprep.subr.mxu0 0.0
    %3463 = vmatpush1.msra.mxu0 0.0
    %3464 = vmatprep.subr.mxu0 0.0
    %3465 = vmatpush1.msra.mxu0 0.0
    %3466 = vmatprep.subr.mxu0 0.0
    %3467 = vmatpush1.msra.mxu0 0.0
    %3468 = vmatprep.subr.mxu0 0.0
    %3469 = vmatpush1.msra.mxu0 0.0
    %3470 = vmatprep.subr.mxu0 0.0
    %3471 = vmatpush1.msra.mxu0 0.0
    %3472 = vmatprep.subr.mxu0 0.0
    %3473 = vmatpush1.msra.mxu0 0.0
    %3474 = vmatprep.subr.mxu0 0.0
    %3475 = vmatpush1.msra.mxu0 0.0
    %3476 = vmatprep.subr.mxu0 0.0
    %3477 = vmatpush1.msra.mxu0 0.0
    %3478 = vmatprep.subr.mxu0 0.0
    %3479 = vmatpush1.msra.mxu0 0.0
    %3480 = vmatprep.subr.mxu0 0.0
    %3481 = vmatpush1.msra.mxu0 0.0
    %3482 = vmatprep.subr.mxu0 0.0
    %3483 = vmatpush1.msra.mxu0 0.0
    %3484 = vmatprep.subr.mxu0 0.0
    %3485 = vmatpush1.msra.mxu0 0.0
    %3486 = vmatprep.subr.mxu0 0.0
    %3487 = vmatpush1.msra.mxu0 0.0
    %3488 = vmatprep.subr.mxu0 0.0
    %3489 = vmatpush1.msra.mxu0 0.0
    %3490 = vmatprep.subr.mxu0 0.0
    %3491 = vmatpush1.msra.mxu0 0.0
    %3492 = vmatprep.subr.mxu0 0.0
    %3493 = vmatpush1.msra.mxu0 0.0
    %3494 = vmatprep.subr.mxu0 0.0
    %3495 = vmatpush1.msra.mxu0 0.0
    %3496 = vmatprep.subr.mxu0 0.0
    %3497 = vmatpush1.msra.mxu0 0.0
    %3498 = vmatprep.subr.mxu0 0.0
    %3499 = vmatpush1.msra.mxu0 0.0
    %3500 = vmatprep.subr.mxu0 0.0
    %3501 = vmatpush1.msra.mxu0 0.0
    %3502 = vmatprep.subr.mxu0 0.0
    %3503 = vmatpush1.msra.mxu0 0.0
    %3504 = vmatprep.subr.mxu0 0.0
    %3505 = vmatpush1.msra.mxu0 0.0
    %3506 = vmatprep.mubr.f32.mxu0 0.0
    %3507 = vmatmul.mubr.f32.gmra.mrb[0].mxu0 %v3440
    %v3508 = vpop.f32.mrb[0].mxu0
    %v3509 = vadd.f32 0.0, %v3508
    %v3510 = vpop.f32.mrb[0].mxu0
    %3511 = vdwg.mxu0
    %v3513 = vsel %vm1335, %v3072, 0
    %3515 = vmatprep.subr.mxu0 0.0
    %3516 = vmatpush1.msra.mxu0 %v2373
    %3517 = vmatprep.subr.mxu0 0.0
    %3518 = vmatpush1.msra.mxu0 0.0
    %3519 = vmatprep.subr.mxu0 0.0
    %3520 = vmatpush1.msra.mxu0 0.0
    %3521 = vmatprep.subr.mxu0 0.0
    %3522 = vmatpush1.msra.mxu0 0.0
    %3523 = vmatprep.subr.mxu0 0.0
    %3524 = vmatpush1.msra.mxu0 0.0
    %3525 = vmatprep.subr.mxu0 0.0
    %3526 = vmatpush1.msra.mxu0 0.0
    %3527 = vmatprep.subr.mxu0 0.0
    %3528 = vmatpush1.msra.mxu0 0.0
    %3529 = vmatprep.subr.mxu0 0.0
    %3530 = vmatpush1.msra.mxu0 0.0
    %3531 = vmatprep.subr.mxu0 0.0
    %3532 = vmatpush1.msra.mxu0 0.0
    %3533 = vmatprep.subr.mxu0 0.0
    %3534 = vmatpush1.msra.mxu0 0.0
    %3535 = vmatprep.subr.mxu0 0.0
    %3536 = vmatpush1.msra.mxu0 0.0
    %3537 = vmatprep.subr.mxu0 0.0
    %3538 = vmatpush1.msra.mxu0 0.0
    %3539 = vmatprep.subr.mxu0 0.0
    %3540 = vmatpush1.msra.mxu0 0.0
    %3541 = vmatprep.subr.mxu0 0.0
    %3542 = vmatpush1.msra.mxu0 0.0
    %3543 = vmatprep.subr.mxu0 0.0
    %3544 = vmatpush1.msra.mxu0 0.0
    %3545 = vmatprep.subr.mxu0 0.0
    %3546 = vmatpush1.msra.mxu0 0.0
    %3547 = vmatprep.subr.mxu0 0.0
    %3548 = vmatpush1.msra.mxu0 0.0
    %3549 = vmatprep.subr.mxu0 0.0
    %3550 = vmatpush1.msra.mxu0 0.0
    %3551 = vmatprep.subr.mxu0 0.0
    %3552 = vmatpush1.msra.mxu0 0.0
    %3553 = vmatprep.subr.mxu0 0.0
    %3554 = vmatpush1.msra.mxu0 0.0
    %3555 = vmatprep.subr.mxu0 0.0
    %3556 = vmatpush1.msra.mxu0 0.0
    %3557 = vmatprep.subr.mxu0 0.0
    %3558 = vmatpush1.msra.mxu0 0.0
    %3559 = vmatprep.subr.mxu0 0.0
    %3560 = vmatpush1.msra.mxu0 0.0
    %3561 = vmatprep.subr.mxu0 0.0
    %3562 = vmatpush1.msra.mxu0 0.0
    %3563 = vmatprep.subr.mxu0 0.0
    %3564 = vmatpush1.msra.mxu0 0.0
    %3565 = vmatprep.subr.mxu0 0.0
    %3566 = vmatpush1.msra.mxu0 0.0
    %3567 = vmatprep.subr.mxu0 0.0
    %3568 = vmatpush1.msra.mxu0 0.0
    %3569 = vmatprep.subr.mxu0 0.0
    %3570 = vmatpush1.msra.mxu0 0.0
    %3571 = vmatprep.subr.mxu0 0.0
    %3572 = vmatpush1.msra.mxu0 0.0
    %3573 = vmatprep.subr.mxu0 0.0
    %3574 = vmatpush1.msra.mxu0 0.0
    %3575 = vmatprep.subr.mxu0 0.0
    %3576 = vmatpush1.msra.mxu0 0.0
    %3577 = vmatprep.subr.mxu0 0.0
    %3578 = vmatpush1.msra.mxu0 0.0
    %3579 = vmatprep.mubr.f32.mxu0 0.0
    %3580 = vmatmul.mubr.f32.gmra.mrb[0].mxu0 %v3513
    %v3581 = vpop.f32.mrb[0].mxu0
    %v3582 = vadd.f32 0.0, %v3581
    %v3583 = vpop.f32.mrb[0].mxu0
    %3584 = vdwg.mxu0
    %v3586 = vsel %vm1335, %v3073, 0
    %3588 = vmatprep.subr.mxu0 0.0
    %3589 = vmatpush1.msra.mxu0 %v2375
    %3590 = vmatprep.subr.mxu0 0.0
    %3591 = vmatpush1.msra.mxu0 0.0
    %3592 = vmatprep.subr.mxu0 0.0
    %3593 = vmatpush1.msra.mxu0 0.0
    %3594 = vmatprep.subr.mxu0 0.0
    %3595 = vmatpush1.msra.mxu0 0.0
    %3596 = vmatprep.subr.mxu0 0.0
    %3597 = vmatpush1.msra.mxu0 0.0
    %3598 = vmatprep.subr.mxu0 0.0
    %3599 = vmatpush1.msra.mxu0 0.0
    %3600 = vmatprep.subr.mxu0 0.0
    %3601 = vmatpush1.msra.mxu0 0.0
    %3602 = vmatprep.subr.mxu0 0.0
    %3603 = vmatpush1.msra.mxu0 0.0
    %3604 = vmatprep.subr.mxu0 0.0
    %3605 = vmatpush1.msra.mxu0 0.0
    %3606 = vmatprep.subr.mxu0 0.0
    %3607 = vmatpush1.msra.mxu0 0.0
    %3608 = vmatprep.subr.mxu0 0.0
    %3609 = vmatpush1.msra.mxu0 0.0
    %3610 = vmatprep.subr.mxu0 0.0
    %3611 = vmatpush1.msra.mxu0 0.0
    %3612 = vmatprep.subr.mxu0 0.0
    %3613 = vmatpush1.msra.mxu0 0.0
    %3614 = vmatprep.subr.mxu0 0.0
    %3615 = vmatpush1.msra.mxu0 0.0
    %3616 = vmatprep.subr.mxu0 0.0
    %3617 = vmatpush1.msra.mxu0 0.0
    %3618 = vmatprep.subr.mxu0 0.0
    %3619 = vmatpush1.msra.mxu0 0.0
    %3620 = vmatprep.subr.mxu0 0.0
    %3621 = vmatpush1.msra.mxu0 0.0
    %3622 = vmatprep.subr.mxu0 0.0
    %3623 = vmatpush1.msra.mxu0 0.0
    %3624 = vmatprep.subr.mxu0 0.0
    %3625 = vmatpush1.msra.mxu0 0.0
    %3626 = vmatprep.subr.mxu0 0.0
    %3627 = vmatpush1.msra.mxu0 0.0
    %3628 = vmatprep.subr.mxu0 0.0
    %3629 = vmatpush1.msra.mxu0 0.0
    %3630 = vmatprep.subr.mxu0 0.0
    %3631 = vmatpush1.msra.mxu0 0.0
    %3632 = vmatprep.subr.mxu0 0.0
    %3633 = vmatpush1.msra.mxu0 0.0
    %3634 = vmatprep.subr.mxu0 0.0
    %3635 = vmatpush1.msra.mxu0 0.0
    %3636 = vmatprep.subr.mxu0 0.0
    %3637 = vmatpush1.msra.mxu0 0.0
    %3638 = vmatprep.subr.mxu0 0.0
    %3639 = vmatpush1.msra.mxu0 0.0
    %3640 = vmatprep.subr.mxu0 0.0
    %3641 = vmatpush1.msra.mxu0 0.0
    %3642 = vmatprep.subr.mxu0 0.0
    %3643 = vmatpush1.msra.mxu0 0.0
    %3644 = vmatprep.subr.mxu0 0.0
    %3645 = vmatpush1.msra.mxu0 0.0
    %3646 = vmatprep.subr.mxu0 0.0
    %3647 = vmatpush1.msra.mxu0 0.0
    %3648 = vmatprep.subr.mxu0 0.0
    %3649 = vmatpush1.msra.mxu0 0.0
    %3650 = vmatprep.subr.mxu0 0.0
    %3651 = vmatpush1.msra.mxu0 0.0
    %3652 = vmatprep.mubr.f32.mxu0 0.0
    %3653 = vmatmul.mubr.f32.gmra.mrb[0].mxu0 %v3586
    %v3654 = vpop.f32.mrb[0].mxu0
    %v3655 = vadd.f32 0.0, %v3654
    %v3656 = vpop.f32.mrb[0].mxu0
    %3657 = vdwg.mxu0
    %3660 = vrot.lane.b32.xlu0 %v3290, 32
    %v3661 = vpop.permute.xlu0 %3660
    %3662 = vrot.lane.b32.xlu0 %v3363, 32
    %v3663 = vpop.permute.xlu0 %3662
    %3668 = vrot.lane.b32.xlu0 %v3436, 64
    %v3669 = vpop.permute.xlu0 %3668
    %3670 = vrot.lane.b32.xlu0 %v3509, 64
    %v3671 = vpop.permute.xlu0 %3670
    %3676 = vrot.lane.b32.xlu0 %v3582, 96
    %v3677 = vpop.permute.xlu0 %3676
    %3678 = vrot.lane.b32.xlu0 %v3655, 96
    %v3679 = vpop.permute.xlu0 %3678
    %v3682 = vsel %vm726, %v3144, %v3661
    %v3683 = vsel %vm726, %v3217, %v3663
    %v3684 = vsel %vm2034, %v3682, %v3669
    %v3685 = vsel %vm2034, %v3683, %v3671
    %v3686 = vsel %vm2037, %v3684, %v3677
    %v3687 = vsel %vm2037, %v3685, %v3679
    %v3689 = vlaneseq
    %v3690 = vshrl.u32 %v3689, 7
    %v3691 = vsub.s32 0, %v3690
    %v3692 = vrot.slane %v404, %v3691
    %3694 = vmatprep.subr.mxu0 0.0
    %3695 = vmatpush1.msra.mxu0 %v388
    %3696 = vmatprep.subr.mxu0 0.0
    %3697 = vmatpush1.msra.mxu0 %v389
    %3698 = vmatprep.subr.mxu0 0.0
    %3699 = vmatpush1.msra.mxu0 %v390
    %3700 = vmatprep.subr.mxu0 0.0
    %3701 = vmatpush1.msra.mxu0 %v391
    %3702 = vmatprep.subr.mxu0 0.0
    %3703 = vmatpush1.msra.mxu0 %v392
    %3704 = vmatprep.subr.mxu0 0.0
    %3705 = vmatpush1.msra.mxu0 %v393
    %3706 = vmatprep.subr.mxu0 0.0
    %3707 = vmatpush1.msra.mxu0 %v394
    %3708 = vmatprep.subr.mxu0 0.0
    %3709 = vmatpush1.msra.mxu0 %v395
    %3710 = vmatprep.subr.mxu0 0.0
    %3711 = vmatpush1.msra.mxu0 %v396
    %3712 = vmatprep.subr.mxu0 0.0
    %3713 = vmatpush1.msra.mxu0 %v397
    %3714 = vmatprep.subr.mxu0 0.0
    %3715 = vmatpush1.msra.mxu0 %v398
    %3716 = vmatprep.subr.mxu0 0.0
    %3717 = vmatpush1.msra.mxu0 %v399
    %3718 = vmatprep.subr.mxu0 0.0
    %3719 = vmatpush1.msra.mxu0 %v400
    %3720 = vmatprep.subr.mxu0 0.0
    %3721 = vmatpush1.msra.mxu0 %v401
    %3722 = vmatprep.subr.mxu0 0.0
    %3723 = vmatpush1.msra.mxu0 %v402
    %3724 = vmatprep.subr.mxu0 0.0
    %3725 = vmatpush1.msra.mxu0 %v403
    %3726 = vmatprep.subr.mxu0 0.0
    %3727 = vmatpush1.msra.mxu0 0.0
    %3728 = vmatprep.subr.mxu0 0.0
    %3729 = vmatpush1.msra.mxu0 0.0
    %3730 = vmatprep.subr.mxu0 0.0
    %3731 = vmatpush1.msra.mxu0 0.0
    %3732 = vmatprep.subr.mxu0 0.0
    %3733 = vmatpush1.msra.mxu0 0.0
    %3734 = vmatprep.subr.mxu0 0.0
    %3735 = vmatpush1.msra.mxu0 0.0
    %3736 = vmatprep.subr.mxu0 0.0
    %3737 = vmatpush1.msra.mxu0 0.0
    %3738 = vmatprep.subr.mxu0 0.0
    %3739 = vmatpush1.msra.mxu0 0.0
    %3740 = vmatprep.subr.mxu0 0.0
    %3741 = vmatpush1.msra.mxu0 0.0
    %3742 = vmatprep.subr.mxu0 0.0
    %3743 = vmatpush1.msra.mxu0 0.0
    %3744 = vmatprep.subr.mxu0 0.0
    %3745 = vmatpush1.msra.mxu0 0.0
    %3746 = vmatprep.subr.mxu0 0.0
    %3747 = vmatpush1.msra.mxu0 0.0
    %3748 = vmatprep.subr.mxu0 0.0
    %3749 = vmatpush1.msra.mxu0 0.0
    %3750 = vmatprep.subr.mxu0 0.0
    %3751 = vmatpush1.msra.mxu0 0.0
    %3752 = vmatprep.subr.mxu0 0.0
    %3753 = vmatpush1.msra.mxu0 0.0
    %3754 = vmatprep.subr.mxu0 0.0
    %3755 = vmatpush1.msra.mxu0 0.0
    %3756 = vmatprep.subr.mxu0 0.0
    %3757 = vmatpush1.msra.mxu0 0.0
    %3758 = vmatprep.mubr.f32.mxu0 0.0
    %3759 = vmatmul.mubr.f32.gmra.mrb[0].mxu0 %v3686
    %v3760 = vpop.f32.mrb[0].mxu0
    %v3761 = vadd.f32 %v3692, %v3760
    %v3762 = vpop.f32.mrb[0].mxu0
    %3763 = vmatprep.mubr.f32.mxu0 0.0
    %3764 = vmatmul.mubr.f32.gmra.mrb[0].mxu0 %v3687
    %v3765 = vpop.f32.mrb[0].mxu0
    %v3766 = vadd.f32 %v3692, %v3765
    %v3767 = vpop.f32.mrb[0].mxu0
    %3768 = vdwg.mxu0
    %v3769 = vadd.f32 %v2121, %v3761
    %v3770 = vadd.f32 %v2122, %v3766
    %3771 = vadd.xlane.f32.xlu0 %v3769
    %v3772 = vpop.xlane.xlu0 %3771
    %3773 = vadd.xlane.f32.xlu0 %v3770
    %v3774 = vpop.xlane.xlu0 %3773
    %v3775 = vmul.f32 %v3772, %v475
    %v3776 = vmul.f32 %v3774, %v475
    %v3777 = vsub.f32 %v3769, %v3775
    %v3778 = vsub.f32 %v3770, %v3776
    %v3779 = vmul.f32 %v3777, %v3777
    %v3780 = vmul.f32 %v3778, %v3778
    %3781 = vadd.xlane.f32.xlu0 %v3779
    %v3782 = vpop.xlane.xlu0 %3781
    %3783 = vadd.xlane.f32.xlu0 %v3780
    %v3784 = vpop.xlane.xlu0 %3783
    %v3785 = vmul.f32 %v3782, %v475
    %v3786 = vmul.f32 %v3784, %v475
    %v3787 = vadd.f32 %v3785, 1e-05
    %v3788 = vadd.f32 %v3786, 1e-05
    %v3789 = vrsqrt.pop %v3787
    %v3790 = vrsqrt.pop %v3788
    %v3791 = vmul.f32 %v3777, %v3789
    %v3792 = vmul.f32 %v3778, %v3790
    %v3794 = vlaneseq
    %v3795 = vshrl.u32 %v3794, 7
    %v3796 = vsub.s32 0, %v3795
    %v3797 = vrot.slane %v268, %v3796
    %v3799 = vmul.f32 %v3791, %v3797
    %v3800 = vmul.f32 %v3792, %v3797
    %v3802 = vlaneseq
    %v3803 = vshrl.u32 %v3802, 7
    %v3804 = vsub.s32 0, %v3803
    %v3805 = vrot.slane %v271, %v3804
    %v3807 = vadd.f32 %v3799, %v3805
    %v3808 = vadd.f32 %v3800, %v3805
    %v3810 = vlaneseq
    %v3811 = vshrl.u32 %v3810, 7
    %v3812 = vsub.s32 0, %v3811
    %v3813 = vrot.slane %v437, %v3812
    %v3814 = vlaneseq
    %v3815 = vshrl.u32 %v3814, 7
    %v3816 = vsub.s32 1, %v3815
    %v3817 = vrot.slane %v437, %v3816
    %3820 = vmatprep.subr.mxu0 %v406
    %3821 = vmatpush1.msra.mxu0 %v405
    %3822 = vmatprep.subr.mxu0 %v408
    %3823 = vmatpush1.msra.mxu0 %v407
    %3824 = vmatprep.subr.mxu0 %v410
    %3825 = vmatpush1.msra.mxu0 %v409
    %3826 = vmatprep.subr.mxu0 %v412
    %3827 = vmatpush1.msra.mxu0 %v411
    %3828 = vmatprep.subr.mxu0 %v414
    %3829 = vmatpush1.msra.mxu0 %v413
    %3830 = vmatprep.subr.mxu0 %v416
    %3831 = vmatpush1.msra.mxu0 %v415
    %3832 = vmatprep.subr.mxu0 %v418
    %3833 = vmatpush1.msra.mxu0 %v417
    %3834 = vmatprep.subr.mxu0 %v420
    %3835 = vmatpush1.msra.mxu0 %v419
    %3836 = vmatprep.subr.mxu0 %v422
    %3837 = vmatpush1.msra.mxu0 %v421
    %3838 = vmatprep.subr.mxu0 %v424
    %3839 = vmatpush1.msra.mxu0 %v423
    %3840 = vmatprep.subr.mxu0 %v426
    %3841 = vmatpush1.msra.mxu0 %v425
    %3842 = vmatprep.subr.mxu0 %v428
    %3843 = vmatpush1.msra.mxu0 %v427
    %3844 = vmatprep.subr.mxu0 %v430
    %3845 = vmatpush1.msra.mxu0 %v429
    %3846 = vmatprep.subr.mxu0 %v432
    %3847 = vmatpush1.msra.mxu0 %v431
    %3848 = vmatprep.subr.mxu0 %v434
    %3849 = vmatpush1.msra.mxu0 %v433
    %3850 = vmatprep.subr.mxu0 %v436
    %3851 = vmatpush1.msra.mxu0 %v435
    %3852 = vmatprep.subr.mxu0 0.0
    %3853 = vmatpush1.msra.mxu0 0.0
    %3854 = vmatprep.subr.mxu0 0.0
    %3855 = vmatpush1.msra.mxu0 0.0
    %3856 = vmatprep.subr.mxu0 0.0
    %3857 = vmatpush1.msra.mxu0 0.0
    %3858 = vmatprep.subr.mxu0 0.0
    %3859 = vmatpush1.msra.mxu0 0.0
    %3860 = vmatprep.subr.mxu0 0.0
    %3861 = vmatpush1.msra.mxu0 0.0
    %3862 = vmatprep.subr.mxu0 0.0
    %3863 = vmatpush1.msra.mxu0 0.0
    %3864 = vmatprep.subr.mxu0 0.0
    %3865 = vmatpush1.msra.mxu0 0.0
    %3866 = vmatprep.subr.mxu0 0.0
    %3867 = vmatpush1.msra.mxu0 0.0
    %3868 = vmatprep.subr.mxu0 0.0
    %3869 = vmatpush1.msra.mxu0 0.0
    %3870 = vmatprep.subr.mxu0 0.0
    %3871 = vmatpush1.msra.mxu0 0.0
    %3872 = vmatprep.subr.mxu0 0.0
    %3873 = vmatpush1.msra.mxu0 0.0
    %3874 = vmatprep.subr.mxu0 0.0
    %3875 = vmatpush1.msra.mxu0 0.0
    %3876 = vmatprep.subr.mxu0 0.0
    %3877 = vmatpush1.msra.mxu0 0.0
    %3878 = vmatprep.subr.mxu0 0.0
    %3879 = vmatpush1.msra.mxu0 0.0
    %3880 = vmatprep.subr.mxu0 0.0
    %3881 = vmatpush1.msra.mxu0 0.0
    %3882 = vmatprep.subr.mxu0 0.0
    %3883 = vmatpush1.msra.mxu0 0.0
    %3884 = vmatprep.mubr.f32.mxu0 0.0
    %3885 = vmatmul.mubr.f32.gmra.mrb[0].mxu0 %v3807
    %v3886 = vpop.f32.mrb[0].mxu0
    %v3887 = vadd.f32 %v3813, %v3886
    %v3888 = vpop.f32.mrb[0].mxu0
    %v3889 = vadd.f32 %v3817, %v3888
    %3890 = vmatprep.mubr.f32.mxu0 0.0
    %3891 = vmatmul.mubr.f32.gmra.mrb[0].mxu0 %v3808
    %v3892 = vpop.f32.mrb[0].mxu0
    %v3893 = vadd.f32 %v3813, %v3892
    %v3894 = vpop.f32.mrb[0].mxu0
    %v3895 = vadd.f32 %v3817, %v3894
    %3896 = vdwg.mxu0
    %v3897 = vmax.f32 %v3887, 0.0
    %v3898 = vmax.f32 %v3889, 0.0
    %v3899 = vmax.f32 %v3893, 0.0
    %v3900 = vmax.f32 %v3895, 0.0
    %3901 = vmatprep.subr.mxu0 0.0
    %3902 = vmatpush1.msra.mxu0 %v438
    %3903 = vmatprep.subr.mxu0 0.0
    %3904 = vmatpush1.msra.mxu0 %v439
    %3905 = vmatprep.subr.mxu0 0.0
    %3906 = vmatpush1.msra.mxu0 %v440
    %3907 = vmatprep.subr.mxu0 0.0
    %3908 = vmatpush1.msra.mxu0 %v441
    %3909 = vmatprep.subr.mxu0 0.0
    %3910 = vmatpush1.msra.mxu0 %v442
    %3911 = vmatprep.subr.mxu0 0.0
    %3912 = vmatpush1.msra.mxu0 %v443
    %3913 = vmatprep.subr.mxu0 0.0
    %3914 = vmatpush1.msra.mxu0 %v444
    %3915 = vmatprep.subr.mxu0 0.0
    %3916 = vmatpush1.msra.mxu0 %v445
    %3917 = vmatprep.subr.mxu0 0.0
    %3918 = vmatpush1.msra.mxu0 %v446
    %3919 = vmatprep.subr.mxu0 0.0
    %3920 = vmatpush1.msra.mxu0 %v447
    %3921 = vmatprep.subr.mxu0 0.0
    %3922 = vmatpush1.msra.mxu0 %v448
    %3923 = vmatprep.subr.mxu0 0.0
    %3924 = vmatpush1.msra.mxu0 %v449
    %3925 = vmatprep.subr.mxu0 0.0
    %3926 = vmatpush1.msra.mxu0 %v450
    %3927 = vmatprep.subr.mxu0 0.0
    %3928 = vmatpush1.msra.mxu0 %v451
    %3929 = vmatprep.subr.mxu0 0.0
    %3930 = vmatpush1.msra.mxu0 %v452
    %3931 = vmatprep.subr.mxu0 0.0
    %3932 = vmatpush1.msra.mxu0 %v453
    %3933 = vmatprep.subr.mxu0 0.0
    %3934 = vmatpush1.msra.mxu0 %v454
    %3935 = vmatprep.subr.mxu0 0.0
    %3936 = vmatpush1.msra.mxu0 %v455
    %3937 = vmatprep.subr.mxu0 0.0
    %3938 = vmatpush1.msra.mxu0 %v456
    %3939 = vmatprep.subr.mxu0 0.0
    %3940 = vmatpush1.msra.mxu0 %v457
    %3941 = vmatprep.subr.mxu0 0.0
    %3942 = vmatpush1.msra.mxu0 %v458
    %3943 = vmatprep.subr.mxu0 0.0
    %3944 = vmatpush1.msra.mxu0 %v459
    %3945 = vmatprep.subr.mxu0 0.0
    %3946 = vmatpush1.msra.mxu0 %v460
    %3947 = vmatprep.subr.mxu0 0.0
    %3948 = vmatpush1.msra.mxu0 %v461
    %3949 = vmatprep.subr.mxu0 0.0
    %3950 = vmatpush1.msra.mxu0 %v462
    %3951 = vmatprep.subr.mxu0 0.0
    %3952 = vmatpush1.msra.mxu0 %v463
    %3953 = vmatprep.subr.mxu0 0.0
    %3954 = vmatpush1.msra.mxu0 %v464
    %3955 = vmatprep.subr.mxu0 0.0
    %3956 = vmatpush1.msra.mxu0 %v465
    %3957 = vmatprep.subr.mxu0 0.0
    %3958 = vmatpush1.msra.mxu0 %v466
    %3959 = vmatprep.subr.mxu0 0.0
    %3960 = vmatpush1.msra.mxu0 %v467
    %3961 = vmatprep.subr.mxu0 0.0
    %3962 = vmatpush1.msra.mxu0 %v468
    %3963 = vmatprep.subr.mxu0 0.0
    %3964 = vmatpush1.msra.mxu0 %v469
    %3965 = vmatprep.mubr.f32.mxu0 %v3898
    %3966 = vmatmul.mubr.f32.gmra.mrb[0].mxu0 %v3897
    %v3967 = vpop.f32.mrb[0].mxu0
    %v3968 = vadd.f32 0.0, %v3967
    %v3969 = vpop.f32.mrb[0].mxu0
    %3970 = vmatprep.mubr.f32.mxu0 %v3900
    %3971 = vmatmul.mubr.f32.gmra.mrb[0].mxu0 %v3899
    %v3972 = vpop.f32.mrb[0].mxu0
    %v3973 = vadd.f32 0.0, %v3972
    %v3974 = vpop.f32.mrb[0].mxu0
    %3975 = vdwg.mxu0
    %v3976 = vadd.f32 %v3769, %v3968
    %v3977 = vadd.f32 %v3770, %v3973
    %v3979 = vlaneseq
    %v3980 = vshrl.u32 %v3979, 7
    %v3981 = vsub.s32 0, %v3980
    %v3982 = vrot.slane %v470, %v3981
    %v3984 = vadd.f32 %v3976, %v3982
    %v3985 = vadd.f32 %v3977, %v3982
    %s3986 = scalar_lea.vmem %s18, 3
    %v3987 = vld [vmem:[%s3986] sm:$0x1]
    %v3988 = vld [vmem:[%s3986 + $0x1] sm:$0x1]
    %v3989 = vld [vmem:[%s3986 + $0x2] sm:$0x1]
    %s3990 = scalar_lea.vmem %s19, 3
    %v3991 = vld [vmem:[%s3990] sm:$0x1]
    %v3992 = vld [vmem:[%s3990 + $0x1] sm:$0x1]
    %v3993 = vld [vmem:[%s3990 + $0x2] sm:$0x1]
    %s3994 = scalar_lea.vmem [#allocation2], 384
    %v3995 = vld [vmem:[%s3994] sm:$0xff]
    %v3996 = vld [vmem:[%s3994 + $0x8] sm:$0xff]
    %v3997 = vld [vmem:[%s3994 + $0x10] sm:$0xff]
    %v3998 = vld [vmem:[%s3994 + $0x18] sm:$0xff]
    %v3999 = vld [vmem:[%s3994 + $0x20] sm:$0xff]
    %v4000 = vld [vmem:[%s3994 + $0x28] sm:$0xff]
    %v4001 = vld [vmem:[%s3994 + $0x30] sm:$0xff]
    %v4002 = vld [vmem:[%s3994 + $0x38] sm:$0xff]
    %v4003 = vld [vmem:[%s3994 + $0x40] sm:$0xff]
    %v4004 = vld [vmem:[%s3994 + $0x48] sm:$0xff]
    %v4005 = vld [vmem:[%s3994 + $0x50] sm:$0xff]
    %v4006 = vld [vmem:[%s3994 + $0x58] sm:$0xff]
    %v4007 = vld [vmem:[%s3994 + $0x60] sm:$0xff]
    %v4008 = vld [vmem:[%s3994 + $0x68] sm:$0xff]
    %v4009 = vld [vmem:[%s3994 + $0x70] sm:$0xff]
    %v4010 = vld [vmem:[%s3994 + $0x78] sm:$0xff]
    %v4011 = vld [vmem:[%s3994 + $0x80] sm:$0xff]
    %v4012 = vld [vmem:[%s3994 + $0x88] sm:$0xff]
    %v4013 = vld [vmem:[%s3994 + $0x90] sm:$0xff]
    %v4014 = vld [vmem:[%s3994 + $0x98] sm:$0xff]
    %v4015 = vld [vmem:[%s3994 + $0xa0] sm:$0xff]
    %v4016 = vld [vmem:[%s3994 + $0xa8] sm:$0xff]
    %v4017 = vld [vmem:[%s3994 + $0xb0] sm:$0xff]
    %v4018 = vld [vmem:[%s3994 + $0xb8] sm:$0xff]
    %v4019 = vld [vmem:[%s3994 + $0xc0] sm:$0xff]
    %v4020 = vld [vmem:[%s3994 + $0xc8] sm:$0xff]
    %v4021 = vld [vmem:[%s3994 + $0xd0] sm:$0xff]
    %v4022 = vld [vmem:[%s3994 + $0xd8] sm:$0xff]
    %v4023 = vld [vmem:[%s3994 + $0xe0] sm:$0xff]
    %v4024 = vld [vmem:[%s3994 + $0xe8] sm:$0xff]
    %v4025 = vld [vmem:[%s3994 + $0xf0] sm:$0xff]
    %v4026 = vld [vmem:[%s3994 + $0xf8] sm:$0xff]
    %v4027 = vld [vmem:[%s3994 + $0x100] sm:$0xff]
    %v4028 = vld [vmem:[%s3994 + $0x108] sm:$0xff]
    %v4029 = vld [vmem:[%s3994 + $0x110] sm:$0xff]
    %v4030 = vld [vmem:[%s3994 + $0x118] sm:$0xff]
    %v4031 = vld [vmem:[%s3994 + $0x120] sm:$0xff]
    %v4032 = vld [vmem:[%s3994 + $0x128] sm:$0xff]
    %v4033 = vld [vmem:[%s3994 + $0x130] sm:$0xff]
    %v4034 = vld [vmem:[%s3994 + $0x138] sm:$0xff]
    %v4035 = vld [vmem:[%s3994 + $0x140] sm:$0xff]
    %v4036 = vld [vmem:[%s3994 + $0x148] sm:$0xff]
    %v4037 = vld [vmem:[%s3994 + $0x150] sm:$0xff]
    %v4038 = vld [vmem:[%s3994 + $0x158] sm:$0xff]
    %v4039 = vld [vmem:[%s3994 + $0x160] sm:$0xff]
    %v4040 = vld [vmem:[%s3994 + $0x168] sm:$0xff]
    %v4041 = vld [vmem:[%s3994 + $0x170] sm:$0xff]
    %v4042 = vld [vmem:[%s3994 + $0x178] sm:$0xff]
    %s4043 = scalar_lea.vmem %s5, 3
    %v4044 = vld [vmem:[%s4043] sm:$0x7]
    %s4045 = scalar_lea.vmem %s6, 128
    %v4046 = vld [vmem:[%s4045] sm:$0xff]
    %v4047 = vld [vmem:[%s4045 + $0x8] sm:$0xff]
    %v4048 = vld [vmem:[%s4045 + $0x10] sm:$0xff]
    %v4049 = vld [vmem:[%s4045 + $0x18] sm:$0xff]
    %v4050 = vld [vmem:[%s4045 + $0x20] sm:$0xff]
    %v4051 = vld [vmem:[%s4045 + $0x28] sm:$0xff]
    %v4052 = vld [vmem:[%s4045 + $0x30] sm:$0xff]
    %v4053 = vld [vmem:[%s4045 + $0x38] sm:$0xff]
    %v4054 = vld [vmem:[%s4045 + $0x40] sm:$0xff]
    %v4055 = vld [vmem:[%s4045 + $0x48] sm:$0xff]
    %v4056 = vld [vmem:[%s4045 + $0x50] sm:$0xff]
    %v4057 = vld [vmem:[%s4045 + $0x58] sm:$0xff]
    %v4058 = vld [vmem:[%s4045 + $0x60] sm:$0xff]
    %v4059 = vld [vmem:[%s4045 + $0x68] sm:$0xff]
    %v4060 = vld [vmem:[%s4045 + $0x70] sm:$0xff]
    %v4061 = vld [vmem:[%s4045 + $0x78] sm:$0xff]
    %s4062 = scalar_lea.vmem [#allocation5], 1
    %v4063 = vld [vmem:[%s4062] sm:$0x1]
    %s4064 = scalar_lea.vmem [#allocation7], 128
    %v4065 = vld [vmem:[%s4064] sm:$0xff]
    %v4066 = vld [vmem:[%s4064 + $0x8] sm:$0xff]
    %v4067 = vld [vmem:[%s4064 + $0x10] sm:$0xff]
    %v4068 = vld [vmem:[%s4064 + $0x18] sm:$0xff]
    %v4069 = vld [vmem:[%s4064 + $0x20] sm:$0xff]
    %v4070 = vld [vmem:[%s4064 + $0x28] sm:$0xff]
    %v4071 = vld [vmem:[%s4064 + $0x30] sm:$0xff]
    %v4072 = vld [vmem:[%s4064 + $0x38] sm:$0xff]
    %v4073 = vld [vmem:[%s4064 + $0x40] sm:$0xff]
    %v4074 = vld [vmem:[%s4064 + $0x48] sm:$0xff]
    %v4075 = vld [vmem:[%s4064 + $0x50] sm:$0xff]
    %v4076 = vld [vmem:[%s4064 + $0x58] sm:$0xff]
    %v4077 = vld [vmem:[%s4064 + $0x60] sm:$0xff]
    %v4078 = vld [vmem:[%s4064 + $0x68] sm:$0xff]
    %v4079 = vld [vmem:[%s4064 + $0x70] sm:$0xff]
    %v4080 = vld [vmem:[%s4064 + $0x78] sm:$0xff]
    %s4081 = scalar_lea.vmem [#allocation8], 1
    %v4082 = vld [vmem:[%s4081] sm:$0x1]
    %s4083 = scalar_lea.vmem [#allocation10], 256
    %v4084 = vld [vmem:[%s4083] sm:$0xff]
    %v4085 = vld [vmem:[%s4083 + $0x8] sm:$0xff]
    %v4086 = vld [vmem:[%s4083 + $0x10] sm:$0xff]
    %v4087 = vld [vmem:[%s4083 + $0x18] sm:$0xff]
    %v4088 = vld [vmem:[%s4083 + $0x20] sm:$0xff]
    %v4089 = vld [vmem:[%s4083 + $0x28] sm:$0xff]
    %v4090 = vld [vmem:[%s4083 + $0x30] sm:$0xff]
    %v4091 = vld [vmem:[%s4083 + $0x38] sm:$0xff]
    %v4092 = vld [vmem:[%s4083 + $0x40] sm:$0xff]
    %v4093 = vld [vmem:[%s4083 + $0x48] sm:$0xff]
    %v4094 = vld [vmem:[%s4083 + $0x50] sm:$0xff]
    %v4095 = vld [vmem:[%s4083 + $0x58] sm:$0xff]
    %v4096 = vld [vmem:[%s4083 + $0x60] sm:$0xff]
    %v4097 = vld [vmem:[%s4083 + $0x68] sm:$0xff]
    %v4098 = vld [vmem:[%s4083 + $0x70] sm:$0xff]
    %v4099 = vld [vmem:[%s4083 + $0x78] sm:$0xff]
    %v4100 = vld [vmem:[%s4083 + $0x80] sm:$0xff]
    %v4101 = vld [vmem:[%s4083 + $0x88] sm:$0xff]
    %v4102 = vld [vmem:[%s4083 + $0x90] sm:$0xff]
    %v4103 = vld [vmem:[%s4083 + $0x98] sm:$0xff]
    %v4104 = vld [vmem:[%s4083 + $0xa0] sm:$0xff]
    %v4105 = vld [vmem:[%s4083 + $0xa8] sm:$0xff]
    %v4106 = vld [vmem:[%s4083 + $0xb0] sm:$0xff]
    %v4107 = vld [vmem:[%s4083 + $0xb8] sm:$0xff]
    %v4108 = vld [vmem:[%s4083 + $0xc0] sm:$0xff]
    %v4109 = vld [vmem:[%s4083 + $0xc8] sm:$0xff]
    %v4110 = vld [vmem:[%s4083 + $0xd0] sm:$0xff]
    %v4111 = vld [vmem:[%s4083 + $0xd8] sm:$0xff]
    %v4112 = vld [vmem:[%s4083 + $0xe0] sm:$0xff]
    %v4113 = vld [vmem:[%s4083 + $0xe8] sm:$0xff]
    %v4114 = vld [vmem:[%s4083 + $0xf0] sm:$0xff]
    %v4115 = vld [vmem:[%s4083 + $0xf8] sm:$0xff]
    %s4116 = scalar_lea.vmem [#allocation11], 2
    %v4117 = vld [vmem:[%s4116] sm:$0x3]
    %s4118 = scalar_lea.vmem [#allocation13], 128
    %v4119 = vld [vmem:[%s4118] sm:$0xff]
    %v4120 = vld [vmem:[%s4118 + $0x8] sm:$0xff]
    %v4121 = vld [vmem:[%s4118 + $0x10] sm:$0xff]
    %v4122 = vld [vmem:[%s4118 + $0x18] sm:$0xff]
    %v4123 = vld [vmem:[%s4118 + $0x20] sm:$0xff]
    %v4124 = vld [vmem:[%s4118 + $0x28] sm:$0xff]
    %v4125 = vld [vmem:[%s4118 + $0x30] sm:$0xff]
    %v4126 = vld [vmem:[%s4118 + $0x38] sm:$0xff]
    %v4127 = vld [vmem:[%s4118 + $0x40] sm:$0xff]
    %v4128 = vld [vmem:[%s4118 + $0x48] sm:$0xff]
    %v4129 = vld [vmem:[%s4118 + $0x50] sm:$0xff]
    %v4130 = vld [vmem:[%s4118 + $0x58] sm:$0xff]
    %v4131 = vld [vmem:[%s4118 + $0x60] sm:$0xff]
    %v4132 = vld [vmem:[%s4118 + $0x68] sm:$0xff]
    %v4133 = vld [vmem:[%s4118 + $0x70] sm:$0xff]
    %v4134 = vld [vmem:[%s4118 + $0x78] sm:$0xff]
    %s4135 = scalar_lea.vmem [#allocation14], 1
    %v4136 = vld [vmem:[%s4135] sm:$0x1]
    %s4137 = scalar_lea.vmem [#allocation16], 256
    %v4138 = vld [vmem:[%s4137] sm:$0xff]
    %v4139 = vld [vmem:[%s4137 + $0x8] sm:$0xff]
    %v4140 = vld [vmem:[%s4137 + $0x10] sm:$0xff]
    %v4141 = vld [vmem:[%s4137 + $0x18] sm:$0xff]
    %v4142 = vld [vmem:[%s4137 + $0x20] sm:$0xff]
    %v4143 = vld [vmem:[%s4137 + $0x28] sm:$0xff]
    %v4144 = vld [vmem:[%s4137 + $0x30] sm:$0xff]
    %v4145 = vld [vmem:[%s4137 + $0x38] sm:$0xff]
    %v4146 = vld [vmem:[%s4137 + $0x40] sm:$0xff]
    %v4147 = vld [vmem:[%s4137 + $0x48] sm:$0xff]
    %v4148 = vld [vmem:[%s4137 + $0x50] sm:$0xff]
    %v4149 = vld [vmem:[%s4137 + $0x58] sm:$0xff]
    %v4150 = vld [vmem:[%s4137 + $0x60] sm:$0xff]
    %v4151 = vld [vmem:[%s4137 + $0x68] sm:$0xff]
    %v4152 = vld [vmem:[%s4137 + $0x70] sm:$0xff]
    %v4153 = vld [vmem:[%s4137 + $0x78] sm:$0xff]
    %v4154 = vld [vmem:[%s4137 + $0x80] sm:$0xff]
    %v4155 = vld [vmem:[%s4137 + $0x88] sm:$0xff]
    %v4156 = vld [vmem:[%s4137 + $0x90] sm:$0xff]
    %v4157 = vld [vmem:[%s4137 + $0x98] sm:$0xff]
    %v4158 = vld [vmem:[%s4137 + $0xa0] sm:$0xff]
    %v4159 = vld [vmem:[%s4137 + $0xa8] sm:$0xff]
    %v4160 = vld [vmem:[%s4137 + $0xb0] sm:$0xff]
    %v4161 = vld [vmem:[%s4137 + $0xb8] sm:$0xff]
    %v4162 = vld [vmem:[%s4137 + $0xc0] sm:$0xff]
    %v4163 = vld [vmem:[%s4137 + $0xc8] sm:$0xff]
    %v4164 = vld [vmem:[%s4137 + $0xd0] sm:$0xff]
    %v4165 = vld [vmem:[%s4137 + $0xd8] sm:$0xff]
    %v4166 = vld [vmem:[%s4137 + $0xe0] sm:$0xff]
    %v4167 = vld [vmem:[%s4137 + $0xe8] sm:$0xff]
    %v4168 = vld [vmem:[%s4137 + $0xf0] sm:$0xff]
    %v4169 = vld [vmem:[%s4137 + $0xf8] sm:$0xff]
    %s4170 = scalar_lea.vmem [#allocation17], 2
    %v4171 = vld [vmem:[%s4170] sm:$0x3]
    %s4172 = scalar_lea.vmem [#allocation19], 256
    %v4173 = vld [vmem:[%s4172] sm:$0xff]
    %v4174 = vld [vmem:[%s4172 + $0x8] sm:$0xff]
    %v4175 = vld [vmem:[%s4172 + $0x10] sm:$0xff]
    %v4176 = vld [vmem:[%s4172 + $0x18] sm:$0xff]
    %v4177 = vld [vmem:[%s4172 + $0x20] sm:$0xff]
    %v4178 = vld [vmem:[%s4172 + $0x28] sm:$0xff]
    %v4179 = vld [vmem:[%s4172 + $0x30] sm:$0xff]
    %v4180 = vld [vmem:[%s4172 + $0x38] sm:$0xff]
    %v4181 = vld [vmem:[%s4172 + $0x40] sm:$0xff]
    %v4182 = vld [vmem:[%s4172 + $0x48] sm:$0xff]
    %v4183 = vld [vmem:[%s4172 + $0x50] sm:$0xff]
    %v4184 = vld [vmem:[%s4172 + $0x58] sm:$0xff]
    %v4185 = vld [vmem:[%s4172 + $0x60] sm:$0xff]
    %v4186 = vld [vmem:[%s4172 + $0x68] sm:$0xff]
    %v4187 = vld [vmem:[%s4172 + $0x70] sm:$0xff]
    %v4188 = vld [vmem:[%s4172 + $0x78] sm:$0xff]
    %v4189 = vld [vmem:[%s4172 + $0x80] sm:$0xff]
    %v4190 = vld [vmem:[%s4172 + $0x88] sm:$0xff]
    %v4191 = vld [vmem:[%s4172 + $0x90] sm:$0xff]
    %v4192 = vld [vmem:[%s4172 + $0x98] sm:$0xff]
    %v4193 = vld [vmem:[%s4172 + $0xa0] sm:$0xff]
    %v4194 = vld [vmem:[%s4172 + $0xa8] sm:$0xff]
    %v4195 = vld [vmem:[%s4172 + $0xb0] sm:$0xff]
    %v4196 = vld [vmem:[%s4172 + $0xb8] sm:$0xff]
    %v4197 = vld [vmem:[%s4172 + $0xc0] sm:$0xff]
    %v4198 = vld [vmem:[%s4172 + $0xc8] sm:$0xff]
    %v4199 = vld [vmem:[%s4172 + $0xd0] sm:$0xff]
    %v4200 = vld [vmem:[%s4172 + $0xd8] sm:$0xff]
    %v4201 = vld [vmem:[%s4172 + $0xe0] sm:$0xff]
    %v4202 = vld [vmem:[%s4172 + $0xe8] sm:$0xff]
    %v4203 = vld [vmem:[%s4172 + $0xf0] sm:$0xff]
    %v4204 = vld [vmem:[%s4172 + $0xf8] sm:$0xff]
    %s4205 = scalar_lea.vmem [#allocation20], 1
    %v4206 = vld [vmem:[%s4205] sm:$0x1]
    %4207 = vadd.xlane.f32.xlu0 %v3984
    %v4208 = vpop.xlane.xlu0 %4207
    %4209 = vadd.xlane.f32.xlu0 %v3985
    %v4210 = vpop.xlane.xlu0 %4209
    %v4211 = vmul.f32 %v4208, %v475
    %v4212 = vmul.f32 %v4210, %v475
    %v4213 = vsub.f32 %v3984, %v4211
    %v4214 = vsub.f32 %v3985, %v4212
    %v4215 = vmul.f32 %v4213, %v4213
    %v4216 = vmul.f32 %v4214, %v4214
    %4217 = vadd.xlane.f32.xlu0 %v4215
    %v4218 = vpop.xlane.xlu0 %4217
    %4219 = vadd.xlane.f32.xlu0 %v4216
    %v4220 = vpop.xlane.xlu0 %4219
    %v4221 = vmul.f32 %v4218, %v475
    %v4222 = vmul.f32 %v4220, %v475
    %v4223 = vadd.f32 %v4221, 1e-05
    %v4224 = vadd.f32 %v4222, 1e-05
    %v4225 = vrsqrt.pop %v4223
    %v4226 = vrsqrt.pop %v4224
    %v4227 = vmul.f32 %v4213, %v4225
    %v4228 = vmul.f32 %v4214, %v4226
    %v4230 = vlaneseq
    %v4231 = vshrl.u32 %v4230, 7
    %v4232 = vsub.s32 0, %v4231
    %v4233 = vrot.slane %v3987, %v4232
    %v4235 = vmul.f32 %v4227, %v4233
    %v4236 = vmul.f32 %v4228, %v4233
    %v4238 = vlaneseq
    %v4239 = vshrl.u32 %v4238, 7
    %v4240 = vsub.s32 0, %v4239
    %v4241 = vrot.slane %v3991, %v4240
    %v4243 = vadd.f32 %v4235, %v4241
    %v4244 = vadd.f32 %v4236, %v4241
    %v4246 = vlaneseq
    %v4247 = vshrl.u32 %v4246, 7
    %v4248 = vsub.s32 0, %v4247
    %v4249 = vrot.slane %v4044, %v4248
    %v4250 = vlaneseq
    %v4251 = vshrl.u32 %v4250, 7
    %v4252 = vsub.s32 1, %v4251
    %v4253 = vrot.slane %v4044, %v4252
    %v4254 = vlaneseq
    %v4255 = vshrl.u32 %v4254, 7
    %v4256 = vsub.s32 2, %v4255
    %v4257 = vrot.slane %v4044, %v4256
    %4261 = vmatprep.subr.mxu0 %v3996
    %4262 = vmatpush1.msra.mxu0 %v3995
    %4263 = vmatprep.subr.mxu0 %v3999
    %4264 = vmatpush1.msra.mxu0 %v3998
    %4265 = vmatprep.subr.mxu0 %v4002
    %4266 = vmatpush1.msra.mxu0 %v4001
    %4267 = vmatprep.subr.mxu0 %v4005
    %4268 = vmatpush1.msra.mxu0 %v4004
    %4269 = vmatprep.subr.mxu0 %v4008
    %4270 = vmatpush1.msra.mxu0 %v4007
    %4271 = vmatprep.subr.mxu0 %v4011
    %4272 = vmatpush1.msra.mxu0 %v4010
    %4273 = vmatprep.subr.mxu0 %v4014
    %4274 = vmatpush1.msra.mxu0 %v4013
    %4275 = vmatprep.subr.mxu0 %v4017
    %4276 = vmatpush1.msra.mxu0 %v4016
    %4277 = vmatprep.subr.mxu0 %v4020
    %4278 = vmatpush1.msra.mxu0 %v4019
    %4279 = vmatprep.subr.mxu0 %v4023
    %4280 = vmatpush1.msra.mxu0 %v4022
    %4281 = vmatprep.subr.mxu0 %v4026
    %4282 = vmatpush1.msra.mxu0 %v4025
    %4283 = vmatprep.subr.mxu0 %v4029
    %4284 = vmatpush1.msra.mxu0 %v4028
    %4285 = vmatprep.subr.mxu0 %v4032
    %4286 = vmatpush1.msra.mxu0 %v4031
    %4287 = vmatprep.subr.mxu0 %v4035
    %4288 = vmatpush1.msra.mxu0 %v4034
    %4289 = vmatprep.subr.mxu0 %v4038
    %4290 = vmatpush1.msra.mxu0 %v4037
    %4291 = vmatprep.subr.mxu0 %v4041
    %4292 = vmatpush1.msra.mxu0 %v4040
    %4293 = vmatprep.subr.mxu0 0.0
    %4294 = vmatpush1.msra.mxu0 0.0
    %4295 = vmatprep.subr.mxu0 0.0
    %4296 = vmatpush1.msra.mxu0 0.0
    %4297 = vmatprep.subr.mxu0 0.0
    %4298 = vmatpush1.msra.mxu0 0.0
    %4299 = vmatprep.subr.mxu0 0.0
    %4300 = vmatpush1.msra.mxu0 0.0
    %4301 = vmatprep.subr.mxu0 0.0
    %4302 = vmatpush1.msra.mxu0 0.0
    %4303 = vmatprep.subr.mxu0 0.0
    %4304 = vmatpush1.msra.mxu0 0.0
    %4305 = vmatprep.subr.mxu0 0.0
    %4306 = vmatpush1.msra.mxu0 0.0
    %4307 = vmatprep.subr.mxu0 0.0
    %4308 = vmatpush1.msra.mxu0 0.0
    %4309 = vmatprep.subr.mxu0 0.0
    %4310 = vmatpush1.msra.mxu0 0.0
    %4311 = vmatprep.subr.mxu0 0.0
    %4312 = vmatpush1.msra.mxu0 0.0
    %4313 = vmatprep.subr.mxu0 0.0
    %4314 = vmatpush1.msra.mxu0 0.0
    %4315 = vmatprep.subr.mxu0 0.0
    %4316 = vmatpush1.msra.mxu0 0.0
    %4317 = vmatprep.subr.mxu0 0.0
    %4318 = vmatpush1.msra.mxu0 0.0
    %4319 = vmatprep.subr.mxu0 0.0
    %4320 = vmatpush1.msra.mxu0 0.0
    %4321 = vmatprep.subr.mxu0 0.0
    %4322 = vmatpush1.msra.mxu0 0.0
    %4323 = vmatprep.subr.mxu0 0.0
    %4324 = vmatpush1.msra.mxu0 0.0
    %4325 = vmatprep.mubr.f32.mxu0 0.0
    %4326 = vmatmul.mubr.f32.gmra.mrb[0].mxu0 %v4243
    %v4327 = vpop.f32.mrb[0].mxu0
    %v4328 = vadd.f32 %v4249, %v4327
    %v4329 = vpop.f32.mrb[0].mxu0
    %v4330 = vadd.f32 %v4253, %v4329
    %4331 = vmatprep.mubr.f32.mxu0 0.0
    %4332 = vmatmul.mubr.f32.gmra.mrb[0].mxu0 %v4244
    %v4333 = vpop.f32.mrb[0].mxu0
    %v4334 = vadd.f32 %v4249, %v4333
    %v4335 = vpop.f32.mrb[0].mxu0
    %v4336 = vadd.f32 %v4253, %v4335
    %4337 = vdwg.mxu0
    %4338 = vmatprep.subr.mxu0 0.0
    %4339 = vmatpush1.msra.mxu0 %v3997
    %4340 = vmatprep.subr.mxu0 0.0
    %4341 = vmatpush1.msra.mxu0 %v4000
    %4342 = vmatprep.subr.mxu0 0.0
    %4343 = vmatpush1.msra.mxu0 %v4003
    %4344 = vmatprep.subr.mxu0 0.0
    %4345 = vmatpush1.msra.mxu0 %v4006
    %4346 = vmatprep.subr.mxu0 0.0
    %4347 = vmatpush1.msra.mxu0 %v4009
    %4348 = vmatprep.subr.mxu0 0.0
    %4349 = vmatpush1.msra.mxu0 %v4012
    %4350 = vmatprep.subr.mxu0 0.0
    %4351 = vmatpush1.msra.mxu0 %v4015
    %4352 = vmatprep.subr.mxu0 0.0
    %4353 = vmatpush1.msra.mxu0 %v4018
    %4354 = vmatprep.subr.mxu0 0.0
    %4355 = vmatpush1.msra.mxu0 %v4021
    %4356 = vmatprep.subr.mxu0 0.0
    %4357 = vmatpush1.msra.mxu0 %v4024
    %4358 = vmatprep.subr.mxu0 0.0
    %4359 = vmatpush1.msra.mxu0 %v4027
    %4360 = vmatprep.subr.mxu0 0.0
    %4361 = vmatpush1.msra.mxu0 %v4030
    %4362 = vmatprep.subr.mxu0 0.0
    %4363 = vmatpush1.msra.mxu0 %v4033
    %4364 = vmatprep.subr.mxu0 0.0
    %4365 = vmatpush1.msra.mxu0 %v4036
    %4366 = vmatprep.subr.mxu0 0.0
    %4367 = vmatpush1.msra.mxu0 %v4039
    %4368 = vmatprep.subr.mxu0 0.0
    %4369 = vmatpush1.msra.mxu0 %v4042
    %4370 = vmatprep.subr.mxu0 0.0
    %4371 = vmatpush1.msra.mxu0 0.0
    %4372 = vmatprep.subr.mxu0 0.0
    %4373 = vmatpush1.msra.mxu0 0.0
    %4374 = vmatprep.subr.mxu0 0.0
    %4375 = vmatpush1.msra.mxu0 0.0
    %4376 = vmatprep.subr.mxu0 0.0
    %4377 = vmatpush1.msra.mxu0 0.0
    %4378 = vmatprep.subr.mxu0 0.0
    %4379 = vmatpush1.msra.mxu0 0.0
    %4380 = vmatprep.subr.mxu0 0.0
    %4381 = vmatpush1.msra.mxu0 0.0
    %4382 = vmatprep.subr.mxu0 0.0
    %4383 = vmatpush1.msra.mxu0 0.0
    %4384 = vmatprep.subr.mxu0 0.0
    %4385 = vmatpush1.msra.mxu0 0.0
    %4386 = vmatprep.subr.mxu0 0.0
    %4387 = vmatpush1.msra.mxu0 0.0
    %4388 = vmatprep.subr.mxu0 0.0
    %4389 = vmatpush1.msra.mxu0 0.0
    %4390 = vmatprep.subr.mxu0 0.0
    %4391 = vmatpush1.msra.mxu0 0.0
    %4392 = vmatprep.subr.mxu0 0.0
    %4393 = vmatpush1.msra.mxu0 0.0
    %4394 = vmatprep.subr.mxu0 0.0
    %4395 = vmatpush1.msra.mxu0 0.0
    %4396 = vmatprep.subr.mxu0 0.0
    %4397 = vmatpush1.msra.mxu0 0.0
    %4398 = vmatprep.subr.mxu0 0.0
    %4399 = vmatpush1.msra.mxu0 0.0
    %4400 = vmatprep.subr.mxu0 0.0
    %4401 = vmatpush1.msra.mxu0 0.0
    %4402 = vmatprep.mubr.f32.mxu0 0.0
    %4403 = vmatmul.mubr.f32.gmra.mrb[0].mxu0 %v4243
    %v4404 = vpop.f32.mrb[0].mxu0
    %v4405 = vadd.f32 %v4257, %v4404
    %v4406 = vpop.f32.mrb[0].mxu0
    %4407 = vmatprep.mubr.f32.mxu0 0.0
    %4408 = vmatmul.mubr.f32.gmra.mrb[0].mxu0 %v4244
    %v4409 = vpop.f32.mrb[0].mxu0
    %v4410 = vadd.f32 %v4257, %v4409
    %v4411 = vpop.f32.mrb[0].mxu0
    %4412 = vdwg.mxu0
    %4415 = vrot.lane.b32.xlu0 %v4328, 96
    %v4416 = vpop.permute.xlu0 %4415
    %4417 = vrot.lane.b32.xlu0 %v4334, 96
    %v4418 = vpop.permute.xlu0 %4417
    %4419 = vrot.lane.b32.xlu0 %v4328, 64
    %v4420 = vpop.permute.xlu0 %4419
    %4421 = vrot.lane.b32.xlu0 %v4334, 64
    %v4422 = vpop.permute.xlu0 %4421
    %4423 = vrot.lane.b32.xlu0 %v4328, 32
    %v4424 = vpop.permute.xlu0 %4423
    %4425 = vrot.lane.b32.xlu0 %v4334, 32
    %v4426 = vpop.permute.xlu0 %4425
    %4429 = vrot.lane.b32.xlu0 %v4330, 96
    %v4430 = vpop.permute.xlu0 %4429
    %4431 = vrot.lane.b32.xlu0 %v4336, 96
    %v4432 = vpop.permute.xlu0 %4431
    %4433 = vrot.lane.b32.xlu0 %v4330, 64
    %v4434 = vpop.permute.xlu0 %4433
    %4435 = vrot.lane.b32.xlu0 %v4336, 64
    %v4436 = vpop.permute.xlu0 %4435
    %4437 = vrot.lane.b32.xlu0 %v4330, 32
    %v4438 = vpop.permute.xlu0 %4437
    %4439 = vrot.lane.b32.xlu0 %v4336, 32
    %v4440 = vpop.permute.xlu0 %4439
    %4443 = vrot.lane.b32.xlu0 %v4405, 96
    %v4444 = vpop.permute.xlu0 %4443
    %4445 = vrot.lane.b32.xlu0 %v4410, 96
    %v4446 = vpop.permute.xlu0 %4445
    %4449 = vrot.lane.b32.xlu0 %v4405, 64
    %v4450 = vpop.permute.xlu0 %4449
    %4451 = vrot.lane.b32.xlu0 %v4410, 64
    %v4452 = vpop.permute.xlu0 %4451
    %4455 = vrot.lane.b32.xlu0 %v4405, 32
    %v4456 = vpop.permute.xlu0 %4455
    %4457 = vrot.lane.b32.xlu0 %v4410, 32
    %v4458 = vpop.permute.xlu0 %4457
    %v4461 = vsel %vm726, %v4328, 0
    %v4463 = vsel %vm726, %v4330, 0
    %4465 = vmatprep.subr.mxu0 0.0
    %4466 = vmatpush1.xpose.msra.mxu0 %v4463
    %4467 = vmatprep.subr.mxu0 0.0
    %4468 = vmatpush1.xpose.msra.mxu0 0.0
    %4469 = vmatprep.subr.mxu0 0.0
    %4470 = vmatpush1.xpose.msra.mxu0 0.0
    %4471 = vmatprep.subr.mxu0 0.0
    %4472 = vmatpush1.xpose.msra.mxu0 0.0
    %4473 = vmatprep.subr.mxu0 0.0
    %4474 = vmatpush1.xpose.msra.mxu0 0.0
    %4475 = vmatprep.subr.mxu0 0.0
    %4476 = vmatpush1.xpose.msra.mxu0 0.0
    %4477 = vmatprep.subr.mxu0 0.0
    %4478 = vmatpush1.xpose.msra.mxu0 0.0
    %4479 = vmatprep.subr.mxu0 0.0
    %4480 = vmatpush1.xpose.msra.mxu0 0.0
    %4481 = vmatprep.subr.mxu0 0.0
    %4482 = vmatpush1.xpose.msra.mxu0 0.0
    %4483 = vmatprep.subr.mxu0 0.0
    %4484 = vmatpush1.xpose.msra.mxu0 0.0
    %4485 = vmatprep.subr.mxu0 0.0
    %4486 = vmatpush1.xpose.msra.mxu0 0.0
    %4487 = vmatprep.subr.mxu0 0.0
    %4488 = vmatpush1.xpose.msra.mxu0 0.0
    %4489 = vmatprep.subr.mxu0 0.0
    %4490 = vmatpush1.xpose.msra.mxu0 0.0
    %4491 = vmatprep.subr.mxu0 0.0
    %4492 = vmatpush1.xpose.msra.mxu0 0.0
    %4493 = vmatprep.subr.mxu0 0.0
    %4494 = vmatpush1.xpose.msra.mxu0 0.0
    %4495 = vmatprep.subr.mxu0 0.0
    %4496 = vmatpush1.xpose.msra.mxu0 0.0
    %4497 = vmatprep.subr.mxu0 0.0
    %4498 = vmatpush1.xpose.msra.mxu0 0.0
    %4499 = vmatprep.subr.mxu0 0.0
    %4500 = vmatpush1.xpose.msra.mxu0 0.0
    %4501 = vmatprep.subr.mxu0 0.0
    %4502 = vmatpush1.xpose.msra.mxu0 0.0
    %4503 = vmatprep.subr.mxu0 0.0
    %4504 = vmatpush1.xpose.msra.mxu0 0.0
    %4505 = vmatprep.subr.mxu0 0.0
    %4506 = vmatpush1.xpose.msra.mxu0 0.0
    %4507 = vmatprep.subr.mxu0 0.0
    %4508 = vmatpush1.xpose.msra.mxu0 0.0
    %4509 = vmatprep.subr.mxu0 0.0
    %4510 = vmatpush1.xpose.msra.mxu0 0.0
    %4511 = vmatprep.subr.mxu0 0.0
    %4512 = vmatpush1.xpose.msra.mxu0 0.0
    %4513 = vmatprep.subr.mxu0 0.0
    %4514 = vmatpush1.xpose.msra.mxu0 0.0
    %4515 = vmatprep.subr.mxu0 0.0
    %4516 = vmatpush1.xpose.msra.mxu0 0.0
    %4517 = vmatprep.subr.mxu0 0.0
    %4518 = vmatpush1.xpose.msra.mxu0 0.0
    %4519 = vmatprep.subr.mxu0 0.0
    %4520 = vmatpush1.xpose.msra.mxu0 0.0
    %4521 = vmatprep.subr.mxu0 0.0
    %4522 = vmatpush1.xpose.msra.mxu0 0.0
    %4523 = vmatprep.subr.mxu0 0.0
    %4524 = vmatpush1.xpose.msra.mxu0 0.0
    %4525 = vmatprep.subr.mxu0 0.0
    %4526 = vmatpush1.xpose.msra.mxu0 0.0
    %4527 = vmatprep.subr.mxu0 0.0
    %4528 = vmatpush1.xpose.msra.mxu0 0.0
    %4529 = vmatprep.mubr.f32.mxu0 0.0
    %4530 = vmatmul.mubr.f32.gmra.mrb[0].mxu0 %v4461
    %v4531 = vpop.f32.mrb[0].mxu0
    %v4532 = vadd.f32 0.0, %v4531
    %v4533 = vpop.f32.mrb[0].mxu0
    %4534 = vdwg.mxu0
    %v4535 = vsel %vm726, %v4334, 0
    %v4537 = vsel %vm726, %v4336, 0
    %4539 = vmatprep.subr.mxu0 0.0
    %4540 = vmatpush1.xpose.msra.mxu0 %v4537
    %4541 = vmatprep.subr.mxu0 0.0
    %4542 = vmatpush1.xpose.msra.mxu0 0.0
    %4543 = vmatprep.subr.mxu0 0.0
    %4544 = vmatpush1.xpose.msra.mxu0 0.0
    %4545 = vmatprep.subr.mxu0 0.0
    %4546 = vmatpush1.xpose.msra.mxu0 0.0
    %4547 = vmatprep.subr.mxu0 0.0
    %4548 = vmatpush1.xpose.msra.mxu0 0.0
    %4549 = vmatprep.subr.mxu0 0.0
    %4550 = vmatpush1.xpose.msra.mxu0 0.0
    %4551 = vmatprep.subr.mxu0 0.0
    %4552 = vmatpush1.xpose.msra.mxu0 0.0
    %4553 = vmatprep.subr.mxu0 0.0
    %4554 = vmatpush1.xpose.msra.mxu0 0.0
    %4555 = vmatprep.subr.mxu0 0.0
    %4556 = vmatpush1.xpose.msra.mxu0 0.0
    %4557 = vmatprep.subr.mxu0 0.0
    %4558 = vmatpush1.xpose.msra.mxu0 0.0
    %4559 = vmatprep.subr.mxu0 0.0
    %4560 = vmatpush1.xpose.msra.mxu0 0.0
    %4561 = vmatprep.subr.mxu0 0.0
    %4562 = vmatpush1.xpose.msra.mxu0 0.0
    %4563 = vmatprep.subr.mxu0 0.0
    %4564 = vmatpush1.xpose.msra.mxu0 0.0
    %4565 = vmatprep.subr.mxu0 0.0
    %4566 = vmatpush1.xpose.msra.mxu0 0.0
    %4567 = vmatprep.subr.mxu0 0.0
    %4568 = vmatpush1.xpose.msra.mxu0 0.0
    %4569 = vmatprep.subr.mxu0 0.0
    %4570 = vmatpush1.xpose.msra.mxu0 0.0
    %4571 = vmatprep.subr.mxu0 0.0
    %4572 = vmatpush1.xpose.msra.mxu0 0.0
    %4573 = vmatprep.subr.mxu0 0.0
    %4574 = vmatpush1.xpose.msra.mxu0 0.0
    %4575 = vmatprep.subr.mxu0 0.0
    %4576 = vmatpush1.xpose.msra.mxu0 0.0
    %4577 = vmatprep.subr.mxu0 0.0
    %4578 = vmatpush1.xpose.msra.mxu0 0.0
    %4579 = vmatprep.subr.mxu0 0.0
    %4580 = vmatpush1.xpose.msra.mxu0 0.0
    %4581 = vmatprep.subr.mxu0 0.0
    %4582 = vmatpush1.xpose.msra.mxu0 0.0
    %4583 = vmatprep.subr.mxu0 0.0
    %4584 = vmatpush1.xpose.msra.mxu0 0.0
    %4585 = vmatprep.subr.mxu0 0.0
    %4586 = vmatpush1.xpose.msra.mxu0 0.0
    %4587 = vmatprep.subr.mxu0 0.0
    %4588 = vmatpush1.xpose.msra.mxu0 0.0
    %4589 = vmatprep.subr.mxu0 0.0
    %4590 = vmatpush1.xpose.msra.mxu0 0.0
    %4591 = vmatprep.subr.mxu0 0.0
    %4592 = vmatpush1.xpose.msra.mxu0 0.0
    %4593 = vmatprep.subr.mxu0 0.0
    %4594 = vmatpush1.xpose.msra.mxu0 0.0
    %4595 = vmatprep.subr.mxu0 0.0
    %4596 = vmatpush1.xpose.msra.mxu0 0.0
    %4597 = vmatprep.subr.mxu0 0.0
    %4598 = vmatpush1.xpose.msra.mxu0 0.0
    %4599 = vmatprep.subr.mxu0 0.0
    %4600 = vmatpush1.xpose.msra.mxu0 0.0
    %4601 = vmatprep.subr.mxu0 0.0
    %4602 = vmatpush1.xpose.msra.mxu0 0.0
    %4603 = vmatprep.mubr.f32.mxu0 0.0
    %4604 = vmatmul.mubr.f32.gmra.mrb[0].mxu0 %v4535
    %v4605 = vpop.f32.mrb[0].mxu0
    %v4606 = vadd.f32 0.0, %v4605
    %v4607 = vpop.f32.mrb[0].mxu0
    %4608 = vdwg.mxu0
    %v4609 = vsel %vm726, %v4416, 0
    %v4611 = vsel %vm726, %v4430, 0
    %4613 = vmatprep.subr.mxu0 0.0
    %4614 = vmatpush1.xpose.msra.mxu0 %v4611
    %4615 = vmatprep.subr.mxu0 0.0
    %4616 = vmatpush1.xpose.msra.mxu0 0.0
    %4617 = vmatprep.subr.mxu0 0.0
    %4618 = vmatpush1.xpose.msra.mxu0 0.0
    %4619 = vmatprep.subr.mxu0 0.0
    %4620 = vmatpush1.xpose.msra.mxu0 0.0
    %4621 = vmatprep.subr.mxu0 0.0
    %4622 = vmatpush1.xpose.msra.mxu0 0.0
    %4623 = vmatprep.subr.mxu0 0.0
    %4624 = vmatpush1.xpose.msra.mxu0 0.0
    %4625 = vmatprep.subr.mxu0 0.0
    %4626 = vmatpush1.xpose.msra.mxu0 0.0
    %4627 = vmatprep.subr.mxu0 0.0
    %4628 = vmatpush1.xpose.msra.mxu0 0.0
    %4629 = vmatprep.subr.mxu0 0.0
    %4630 = vmatpush1.xpose.msra.mxu0 0.0
    %4631 = vmatprep.subr.mxu0 0.0
    %4632 = vmatpush1.xpose.msra.mxu0 0.0
    %4633 = vmatprep.subr.mxu0 0.0
    %4634 = vmatpush1.xpose.msra.mxu0 0.0
    %4635 = vmatprep.subr.mxu0 0.0
    %4636 = vmatpush1.xpose.msra.mxu0 0.0
    %4637 = vmatprep.subr.mxu0 0.0
    %4638 = vmatpush1.xpose.msra.mxu0 0.0
    %4639 = vmatprep.subr.mxu0 0.0
    %4640 = vmatpush1.xpose.msra.mxu0 0.0
    %4641 = vmatprep.subr.mxu0 0.0
    %4642 = vmatpush1.xpose.msra.mxu0 0.0
    %4643 = vmatprep.subr.mxu0 0.0
    %4644 = vmatpush1.xpose.msra.mxu0 0.0
    %4645 = vmatprep.subr.mxu0 0.0
    %4646 = vmatpush1.xpose.msra.mxu0 0.0
    %4647 = vmatprep.subr.mxu0 0.0
    %4648 = vmatpush1.xpose.msra.mxu0 0.0
    %4649 = vmatprep.subr.mxu0 0.0
    %4650 = vmatpush1.xpose.msra.mxu0 0.0
    %4651 = vmatprep.subr.mxu0 0.0
    %4652 = vmatpush1.xpose.msra.mxu0 0.0
    %4653 = vmatprep.subr.mxu0 0.0
    %4654 = vmatpush1.xpose.msra.mxu0 0.0
    %4655 = vmatprep.subr.mxu0 0.0
    %4656 = vmatpush1.xpose.msra.mxu0 0.0
    %4657 = vmatprep.subr.mxu0 0.0
    %4658 = vmatpush1.xpose.msra.mxu0 0.0
    %4659 = vmatprep.subr.mxu0 0.0
    %4660 = vmatpush1.xpose.msra.mxu0 0.0
    %4661 = vmatprep.subr.mxu0 0.0
    %4662 = vmatpush1.xpose.msra.mxu0 0.0
    %4663 = vmatprep.subr.mxu0 0.0
    %4664 = vmatpush1.xpose.msra.mxu0 0.0
    %4665 = vmatprep.subr.mxu0 0.0
    %4666 = vmatpush1.xpose.msra.mxu0 0.0
    %4667 = vmatprep.subr.mxu0 0.0
    %4668 = vmatpush1.xpose.msra.mxu0 0.0
    %4669 = vmatprep.subr.mxu0 0.0
    %4670 = vmatpush1.xpose.msra.mxu0 0.0
    %4671 = vmatprep.subr.mxu0 0.0
    %4672 = vmatpush1.xpose.msra.mxu0 0.0
    %4673 = vmatprep.subr.mxu0 0.0
    %4674 = vmatpush1.xpose.msra.mxu0 0.0
    %4675 = vmatprep.subr.mxu0 0.0
    %4676 = vmatpush1.xpose.msra.mxu0 0.0
    %4677 = vmatprep.mubr.f32.mxu0 0.0
    %4678 = vmatmul.mubr.f32.gmra.mrb[0].mxu0 %v4609
    %v4679 = vpop.f32.mrb[0].mxu0
    %v4680 = vadd.f32 0.0, %v4679
    %v4681 = vpop.f32.mrb[0].mxu0
    %4682 = vdwg.mxu0
    %v4683 = vsel %vm726, %v4418, 0
    %v4685 = vsel %vm726, %v4432, 0
    %4687 = vmatprep.subr.mxu0 0.0
    %4688 = vmatpush1.xpose.msra.mxu0 %v4685
    %4689 = vmatprep.subr.mxu0 0.0
    %4690 = vmatpush1.xpose.msra.mxu0 0.0
    %4691 = vmatprep.subr.mxu0 0.0
    %4692 = vmatpush1.xpose.msra.mxu0 0.0
    %4693 = vmatprep.subr.mxu0 0.0
    %4694 = vmatpush1.xpose.msra.mxu0 0.0
    %4695 = vmatprep.subr.mxu0 0.0
    %4696 = vmatpush1.xpose.msra.mxu0 0.0
    %4697 = vmatprep.subr.mxu0 0.0
    %4698 = vmatpush1.xpose.msra.mxu0 0.0
    %4699 = vmatprep.subr.mxu0 0.0
    %4700 = vmatpush1.xpose.msra.mxu0 0.0
    %4701 = vmatprep.subr.mxu0 0.0
    %4702 = vmatpush1.xpose.msra.mxu0 0.0
    %4703 = vmatprep.subr.mxu0 0.0
    %4704 = vmatpush1.xpose.msra.mxu0 0.0
    %4705 = vmatprep.subr.mxu0 0.0
    %4706 = vmatpush1.xpose.msra.mxu0 0.0
    %4707 = vmatprep.subr.mxu0 0.0
    %4708 = vmatpush1.xpose.msra.mxu0 0.0
    %4709 = vmatprep.subr.mxu0 0.0
    %4710 = vmatpush1.xpose.msra.mxu0 0.0
    %4711 = vmatprep.subr.mxu0 0.0
    %4712 = vmatpush1.xpose.msra.mxu0 0.0
    %4713 = vmatprep.subr.mxu0 0.0
    %4714 = vmatpush1.xpose.msra.mxu0 0.0
    %4715 = vmatprep.subr.mxu0 0.0
    %4716 = vmatpush1.xpose.msra.mxu0 0.0
    %4717 = vmatprep.subr.mxu0 0.0
    %4718 = vmatpush1.xpose.msra.mxu0 0.0
    %4719 = vmatprep.subr.mxu0 0.0
    %4720 = vmatpush1.xpose.msra.mxu0 0.0
    %4721 = vmatprep.subr.mxu0 0.0
    %4722 = vmatpush1.xpose.msra.mxu0 0.0
    %4723 = vmatprep.subr.mxu0 0.0
    %4724 = vmatpush1.xpose.msra.mxu0 0.0
    %4725 = vmatprep.subr.mxu0 0.0
    %4726 = vmatpush1.xpose.msra.mxu0 0.0
    %4727 = vmatprep.subr.mxu0 0.0
    %4728 = vmatpush1.xpose.msra.mxu0 0.0
    %4729 = vmatprep.subr.mxu0 0.0
    %4730 = vmatpush1.xpose.msra.mxu0 0.0
    %4731 = vmatprep.subr.mxu0 0.0
    %4732 = vmatpush1.xpose.msra.mxu0 0.0
    %4733 = vmatprep.subr.mxu0 0.0
    %4734 = vmatpush1.xpose.msra.mxu0 0.0
    %4735 = vmatprep.subr.mxu0 0.0
    %4736 = vmatpush1.xpose.msra.mxu0 0.0
    %4737 = vmatprep.subr.mxu0 0.0
    %4738 = vmatpush1.xpose.msra.mxu0 0.0
    %4739 = vmatprep.subr.mxu0 0.0
    %4740 = vmatpush1.xpose.msra.mxu0 0.0
    %4741 = vmatprep.subr.mxu0 0.0
    %4742 = vmatpush1.xpose.msra.mxu0 0.0
    %4743 = vmatprep.subr.mxu0 0.0
    %4744 = vmatpush1.xpose.msra.mxu0 0.0
    %4745 = vmatprep.subr.mxu0 0.0
    %4746 = vmatpush1.xpose.msra.mxu0 0.0
    %4747 = vmatprep.subr.mxu0 0.0
    %4748 = vmatpush1.xpose.msra.mxu0 0.0
    %4749 = vmatprep.subr.mxu0 0.0
    %4750 = vmatpush1.xpose.msra.mxu0 0.0
    %4751 = vmatprep.mubr.f32.mxu0 0.0
    %4752 = vmatmul.mubr.f32.gmra.mrb[0].mxu0 %v4683
    %v4753 = vpop.f32.mrb[0].mxu0
    %v4754 = vadd.f32 0.0, %v4753
    %v4755 = vpop.f32.mrb[0].mxu0
    %4756 = vdwg.mxu0
    %v4757 = vsel %vm726, %v4420, 0
    %v4759 = vsel %vm726, %v4434, 0
    %4761 = vmatprep.subr.mxu0 0.0
    %4762 = vmatpush1.xpose.msra.mxu0 %v4759
    %4763 = vmatprep.subr.mxu0 0.0
    %4764 = vmatpush1.xpose.msra.mxu0 0.0
    %4765 = vmatprep.subr.mxu0 0.0
    %4766 = vmatpush1.xpose.msra.mxu0 0.0
    %4767 = vmatprep.subr.mxu0 0.0
    %4768 = vmatpush1.xpose.msra.mxu0 0.0
    %4769 = vmatprep.subr.mxu0 0.0
    %4770 = vmatpush1.xpose.msra.mxu0 0.0
    %4771 = vmatprep.subr.mxu0 0.0
    %4772 = vmatpush1.xpose.msra.mxu0 0.0
    %4773 = vmatprep.subr.mxu0 0.0
    %4774 = vmatpush1.xpose.msra.mxu0 0.0
    %4775 = vmatprep.subr.mxu0 0.0
    %4776 = vmatpush1.xpose.msra.mxu0 0.0
    %4777 = vmatprep.subr.mxu0 0.0
    %4778 = vmatpush1.xpose.msra.mxu0 0.0
    %4779 = vmatprep.subr.mxu0 0.0
    %4780 = vmatpush1.xpose.msra.mxu0 0.0
    %4781 = vmatprep.subr.mxu0 0.0
    %4782 = vmatpush1.xpose.msra.mxu0 0.0
    %4783 = vmatprep.subr.mxu0 0.0
    %4784 = vmatpush1.xpose.msra.mxu0 0.0
    %4785 = vmatprep.subr.mxu0 0.0
    %4786 = vmatpush1.xpose.msra.mxu0 0.0
    %4787 = vmatprep.subr.mxu0 0.0
    %4788 = vmatpush1.xpose.msra.mxu0 0.0
    %4789 = vmatprep.subr.mxu0 0.0
    %4790 = vmatpush1.xpose.msra.mxu0 0.0
    %4791 = vmatprep.subr.mxu0 0.0
    %4792 = vmatpush1.xpose.msra.mxu0 0.0
    %4793 = vmatprep.subr.mxu0 0.0
    %4794 = vmatpush1.xpose.msra.mxu0 0.0
    %4795 = vmatprep.subr.mxu0 0.0
    %4796 = vmatpush1.xpose.msra.mxu0 0.0
    %4797 = vmatprep.subr.mxu0 0.0
    %4798 = vmatpush1.xpose.msra.mxu0 0.0
    %4799 = vmatprep.subr.mxu0 0.0
    %4800 = vmatpush1.xpose.msra.mxu0 0.0
    %4801 = vmatprep.subr.mxu0 0.0
    %4802 = vmatpush1.xpose.msra.mxu0 0.0
    %4803 = vmatprep.subr.mxu0 0.0
    %4804 = vmatpush1.xpose.msra.mxu0 0.0
    %4805 = vmatprep.subr.mxu0 0.0
    %4806 = vmatpush1.xpose.msra.mxu0 0.0
    %4807 = vmatprep.subr.mxu0 0.0
    %4808 = vmatpush1.xpose.msra.mxu0 0.0
    %4809 = vmatprep.subr.mxu0 0.0
    %4810 = vmatpush1.xpose.msra.mxu0 0.0
    %4811 = vmatprep.subr.mxu0 0.0
    %4812 = vmatpush1.xpose.msra.mxu0 0.0
    %4813 = vmatprep.subr.mxu0 0.0
    %4814 = vmatpush1.xpose.msra.mxu0 0.0
    %4815 = vmatprep.subr.mxu0 0.0
    %4816 = vmatpush1.xpose.msra.mxu0 0.0
    %4817 = vmatprep.subr.mxu0 0.0
    %4818 = vmatpush1.xpose.msra.mxu0 0.0
    %4819 = vmatprep.subr.mxu0 0.0
    %4820 = vmatpush1.xpose.msra.mxu0 0.0
    %4821 = vmatprep.subr.mxu0 0.0
    %4822 = vmatpush1.xpose.msra.mxu0 0.0
    %4823 = vmatprep.subr.mxu0 0.0
    %4824 = vmatpush1.xpose.msra.mxu0 0.0
    %4825 = vmatprep.mubr.f32.mxu0 0.0
    %4826 = vmatmul.mubr.f32.gmra.mrb[0].mxu0 %v4757
    %v4827 = vpop.f32.mrb[0].mxu0
    %v4828 = vadd.f32 0.0, %v4827
    %v4829 = vpop.f32.mrb[0].mxu0
    %4830 = vdwg.mxu0
    %v4831 = vsel %vm726, %v4422, 0
    %v4833 = vsel %vm726, %v4436, 0
    %4835 = vmatprep.subr.mxu0 0.0
    %4836 = vmatpush1.xpose.msra.mxu0 %v4833
    %4837 = vmatprep.subr.mxu0 0.0
    %4838 = vmatpush1.xpose.msra.mxu0 0.0
    %4839 = vmatprep.subr.mxu0 0.0
    %4840 = vmatpush1.xpose.msra.mxu0 0.0
    %4841 = vmatprep.subr.mxu0 0.0
    %4842 = vmatpush1.xpose.msra.mxu0 0.0
    %4843 = vmatprep.subr.mxu0 0.0
    %4844 = vmatpush1.xpose.msra.mxu0 0.0
    %4845 = vmatprep.subr.mxu0 0.0
    %4846 = vmatpush1.xpose.msra.mxu0 0.0
    %4847 = vmatprep.subr.mxu0 0.0
    %4848 = vmatpush1.xpose.msra.mxu0 0.0
    %4849 = vmatprep.subr.mxu0 0.0
    %4850 = vmatpush1.xpose.msra.mxu0 0.0
    %4851 = vmatprep.subr.mxu0 0.0
    %4852 = vmatpush1.xpose.msra.mxu0 0.0
    %4853 = vmatprep.subr.mxu0 0.0
    %4854 = vmatpush1.xpose.msra.mxu0 0.0
    %4855 = vmatprep.subr.mxu0 0.0
    %4856 = vmatpush1.xpose.msra.mxu0 0.0
    %4857 = vmatprep.subr.mxu0 0.0
    %4858 = vmatpush1.xpose.msra.mxu0 0.0
    %4859 = vmatprep.subr.mxu0 0.0
    %4860 = vmatpush1.xpose.msra.mxu0 0.0
    %4861 = vmatprep.subr.mxu0 0.0
    %4862 = vmatpush1.xpose.msra.mxu0 0.0
    %4863 = vmatprep.subr.mxu0 0.0
    %4864 = vmatpush1.xpose.msra.mxu0 0.0
    %4865 = vmatprep.subr.mxu0 0.0
    %4866 = vmatpush1.xpose.msra.mxu0 0.0
    %4867 = vmatprep.subr.mxu0 0.0
    %4868 = vmatpush1.xpose.msra.mxu0 0.0
    %4869 = vmatprep.subr.mxu0 0.0
    %4870 = vmatpush1.xpose.msra.mxu0 0.0
    %4871 = vmatprep.subr.mxu0 0.0
    %4872 = vmatpush1.xpose.msra.mxu0 0.0
    %4873 = vmatprep.subr.mxu0 0.0
    %4874 = vmatpush1.xpose.msra.mxu0 0.0
    %4875 = vmatprep.subr.mxu0 0.0
    %4876 = vmatpush1.xpose.msra.mxu0 0.0
    %4877 = vmatprep.subr.mxu0 0.0
    %4878 = vmatpush1.xpose.msra.mxu0 0.0
    %4879 = vmatprep.subr.mxu0 0.0
    %4880 = vmatpush1.xpose.msra.mxu0 0.0
    %4881 = vmatprep.subr.mxu0 0.0
    %4882 = vmatpush1.xpose.msra.mxu0 0.0
    %4883 = vmatprep.subr.mxu0 0.0
    %4884 = vmatpush1.xpose.msra.mxu0 0.0
    %4885 = vmatprep.subr.mxu0 0.0
    %4886 = vmatpush1.xpose.msra.mxu0 0.0
    %4887 = vmatprep.subr.mxu0 0.0
    %4888 = vmatpush1.xpose.msra.mxu0 0.0
    %4889 = vmatprep.subr.mxu0 0.0
    %4890 = vmatpush1.xpose.msra.mxu0 0.0
    %4891 = vmatprep.subr.mxu0 0.0
    %4892 = vmatpush1.xpose.msra.mxu0 0.0
    %4893 = vmatprep.subr.mxu0 0.0
    %4894 = vmatpush1.xpose.msra.mxu0 0.0
    %4895 = vmatprep.subr.mxu0 0.0
    %4896 = vmatpush1.xpose.msra.mxu0 0.0
    %4897 = vmatprep.subr.mxu0 0.0
    %4898 = vmatpush1.xpose.msra.mxu0 0.0
    %4899 = vmatprep.mubr.f32.mxu0 0.0
    %4900 = vmatmul.mubr.f32.gmra.mrb[0].mxu0 %v4831
    %v4901 = vpop.f32.mrb[0].mxu0
    %v4902 = vadd.f32 0.0, %v4901
    %v4903 = vpop.f32.mrb[0].mxu0
    %4904 = vdwg.mxu0
    %v4905 = vsel %vm726, %v4424, 0
    %v4907 = vsel %vm726, %v4438, 0
    %4909 = vmatprep.subr.mxu0 0.0
    %4910 = vmatpush1.xpose.msra.mxu0 %v4907
    %4911 = vmatprep.subr.mxu0 0.0
    %4912 = vmatpush1.xpose.msra.mxu0 0.0
    %4913 = vmatprep.subr.mxu0 0.0
    %4914 = vmatpush1.xpose.msra.mxu0 0.0
    %4915 = vmatprep.subr.mxu0 0.0
    %4916 = vmatpush1.xpose.msra.mxu0 0.0
    %4917 = vmatprep.subr.mxu0 0.0
    %4918 = vmatpush1.xpose.msra.mxu0 0.0
    %4919 = vmatprep.subr.mxu0 0.0
    %4920 = vmatpush1.xpose.msra.mxu0 0.0
    %4921 = vmatprep.subr.mxu0 0.0
    %4922 = vmatpush1.xpose.msra.mxu0 0.0
    %4923 = vmatprep.subr.mxu0 0.0
    %4924 = vmatpush1.xpose.msra.mxu0 0.0
    %4925 = vmatprep.subr.mxu0 0.0
    %4926 = vmatpush1.xpose.msra.mxu0 0.0
    %4927 = vmatprep.subr.mxu0 0.0
    %4928 = vmatpush1.xpose.msra.mxu0 0.0
    %4929 = vmatprep.subr.mxu0 0.0
    %4930 = vmatpush1.xpose.msra.mxu0 0.0
    %4931 = vmatprep.subr.mxu0 0.0
    %4932 = vmatpush1.xpose.msra.mxu0 0.0
    %4933 = vmatprep.subr.mxu0 0.0
    %4934 = vmatpush1.xpose.msra.mxu0 0.0
    %4935 = vmatprep.subr.mxu0 0.0
    %4936 = vmatpush1.xpose.msra.mxu0 0.0
    %4937 = vmatprep.subr.mxu0 0.0
    %4938 = vmatpush1.xpose.msra.mxu0 0.0
    %4939 = vmatprep.subr.mxu0 0.0
    %4940 = vmatpush1.xpose.msra.mxu0 0.0
    %4941 = vmatprep.subr.mxu0 0.0
    %4942 = vmatpush1.xpose.msra.mxu0 0.0
    %4943 = vmatprep.subr.mxu0 0.0
    %4944 = vmatpush1.xpose.msra.mxu0 0.0
    %4945 = vmatprep.subr.mxu0 0.0
    %4946 = vmatpush1.xpose.msra.mxu0 0.0
    %4947 = vmatprep.subr.mxu0 0.0
    %4948 = vmatpush1.xpose.msra.mxu0 0.0
    %4949 = vmatprep.subr.mxu0 0.0
    %4950 = vmatpush1.xpose.msra.mxu0 0.0
    %4951 = vmatprep.subr.mxu0 0.0
    %4952 = vmatpush1.xpose.msra.mxu0 0.0
    %4953 = vmatprep.subr.mxu0 0.0
    %4954 = vmatpush1.xpose.msra.mxu0 0.0
    %4955 = vmatprep.subr.mxu0 0.0
    %4956 = vmatpush1.xpose.msra.mxu0 0.0
    %4957 = vmatprep.subr.mxu0 0.0
    %4958 = vmatpush1.xpose.msra.mxu0 0.0
    %4959 = vmatprep.subr.mxu0 0.0
    %4960 = vmatpush1.xpose.msra.mxu0 0.0
    %4961 = vmatprep.subr.mxu0 0.0
    %4962 = vmatpush1.xpose.msra.mxu0 0.0
    %4963 = vmatprep.subr.mxu0 0.0
    %4964 = vmatpush1.xpose.msra.mxu0 0.0
    %4965 = vmatprep.subr.mxu0 0.0
    %4966 = vmatpush1.xpose.msra.mxu0 0.0
    %4967 = vmatprep.subr.mxu0 0.0
    %4968 = vmatpush1.xpose.msra.mxu0 0.0
    %4969 = vmatprep.subr.mxu0 0.0
    %4970 = vmatpush1.xpose.msra.mxu0 0.0
    %4971 = vmatprep.subr.mxu0 0.0
    %4972 = vmatpush1.xpose.msra.mxu0 0.0
    %4973 = vmatprep.mubr.f32.mxu0 0.0
    %4974 = vmatmul.mubr.f32.gmra.mrb[0].mxu0 %v4905
    %v4975 = vpop.f32.mrb[0].mxu0
    %v4976 = vadd.f32 0.0, %v4975
    %v4977 = vpop.f32.mrb[0].mxu0
    %4978 = vdwg.mxu0
    %v4979 = vsel %vm726, %v4426, 0
    %v4981 = vsel %vm726, %v4440, 0
    %4983 = vmatprep.subr.mxu0 0.0
    %4984 = vmatpush1.xpose.msra.mxu0 %v4981
    %4985 = vmatprep.subr.mxu0 0.0
    %4986 = vmatpush1.xpose.msra.mxu0 0.0
    %4987 = vmatprep.subr.mxu0 0.0
    %4988 = vmatpush1.xpose.msra.mxu0 0.0
    %4989 = vmatprep.subr.mxu0 0.0
    %4990 = vmatpush1.xpose.msra.mxu0 0.0
    %4991 = vmatprep.subr.mxu0 0.0
    %4992 = vmatpush1.xpose.msra.mxu0 0.0
    %4993 = vmatprep.subr.mxu0 0.0
    %4994 = vmatpush1.xpose.msra.mxu0 0.0
    %4995 = vmatprep.subr.mxu0 0.0
    %4996 = vmatpush1.xpose.msra.mxu0 0.0
    %4997 = vmatprep.subr.mxu0 0.0
    %4998 = vmatpush1.xpose.msra.mxu0 0.0
    %4999 = vmatprep.subr.mxu0 0.0
    %5000 = vmatpush1.xpose.msra.mxu0 0.0
    %5001 = vmatprep.subr.mxu0 0.0
    %5002 = vmatpush1.xpose.msra.mxu0 0.0
    %5003 = vmatprep.subr.mxu0 0.0
    %5004 = vmatpush1.xpose.msra.mxu0 0.0
    %5005 = vmatprep.subr.mxu0 0.0
    %5006 = vmatpush1.xpose.msra.mxu0 0.0
    %5007 = vmatprep.subr.mxu0 0.0
    %5008 = vmatpush1.xpose.msra.mxu0 0.0
    %5009 = vmatprep.subr.mxu0 0.0
    %5010 = vmatpush1.xpose.msra.mxu0 0.0
    %5011 = vmatprep.subr.mxu0 0.0
    %5012 = vmatpush1.xpose.msra.mxu0 0.0
    %5013 = vmatprep.subr.mxu0 0.0
    %5014 = vmatpush1.xpose.msra.mxu0 0.0
    %5015 = vmatprep.subr.mxu0 0.0
    %5016 = vmatpush1.xpose.msra.mxu0 0.0
    %5017 = vmatprep.subr.mxu0 0.0
    %5018 = vmatpush1.xpose.msra.mxu0 0.0
    %5019 = vmatprep.subr.mxu0 0.0
    %5020 = vmatpush1.xpose.msra.mxu0 0.0
    %5021 = vmatprep.subr.mxu0 0.0
    %5022 = vmatpush1.xpose.msra.mxu0 0.0
    %5023 = vmatprep.subr.mxu0 0.0
    %5024 = vmatpush1.xpose.msra.mxu0 0.0
    %5025 = vmatprep.subr.mxu0 0.0
    %5026 = vmatpush1.xpose.msra.mxu0 0.0
    %5027 = vmatprep.subr.mxu0 0.0
    %5028 = vmatpush1.xpose.msra.mxu0 0.0
    %5029 = vmatprep.subr.mxu0 0.0
    %5030 = vmatpush1.xpose.msra.mxu0 0.0
    %5031 = vmatprep.subr.mxu0 0.0
    %5032 = vmatpush1.xpose.msra.mxu0 0.0
    %5033 = vmatprep.subr.mxu0 0.0
    %5034 = vmatpush1.xpose.msra.mxu0 0.0
    %5035 = vmatprep.subr.mxu0 0.0
    %5036 = vmatpush1.xpose.msra.mxu0 0.0
    %5037 = vmatprep.subr.mxu0 0.0
    %5038 = vmatpush1.xpose.msra.mxu0 0.0
    %5039 = vmatprep.subr.mxu0 0.0
    %5040 = vmatpush1.xpose.msra.mxu0 0.0
    %5041 = vmatprep.subr.mxu0 0.0
    %5042 = vmatpush1.xpose.msra.mxu0 0.0
    %5043 = vmatprep.subr.mxu0 0.0
    %5044 = vmatpush1.xpose.msra.mxu0 0.0
    %5045 = vmatprep.subr.mxu0 0.0
    %5046 = vmatpush1.xpose.msra.mxu0 0.0
    %5047 = vmatprep.mubr.f32.mxu0 0.0
    %5048 = vmatmul.mubr.f32.gmra.mrb[0].mxu0 %v4979
    %v5049 = vpop.f32.mrb[0].mxu0
    %v5050 = vadd.f32 0.0, %v5049
    %v5051 = vpop.f32.mrb[0].mxu0
    %5052 = vdwg.mxu0
    %v5053 = vmul.f32 %v4532, 0.17677669
    %v5054 = vmul.f32 %v4606, 0.17677669
    %v5055 = vmul.f32 %v4680, 0.17677669
    %v5056 = vmul.f32 %v4754, 0.17677669
    %v5057 = vmul.f32 %v4828, 0.17677669
    %v5058 = vmul.f32 %v4902, 0.17677669
    %v5059 = vmul.f32 %v4976, 0.17677669
    %v5060 = vmul.f32 %v5050, 0.17677669
    %v5061 = vadd.f32 %v5053, %v258
    %v5062 = vadd.f32 %v5054, %v259
    %v5063 = vadd.f32 %v5055, %v260
    %v5064 = vadd.f32 %v5056, %v261
    %v5065 = vadd.f32 %v5057, %v262
    %v5066 = vadd.f32 %v5058, %v263
    %v5067 = vadd.f32 %v5059, %v264
    %v5068 = vadd.f32 %v5060, %v265
    %v5069 = vsel %vm1335, %v5061, -inf
    %5070 = vmax.xlane.f32.xlu0 %v5069
    %v5071 = vpop.xlane.xlu0 %5070
    %v5072 = vsel %vm1335, %v5062, -inf
    %5073 = vmax.xlane.f32.xlu0 %v5072
    %v5074 = vpop.xlane.xlu0 %5073
    %v5075 = vsel %vm1335, %v5063, -inf
    %5076 = vmax.xlane.f32.xlu0 %v5075
    %v5077 = vpop.xlane.xlu0 %5076
    %v5078 = vsel %vm1335, %v5064, -inf
    %5079 = vmax.xlane.f32.xlu0 %v5078
    %v5080 = vpop.xlane.xlu0 %5079
    %v5081 = vsel %vm1335, %v5065, -inf
    %5082 = vmax.xlane.f32.xlu0 %v5081
    %v5083 = vpop.xlane.xlu0 %5082
    %v5084 = vsel %vm1335, %v5066, -inf
    %5085 = vmax.xlane.f32.xlu0 %v5084
    %v5086 = vpop.xlane.xlu0 %5085
    %v5087 = vsel %vm1335, %v5067, -inf
    %5088 = vmax.xlane.f32.xlu0 %v5087
    %v5089 = vpop.xlane.xlu0 %5088
    %v5090 = vsel %vm1335, %v5068, -inf
    %5091 = vmax.xlane.f32.xlu0 %v5090
    %v5092 = vpop.xlane.xlu0 %5091
    %v5093 = vsub.f32 %v5061, %v5071
    %v5094 = vsub.f32 %v5062, %v5074
    %v5095 = vsub.f32 %v5063, %v5077
    %v5096 = vsub.f32 %v5064, %v5080
    %v5097 = vsub.f32 %v5065, %v5083
    %v5098 = vsub.f32 %v5066, %v5086
    %v5099 = vsub.f32 %v5067, %v5089
    %v5100 = vsub.f32 %v5068, %v5092
    %v5101 = vmul.f32 %v5093, 1.442695
    %v5102 = vpow.pop %v5101
    %v5103 = vmul.f32 %v5094, 1.442695
    %v5104 = vpow.pop %v5103
    %v5105 = vmul.f32 %v5095, 1.442695
    %v5106 = vpow.pop %v5105
    %v5107 = vmul.f32 %v5096, 1.442695
    %v5108 = vpow.pop %v5107
    %v5109 = vmul.f32 %v5097, 1.442695
    %v5110 = vpow.pop %v5109
    %v5111 = vmul.f32 %v5098, 1.442695
    %v5112 = vpow.pop %v5111
    %v5113 = vmul.f32 %v5099, 1.442695
    %v5114 = vpow.pop %v5113
    %v5115 = vmul.f32 %v5100, 1.442695
    %v5116 = vpow.pop %v5115
    %v5117 = vsel %vm1335, %v5102, 0.0
    %5118 = vadd.xlane.f32.xlu0 %v5117
    %v5119 = vpop.xlane.xlu0 %5118
    %v5120 = vsel %vm1335, %v5104, 0.0
    %5121 = vadd.xlane.f32.xlu0 %v5120
    %v5122 = vpop.xlane.xlu0 %5121
    %v5123 = vsel %vm1335, %v5106, 0.0
    %5124 = vadd.xlane.f32.xlu0 %v5123
    %v5125 = vpop.xlane.xlu0 %5124
    %v5126 = vsel %vm1335, %v5108, 0.0
    %5127 = vadd.xlane.f32.xlu0 %v5126
    %v5128 = vpop.xlane.xlu0 %5127
    %v5129 = vsel %vm1335, %v5110, 0.0
    %5130 = vadd.xlane.f32.xlu0 %v5129
    %v5131 = vpop.xlane.xlu0 %5130
    %v5132 = vsel %vm1335, %v5112, 0.0
    %5133 = vadd.xlane.f32.xlu0 %v5132
    %v5134 = vpop.xlane.xlu0 %5133
    %v5135 = vsel %vm1335, %v5114, 0.0
    %5136 = vadd.xlane.f32.xlu0 %v5135
    %v5137 = vpop.xlane.xlu0 %5136
    %v5138 = vsel %vm1335, %v5116, 0.0
    %5139 = vadd.xlane.f32.xlu0 %v5138
    %v5140 = vpop.xlane.xlu0 %5139
    %v5141 = vrcp.pop %v5119
    %v5142 = vrcp.pop %v5122
    %v5143 = vrcp.pop %v5125
    %v5144 = vrcp.pop %v5128
    %v5145 = vrcp.pop %v5131
    %v5146 = vrcp.pop %v5134
    %v5147 = vrcp.pop %v5137
    %v5148 = vrcp.pop %v5140
    %v5149 = vmul.f32 %v5102, %v5141
    %v5150 = vmul.f32 %v5104, %v5142
    %v5151 = vmul.f32 %v5106, %v5143
    %v5152 = vmul.f32 %v5108, %v5144
    %v5153 = vmul.f32 %v5110, %v5145
    %v5154 = vmul.f32 %v5112, %v5146
    %v5155 = vmul.f32 %v5114, %v5147
    %v5156 = vmul.f32 %v5116, %v5148
    %v5158 = vsel %vm1335, %v5149, 0
    %5160 = vmatprep.subr.mxu0 0.0
    %5161 = vmatpush1.msra.mxu0 %v4405
    %5162 = vmatprep.subr.mxu0 0.0
    %5163 = vmatpush1.msra.mxu0 0.0
    %5164 = vmatprep.subr.mxu0 0.0
    %5165 = vmatpush1.msra.mxu0 0.0
    %5166 = vmatprep.subr.mxu0 0.0
    %5167 = vmatpush1.msra.mxu0 0.0
    %5168 = vmatprep.subr.mxu0 0.0
    %5169 = vmatpush1.msra.mxu0 0.0
    %5170 = vmatprep.subr.mxu0 0.0
    %5171 = vmatpush1.msra.mxu0 0.0
    %5172 = vmatprep.subr.mxu0 0.0
    %5173 = vmatpush1.msra.mxu0 0.0
    %5174 = vmatprep.subr.mxu0 0.0
    %5175 = vmatpush1.msra.mxu0 0.0
    %5176 = vmatprep.subr.mxu0 0.0
    %5177 = vmatpush1.msra.mxu0 0.0
    %5178 = vmatprep.subr.mxu0 0.0
    %5179 = vmatpush1.msra.mxu0 0.0
    %5180 = vmatprep.subr.mxu0 0.0
    %5181 = vmatpush1.msra.mxu0 0.0
    %5182 = vmatprep.subr.mxu0 0.0
    %5183 = vmatpush1.msra.mxu0 0.0
    %5184 = vmatprep.subr.mxu0 0.0
    %5185 = vmatpush1.msra.mxu0 0.0
    %5186 = vmatprep.subr.mxu0 0.0
    %5187 = vmatpush1.msra.mxu0 0.0
    %5188 = vmatprep.subr.mxu0 0.0
    %5189 = vmatpush1.msra.mxu0 0.0
    %5190 = vmatprep.subr.mxu0 0.0
    %5191 = vmatpush1.msra.mxu0 0.0
    %5192 = vmatprep.subr.mxu0 0.0
    %5193 = vmatpush1.msra.mxu0 0.0
    %5194 = vmatprep.subr.mxu0 0.0
    %5195 = vmatpush1.msra.mxu0 0.0
    %5196 = vmatprep.subr.mxu0 0.0
    %5197 = vmatpush1.msra.mxu0 0.0
    %5198 = vmatprep.subr.mxu0 0.0
    %5199 = vmatpush1.msra.mxu0 0.0
    %5200 = vmatprep.subr.mxu0 0.0
    %5201 = vmatpush1.msra.mxu0 0.0
    %5202 = vmatprep.subr.mxu0 0.0
    %5203 = vmatpush1.msra.mxu0 0.0
    %5204 = vmatprep.subr.mxu0 0.0
    %5205 = vmatpush1.msra.mxu0 0.0
    %5206 = vmatprep.subr.mxu0 0.0
    %5207 = vmatpush1.msra.mxu0 0.0
    %5208 = vmatprep.subr.mxu0 0.0
    %5209 = vmatpush1.msra.mxu0 0.0
    %5210 = vmatprep.subr.mxu0 0.0
    %5211 = vmatpush1.msra.mxu0 0.0
    %5212 = vmatprep.subr.mxu0 0.0
    %5213 = vmatpush1.msra.mxu0 0.0
    %5214 = vmatprep.subr.mxu0 0.0
    %5215 = vmatpush1.msra.mxu0 0.0
    %5216 = vmatprep.subr.mxu0 0.0
    %5217 = vmatpush1.msra.mxu0 0.0
    %5218 = vmatprep.subr.mxu0 0.0
    %5219 = vmatpush1.msra.mxu0 0.0
    %5220 = vmatprep.subr.mxu0 0.0
    %5221 = vmatpush1.msra.mxu0 0.0
    %5222 = vmatprep.subr.mxu0 0.0
    %5223 = vmatpush1.msra.mxu0 0.0
    %5224 = vmatprep.mubr.f32.mxu0 0.0
    %5225 = vmatmul.mubr.f32.gmra.mrb[0].mxu0 %v5158
    %v5226 = vpop.f32.mrb[0].mxu0
    %v5227 = vadd.f32 0.0, %v5226
    %v5228 = vpop.f32.mrb[0].mxu0
    %5229 = vdwg.mxu0
    %v5231 = vsel %vm1335, %v5150, 0
    %5233 = vmatprep.subr.mxu0 0.0
    %5234 = vmatpush1.msra.mxu0 %v4410
    %5235 = vmatprep.subr.mxu0 0.0
    %5236 = vmatpush1.msra.mxu0 0.0
    %5237 = vmatprep.subr.mxu0 0.0
    %5238 = vmatpush1.msra.mxu0 0.0
    %5239 = vmatprep.subr.mxu0 0.0
    %5240 = vmatpush1.msra.mxu0 0.0
    %5241 = vmatprep.subr.mxu0 0.0
    %5242 = vmatpush1.msra.mxu0 0.0
    %5243 = vmatprep.subr.mxu0 0.0
    %5244 = vmatpush1.msra.mxu0 0.0
    %5245 = vmatprep.subr.mxu0 0.0
    %5246 = vmatpush1.msra.mxu0 0.0
    %5247 = vmatprep.subr.mxu0 0.0
    %5248 = vmatpush1.msra.mxu0 0.0
    %5249 = vmatprep.subr.mxu0 0.0
    %5250 = vmatpush1.msra.mxu0 0.0
    %5251 = vmatprep.subr.mxu0 0.0
    %5252 = vmatpush1.msra.mxu0 0.0
    %5253 = vmatprep.subr.mxu0 0.0
    %5254 = vmatpush1.msra.mxu0 0.0
    %5255 = vmatprep.subr.mxu0 0.0
    %5256 = vmatpush1.msra.mxu0 0.0
    %5257 = vmatprep.subr.mxu0 0.0
    %5258 = vmatpush1.msra.mxu0 0.0
    %5259 = vmatprep.subr.mxu0 0.0
    %5260 = vmatpush1.msra.mxu0 0.0
    %5261 = vmatprep.subr.mxu0 0.0
    %5262 = vmatpush1.msra.mxu0 0.0
    %5263 = vmatprep.subr.mxu0 0.0
    %5264 = vmatpush1.msra.mxu0 0.0
    %5265 = vmatprep.subr.mxu0 0.0
    %5266 = vmatpush1.msra.mxu0 0.0
    %5267 = vmatprep.subr.mxu0 0.0
    %5268 = vmatpush1.msra.mxu0 0.0
    %5269 = vmatprep.subr.mxu0 0.0
    %5270 = vmatpush1.msra.mxu0 0.0
    %5271 = vmatprep.subr.mxu0 0.0
    %5272 = vmatpush1.msra.mxu0 0.0
    %5273 = vmatprep.subr.mxu0 0.0
    %5274 = vmatpush1.msra.mxu0 0.0
    %5275 = vmatprep.subr.mxu0 0.0
    %5276 = vmatpush1.msra.mxu0 0.0
    %5277 = vmatprep.subr.mxu0 0.0
    %5278 = vmatpush1.msra.mxu0 0.0
    %5279 = vmatprep.subr.mxu0 0.0
    %5280 = vmatpush1.msra.mxu0 0.0
    %5281 = vmatprep.subr.mxu0 0.0
    %5282 = vmatpush1.msra.mxu0 0.0
    %5283 = vmatprep.subr.mxu0 0.0
    %5284 = vmatpush1.msra.mxu0 0.0
    %5285 = vmatprep.subr.mxu0 0.0
    %5286 = vmatpush1.msra.mxu0 0.0
    %5287 = vmatprep.subr.mxu0 0.0
    %5288 = vmatpush1.msra.mxu0 0.0
    %5289 = vmatprep.subr.mxu0 0.0
    %5290 = vmatpush1.msra.mxu0 0.0
    %5291 = vmatprep.subr.mxu0 0.0
    %5292 = vmatpush1.msra.mxu0 0.0
    %5293 = vmatprep.subr.mxu0 0.0
    %5294 = vmatpush1.msra.mxu0 0.0
    %5295 = vmatprep.subr.mxu0 0.0
    %5296 = vmatpush1.msra.mxu0 0.0
    %5297 = vmatprep.mubr.f32.mxu0 0.0
    %5298 = vmatmul.mubr.f32.gmra.mrb[0].mxu0 %v5231
    %v5299 = vpop.f32.mrb[0].mxu0
    %v5300 = vadd.f32 0.0, %v5299
    %v5301 = vpop.f32.mrb[0].mxu0
    %5302 = vdwg.mxu0
    %v5304 = vsel %vm1335, %v5151, 0
    %5306 = vmatprep.subr.mxu0 0.0
    %5307 = vmatpush1.msra.mxu0 %v4444
    %5308 = vmatprep.subr.mxu0 0.0
    %5309 = vmatpush1.msra.mxu0 0.0
    %5310 = vmatprep.subr.mxu0 0.0
    %5311 = vmatpush1.msra.mxu0 0.0
    %5312 = vmatprep.subr.mxu0 0.0
    %5313 = vmatpush1.msra.mxu0 0.0
    %5314 = vmatprep.subr.mxu0 0.0
    %5315 = vmatpush1.msra.mxu0 0.0
    %5316 = vmatprep.subr.mxu0 0.0
    %5317 = vmatpush1.msra.mxu0 0.0
    %5318 = vmatprep.subr.mxu0 0.0
    %5319 = vmatpush1.msra.mxu0 0.0
    %5320 = vmatprep.subr.mxu0 0.0
    %5321 = vmatpush1.msra.mxu0 0.0
    %5322 = vmatprep.subr.mxu0 0.0
    %5323 = vmatpush1.msra.mxu0 0.0
    %5324 = vmatprep.subr.mxu0 0.0
    %5325 = vmatpush1.msra.mxu0 0.0
    %5326 = vmatprep.subr.mxu0 0.0
    %5327 = vmatpush1.msra.mxu0 0.0
    %5328 = vmatprep.subr.mxu0 0.0
    %5329 = vmatpush1.msra.mxu0 0.0
    %5330 = vmatprep.subr.mxu0 0.0
    %5331 = vmatpush1.msra.mxu0 0.0
    %5332 = vmatprep.subr.mxu0 0.0
    %5333 = vmatpush1.msra.mxu0 0.0
    %5334 = vmatprep.subr.mxu0 0.0
    %5335 = vmatpush1.msra.mxu0 0.0
    %5336 = vmatprep.subr.mxu0 0.0
    %5337 = vmatpush1.msra.mxu0 0.0
    %5338 = vmatprep.subr.mxu0 0.0
    %5339 = vmatpush1.msra.mxu0 0.0
    %5340 = vmatprep.subr.mxu0 0.0
    %5341 = vmatpush1.msra.mxu0 0.0
    %5342 = vmatprep.subr.mxu0 0.0
    %5343 = vmatpush1.msra.mxu0 0.0
    %5344 = vmatprep.subr.mxu0 0.0
    %5345 = vmatpush1.msra.mxu0 0.0
    %5346 = vmatprep.subr.mxu0 0.0
    %5347 = vmatpush1.msra.mxu0 0.0
    %5348 = vmatprep.subr.mxu0 0.0
    %5349 = vmatpush1.msra.mxu0 0.0
    %5350 = vmatprep.subr.mxu0 0.0
    %5351 = vmatpush1.msra.mxu0 0.0
    %5352 = vmatprep.subr.mxu0 0.0
    %5353 = vmatpush1.msra.mxu0 0.0
    %5354 = vmatprep.subr.mxu0 0.0
    %5355 = vmatpush1.msra.mxu0 0.0
    %5356 = vmatprep.subr.mxu0 0.0
    %5357 = vmatpush1.msra.mxu0 0.0
    %5358 = vmatprep.subr.mxu0 0.0
    %5359 = vmatpush1.msra.mxu0 0.0
    %5360 = vmatprep.subr.mxu0 0.0
    %5361 = vmatpush1.msra.mxu0 0.0
    %5362 = vmatprep.subr.mxu0 0.0
    %5363 = vmatpush1.msra.mxu0 0.0
    %5364 = vmatprep.subr.mxu0 0.0
    %5365 = vmatpush1.msra.mxu0 0.0
    %5366 = vmatprep.subr.mxu0 0.0
    %5367 = vmatpush1.msra.mxu0 0.0
    %5368 = vmatprep.subr.mxu0 0.0
    %5369 = vmatpush1.msra.mxu0 0.0
    %5370 = vmatprep.mubr.f32.mxu0 0.0
    %5371 = vmatmul.mubr.f32.gmra.mrb[0].mxu0 %v5304
    %v5372 = vpop.f32.mrb[0].mxu0
    %v5373 = vadd.f32 0.0, %v5372
    %v5374 = vpop.f32.mrb[0].mxu0
    %5375 = vdwg.mxu0
    %v5377 = vsel %vm1335, %v5152, 0
    %5379 = vmatprep.subr.mxu0 0.0
    %5380 = vmatpush1.msra.mxu0 %v4446
    %5381 = vmatprep.subr.mxu0 0.0
    %5382 = vmatpush1.msra.mxu0 0.0
    %5383 = vmatprep.subr.mxu0 0.0
    %5384 = vmatpush1.msra.mxu0 0.0
    %5385 = vmatprep.subr.mxu0 0.0
    %5386 = vmatpush1.msra.mxu0 0.0
    %5387 = vmatprep.subr.mxu0 0.0
    %5388 = vmatpush1.msra.mxu0 0.0
    %5389 = vmatprep.subr.mxu0 0.0
    %5390 = vmatpush1.msra.mxu0 0.0
    %5391 = vmatprep.subr.mxu0 0.0
    %5392 = vmatpush1.msra.mxu0 0.0
    %5393 = vmatprep.subr.mxu0 0.0
    %5394 = vmatpush1.msra.mxu0 0.0
    %5395 = vmatprep.subr.mxu0 0.0
    %5396 = vmatpush1.msra.mxu0 0.0
    %5397 = vmatprep.subr.mxu0 0.0
    %5398 = vmatpush1.msra.mxu0 0.0
    %5399 = vmatprep.subr.mxu0 0.0
    %5400 = vmatpush1.msra.mxu0 0.0
    %5401 = vmatprep.subr.mxu0 0.0
    %5402 = vmatpush1.msra.mxu0 0.0
    %5403 = vmatprep.subr.mxu0 0.0
    %5404 = vmatpush1.msra.mxu0 0.0
    %5405 = vmatprep.subr.mxu0 0.0
    %5406 = vmatpush1.msra.mxu0 0.0
    %5407 = vmatprep.subr.mxu0 0.0
    %5408 = vmatpush1.msra.mxu0 0.0
    %5409 = vmatprep.subr.mxu0 0.0
    %5410 = vmatpush1.msra.mxu0 0.0
    %5411 = vmatprep.subr.mxu0 0.0
    %5412 = vmatpush1.msra.mxu0 0.0
    %5413 = vmatprep.subr.mxu0 0.0
    %5414 = vmatpush1.msra.mxu0 0.0
    %5415 = vmatprep.subr.mxu0 0.0
    %5416 = vmatpush1.msra.mxu0 0.0
    %5417 = vmatprep.subr.mxu0 0.0
    %5418 = vmatpush1.msra.mxu0 0.0
    %5419 = vmatprep.subr.mxu0 0.0
    %5420 = vmatpush1.msra.mxu0 0.0
    %5421 = vmatprep.subr.mxu0 0.0
    %5422 = vmatpush1.msra.mxu0 0.0
    %5423 = vmatprep.subr.mxu0 0.0
    %5424 = vmatpush1.msra.mxu0 0.0
    %5425 = vmatprep.subr.mxu0 0.0
    %5426 = vmatpush1.msra.mxu0 0.0
    %5427 = vmatprep.subr.mxu0 0.0
    %5428 = vmatpush1.msra.mxu0 0.0
    %5429 = vmatprep.subr.mxu0 0.0
    %5430 = vmatpush1.msra.mxu0 0.0
    %5431 = vmatprep.subr.mxu0 0.0
    %5432 = vmatpush1.msra.mxu0 0.0
    %5433 = vmatprep.subr.mxu0 0.0
    %5434 = vmatpush1.msra.mxu0 0.0
    %5435 = vmatprep.subr.mxu0 0.0
    %5436 = vmatpush1.msra.mxu0 0.0
    %5437 = vmatprep.subr.mxu0 0.0
    %5438 = vmatpush1.msra.mxu0 0.0
    %5439 = vmatprep.subr.mxu0 0.0
    %5440 = vmatpush1.msra.mxu0 0.0
    %5441 = vmatprep.subr.mxu0 0.0
    %5442 = vmatpush1.msra.mxu0 0.0
    %5443 = vmatprep.mubr.f32.mxu0 0.0
    %5444 = vmatmul.mubr.f32.gmra.mrb[0].mxu0 %v5377
    %v5445 = vpop.f32.mrb[0].mxu0
    %v5446 = vadd.f32 0.0, %v5445
    %v5447 = vpop.f32.mrb[0].mxu0
    %5448 = vdwg.mxu0
    %v5450 = vsel %vm1335, %v5153, 0
    %5452 = vmatprep.subr.mxu0 0.0
    %5453 = vmatpush1.msra.mxu0 %v4450
    %5454 = vmatprep.subr.mxu0 0.0
    %5455 = vmatpush1.msra.mxu0 0.0
    %5456 = vmatprep.subr.mxu0 0.0
    %5457 = vmatpush1.msra.mxu0 0.0
    %5458 = vmatprep.subr.mxu0 0.0
    %5459 = vmatpush1.msra.mxu0 0.0
    %5460 = vmatprep.subr.mxu0 0.0
    %5461 = vmatpush1.msra.mxu0 0.0
    %5462 = vmatprep.subr.mxu0 0.0
    %5463 = vmatpush1.msra.mxu0 0.0
    %5464 = vmatprep.subr.mxu0 0.0
    %5465 = vmatpush1.msra.mxu0 0.0
    %5466 = vmatprep.subr.mxu0 0.0
    %5467 = vmatpush1.msra.mxu0 0.0
    %5468 = vmatprep.subr.mxu0 0.0
    %5469 = vmatpush1.msra.mxu0 0.0
    %5470 = vmatprep.subr.mxu0 0.0
    %5471 = vmatpush1.msra.mxu0 0.0
    %5472 = vmatprep.subr.mxu0 0.0
    %5473 = vmatpush1.msra.mxu0 0.0
    %5474 = vmatprep.subr.mxu0 0.0
    %5475 = vmatpush1.msra.mxu0 0.0
    %5476 = vmatprep.subr.mxu0 0.0
    %5477 = vmatpush1.msra.mxu0 0.0
    %5478 = vmatprep.subr.mxu0 0.0
    %5479 = vmatpush1.msra.mxu0 0.0
    %5480 = vmatprep.subr.mxu0 0.0
    %5481 = vmatpush1.msra.mxu0 0.0
    %5482 = vmatprep.subr.mxu0 0.0
    %5483 = vmatpush1.msra.mxu0 0.0
    %5484 = vmatprep.subr.mxu0 0.0
    %5485 = vmatpush1.msra.mxu0 0.0
    %5486 = vmatprep.subr.mxu0 0.0
    %5487 = vmatpush1.msra.mxu0 0.0
    %5488 = vmatprep.subr.mxu0 0.0
    %5489 = vmatpush1.msra.mxu0 0.0
    %5490 = vmatprep.subr.mxu0 0.0
    %5491 = vmatpush1.msra.mxu0 0.0
    %5492 = vmatprep.subr.mxu0 0.0
    %5493 = vmatpush1.msra.mxu0 0.0
    %5494 = vmatprep.subr.mxu0 0.0
    %5495 = vmatpush1.msra.mxu0 0.0
    %5496 = vmatprep.subr.mxu0 0.0
    %5497 = vmatpush1.msra.mxu0 0.0
    %5498 = vmatprep.subr.mxu0 0.0
    %5499 = vmatpush1.msra.mxu0 0.0
    %5500 = vmatprep.subr.mxu0 0.0
    %5501 = vmatpush1.msra.mxu0 0.0
    %5502 = vmatprep.subr.mxu0 0.0
    %5503 = vmatpush1.msra.mxu0 0.0
    %5504 = vmatprep.subr.mxu0 0.0
    %5505 = vmatpush1.msra.mxu0 0.0
    %5506 = vmatprep.subr.mxu0 0.0
    %5507 = vmatpush1.msra.mxu0 0.0
    %5508 = vmatprep.subr.mxu0 0.0
    %5509 = vmatpush1.msra.mxu0 0.0
    %5510 = vmatprep.subr.mxu0 0.0
    %5511 = vmatpush1.msra.mxu0 0.0
    %5512 = vmatprep.subr.mxu0 0.0
    %5513 = vmatpush1.msra.mxu0 0.0
    %5514 = vmatprep.subr.mxu0 0.0
    %5515 = vmatpush1.msra.mxu0 0.0
    %5516 = vmatprep.mubr.f32.mxu0 0.0
    %5517 = vmatmul.mubr.f32.gmra.mrb[0].mxu0 %v5450
    %v5518 = vpop.f32.mrb[0].mxu0
    %v5519 = vadd.f32 0.0, %v5518
    %v5520 = vpop.f32.mrb[0].mxu0
    %5521 = vdwg.mxu0
    %v5523 = vsel %vm1335, %v5154, 0
    %5525 = vmatprep.subr.mxu0 0.0
    %5526 = vmatpush1.msra.mxu0 %v4452
    %5527 = vmatprep.subr.mxu0 0.0
    %5528 = vmatpush1.msra.mxu0 0.0
    %5529 = vmatprep.subr.mxu0 0.0
    %5530 = vmatpush1.msra.mxu0 0.0
    %5531 = vmatprep.subr.mxu0 0.0
    %5532 = vmatpush1.msra.mxu0 0.0
    %5533 = vmatprep.subr.mxu0 0.0
    %5534 = vmatpush1.msra.mxu0 0.0
    %5535 = vmatprep.subr.mxu0 0.0
    %5536 = vmatpush1.msra.mxu0 0.0
    %5537 = vmatprep.subr.mxu0 0.0
    %5538 = vmatpush1.msra.mxu0 0.0
    %5539 = vmatprep.subr.mxu0 0.0
    %5540 = vmatpush1.msra.mxu0 0.0
    %5541 = vmatprep.subr.mxu0 0.0
    %5542 = vmatpush1.msra.mxu0 0.0
    %5543 = vmatprep.subr.mxu0 0.0
    %5544 = vmatpush1.msra.mxu0 0.0
    %5545 = vmatprep.subr.mxu0 0.0
    %5546 = vmatpush1.msra.mxu0 0.0
    %5547 = vmatprep.subr.mxu0 0.0
    %5548 = vmatpush1.msra.mxu0 0.0
    %5549 = vmatprep.subr.mxu0 0.0
    %5550 = vmatpush1.msra.mxu0 0.0
    %5551 = vmatprep.subr.mxu0 0.0
    %5552 = vmatpush1.msra.mxu0 0.0
    %5553 = vmatprep.subr.mxu0 0.0
    %5554 = vmatpush1.msra.mxu0 0.0
    %5555 = vmatprep.subr.mxu0 0.0
    %5556 = vmatpush1.msra.mxu0 0.0
    %5557 = vmatprep.subr.mxu0 0.0
    %5558 = vmatpush1.msra.mxu0 0.0
    %5559 = vmatprep.subr.mxu0 0.0
    %5560 = vmatpush1.msra.mxu0 0.0
    %5561 = vmatprep.subr.mxu0 0.0
    %5562 = vmatpush1.msra.mxu0 0.0
    %5563 = vmatprep.subr.mxu0 0.0
    %5564 = vmatpush1.msra.mxu0 0.0
    %5565 = vmatprep.subr.mxu0 0.0
    %5566 = vmatpush1.msra.mxu0 0.0
    %5567 = vmatprep.subr.mxu0 0.0
    %5568 = vmatpush1.msra.mxu0 0.0
    %5569 = vmatprep.subr.mxu0 0.0
    %5570 = vmatpush1.msra.mxu0 0.0
    %5571 = vmatprep.subr.mxu0 0.0
    %5572 = vmatpush1.msra.mxu0 0.0
    %5573 = vmatprep.subr.mxu0 0.0
    %5574 = vmatpush1.msra.mxu0 0.0
    %5575 = vmatprep.subr.mxu0 0.0
    %5576 = vmatpush1.msra.mxu0 0.0
    %5577 = vmatprep.subr.mxu0 0.0
    %5578 = vmatpush1.msra.mxu0 0.0
    %5579 = vmatprep.subr.mxu0 0.0
    %5580 = vmatpush1.msra.mxu0 0.0
    %5581 = vmatprep.subr.mxu0 0.0
    %5582 = vmatpush1.msra.mxu0 0.0
    %5583 = vmatprep.subr.mxu0 0.0
    %5584 = vmatpush1.msra.mxu0 0.0
    %5585 = vmatprep.subr.mxu0 0.0
    %5586 = vmatpush1.msra.mxu0 0.0
    %5587 = vmatprep.subr.mxu0 0.0
    %5588 = vmatpush1.msra.mxu0 0.0
    %5589 = vmatprep.mubr.f32.mxu0 0.0
    %5590 = vmatmul.mubr.f32.gmra.mrb[0].mxu0 %v5523
    %v5591 = vpop.f32.mrb[0].mxu0
    %v5592 = vadd.f32 0.0, %v5591
    %v5593 = vpop.f32.mrb[0].mxu0
    %5594 = vdwg.mxu0
    %v5596 = vsel %vm1335, %v5155, 0
    %5598 = vmatprep.subr.mxu0 0.0
    %5599 = vmatpush1.msra.mxu0 %v4456
    %5600 = vmatprep.subr.mxu0 0.0
    %5601 = vmatpush1.msra.mxu0 0.0
    %5602 = vmatprep.subr.mxu0 0.0
    %5603 = vmatpush1.msra.mxu0 0.0
    %5604 = vmatprep.subr.mxu0 0.0
    %5605 = vmatpush1.msra.mxu0 0.0
    %5606 = vmatprep.subr.mxu0 0.0
    %5607 = vmatpush1.msra.mxu0 0.0
    %5608 = vmatprep.subr.mxu0 0.0
    %5609 = vmatpush1.msra.mxu0 0.0
    %5610 = vmatprep.subr.mxu0 0.0
    %5611 = vmatpush1.msra.mxu0 0.0
    %5612 = vmatprep.subr.mxu0 0.0
    %5613 = vmatpush1.msra.mxu0 0.0
    %5614 = vmatprep.subr.mxu0 0.0
    %5615 = vmatpush1.msra.mxu0 0.0
    %5616 = vmatprep.subr.mxu0 0.0
    %5617 = vmatpush1.msra.mxu0 0.0
    %5618 = vmatprep.subr.mxu0 0.0
    %5619 = vmatpush1.msra.mxu0 0.0
    %5620 = vmatprep.subr.mxu0 0.0
    %5621 = vmatpush1.msra.mxu0 0.0
    %5622 = vmatprep.subr.mxu0 0.0
    %5623 = vmatpush1.msra.mxu0 0.0
    %5624 = vmatprep.subr.mxu0 0.0
    %5625 = vmatpush1.msra.mxu0 0.0
    %5626 = vmatprep.subr.mxu0 0.0
    %5627 = vmatpush1.msra.mxu0 0.0
    %5628 = vmatprep.subr.mxu0 0.0
    %5629 = vmatpush1.msra.mxu0 0.0
    %5630 = vmatprep.subr.mxu0 0.0
    %5631 = vmatpush1.msra.mxu0 0.0
    %5632 = vmatprep.subr.mxu0 0.0
    %5633 = vmatpush1.msra.mxu0 0.0
    %5634 = vmatprep.subr.mxu0 0.0
    %5635 = vmatpush1.msra.mxu0 0.0
    %5636 = vmatprep.subr.mxu0 0.0
    %5637 = vmatpush1.msra.mxu0 0.0
    %5638 = vmatprep.subr.mxu0 0.0
    %5639 = vmatpush1.msra.mxu0 0.0
    %5640 = vmatprep.subr.mxu0 0.0
    %5641 = vmatpush1.msra.mxu0 0.0
    %5642 = vmatprep.subr.mxu0 0.0
    %5643 = vmatpush1.msra.mxu0 0.0
    %5644 = vmatprep.subr.mxu0 0.0
    %5645 = vmatpush1.msra.mxu0 0.0
    %5646 = vmatprep.subr.mxu0 0.0
    %5647 = vmatpush1.msra.mxu0 0.0
    %5648 = vmatprep.subr.mxu0 0.0
    %5649 = vmatpush1.msra.mxu0 0.0
    %5650 = vmatprep.subr.mxu0 0.0
    %5651 = vmatpush1.msra.mxu0 0.0
    %5652 = vmatprep.subr.mxu0 0.0
    %5653 = vmatpush1.msra.mxu0 0.0
    %5654 = vmatprep.subr.mxu0 0.0
    %5655 = vmatpush1.msra.mxu0 0.0
    %5656 = vmatprep.subr.mxu0 0.0
    %5657 = vmatpush1.msra.mxu0 0.0
    %5658 = vmatprep.subr.mxu0 0.0
    %5659 = vmatpush1.msra.mxu0 0.0
    %5660 = vmatprep.subr.mxu0 0.0
    %5661 = vmatpush1.msra.mxu0 0.0
    %5662 = vmatprep.mubr.f32.mxu0 0.0
    %5663 = vmatmul.mubr.f32.gmra.mrb[0].mxu0 %v5596
    %v5664 = vpop.f32.mrb[0].mxu0
    %v5665 = vadd.f32 0.0, %v5664
    %v5666 = vpop.f32.mrb[0].mxu0
    %5667 = vdwg.mxu0
    %v5669 = vsel %vm1335, %v5156, 0
    %5671 = vmatprep.subr.mxu0 0.0
    %5672 = vmatpush1.msra.mxu0 %v4458
    %5673 = vmatprep.subr.mxu0 0.0
    %5674 = vmatpush1.msra.mxu0 0.0
    %5675 = vmatprep.subr.mxu0 0.0
    %5676 = vmatpush1.msra.mxu0 0.0
    %5677 = vmatprep.subr.mxu0 0.0
    %5678 = vmatpush1.msra.mxu0 0.0
    %5679 = vmatprep.subr.mxu0 0.0
    %5680 = vmatpush1.msra.mxu0 0.0
    %5681 = vmatprep.subr.mxu0 0.0
    %5682 = vmatpush1.msra.mxu0 0.0
    %5683 = vmatprep.subr.mxu0 0.0
    %5684 = vmatpush1.msra.mxu0 0.0
    %5685 = vmatprep.subr.mxu0 0.0
    %5686 = vmatpush1.msra.mxu0 0.0
    %5687 = vmatprep.subr.mxu0 0.0
    %5688 = vmatpush1.msra.mxu0 0.0
    %5689 = vmatprep.subr.mxu0 0.0
    %5690 = vmatpush1.msra.mxu0 0.0
    %5691 = vmatprep.subr.mxu0 0.0
    %5692 = vmatpush1.msra.mxu0 0.0
    %5693 = vmatprep.subr.mxu0 0.0
    %5694 = vmatpush1.msra.mxu0 0.0
    %5695 = vmatprep.subr.mxu0 0.0
    %5696 = vmatpush1.msra.mxu0 0.0
    %5697 = vmatprep.subr.mxu0 0.0
    %5698 = vmatpush1.msra.mxu0 0.0
    %5699 = vmatprep.subr.mxu0 0.0
    %5700 = vmatpush1.msra.mxu0 0.0
    %5701 = vmatprep.subr.mxu0 0.0
    %5702 = vmatpush1.msra.mxu0 0.0
    %5703 = vmatprep.subr.mxu0 0.0
    %5704 = vmatpush1.msra.mxu0 0.0
    %5705 = vmatprep.subr.mxu0 0.0
    %5706 = vmatpush1.msra.mxu0 0.0
    %5707 = vmatprep.subr.mxu0 0.0
    %5708 = vmatpush1.msra.mxu0 0.0
    %5709 = vmatprep.subr.mxu0 0.0
    %5710 = vmatpush1.msra.mxu0 0.0
    %5711 = vmatprep.subr.mxu0 0.0
    %5712 = vmatpush1.msra.mxu0 0.0
    %5713 = vmatprep.subr.mxu0 0.0
    %5714 = vmatpush1.msra.mxu0 0.0
    %5715 = vmatprep.subr.mxu0 0.0
    %5716 = vmatpush1.msra.mxu0 0.0
    %5717 = vmatprep.subr.mxu0 0.0
    %5718 = vmatpush1.msra.mxu0 0.0
    %5719 = vmatprep.subr.mxu0 0.0
    %5720 = vmatpush1.msra.mxu0 0.0
    %5721 = vmatprep.subr.mxu0 0.0
    %5722 = vmatpush1.msra.mxu0 0.0
    %5723 = vmatprep.subr.mxu0 0.0
    %5724 = vmatpush1.msra.mxu0 0.0
    %5725 = vmatprep.subr.mxu0 0.0
    %5726 = vmatpush1.msra.mxu0 0.0
    %5727 = vmatprep.subr.mxu0 0.0
    %5728 = vmatpush1.msra.mxu0 0.0
    %5729 = vmatprep.subr.mxu0 0.0
    %5730 = vmatpush1.msra.mxu0 0.0
    %5731 = vmatprep.subr.mxu0 0.0
    %5732 = vmatpush1.msra.mxu0 0.0
    %5733 = vmatprep.subr.mxu0 0.0
    %5734 = vmatpush1.msra.mxu0 0.0
    %5735 = vmatprep.mubr.f32.mxu0 0.0
    %5736 = vmatmul.mubr.f32.gmra.mrb[0].mxu0 %v5669
    %v5737 = vpop.f32.mrb[0].mxu0
    %v5738 = vadd.f32 0.0, %v5737
    %v5739 = vpop.f32.mrb[0].mxu0
    %5740 = vdwg.mxu0
    %5743 = vrot.lane.b32.xlu0 %v5373, 32
    %v5744 = vpop.permute.xlu0 %5743
    %5745 = vrot.lane.b32.xlu0 %v5446, 32
    %v5746 = vpop.permute.xlu0 %5745
    %5751 = vrot.lane.b32.xlu0 %v5519, 64
    %v5752 = vpop.permute.xlu0 %5751
    %5753 = vrot.lane.b32.xlu0 %v5592, 64
    %v5754 = vpop.permute.xlu0 %5753
    %5759 = vrot.lane.b32.xlu0 %v5665, 96
    %v5760 = vpop.permute.xlu0 %5759
    %5761 = vrot.lane.b32.xlu0 %v5738, 96
    %v5762 = vpop.permute.xlu0 %5761
    %v5765 = vsel %vm726, %v5227, %v5744
    %v5766 = vsel %vm726, %v5300, %v5746
    %v5767 = vsel %vm2034, %v5765, %v5752
    %v5768 = vsel %vm2034, %v5766, %v5754
    %v5769 = vsel %vm2037, %v5767, %v5760
    %v5770 = vsel %vm2037, %v5768, %v5762
    %v5772 = vlaneseq
    %v5773 = vshrl.u32 %v5772, 7
    %v5774 = vsub.s32 0, %v5773
    %v5775 = vrot.slane %v4063, %v5774
    %5777 = vmatprep.subr.mxu0 0.0
    %5778 = vmatpush1.msra.mxu0 %v4046
    %5779 = vmatprep.subr.mxu0 0.0
    %5780 = vmatpush1.msra.mxu0 %v4047
    %5781 = vmatprep.subr.mxu0 0.0
    %5782 = vmatpush1.msra.mxu0 %v4048
    %5783 = vmatprep.subr.mxu0 0.0
    %5784 = vmatpush1.msra.mxu0 %v4049
    %5785 = vmatprep.subr.mxu0 0.0
    %5786 = vmatpush1.msra.mxu0 %v4050
    %5787 = vmatprep.subr.mxu0 0.0
    %5788 = vmatpush1.msra.mxu0 %v4051
    %5789 = vmatprep.subr.mxu0 0.0
    %5790 = vmatpush1.msra.mxu0 %v4052
    %5791 = vmatprep.subr.mxu0 0.0
    %5792 = vmatpush1.msra.mxu0 %v4053
    %5793 = vmatprep.subr.mxu0 0.0
    %5794 = vmatpush1.msra.mxu0 %v4054
    %5795 = vmatprep.subr.mxu0 0.0
    %5796 = vmatpush1.msra.mxu0 %v4055
    %5797 = vmatprep.subr.mxu0 0.0
    %5798 = vmatpush1.msra.mxu0 %v4056
    %5799 = vmatprep.subr.mxu0 0.0
    %5800 = vmatpush1.msra.mxu0 %v4057
    %5801 = vmatprep.subr.mxu0 0.0
    %5802 = vmatpush1.msra.mxu0 %v4058
    %5803 = vmatprep.subr.mxu0 0.0
    %5804 = vmatpush1.msra.mxu0 %v4059
    %5805 = vmatprep.subr.mxu0 0.0
    %5806 = vmatpush1.msra.mxu0 %v4060
    %5807 = vmatprep.subr.mxu0 0.0
    %5808 = vmatpush1.msra.mxu0 %v4061
    %5809 = vmatprep.subr.mxu0 0.0
    %5810 = vmatpush1.msra.mxu0 0.0
    %5811 = vmatprep.subr.mxu0 0.0
    %5812 = vmatpush1.msra.mxu0 0.0
    %5813 = vmatprep.subr.mxu0 0.0
    %5814 = vmatpush1.msra.mxu0 0.0
    %5815 = vmatprep.subr.mxu0 0.0
    %5816 = vmatpush1.msra.mxu0 0.0
    %5817 = vmatprep.subr.mxu0 0.0
    %5818 = vmatpush1.msra.mxu0 0.0
    %5819 = vmatprep.subr.mxu0 0.0
    %5820 = vmatpush1.msra.mxu0 0.0
    %5821 = vmatprep.subr.mxu0 0.0
    %5822 = vmatpush1.msra.mxu0 0.0
    %5823 = vmatprep.subr.mxu0 0.0
    %5824 = vmatpush1.msra.mxu0 0.0
    %5825 = vmatprep.subr.mxu0 0.0
    %5826 = vmatpush1.msra.mxu0 0.0
    %5827 = vmatprep.subr.mxu0 0.0
    %5828 = vmatpush1.msra.mxu0 0.0
    %5829 = vmatprep.subr.mxu0 0.0
    %5830 = vmatpush1.msra.mxu0 0.0
    %5831 = vmatprep.subr.mxu0 0.0
    %5832 = vmatpush1.msra.mxu0 0.0
    %5833 = vmatprep.subr.mxu0 0.0
    %5834 = vmatpush1.msra.mxu0 0.0
    %5835 = vmatprep.subr.mxu0 0.0
    %5836 = vmatpush1.msra.mxu0 0.0
    %5837 = vmatprep.subr.mxu0 0.0
    %5838 = vmatpush1.msra.mxu0 0.0
    %5839 = vmatprep.subr.mxu0 0.0
    %5840 = vmatpush1.msra.mxu0 0.0
    %5841 = vmatprep.mubr.f32.mxu0 0.0
    %5842 = vmatmul.mubr.f32.gmra.mrb[0].mxu0 %v5769
    %v5843 = vpop.f32.mrb[0].mxu0
    %v5844 = vadd.f32 %v5775, %v5843
    %v5845 = vpop.f32.mrb[0].mxu0
    %5846 = vmatprep.mubr.f32.mxu0 0.0
    %5847 = vmatmul.mubr.f32.gmra.mrb[0].mxu0 %v5770
    %v5848 = vpop.f32.mrb[0].mxu0
    %v5849 = vadd.f32 %v5775, %v5848
    %v5850 = vpop.f32.mrb[0].mxu0
    %5851 = vdwg.mxu0
    %v5852 = vadd.f32 %v3984, %v5844
    %v5853 = vadd.f32 %v3985, %v5849
    %5854 = vadd.xlane.f32.xlu0 %v5852
    %v5855 = vpop.xlane.xlu0 %5854
    %5856 = vadd.xlane.f32.xlu0 %v5853
    %v5857 = vpop.xlane.xlu0 %5856
    %v5858 = vmul.f32 %v5855, %v475
    %v5859 = vmul.f32 %v5857, %v475
    %v5860 = vsub.f32 %v5852, %v5858
    %v5861 = vsub.f32 %v5853, %v5859
    %v5862 = vmul.f32 %v5860, %v5860
    %v5863 = vmul.f32 %v5861, %v5861
    %5864 = vadd.xlane.f32.xlu0 %v5862
    %v5865 = vpop.xlane.xlu0 %5864
    %5866 = vadd.xlane.f32.xlu0 %v5863
    %v5867 = vpop.xlane.xlu0 %5866
    %v5868 = vmul.f32 %v5865, %v475
    %v5869 = vmul.f32 %v5867, %v475
    %v5870 = vadd.f32 %v5868, 1e-05
    %v5871 = vadd.f32 %v5869, 1e-05
    %v5872 = vrsqrt.pop %v5870
    %v5873 = vrsqrt.pop %v5871
    %v5874 = vmul.f32 %v5860, %v5872
    %v5875 = vmul.f32 %v5861, %v5873
    %v5877 = vlaneseq
    %v5878 = vshrl.u32 %v5877, 7
    %v5879 = vsub.s32 0, %v5878
    %v5880 = vrot.slane %v3988, %v5879
    %v5882 = vmul.f32 %v5874, %v5880
    %v5883 = vmul.f32 %v5875, %v5880
    %v5885 = vlaneseq
    %v5886 = vshrl.u32 %v5885, 7
    %v5887 = vsub.s32 0, %v5886
    %v5888 = vrot.slane %v3992, %v5887
    %v5890 = vadd.f32 %v5882, %v5888
    %v5891 = vadd.f32 %v5883, %v5888
    %v5893 = vlaneseq
    %v5894 = vshrl.u32 %v5893, 7
    %v5895 = vsub.s32 0, %v5894
    %v5896 = vrot.slane %v4082, %v5895
    %5898 = vmatprep.subr.mxu0 0.0
    %5899 = vmatpush1.msra.mxu0 %v4065
    %5900 = vmatprep.subr.mxu0 0.0
    %5901 = vmatpush1.msra.mxu0 %v4066
    %5902 = vmatprep.subr.mxu0 0.0
    %5903 = vmatpush1.msra.mxu0 %v4067
    %5904 = vmatprep.subr.mxu0 0.0
    %5905 = vmatpush1.msra.mxu0 %v4068
    %5906 = vmatprep.subr.mxu0 0.0
    %5907 = vmatpush1.msra.mxu0 %v4069
    %5908 = vmatprep.subr.mxu0 0.0
    %5909 = vmatpush1.msra.mxu0 %v4070
    %5910 = vmatprep.subr.mxu0 0.0
    %5911 = vmatpush1.msra.mxu0 %v4071
    %5912 = vmatprep.subr.mxu0 0.0
    %5913 = vmatpush1.msra.mxu0 %v4072
    %5914 = vmatprep.subr.mxu0 0.0
    %5915 = vmatpush1.msra.mxu0 %v4073
    %5916 = vmatprep.subr.mxu0 0.0
    %5917 = vmatpush1.msra.mxu0 %v4074
    %5918 = vmatprep.subr.mxu0 0.0
    %5919 = vmatpush1.msra.mxu0 %v4075
    %5920 = vmatprep.subr.mxu0 0.0
    %5921 = vmatpush1.msra.mxu0 %v4076
    %5922 = vmatprep.subr.mxu0 0.0
    %5923 = vmatpush1.msra.mxu0 %v4077
    %5924 = vmatprep.subr.mxu0 0.0
    %5925 = vmatpush1.msra.mxu0 %v4078
    %5926 = vmatprep.subr.mxu0 0.0
    %5927 = vmatpush1.msra.mxu0 %v4079
    %5928 = vmatprep.subr.mxu0 0.0
    %5929 = vmatpush1.msra.mxu0 %v4080
    %5930 = vmatprep.subr.mxu0 0.0
    %5931 = vmatpush1.msra.mxu0 0.0
    %5932 = vmatprep.subr.mxu0 0.0
    %5933 = vmatpush1.msra.mxu0 0.0
    %5934 = vmatprep.subr.mxu0 0.0
    %5935 = vmatpush1.msra.mxu0 0.0
    %5936 = vmatprep.subr.mxu0 0.0
    %5937 = vmatpush1.msra.mxu0 0.0
    %5938 = vmatprep.subr.mxu0 0.0
    %5939 = vmatpush1.msra.mxu0 0.0
    %5940 = vmatprep.subr.mxu0 0.0
    %5941 = vmatpush1.msra.mxu0 0.0
    %5942 = vmatprep.subr.mxu0 0.0
    %5943 = vmatpush1.msra.mxu0 0.0
    %5944 = vmatprep.subr.mxu0 0.0
    %5945 = vmatpush1.msra.mxu0 0.0
    %5946 = vmatprep.subr.mxu0 0.0
    %5947 = vmatpush1.msra.mxu0 0.0
    %5948 = vmatprep.subr.mxu0 0.0
    %5949 = vmatpush1.msra.mxu0 0.0
    %5950 = vmatprep.subr.mxu0 0.0
    %5951 = vmatpush1.msra.mxu0 0.0
    %5952 = vmatprep.subr.mxu0 0.0
    %5953 = vmatpush1.msra.mxu0 0.0
    %5954 = vmatprep.subr.mxu0 0.0
    %5955 = vmatpush1.msra.mxu0 0.0
    %5956 = vmatprep.subr.mxu0 0.0
    %5957 = vmatpush1.msra.mxu0 0.0
    %5958 = vmatprep.subr.mxu0 0.0
    %5959 = vmatpush1.msra.mxu0 0.0
    %5960 = vmatprep.subr.mxu0 0.0
    %5961 = vmatpush1.msra.mxu0 0.0
    %5962 = vmatprep.mubr.f32.mxu0 0.0
    %5963 = vmatmul.mubr.f32.gmra.mrb[0].mxu0 %v5890
    %v5964 = vpop.f32.mrb[0].mxu0
    %v5965 = vadd.f32 %v5896, %v5964
    %v5966 = vpop.f32.mrb[0].mxu0
    %5967 = vmatprep.mubr.f32.mxu0 0.0
    %5968 = vmatmul.mubr.f32.gmra.mrb[0].mxu0 %v5891
    %v5969 = vpop.f32.mrb[0].mxu0
    %v5970 = vadd.f32 %v5896, %v5969
    %v5971 = vpop.f32.mrb[0].mxu0
    %5972 = vdwg.mxu0
    %v5974 = vlaneseq
    %v5975 = vshrl.u32 %v5974, 7
    %v5976 = vsub.s32 0, %v5975
    %v5977 = vrot.slane %v4117, %v5976
    %v5978 = vlaneseq
    %v5979 = vshrl.u32 %v5978, 7
    %v5980 = vsub.s32 1, %v5979
    %v5981 = vrot.slane %v4117, %v5980
    %5984 = vmatprep.subr.mxu0 %v4085
    %5985 = vmatpush1.msra.mxu0 %v4084
    %5986 = vmatprep.subr.mxu0 %v4087
    %5987 = vmatpush1.msra.mxu0 %v4086
    %5988 = vmatprep.subr.mxu0 %v4089
    %5989 = vmatpush1.msra.mxu0 %v4088
    %5990 = vmatprep.subr.mxu0 %v4091
    %5991 = vmatpush1.msra.mxu0 %v4090
    %5992 = vmatprep.subr.mxu0 %v4093
    %5993 = vmatpush1.msra.mxu0 %v4092
    %5994 = vmatprep.subr.mxu0 %v4095
    %5995 = vmatpush1.msra.mxu0 %v4094
    %5996 = vmatprep.subr.mxu0 %v4097
    %5997 = vmatpush1.msra.mxu0 %v4096
    %5998 = vmatprep.subr.mxu0 %v4099
    %5999 = vmatpush1.msra.mxu0 %v4098
    %6000 = vmatprep.subr.mxu0 %v4101
    %6001 = vmatpush1.msra.mxu0 %v4100
    %6002 = vmatprep.subr.mxu0 %v4103
    %6003 = vmatpush1.msra.mxu0 %v4102
    %6004 = vmatprep.subr.mxu0 %v4105
    %6005 = vmatpush1.msra.mxu0 %v4104
    %6006 = vmatprep.subr.mxu0 %v4107
    %6007 = vmatpush1.msra.mxu0 %v4106
    %6008 = vmatprep.subr.mxu0 %v4109
    %6009 = vmatpush1.msra.mxu0 %v4108
    %6010 = vmatprep.subr.mxu0 %v4111
    %6011 = vmatpush1.msra.mxu0 %v4110
    %6012 = vmatprep.subr.mxu0 %v4113
    %6013 = vmatpush1.msra.mxu0 %v4112
    %6014 = vmatprep.subr.mxu0 %v4115
    %6015 = vmatpush1.msra.mxu0 %v4114
    %6016 = vmatprep.subr.mxu0 0.0
    %6017 = vmatpush1.msra.mxu0 0.0
    %6018 = vmatprep.subr.mxu0 0.0
    %6019 = vmatpush1.msra.mxu0 0.0
    %6020 = vmatprep.subr.mxu0 0.0
    %6021 = vmatpush1.msra.mxu0 0.0
    %6022 = vmatprep.subr.mxu0 0.0
    %6023 = vmatpush1.msra.mxu0 0.0
    %6024 = vmatprep.subr.mxu0 0.0
    %6025 = vmatpush1.msra.mxu0 0.0
    %6026 = vmatprep.subr.mxu0 0.0
    %6027 = vmatpush1.msra.mxu0 0.0
    %6028 = vmatprep.subr.mxu0 0.0
    %6029 = vmatpush1.msra.mxu0 0.0
    %6030 = vmatprep.subr.mxu0 0.0
    %6031 = vmatpush1.msra.mxu0 0.0
    %6032 = vmatprep.subr.mxu0 0.0
    %6033 = vmatpush1.msra.mxu0 0.0
    %6034 = vmatprep.subr.mxu0 0.0
    %6035 = vmatpush1.msra.mxu0 0.0
    %6036 = vmatprep.subr.mxu0 0.0
    %6037 = vmatpush1.msra.mxu0 0.0
    %6038 = vmatprep.subr.mxu0 0.0
    %6039 = vmatpush1.msra.mxu0 0.0
    %6040 = vmatprep.subr.mxu0 0.0
    %6041 = vmatpush1.msra.mxu0 0.0
    %6042 = vmatprep.subr.mxu0 0.0
    %6043 = vmatpush1.msra.mxu0 0.0
    %6044 = vmatprep.subr.mxu0 0.0
    %6045 = vmatpush1.msra.mxu0 0.0
    %6046 = vmatprep.subr.mxu0 0.0
    %6047 = vmatpush1.msra.mxu0 0.0
    %6048 = vmatprep.mubr.f32.mxu0 0.0
    %6049 = vmatmul.mubr.f32.gmra.mrb[0].mxu0 %v248
    %v6050 = vpop.f32.mrb[0].mxu0
    %v6051 = vadd.f32 %v5977, %v6050
    %v6052 = vpop.f32.mrb[0].mxu0
    %v6053 = vadd.f32 %v5981, %v6052
    %6054 = vmatprep.mubr.f32.mxu0 0.0
    %6055 = vmatmul.mubr.f32.gmra.mrb[0].mxu0 %v249
    %v6056 = vpop.f32.mrb[0].mxu0
    %v6057 = vadd.f32 %v5977, %v6056
    %v6058 = vpop.f32.mrb[0].mxu0
    %v6059 = vadd.f32 %v5981, %v6058
    %6060 = vdwg.mxu0
    %6063 = vrot.lane.b32.xlu0 %v5965, 96
    %v6064 = vpop.permute.xlu0 %6063
    %6065 = vrot.lane.b32.xlu0 %v5970, 96
    %v6066 = vpop.permute.xlu0 %6065
    %6067 = vrot.lane.b32.xlu0 %v5965, 64
    %v6068 = vpop.permute.xlu0 %6067
    %6069 = vrot.lane.b32.xlu0 %v5970, 64
    %v6070 = vpop.permute.xlu0 %6069
    %6071 = vrot.lane.b32.xlu0 %v5965, 32
    %v6072 = vpop.permute.xlu0 %6071
    %6073 = vrot.lane.b32.xlu0 %v5970, 32
    %v6074 = vpop.permute.xlu0 %6073
    %6077 = vrot.lane.b32.xlu0 %v6051, 96
    %v6078 = vpop.permute.xlu0 %6077
    %6079 = vrot.lane.b32.xlu0 %v6057, 96
    %v6080 = vpop.permute.xlu0 %6079
    %6081 = vrot.lane.b32.xlu0 %v6051, 64
    %v6082 = vpop.permute.xlu0 %6081
    %6083 = vrot.lane.b32.xlu0 %v6057, 64
    %v6084 = vpop.permute.xlu0 %6083
    %6085 = vrot.lane.b32.xlu0 %v6051, 32
    %v6086 = vpop.permute.xlu0 %6085
    %6087 = vrot.lane.b32.xlu0 %v6057, 32
    %v6088 = vpop.permute.xlu0 %6087
    %6091 = vrot.lane.b32.xlu0 %v6053, 96
    %v6092 = vpop.permute.xlu0 %6091
    %6093 = vrot.lane.b32.xlu0 %v6059, 96
    %v6094 = vpop.permute.xlu0 %6093
    %6097 = vrot.lane.b32.xlu0 %v6053, 64
    %v6098 = vpop.permute.xlu0 %6097
    %6099 = vrot.lane.b32.xlu0 %v6059, 64
    %v6100 = vpop.permute.xlu0 %6099
    %6103 = vrot.lane.b32.xlu0 %v6053, 32
    %v6104 = vpop.permute.xlu0 %6103
    %6105 = vrot.lane.b32.xlu0 %v6059, 32
    %v6106 = vpop.permute.xlu0 %6105
    %v6109 = vsel %vm726, %v5965, 0
    %v6111 = vsel %vm726, %v6051, 0
    %6113 = vmatprep.subr.mxu0 0.0
    %6114 = vmatpush1.xpose.msra.mxu0 %v6111
    %6115 = vmatprep.subr.mxu0 0.0
    %6116 = vmatpush1.xpose.msra.mxu0 0.0
    %6117 = vmatprep.subr.mxu0 0.0
    %6118 = vmatpush1.xpose.msra.mxu0 0.0
    %6119 = vmatprep.subr.mxu0 0.0
    %6120 = vmatpush1.xpose.msra.mxu0 0.0
    %6121 = vmatprep.subr.mxu0 0.0
    %6122 = vmatpush1.xpose.msra.mxu0 0.0
    %6123 = vmatprep.subr.mxu0 0.0
    %6124 = vmatpush1.xpose.msra.mxu0 0.0
    %6125 = vmatprep.subr.mxu0 0.0
    %6126 = vmatpush1.xpose.msra.mxu0 0.0
    %6127 = vmatprep.subr.mxu0 0.0
    %6128 = vmatpush1.xpose.msra.mxu0 0.0
    %6129 = vmatprep.subr.mxu0 0.0
    %6130 = vmatpush1.xpose.msra.mxu0 0.0
    %6131 = vmatprep.subr.mxu0 0.0
    %6132 = vmatpush1.xpose.msra.mxu0 0.0
    %6133 = vmatprep.subr.mxu0 0.0
    %6134 = vmatpush1.xpose.msra.mxu0 0.0
    %6135 = vmatprep.subr.mxu0 0.0
    %6136 = vmatpush1.xpose.msra.mxu0 0.0
    %6137 = vmatprep.subr.mxu0 0.0
    %6138 = vmatpush1.xpose.msra.mxu0 0.0
    %6139 = vmatprep.subr.mxu0 0.0
    %6140 = vmatpush1.xpose.msra.mxu0 0.0
    %6141 = vmatprep.subr.mxu0 0.0
    %6142 = vmatpush1.xpose.msra.mxu0 0.0
    %6143 = vmatprep.subr.mxu0 0.0
    %6144 = vmatpush1.xpose.msra.mxu0 0.0
    %6145 = vmatprep.subr.mxu0 0.0
    %6146 = vmatpush1.xpose.msra.mxu0 0.0
    %6147 = vmatprep.subr.mxu0 0.0
    %6148 = vmatpush1.xpose.msra.mxu0 0.0
    %6149 = vmatprep.subr.mxu0 0.0
    %6150 = vmatpush1.xpose.msra.mxu0 0.0
    %6151 = vmatprep.subr.mxu0 0.0
    %6152 = vmatpush1.xpose.msra.mxu0 0.0
    %6153 = vmatprep.subr.mxu0 0.0
    %6154 = vmatpush1.xpose.msra.mxu0 0.0
    %6155 = vmatprep.subr.mxu0 0.0
    %6156 = vmatpush1.xpose.msra.mxu0 0.0
    %6157 = vmatprep.subr.mxu0 0.0
    %6158 = vmatpush1.xpose.msra.mxu0 0.0
    %6159 = vmatprep.subr.mxu0 0.0
    %6160 = vmatpush1.xpose.msra.mxu0 0.0
    %6161 = vmatprep.subr.mxu0 0.0
    %6162 = vmatpush1.xpose.msra.mxu0 0.0
    %6163 = vmatprep.subr.mxu0 0.0
    %6164 = vmatpush1.xpose.msra.mxu0 0.0
    %6165 = vmatprep.subr.mxu0 0.0
    %6166 = vmatpush1.xpose.msra.mxu0 0.0
    %6167 = vmatprep.subr.mxu0 0.0
    %6168 = vmatpush1.xpose.msra.mxu0 0.0
    %6169 = vmatprep.subr.mxu0 0.0
    %6170 = vmatpush1.xpose.msra.mxu0 0.0
    %6171 = vmatprep.subr.mxu0 0.0
    %6172 = vmatpush1.xpose.msra.mxu0 0.0
    %6173 = vmatprep.subr.mxu0 0.0
    %6174 = vmatpush1.xpose.msra.mxu0 0.0
    %6175 = vmatprep.subr.mxu0 0.0
    %6176 = vmatpush1.xpose.msra.mxu0 0.0
    %6177 = vmatprep.mubr.f32.mxu0 0.0
    %6178 = vmatmul.mubr.f32.gmra.mrb[0].mxu0 %v6109
    %v6179 = vpop.f32.mrb[0].mxu0
    %v6180 = vadd.f32 0.0, %v6179
    %v6181 = vpop.f32.mrb[0].mxu0
    %6182 = vdwg.mxu0
    %v6183 = vsel %vm726, %v5970, 0
    %v6185 = vsel %vm726, %v6057, 0
    %6187 = vmatprep.subr.mxu0 0.0
    %6188 = vmatpush1.xpose.msra.mxu0 %v6185
    %6189 = vmatprep.subr.mxu0 0.0
    %6190 = vmatpush1.xpose.msra.mxu0 0.0
    %6191 = vmatprep.subr.mxu0 0.0
    %6192 = vmatpush1.xpose.msra.mxu0 0.0
    %6193 = vmatprep.subr.mxu0 0.0
    %6194 = vmatpush1.xpose.msra.mxu0 0.0
    %6195 = vmatprep.subr.mxu0 0.0
    %6196 = vmatpush1.xpose.msra.mxu0 0.0
    %6197 = vmatprep.subr.mxu0 0.0
    %6198 = vmatpush1.xpose.msra.mxu0 0.0
    %6199 = vmatprep.subr.mxu0 0.0
    %6200 = vmatpush1.xpose.msra.mxu0 0.0
    %6201 = vmatprep.subr.mxu0 0.0
    %6202 = vmatpush1.xpose.msra.mxu0 0.0
    %6203 = vmatprep.subr.mxu0 0.0
    %6204 = vmatpush1.xpose.msra.mxu0 0.0
    %6205 = vmatprep.subr.mxu0 0.0
    %6206 = vmatpush1.xpose.msra.mxu0 0.0
    %6207 = vmatprep.subr.mxu0 0.0
    %6208 = vmatpush1.xpose.msra.mxu0 0.0
    %6209 = vmatprep.subr.mxu0 0.0
    %6210 = vmatpush1.xpose.msra.mxu0 0.0
    %6211 = vmatprep.subr.mxu0 0.0
    %6212 = vmatpush1.xpose.msra.mxu0 0.0
    %6213 = vmatprep.subr.mxu0 0.0
    %6214 = vmatpush1.xpose.msra.mxu0 0.0
    %6215 = vmatprep.subr.mxu0 0.0
    %6216 = vmatpush1.xpose.msra.mxu0 0.0
    %6217 = vmatprep.subr.mxu0 0.0
    %6218 = vmatpush1.xpose.msra.mxu0 0.0
    %6219 = vmatprep.subr.mxu0 0.0
    %6220 = vmatpush1.xpose.msra.mxu0 0.0
    %6221 = vmatprep.subr.mxu0 0.0
    %6222 = vmatpush1.xpose.msra.mxu0 0.0
    %6223 = vmatprep.subr.mxu0 0.0
    %6224 = vmatpush1.xpose.msra.mxu0 0.0
    %6225 = vmatprep.subr.mxu0 0.0
    %6226 = vmatpush1.xpose.msra.mxu0 0.0
    %6227 = vmatprep.subr.mxu0 0.0
    %6228 = vmatpush1.xpose.msra.mxu0 0.0
    %6229 = vmatprep.subr.mxu0 0.0
    %6230 = vmatpush1.xpose.msra.mxu0 0.0
    %6231 = vmatprep.subr.mxu0 0.0
    %6232 = vmatpush1.xpose.msra.mxu0 0.0
    %6233 = vmatprep.subr.mxu0 0.0
    %6234 = vmatpush1.xpose.msra.mxu0 0.0
    %6235 = vmatprep.subr.mxu0 0.0
    %6236 = vmatpush1.xpose.msra.mxu0 0.0
    %6237 = vmatprep.subr.mxu0 0.0
    %6238 = vmatpush1.xpose.msra.mxu0 0.0
    %6239 = vmatprep.subr.mxu0 0.0
    %6240 = vmatpush1.xpose.msra.mxu0 0.0
    %6241 = vmatprep.subr.mxu0 0.0
    %6242 = vmatpush1.xpose.msra.mxu0 0.0
    %6243 = vmatprep.subr.mxu0 0.0
    %6244 = vmatpush1.xpose.msra.mxu0 0.0
    %6245 = vmatprep.subr.mxu0 0.0
    %6246 = vmatpush1.xpose.msra.mxu0 0.0
    %6247 = vmatprep.subr.mxu0 0.0
    %6248 = vmatpush1.xpose.msra.mxu0 0.0
    %6249 = vmatprep.subr.mxu0 0.0
    %6250 = vmatpush1.xpose.msra.mxu0 0.0
    %6251 = vmatprep.mubr.f32.mxu0 0.0
    %6252 = vmatmul.mubr.f32.gmra.mrb[0].mxu0 %v6183
    %v6253 = vpop.f32.mrb[0].mxu0
    %v6254 = vadd.f32 0.0, %v6253
    %v6255 = vpop.f32.mrb[0].mxu0
    %6256 = vdwg.mxu0
    %v6257 = vsel %vm726, %v6064, 0
    %v6259 = vsel %vm726, %v6078, 0
    %6261 = vmatprep.subr.mxu0 0.0
    %6262 = vmatpush1.xpose.msra.mxu0 %v6259
    %6263 = vmatprep.subr.mxu0 0.0
    %6264 = vmatpush1.xpose.msra.mxu0 0.0
    %6265 = vmatprep.subr.mxu0 0.0
    %6266 = vmatpush1.xpose.msra.mxu0 0.0
    %6267 = vmatprep.subr.mxu0 0.0
    %6268 = vmatpush1.xpose.msra.mxu0 0.0
    %6269 = vmatprep.subr.mxu0 0.0
    %6270 = vmatpush1.xpose.msra.mxu0 0.0
    %6271 = vmatprep.subr.mxu0 0.0
    %6272 = vmatpush1.xpose.msra.mxu0 0.0
    %6273 = vmatprep.subr.mxu0 0.0
    %6274 = vmatpush1.xpose.msra.mxu0 0.0
    %6275 = vmatprep.subr.mxu0 0.0
    %6276 = vmatpush1.xpose.msra.mxu0 0.0
    %6277 = vmatprep.subr.mxu0 0.0
    %6278 = vmatpush1.xpose.msra.mxu0 0.0
    %6279 = vmatprep.subr.mxu0 0.0
    %6280 = vmatpush1.xpose.msra.mxu0 0.0
    %6281 = vmatprep.subr.mxu0 0.0
    %6282 = vmatpush1.xpose.msra.mxu0 0.0
    %6283 = vmatprep.subr.mxu0 0.0
    %6284 = vmatpush1.xpose.msra.mxu0 0.0
    %6285 = vmatprep.subr.mxu0 0.0
    %6286 = vmatpush1.xpose.msra.mxu0 0.0
    %6287 = vmatprep.subr.mxu0 0.0
    %6288 = vmatpush1.xpose.msra.mxu0 0.0
    %6289 = vmatprep.subr.mxu0 0.0
    %6290 = vmatpush1.xpose.msra.mxu0 0.0
    %6291 = vmatprep.subr.mxu0 0.0
    %6292 = vmatpush1.xpose.msra.mxu0 0.0
    %6293 = vmatprep.subr.mxu0 0.0
    %6294 = vmatpush1.xpose.msra.mxu0 0.0
    %6295 = vmatprep.subr.mxu0 0.0
    %6296 = vmatpush1.xpose.msra.mxu0 0.0
    %6297 = vmatprep.subr.mxu0 0.0
    %6298 = vmatpush1.xpose.msra.mxu0 0.0
    %6299 = vmatprep.subr.mxu0 0.0
    %6300 = vmatpush1.xpose.msra.mxu0 0.0
    %6301 = vmatprep.subr.mxu0 0.0
    %6302 = vmatpush1.xpose.msra.mxu0 0.0
    %6303 = vmatprep.subr.mxu0 0.0
    %6304 = vmatpush1.xpose.msra.mxu0 0.0
    %6305 = vmatprep.subr.mxu0 0.0
    %6306 = vmatpush1.xpose.msra.mxu0 0.0
    %6307 = vmatprep.subr.mxu0 0.0
    %6308 = vmatpush1.xpose.msra.mxu0 0.0
    %6309 = vmatprep.subr.mxu0 0.0
    %6310 = vmatpush1.xpose.msra.mxu0 0.0
    %6311 = vmatprep.subr.mxu0 0.0
    %6312 = vmatpush1.xpose.msra.mxu0 0.0
    %6313 = vmatprep.subr.mxu0 0.0
    %6314 = vmatpush1.xpose.msra.mxu0 0.0
    %6315 = vmatprep.subr.mxu0 0.0
    %6316 = vmatpush1.xpose.msra.mxu0 0.0
    %6317 = vmatprep.subr.mxu0 0.0
    %6318 = vmatpush1.xpose.msra.mxu0 0.0
    %6319 = vmatprep.subr.mxu0 0.0
    %6320 = vmatpush1.xpose.msra.mxu0 0.0
    %6321 = vmatprep.subr.mxu0 0.0
    %6322 = vmatpush1.xpose.msra.mxu0 0.0
    %6323 = vmatprep.subr.mxu0 0.0
    %6324 = vmatpush1.xpose.msra.mxu0 0.0
    %6325 = vmatprep.mubr.f32.mxu0 0.0
    %6326 = vmatmul.mubr.f32.gmra.mrb[0].mxu0 %v6257
    %v6327 = vpop.f32.mrb[0].mxu0
    %v6328 = vadd.f32 0.0, %v6327
    %v6329 = vpop.f32.mrb[0].mxu0
    %6330 = vdwg.mxu0
    %v6331 = vsel %vm726, %v6066, 0
    %v6333 = vsel %vm726, %v6080, 0
    %6335 = vmatprep.subr.mxu0 0.0
    %6336 = vmatpush1.xpose.msra.mxu0 %v6333
    %6337 = vmatprep.subr.mxu0 0.0
    %6338 = vmatpush1.xpose.msra.mxu0 0.0
    %6339 = vmatprep.subr.mxu0 0.0
    %6340 = vmatpush1.xpose.msra.mxu0 0.0
    %6341 = vmatprep.subr.mxu0 0.0
    %6342 = vmatpush1.xpose.msra.mxu0 0.0
    %6343 = vmatprep.subr.mxu0 0.0
    %6344 = vmatpush1.xpose.msra.mxu0 0.0
    %6345 = vmatprep.subr.mxu0 0.0
    %6346 = vmatpush1.xpose.msra.mxu0 0.0
    %6347 = vmatprep.subr.mxu0 0.0
    %6348 = vmatpush1.xpose.msra.mxu0 0.0
    %6349 = vmatprep.subr.mxu0 0.0
    %6350 = vmatpush1.xpose.msra.mxu0 0.0
    %6351 = vmatprep.subr.mxu0 0.0
    %6352 = vmatpush1.xpose.msra.mxu0 0.0
    %6353 = vmatprep.subr.mxu0 0.0
    %6354 = vmatpush1.xpose.msra.mxu0 0.0
    %6355 = vmatprep.subr.mxu0 0.0
    %6356 = vmatpush1.xpose.msra.mxu0 0.0
    %6357 = vmatprep.subr.mxu0 0.0
    %6358 = vmatpush1.xpose.msra.mxu0 0.0
    %6359 = vmatprep.subr.mxu0 0.0
    %6360 = vmatpush1.xpose.msra.mxu0 0.0
    %6361 = vmatprep.subr.mxu0 0.0
    %6362 = vmatpush1.xpose.msra.mxu0 0.0
    %6363 = vmatprep.subr.mxu0 0.0
    %6364 = vmatpush1.xpose.msra.mxu0 0.0
    %6365 = vmatprep.subr.mxu0 0.0
    %6366 = vmatpush1.xpose.msra.mxu0 0.0
    %6367 = vmatprep.subr.mxu0 0.0
    %6368 = vmatpush1.xpose.msra.mxu0 0.0
    %6369 = vmatprep.subr.mxu0 0.0
    %6370 = vmatpush1.xpose.msra.mxu0 0.0
    %6371 = vmatprep.subr.mxu0 0.0
    %6372 = vmatpush1.xpose.msra.mxu0 0.0
    %6373 = vmatprep.subr.mxu0 0.0
    %6374 = vmatpush1.xpose.msra.mxu0 0.0
    %6375 = vmatprep.subr.mxu0 0.0
    %6376 = vmatpush1.xpose.msra.mxu0 0.0
    %6377 = vmatprep.subr.mxu0 0.0
    %6378 = vmatpush1.xpose.msra.mxu0 0.0
    %6379 = vmatprep.subr.mxu0 0.0
    %6380 = vmatpush1.xpose.msra.mxu0 0.0
    %6381 = vmatprep.subr.mxu0 0.0
    %6382 = vmatpush1.xpose.msra.mxu0 0.0
    %6383 = vmatprep.subr.mxu0 0.0
    %6384 = vmatpush1.xpose.msra.mxu0 0.0
    %6385 = vmatprep.subr.mxu0 0.0
    %6386 = vmatpush1.xpose.msra.mxu0 0.0
    %6387 = vmatprep.subr.mxu0 0.0
    %6388 = vmatpush1.xpose.msra.mxu0 0.0
    %6389 = vmatprep.subr.mxu0 0.0
    %6390 = vmatpush1.xpose.msra.mxu0 0.0
    %6391 = vmatprep.subr.mxu0 0.0
    %6392 = vmatpush1.xpose.msra.mxu0 0.0
    %6393 = vmatprep.subr.mxu0 0.0
    %6394 = vmatpush1.xpose.msra.mxu0 0.0
    %6395 = vmatprep.subr.mxu0 0.0
    %6396 = vmatpush1.xpose.msra.mxu0 0.0
    %6397 = vmatprep.subr.mxu0 0.0
    %6398 = vmatpush1.xpose.msra.mxu0 0.0
    %6399 = vmatprep.mubr.f32.mxu0 0.0
    %6400 = vmatmul.mubr.f32.gmra.mrb[0].mxu0 %v6331
    %v6401 = vpop.f32.mrb[0].mxu0
    %v6402 = vadd.f32 0.0, %v6401
    %v6403 = vpop.f32.mrb[0].mxu0
    %6404 = vdwg.mxu0
    %v6405 = vsel %vm726, %v6068, 0
    %v6407 = vsel %vm726, %v6082, 0
    %6409 = vmatprep.subr.mxu0 0.0
    %6410 = vmatpush1.xpose.msra.mxu0 %v6407
    %6411 = vmatprep.subr.mxu0 0.0
    %6412 = vmatpush1.xpose.msra.mxu0 0.0
    %6413 = vmatprep.subr.mxu0 0.0
    %6414 = vmatpush1.xpose.msra.mxu0 0.0
    %6415 = vmatprep.subr.mxu0 0.0
    %6416 = vmatpush1.xpose.msra.mxu0 0.0
    %6417 = vmatprep.subr.mxu0 0.0
    %6418 = vmatpush1.xpose.msra.mxu0 0.0
    %6419 = vmatprep.subr.mxu0 0.0
    %6420 = vmatpush1.xpose.msra.mxu0 0.0
    %6421 = vmatprep.subr.mxu0 0.0
    %6422 = vmatpush1.xpose.msra.mxu0 0.0
    %6423 = vmatprep.subr.mxu0 0.0
    %6424 = vmatpush1.xpose.msra.mxu0 0.0
    %6425 = vmatprep.subr.mxu0 0.0
    %6426 = vmatpush1.xpose.msra.mxu0 0.0
    %6427 = vmatprep.subr.mxu0 0.0
    %6428 = vmatpush1.xpose.msra.mxu0 0.0
    %6429 = vmatprep.subr.mxu0 0.0
    %6430 = vmatpush1.xpose.msra.mxu0 0.0
    %6431 = vmatprep.subr.mxu0 0.0
    %6432 = vmatpush1.xpose.msra.mxu0 0.0
    %6433 = vmatprep.subr.mxu0 0.0
    %6434 = vmatpush1.xpose.msra.mxu0 0.0
    %6435 = vmatprep.subr.mxu0 0.0
    %6436 = vmatpush1.xpose.msra.mxu0 0.0
    %6437 = vmatprep.subr.mxu0 0.0
    %6438 = vmatpush1.xpose.msra.mxu0 0.0
    %6439 = vmatprep.subr.mxu0 0.0
    %6440 = vmatpush1.xpose.msra.mxu0 0.0
    %6441 = vmatprep.subr.mxu0 0.0
    %6442 = vmatpush1.xpose.msra.mxu0 0.0
    %6443 = vmatprep.subr.mxu0 0.0
    %6444 = vmatpush1.xpose.msra.mxu0 0.0
    %6445 = vmatprep.subr.mxu0 0.0
    %6446 = vmatpush1.xpose.msra.mxu0 0.0
    %6447 = vmatprep.subr.mxu0 0.0
    %6448 = vmatpush1.xpose.msra.mxu0 0.0
    %6449 = vmatprep.subr.mxu0 0.0
    %6450 = vmatpush1.xpose.msra.mxu0 0.0
    %6451 = vmatprep.subr.mxu0 0.0
    %6452 = vmatpush1.xpose.msra.mxu0 0.0
    %6453 = vmatprep.subr.mxu0 0.0
    %6454 = vmatpush1.xpose.msra.mxu0 0.0
    %6455 = vmatprep.subr.mxu0 0.0
    %6456 = vmatpush1.xpose.msra.mxu0 0.0
    %6457 = vmatprep.subr.mxu0 0.0
    %6458 = vmatpush1.xpose.msra.mxu0 0.0
    %6459 = vmatprep.subr.mxu0 0.0
    %6460 = vmatpush1.xpose.msra.mxu0 0.0
    %6461 = vmatprep.subr.mxu0 0.0
    %6462 = vmatpush1.xpose.msra.mxu0 0.0
    %6463 = vmatprep.subr.mxu0 0.0
    %6464 = vmatpush1.xpose.msra.mxu0 0.0
    %6465 = vmatprep.subr.mxu0 0.0
    %6466 = vmatpush1.xpose.msra.mxu0 0.0
    %6467 = vmatprep.subr.mxu0 0.0
    %6468 = vmatpush1.xpose.msra.mxu0 0.0
    %6469 = vmatprep.subr.mxu0 0.0
    %6470 = vmatpush1.xpose.msra.mxu0 0.0
    %6471 = vmatprep.subr.mxu0 0.0
    %6472 = vmatpush1.xpose.msra.mxu0 0.0
    %6473 = vmatprep.mubr.f32.mxu0 0.0
    %6474 = vmatmul.mubr.f32.gmra.mrb[0].mxu0 %v6405
    %v6475 = vpop.f32.mrb[0].mxu0
    %v6476 = vadd.f32 0.0, %v6475
    %v6477 = vpop.f32.mrb[0].mxu0
    %6478 = vdwg.mxu0
    %v6479 = vsel %vm726, %v6070, 0
    %v6481 = vsel %vm726, %v6084, 0
    %6483 = vmatprep.subr.mxu0 0.0
    %6484 = vmatpush1.xpose.msra.mxu0 %v6481
    %6485 = vmatprep.subr.mxu0 0.0
    %6486 = vmatpush1.xpose.msra.mxu0 0.0
    %6487 = vmatprep.subr.mxu0 0.0
    %6488 = vmatpush1.xpose.msra.mxu0 0.0
    %6489 = vmatprep.subr.mxu0 0.0
    %6490 = vmatpush1.xpose.msra.mxu0 0.0
    %6491 = vmatprep.subr.mxu0 0.0
    %6492 = vmatpush1.xpose.msra.mxu0 0.0
    %6493 = vmatprep.subr.mxu0 0.0
    %6494 = vmatpush1.xpose.msra.mxu0 0.0
    %6495 = vmatprep.subr.mxu0 0.0
    %6496 = vmatpush1.xpose.msra.mxu0 0.0
    %6497 = vmatprep.subr.mxu0 0.0
    %6498 = vmatpush1.xpose.msra.mxu0 0.0
    %6499 = vmatprep.subr.mxu0 0.0
    %6500 = vmatpush1.xpose.msra.mxu0 0.0
    %6501 = vmatprep.subr.mxu0 0.0
    %6502 = vmatpush1.xpose.msra.mxu0 0.0
    %6503 = vmatprep.subr.mxu0 0.0
    %6504 = vmatpush1.xpose.msra.mxu0 0.0
    %6505 = vmatprep.subr.mxu0 0.0
    %6506 = vmatpush1.xpose.msra.mxu0 0.0
    %6507 = vmatprep.subr.mxu0 0.0
    %6508 = vmatpush1.xpose.msra.mxu0 0.0
    %6509 = vmatprep.subr.mxu0 0.0
    %6510 = vmatpush1.xpose.msra.mxu0 0.0
    %6511 = vmatprep.subr.mxu0 0.0
    %6512 = vmatpush1.xpose.msra.mxu0 0.0
    %6513 = vmatprep.subr.mxu0 0.0
    %6514 = vmatpush1.xpose.msra.mxu0 0.0
    %6515 = vmatprep.subr.mxu0 0.0
    %6516 = vmatpush1.xpose.msra.mxu0 0.0
    %6517 = vmatprep.subr.mxu0 0.0
    %6518 = vmatpush1.xpose.msra.mxu0 0.0
    %6519 = vmatprep.subr.mxu0 0.0
    %6520 = vmatpush1.xpose.msra.mxu0 0.0
    %6521 = vmatprep.subr.mxu0 0.0
    %6522 = vmatpush1.xpose.msra.mxu0 0.0
    %6523 = vmatprep.subr.mxu0 0.0
    %6524 = vmatpush1.xpose.msra.mxu0 0.0
    %6525 = vmatprep.subr.mxu0 0.0
    %6526 = vmatpush1.xpose.msra.mxu0 0.0
    %6527 = vmatprep.subr.mxu0 0.0
    %6528 = vmatpush1.xpose.msra.mxu0 0.0
    %6529 = vmatprep.subr.mxu0 0.0
    %6530 = vmatpush1.xpose.msra.mxu0 0.0
    %6531 = vmatprep.subr.mxu0 0.0
    %6532 = vmatpush1.xpose.msra.mxu0 0.0
    %6533 = vmatprep.subr.mxu0 0.0
    %6534 = vmatpush1.xpose.msra.mxu0 0.0
    %6535 = vmatprep.subr.mxu0 0.0
    %6536 = vmatpush1.xpose.msra.mxu0 0.0
    %6537 = vmatprep.subr.mxu0 0.0
    %6538 = vmatpush1.xpose.msra.mxu0 0.0
    %6539 = vmatprep.subr.mxu0 0.0
    %6540 = vmatpush1.xpose.msra.mxu0 0.0
    %6541 = vmatprep.subr.mxu0 0.0
    %6542 = vmatpush1.xpose.msra.mxu0 0.0
    %6543 = vmatprep.subr.mxu0 0.0
    %6544 = vmatpush1.xpose.msra.mxu0 0.0
    %6545 = vmatprep.subr.mxu0 0.0
    %6546 = vmatpush1.xpose.msra.mxu0 0.0
    %6547 = vmatprep.mubr.f32.mxu0 0.0
    %6548 = vmatmul.mubr.f32.gmra.mrb[0].mxu0 %v6479
    %v6549 = vpop.f32.mrb[0].mxu0
    %v6550 = vadd.f32 0.0, %v6549
    %v6551 = vpop.f32.mrb[0].mxu0
    %6552 = vdwg.mxu0
    %v6553 = vsel %vm726, %v6072, 0
    %v6555 = vsel %vm726, %v6086, 0
    %6557 = vmatprep.subr.mxu0 0.0
    %6558 = vmatpush1.xpose.msra.mxu0 %v6555
    %6559 = vmatprep.subr.mxu0 0.0
    %6560 = vmatpush1.xpose.msra.mxu0 0.0
    %6561 = vmatprep.subr.mxu0 0.0
    %6562 = vmatpush1.xpose.msra.mxu0 0.0
    %6563 = vmatprep.subr.mxu0 0.0
    %6564 = vmatpush1.xpose.msra.mxu0 0.0
    %6565 = vmatprep.subr.mxu0 0.0
    %6566 = vmatpush1.xpose.msra.mxu0 0.0
    %6567 = vmatprep.subr.mxu0 0.0
    %6568 = vmatpush1.xpose.msra.mxu0 0.0
    %6569 = vmatprep.subr.mxu0 0.0
    %6570 = vmatpush1.xpose.msra.mxu0 0.0
    %6571 = vmatprep.subr.mxu0 0.0
    %6572 = vmatpush1.xpose.msra.mxu0 0.0
    %6573 = vmatprep.subr.mxu0 0.0
    %6574 = vmatpush1.xpose.msra.mxu0 0.0
    %6575 = vmatprep.subr.mxu0 0.0
    %6576 = vmatpush1.xpose.msra.mxu0 0.0
    %6577 = vmatprep.subr.mxu0 0.0
    %6578 = vmatpush1.xpose.msra.mxu0 0.0
    %6579 = vmatprep.subr.mxu0 0.0
    %6580 = vmatpush1.xpose.msra.mxu0 0.0
    %6581 = vmatprep.subr.mxu0 0.0
    %6582 = vmatpush1.xpose.msra.mxu0 0.0
    %6583 = vmatprep.subr.mxu0 0.0
    %6584 = vmatpush1.xpose.msra.mxu0 0.0
    %6585 = vmatprep.subr.mxu0 0.0
    %6586 = vmatpush1.xpose.msra.mxu0 0.0
    %6587 = vmatprep.subr.mxu0 0.0
    %6588 = vmatpush1.xpose.msra.mxu0 0.0
    %6589 = vmatprep.subr.mxu0 0.0
    %6590 = vmatpush1.xpose.msra.mxu0 0.0
    %6591 = vmatprep.subr.mxu0 0.0
    %6592 = vmatpush1.xpose.msra.mxu0 0.0
    %6593 = vmatprep.subr.mxu0 0.0
    %6594 = vmatpush1.xpose.msra.mxu0 0.0
    %6595 = vmatprep.subr.mxu0 0.0
    %6596 = vmatpush1.xpose.msra.mxu0 0.0
    %6597 = vmatprep.subr.mxu0 0.0
    %6598 = vmatpush1.xpose.msra.mxu0 0.0
    %6599 = vmatprep.subr.mxu0 0.0
    %6600 = vmatpush1.xpose.msra.mxu0 0.0
    %6601 = vmatprep.subr.mxu0 0.0
    %6602 = vmatpush1.xpose.msra.mxu0 0.0
    %6603 = vmatprep.subr.mxu0 0.0
    %6604 = vmatpush1.xpose.msra.mxu0 0.0
    %6605 = vmatprep.subr.mxu0 0.0
    %6606 = vmatpush1.xpose.msra.mxu0 0.0
    %6607 = vmatprep.subr.mxu0 0.0
    %6608 = vmatpush1.xpose.msra.mxu0 0.0
    %6609 = vmatprep.subr.mxu0 0.0
    %6610 = vmatpush1.xpose.msra.mxu0 0.0
    %6611 = vmatprep.subr.mxu0 0.0
    %6612 = vmatpush1.xpose.msra.mxu0 0.0
    %6613 = vmatprep.subr.mxu0 0.0
    %6614 = vmatpush1.xpose.msra.mxu0 0.0
    %6615 = vmatprep.subr.mxu0 0.0
    %6616 = vmatpush1.xpose.msra.mxu0 0.0
    %6617 = vmatprep.subr.mxu0 0.0
    %6618 = vmatpush1.xpose.msra.mxu0 0.0
    %6619 = vmatprep.subr.mxu0 0.0
    %6620 = vmatpush1.xpose.msra.mxu0 0.0
    %6621 = vmatprep.mubr.f32.mxu0 0.0
    %6622 = vmatmul.mubr.f32.gmra.mrb[0].mxu0 %v6553
    %v6623 = vpop.f32.mrb[0].mxu0
    %v6624 = vadd.f32 0.0, %v6623
    %v6625 = vpop.f32.mrb[0].mxu0
    %6626 = vdwg.mxu0
    %v6627 = vsel %vm726, %v6074, 0
    %v6629 = vsel %vm726, %v6088, 0
    %6631 = vmatprep.subr.mxu0 0.0
    %6632 = vmatpush1.xpose.msra.mxu0 %v6629
    %6633 = vmatprep.subr.mxu0 0.0
    %6634 = vmatpush1.xpose.msra.mxu0 0.0
    %6635 = vmatprep.subr.mxu0 0.0
    %6636 = vmatpush1.xpose.msra.mxu0 0.0
    %6637 = vmatprep.subr.mxu0 0.0
    %6638 = vmatpush1.xpose.msra.mxu0 0.0
    %6639 = vmatprep.subr.mxu0 0.0
    %6640 = vmatpush1.xpose.msra.mxu0 0.0
    %6641 = vmatprep.subr.mxu0 0.0
    %6642 = vmatpush1.xpose.msra.mxu0 0.0
    %6643 = vmatprep.subr.mxu0 0.0
    %6644 = vmatpush1.xpose.msra.mxu0 0.0
    %6645 = vmatprep.subr.mxu0 0.0
    %6646 = vmatpush1.xpose.msra.mxu0 0.0
    %6647 = vmatprep.subr.mxu0 0.0
    %6648 = vmatpush1.xpose.msra.mxu0 0.0
    %6649 = vmatprep.subr.mxu0 0.0
    %6650 = vmatpush1.xpose.msra.mxu0 0.0
    %6651 = vmatprep.subr.mxu0 0.0
    %6652 = vmatpush1.xpose.msra.mxu0 0.0
    %6653 = vmatprep.subr.mxu0 0.0
    %6654 = vmatpush1.xpose.msra.mxu0 0.0
    %6655 = vmatprep.subr.mxu0 0.0
    %6656 = vmatpush1.xpose.msra.mxu0 0.0
    %6657 = vmatprep.subr.mxu0 0.0
    %6658 = vmatpush1.xpose.msra.mxu0 0.0
    %6659 = vmatprep.subr.mxu0 0.0
    %6660 = vmatpush1.xpose.msra.mxu0 0.0
    %6661 = vmatprep.subr.mxu0 0.0
    %6662 = vmatpush1.xpose.msra.mxu0 0.0
    %6663 = vmatprep.subr.mxu0 0.0
    %6664 = vmatpush1.xpose.msra.mxu0 0.0
    %6665 = vmatprep.subr.mxu0 0.0
    %6666 = vmatpush1.xpose.msra.mxu0 0.0
    %6667 = vmatprep.subr.mxu0 0.0
    %6668 = vmatpush1.xpose.msra.mxu0 0.0
    %6669 = vmatprep.subr.mxu0 0.0
    %6670 = vmatpush1.xpose.msra.mxu0 0.0
    %6671 = vmatprep.subr.mxu0 0.0
    %6672 = vmatpush1.xpose.msra.mxu0 0.0
    %6673 = vmatprep.subr.mxu0 0.0
    %6674 = vmatpush1.xpose.msra.mxu0 0.0
    %6675 = vmatprep.subr.mxu0 0.0
    %6676 = vmatpush1.xpose.msra.mxu0 0.0
    %6677 = vmatprep.subr.mxu0 0.0
    %6678 = vmatpush1.xpose.msra.mxu0 0.0
    %6679 = vmatprep.subr.mxu0 0.0
    %6680 = vmatpush1.xpose.msra.mxu0 0.0
    %6681 = vmatprep.subr.mxu0 0.0
    %6682 = vmatpush1.xpose.msra.mxu0 0.0
    %6683 = vmatprep.subr.mxu0 0.0
    %6684 = vmatpush1.xpose.msra.mxu0 0.0
    %6685 = vmatprep.subr.mxu0 0.0
    %6686 = vmatpush1.xpose.msra.mxu0 0.0
    %6687 = vmatprep.subr.mxu0 0.0
    %6688 = vmatpush1.xpose.msra.mxu0 0.0
    %6689 = vmatprep.subr.mxu0 0.0
    %6690 = vmatpush1.xpose.msra.mxu0 0.0
    %6691 = vmatprep.subr.mxu0 0.0
    %6692 = vmatpush1.xpose.msra.mxu0 0.0
    %6693 = vmatprep.subr.mxu0 0.0
    %6694 = vmatpush1.xpose.msra.mxu0 0.0
    %6695 = vmatprep.mubr.f32.mxu0 0.0
    %6696 = vmatmul.mubr.f32.gmra.mrb[0].mxu0 %v6627
    %v6697 = vpop.f32.mrb[0].mxu0
    %v6698 = vadd.f32 0.0, %v6697
    %v6699 = vpop.f32.mrb[0].mxu0
    %6700 = vdwg.mxu0
    %v6701 = vmul.f32 %v6180, 0.17677669
    %v6702 = vmul.f32 %v6254, 0.17677669
    %v6703 = vmul.f32 %v6328, 0.17677669
    %v6704 = vmul.f32 %v6402, 0.17677669
    %v6705 = vmul.f32 %v6476, 0.17677669
    %v6706 = vmul.f32 %v6550, 0.17677669
    %v6707 = vmul.f32 %v6624, 0.17677669
    %v6708 = vmul.f32 %v6698, 0.17677669
    %v6709 = vadd.f32 %v6701, %v250
    %v6710 = vadd.f32 %v6702, %v251
    %v6711 = vadd.f32 %v6703, %v252
    %v6712 = vadd.f32 %v6704, %v253
    %v6713 = vadd.f32 %v6705, %v254
    %v6714 = vadd.f32 %v6706, %v255
    %v6715 = vadd.f32 %v6707, %v256
    %v6716 = vadd.f32 %v6708, %v257
    %v6717 = vsel %vm1335, %v6709, -inf
    %6718 = vmax.xlane.f32.xlu0 %v6717
    %v6719 = vpop.xlane.xlu0 %6718
    %v6720 = vsel %vm1335, %v6710, -inf
    %6721 = vmax.xlane.f32.xlu0 %v6720
    %v6722 = vpop.xlane.xlu0 %6721
    %v6723 = vsel %vm1335, %v6711, -inf
    %6724 = vmax.xlane.f32.xlu0 %v6723
    %v6725 = vpop.xlane.xlu0 %6724
    %v6726 = vsel %vm1335, %v6712, -inf
    %6727 = vmax.xlane.f32.xlu0 %v6726
    %v6728 = vpop.xlane.xlu0 %6727
    %v6729 = vsel %vm1335, %v6713, -inf
    %6730 = vmax.xlane.f32.xlu0 %v6729
    %v6731 = vpop.xlane.xlu0 %6730
    %v6732 = vsel %vm1335, %v6714, -inf
    %6733 = vmax.xlane.f32.xlu0 %v6732
    %v6734 = vpop.xlane.xlu0 %6733
    %v6735 = vsel %vm1335, %v6715, -inf
    %6736 = vmax.xlane.f32.xlu0 %v6735
    %v6737 = vpop.xlane.xlu0 %6736
    %v6738 = vsel %vm1335, %v6716, -inf
    %6739 = vmax.xlane.f32.xlu0 %v6738
    %v6740 = vpop.xlane.xlu0 %6739
    %v6741 = vsub.f32 %v6709, %v6719
    %v6742 = vsub.f32 %v6710, %v6722
    %v6743 = vsub.f32 %v6711, %v6725
    %v6744 = vsub.f32 %v6712, %v6728
    %v6745 = vsub.f32 %v6713, %v6731
    %v6746 = vsub.f32 %v6714, %v6734
    %v6747 = vsub.f32 %v6715, %v6737
    %v6748 = vsub.f32 %v6716, %v6740
    %v6749 = vmul.f32 %v6741, 1.442695
    %v6750 = vpow.pop %v6749
    %v6751 = vmul.f32 %v6742, 1.442695
    %v6752 = vpow.pop %v6751
    %v6753 = vmul.f32 %v6743, 1.442695
    %v6754 = vpow.pop %v6753
    %v6755 = vmul.f32 %v6744, 1.442695
    %v6756 = vpow.pop %v6755
    %v6757 = vmul.f32 %v6745, 1.442695
    %v6758 = vpow.pop %v6757
    %v6759 = vmul.f32 %v6746, 1.442695
    %v6760 = vpow.pop %v6759
    %v6761 = vmul.f32 %v6747, 1.442695
    %v6762 = vpow.pop %v6761
    %v6763 = vmul.f32 %v6748, 1.442695
    %v6764 = vpow.pop %v6763
    %v6765 = vsel %vm1335, %v6750, 0.0
    %6766 = vadd.xlane.f32.xlu0 %v6765
    %v6767 = vpop.xlane.xlu0 %6766
    %v6768 = vsel %vm1335, %v6752, 0.0
    %6769 = vadd.xlane.f32.xlu0 %v6768
    %v6770 = vpop.xlane.xlu0 %6769
    %v6771 = vsel %vm1335, %v6754, 0.0
    %6772 = vadd.xlane.f32.xlu0 %v6771
    %v6773 = vpop.xlane.xlu0 %6772
    %v6774 = vsel %vm1335, %v6756, 0.0
    %6775 = vadd.xlane.f32.xlu0 %v6774
    %v6776 = vpop.xlane.xlu0 %6775
    %v6777 = vsel %vm1335, %v6758, 0.0
    %6778 = vadd.xlane.f32.xlu0 %v6777
    %v6779 = vpop.xlane.xlu0 %6778
    %v6780 = vsel %vm1335, %v6760, 0.0
    %6781 = vadd.xlane.f32.xlu0 %v6780
    %v6782 = vpop.xlane.xlu0 %6781
    %v6783 = vsel %vm1335, %v6762, 0.0
    %6784 = vadd.xlane.f32.xlu0 %v6783
    %v6785 = vpop.xlane.xlu0 %6784
    %v6786 = vsel %vm1335, %v6764, 0.0
    %6787 = vadd.xlane.f32.xlu0 %v6786
    %v6788 = vpop.xlane.xlu0 %6787
    %v6789 = vrcp.pop %v6767
    %v6790 = vrcp.pop %v6770
    %v6791 = vrcp.pop %v6773
    %v6792 = vrcp.pop %v6776
    %v6793 = vrcp.pop %v6779
    %v6794 = vrcp.pop %v6782
    %v6795 = vrcp.pop %v6785
    %v6796 = vrcp.pop %v6788
    %v6797 = vmul.f32 %v6750, %v6789
    %v6798 = vmul.f32 %v6752, %v6790
    %v6799 = vmul.f32 %v6754, %v6791
    %v6800 = vmul.f32 %v6756, %v6792
    %v6801 = vmul.f32 %v6758, %v6793
    %v6802 = vmul.f32 %v6760, %v6794
    %v6803 = vmul.f32 %v6762, %v6795
    %v6804 = vmul.f32 %v6764, %v6796
    %v6806 = vsel %vm1335, %v6797, 0
    %6808 = vmatprep.subr.mxu0 0.0
    %6809 = vmatpush1.msra.mxu0 %v6053
    %6810 = vmatprep.subr.mxu0 0.0
    %6811 = vmatpush1.msra.mxu0 0.0
    %6812 = vmatprep.subr.mxu0 0.0
    %6813 = vmatpush1.msra.mxu0 0.0
    %6814 = vmatprep.subr.mxu0 0.0
    %6815 = vmatpush1.msra.mxu0 0.0
    %6816 = vmatprep.subr.mxu0 0.0
    %6817 = vmatpush1.msra.mxu0 0.0
    %6818 = vmatprep.subr.mxu0 0.0
    %6819 = vmatpush1.msra.mxu0 0.0
    %6820 = vmatprep.subr.mxu0 0.0
    %6821 = vmatpush1.msra.mxu0 0.0
    %6822 = vmatprep.subr.mxu0 0.0
    %6823 = vmatpush1.msra.mxu0 0.0
    %6824 = vmatprep.subr.mxu0 0.0
    %6825 = vmatpush1.msra.mxu0 0.0
    %6826 = vmatprep.subr.mxu0 0.0
    %6827 = vmatpush1.msra.mxu0 0.0
    %6828 = vmatprep.subr.mxu0 0.0
    %6829 = vmatpush1.msra.mxu0 0.0
    %6830 = vmatprep.subr.mxu0 0.0
    %6831 = vmatpush1.msra.mxu0 0.0
    %6832 = vmatprep.subr.mxu0 0.0
    %6833 = vmatpush1.msra.mxu0 0.0
    %6834 = vmatprep.subr.mxu0 0.0
    %6835 = vmatpush1.msra.mxu0 0.0
    %6836 = vmatprep.subr.mxu0 0.0
    %6837 = vmatpush1.msra.mxu0 0.0
    %6838 = vmatprep.subr.mxu0 0.0
    %6839 = vmatpush1.msra.mxu0 0.0
    %6840 = vmatprep.subr.mxu0 0.0
    %6841 = vmatpush1.msra.mxu0 0.0
    %6842 = vmatprep.subr.mxu0 0.0
    %6843 = vmatpush1.msra.mxu0 0.0
    %6844 = vmatprep.subr.mxu0 0.0
    %6845 = vmatpush1.msra.mxu0 0.0
    %6846 = vmatprep.subr.mxu0 0.0
    %6847 = vmatpush1.msra.mxu0 0.0
    %6848 = vmatprep.subr.mxu0 0.0
    %6849 = vmatpush1.msra.mxu0 0.0
    %6850 = vmatprep.subr.mxu0 0.0
    %6851 = vmatpush1.msra.mxu0 0.0
    %6852 = vmatprep.subr.mxu0 0.0
    %6853 = vmatpush1.msra.mxu0 0.0
    %6854 = vmatprep.subr.mxu0 0.0
    %6855 = vmatpush1.msra.mxu0 0.0
    %6856 = vmatprep.subr.mxu0 0.0
    %6857 = vmatpush1.msra.mxu0 0.0
    %6858 = vmatprep.subr.mxu0 0.0
    %6859 = vmatpush1.msra.mxu0 0.0
    %6860 = vmatprep.subr.mxu0 0.0
    %6861 = vmatpush1.msra.mxu0 0.0
    %6862 = vmatprep.subr.mxu0 0.0
    %6863 = vmatpush1.msra.mxu0 0.0
    %6864 = vmatprep.subr.mxu0 0.0
    %6865 = vmatpush1.msra.mxu0 0.0
    %6866 = vmatprep.subr.mxu0 0.0
    %6867 = vmatpush1.msra.mxu0 0.0
    %6868 = vmatprep.subr.mxu0 0.0
    %6869 = vmatpush1.msra.mxu0 0.0
    %6870 = vmatprep.subr.mxu0 0.0
    %6871 = vmatpush1.msra.mxu0 0.0
    %6872 = vmatprep.mubr.f32.mxu0 0.0
    %6873 = vmatmul.mubr.f32.gmra.mrb[0].mxu0 %v6806
    %v6874 = vpop.f32.mrb[0].mxu0
    %v6875 = vadd.f32 0.0, %v6874
    %v6876 = vpop.f32.mrb[0].mxu0
    %6877 = vdwg.mxu0
    %v6879 = vsel %vm1335, %v6798, 0
    %6881 = vmatprep.subr.mxu0 0.0
    %6882 = vmatpush1.msra.mxu0 %v6059
    %6883 = vmatprep.subr.mxu0 0.0
    %6884 = vmatpush1.msra.mxu0 0.0
    %6885 = vmatprep.subr.mxu0 0.0
    %6886 = vmatpush1.msra.mxu0 0.0
    %6887 = vmatprep.subr.mxu0 0.0
    %6888 = vmatpush1.msra.mxu0 0.0
    %6889 = vmatprep.subr.mxu0 0.0
    %6890 = vmatpush1.msra.mxu0 0.0
    %6891 = vmatprep.subr.mxu0 0.0
    %6892 = vmatpush1.msra.mxu0 0.0
    %6893 = vmatprep.subr.mxu0 0.0
    %6894 = vmatpush1.msra.mxu0 0.0
    %6895 = vmatprep.subr.mxu0 0.0
    %6896 = vmatpush1.msra.mxu0 0.0
    %6897 = vmatprep.subr.mxu0 0.0
    %6898 = vmatpush1.msra.mxu0 0.0
    %6899 = vmatprep.subr.mxu0 0.0
    %6900 = vmatpush1.msra.mxu0 0.0
    %6901 = vmatprep.subr.mxu0 0.0
    %6902 = vmatpush1.msra.mxu0 0.0
    %6903 = vmatprep.subr.mxu0 0.0
    %6904 = vmatpush1.msra.mxu0 0.0
    %6905 = vmatprep.subr.mxu0 0.0
    %6906 = vmatpush1.msra.mxu0 0.0
    %6907 = vmatprep.subr.mxu0 0.0
    %6908 = vmatpush1.msra.mxu0 0.0
    %6909 = vmatprep.subr.mxu0 0.0
    %6910 = vmatpush1.msra.mxu0 0.0
    %6911 = vmatprep.subr.mxu0 0.0
    %6912 = vmatpush1.msra.mxu0 0.0
    %6913 = vmatprep.subr.mxu0 0.0
    %6914 = vmatpush1.msra.mxu0 0.0
    %6915 = vmatprep.subr.mxu0 0.0
    %6916 = vmatpush1.msra.mxu0 0.0
    %6917 = vmatprep.subr.mxu0 0.0
    %6918 = vmatpush1.msra.mxu0 0.0
    %6919 = vmatprep.subr.mxu0 0.0
    %6920 = vmatpush1.msra.mxu0 0.0
    %6921 = vmatprep.subr.mxu0 0.0
    %6922 = vmatpush1.msra.mxu0 0.0
    %6923 = vmatprep.subr.mxu0 0.0
    %6924 = vmatpush1.msra.mxu0 0.0
    %6925 = vmatprep.subr.mxu0 0.0
    %6926 = vmatpush1.msra.mxu0 0.0
    %6927 = vmatprep.subr.mxu0 0.0
    %6928 = vmatpush1.msra.mxu0 0.0
    %6929 = vmatprep.subr.mxu0 0.0
    %6930 = vmatpush1.msra.mxu0 0.0
    %6931 = vmatprep.subr.mxu0 0.0
    %6932 = vmatpush1.msra.mxu0 0.0
    %6933 = vmatprep.subr.mxu0 0.0
    %6934 = vmatpush1.msra.mxu0 0.0
    %6935 = vmatprep.subr.mxu0 0.0
    %6936 = vmatpush1.msra.mxu0 0.0
    %6937 = vmatprep.subr.mxu0 0.0
    %6938 = vmatpush1.msra.mxu0 0.0
    %6939 = vmatprep.subr.mxu0 0.0
    %6940 = vmatpush1.msra.mxu0 0.0
    %6941 = vmatprep.subr.mxu0 0.0
    %6942 = vmatpush1.msra.mxu0 0.0
    %6943 = vmatprep.subr.mxu0 0.0
    %6944 = vmatpush1.msra.mxu0 0.0
    %6945 = vmatprep.mubr.f32.mxu0 0.0
    %6946 = vmatmul.mubr.f32.gmra.mrb[0].mxu0 %v6879
    %v6947 = vpop.f32.mrb[0].mxu0
    %v6948 = vadd.f32 0.0, %v6947
    %v6949 = vpop.f32.mrb[0].mxu0
    %6950 = vdwg.mxu0
    %v6952 = vsel %vm1335, %v6799, 0
    %6954 = vmatprep.subr.mxu0 0.0
    %6955 = vmatpush1.msra.mxu0 %v6092
    %6956 = vmatprep.subr.mxu0 0.0
    %6957 = vmatpush1.msra.mxu0 0.0
    %6958 = vmatprep.subr.mxu0 0.0
    %6959 = vmatpush1.msra.mxu0 0.0
    %6960 = vmatprep.subr.mxu0 0.0
    %6961 = vmatpush1.msra.mxu0 0.0
    %6962 = vmatprep.subr.mxu0 0.0
    %6963 = vmatpush1.msra.mxu0 0.0
    %6964 = vmatprep.subr.mxu0 0.0
    %6965 = vmatpush1.msra.mxu0 0.0
    %6966 = vmatprep.subr.mxu0 0.0
    %6967 = vmatpush1.msra.mxu0 0.0
    %6968 = vmatprep.subr.mxu0 0.0
    %6969 = vmatpush1.msra.mxu0 0.0
    %6970 = vmatprep.subr.mxu0 0.0
    %6971 = vmatpush1.msra.mxu0 0.0
    %6972 = vmatprep.subr.mxu0 0.0
    %6973 = vmatpush1.msra.mxu0 0.0
    %6974 = vmatprep.subr.mxu0 0.0
    %6975 = vmatpush1.msra.mxu0 0.0
    %6976 = vmatprep.subr.mxu0 0.0
    %6977 = vmatpush1.msra.mxu0 0.0
    %6978 = vmatprep.subr.mxu0 0.0
    %6979 = vmatpush1.msra.mxu0 0.0
    %6980 = vmatprep.subr.mxu0 0.0
    %6981 = vmatpush1.msra.mxu0 0.0
    %6982 = vmatprep.subr.mxu0 0.0
    %6983 = vmatpush1.msra.mxu0 0.0
    %6984 = vmatprep.subr.mxu0 0.0
    %6985 = vmatpush1.msra.mxu0 0.0
    %6986 = vmatprep.subr.mxu0 0.0
    %6987 = vmatpush1.msra.mxu0 0.0
    %6988 = vmatprep.subr.mxu0 0.0
    %6989 = vmatpush1.msra.mxu0 0.0
    %6990 = vmatprep.subr.mxu0 0.0
    %6991 = vmatpush1.msra.mxu0 0.0
    %6992 = vmatprep.subr.mxu0 0.0
    %6993 = vmatpush1.msra.mxu0 0.0
    %6994 = vmatprep.subr.mxu0 0.0
    %6995 = vmatpush1.msra.mxu0 0.0
    %6996 = vmatprep.subr.mxu0 0.0
    %6997 = vmatpush1.msra.mxu0 0.0
    %6998 = vmatprep.subr.mxu0 0.0
    %6999 = vmatpush1.msra.mxu0 0.0
    %7000 = vmatprep.subr.mxu0 0.0
    %7001 = vmatpush1.msra.mxu0 0.0
    %7002 = vmatprep.subr.mxu0 0.0
    %7003 = vmatpush1.msra.mxu0 0.0
    %7004 = vmatprep.subr.mxu0 0.0
    %7005 = vmatpush1.msra.mxu0 0.0
    %7006 = vmatprep.subr.mxu0 0.0
    %7007 = vmatpush1.msra.mxu0 0.0
    %7008 = vmatprep.subr.mxu0 0.0
    %7009 = vmatpush1.msra.mxu0 0.0
    %7010 = vmatprep.subr.mxu0 0.0
    %7011 = vmatpush1.msra.mxu0 0.0
    %7012 = vmatprep.subr.mxu0 0.0
    %7013 = vmatpush1.msra.mxu0 0.0
    %7014 = vmatprep.subr.mxu0 0.0
    %7015 = vmatpush1.msra.mxu0 0.0
    %7016 = vmatprep.subr.mxu0 0.0
    %7017 = vmatpush1.msra.mxu0 0.0
    %7018 = vmatprep.mubr.f32.mxu0 0.0
    %7019 = vmatmul.mubr.f32.gmra.mrb[0].mxu0 %v6952
    %v7020 = vpop.f32.mrb[0].mxu0
    %v7021 = vadd.f32 0.0, %v7020
    %v7022 = vpop.f32.mrb[0].mxu0
    %7023 = vdwg.mxu0
    %v7025 = vsel %vm1335, %v6800, 0
    %7027 = vmatprep.subr.mxu0 0.0
    %7028 = vmatpush1.msra.mxu0 %v6094
    %7029 = vmatprep.subr.mxu0 0.0
    %7030 = vmatpush1.msra.mxu0 0.0
    %7031 = vmatprep.subr.mxu0 0.0
    %7032 = vmatpush1.msra.mxu0 0.0
    %7033 = vmatprep.subr.mxu0 0.0
    %7034 = vmatpush1.msra.mxu0 0.0
    %7035 = vmatprep.subr.mxu0 0.0
    %7036 = vmatpush1.msra.mxu0 0.0
    %7037 = vmatprep.subr.mxu0 0.0
    %7038 = vmatpush1.msra.mxu0 0.0
    %7039 = vmatprep.subr.mxu0 0.0
    %7040 = vmatpush1.msra.mxu0 0.0
    %7041 = vmatprep.subr.mxu0 0.0
    %7042 = vmatpush1.msra.mxu0 0.0
    %7043 = vmatprep.subr.mxu0 0.0
    %7044 = vmatpush1.msra.mxu0 0.0
    %7045 = vmatprep.subr.mxu0 0.0
    %7046 = vmatpush1.msra.mxu0 0.0
    %7047 = vmatprep.subr.mxu0 0.0
    %7048 = vmatpush1.msra.mxu0 0.0
    %7049 = vmatprep.subr.mxu0 0.0
    %7050 = vmatpush1.msra.mxu0 0.0
    %7051 = vmatprep.subr.mxu0 0.0
    %7052 = vmatpush1.msra.mxu0 0.0
    %7053 = vmatprep.subr.mxu0 0.0
    %7054 = vmatpush1.msra.mxu0 0.0
    %7055 = vmatprep.subr.mxu0 0.0
    %7056 = vmatpush1.msra.mxu0 0.0
    %7057 = vmatprep.subr.mxu0 0.0
    %7058 = vmatpush1.msra.mxu0 0.0
    %7059 = vmatprep.subr.mxu0 0.0
    %7060 = vmatpush1.msra.mxu0 0.0
    %7061 = vmatprep.subr.mxu0 0.0
    %7062 = vmatpush1.msra.mxu0 0.0
    %7063 = vmatprep.subr.mxu0 0.0
    %7064 = vmatpush1.msra.mxu0 0.0
    %7065 = vmatprep.subr.mxu0 0.0
    %7066 = vmatpush1.msra.mxu0 0.0
    %7067 = vmatprep.subr.mxu0 0.0
    %7068 = vmatpush1.msra.mxu0 0.0
    %7069 = vmatprep.subr.mxu0 0.0
    %7070 = vmatpush1.msra.mxu0 0.0
    %7071 = vmatprep.subr.mxu0 0.0
    %7072 = vmatpush1.msra.mxu0 0.0
    %7073 = vmatprep.subr.mxu0 0.0
    %7074 = vmatpush1.msra.mxu0 0.0
    %7075 = vmatprep.subr.mxu0 0.0
    %7076 = vmatpush1.msra.mxu0 0.0
    %7077 = vmatprep.subr.mxu0 0.0
    %7078 = vmatpush1.msra.mxu0 0.0
    %7079 = vmatprep.subr.mxu0 0.0
    %7080 = vmatpush1.msra.mxu0 0.0
    %7081 = vmatprep.subr.mxu0 0.0
    %7082 = vmatpush1.msra.mxu0 0.0
    %7083 = vmatprep.subr.mxu0 0.0
    %7084 = vmatpush1.msra.mxu0 0.0
    %7085 = vmatprep.subr.mxu0 0.0
    %7086 = vmatpush1.msra.mxu0 0.0
    %7087 = vmatprep.subr.mxu0 0.0
    %7088 = vmatpush1.msra.mxu0 0.0
    %7089 = vmatprep.subr.mxu0 0.0
    %7090 = vmatpush1.msra.mxu0 0.0
    %7091 = vmatprep.mubr.f32.mxu0 0.0
    %7092 = vmatmul.mubr.f32.gmra.mrb[0].mxu0 %v7025
    %v7093 = vpop.f32.mrb[0].mxu0
    %v7094 = vadd.f32 0.0, %v7093
    %v7095 = vpop.f32.mrb[0].mxu0
    %7096 = vdwg.mxu0
    %v7098 = vsel %vm1335, %v6801, 0
    %7100 = vmatprep.subr.mxu0 0.0
    %7101 = vmatpush1.msra.mxu0 %v6098
    %7102 = vmatprep.subr.mxu0 0.0
    %7103 = vmatpush1.msra.mxu0 0.0
    %7104 = vmatprep.subr.mxu0 0.0
    %7105 = vmatpush1.msra.mxu0 0.0
    %7106 = vmatprep.subr.mxu0 0.0
    %7107 = vmatpush1.msra.mxu0 0.0
    %7108 = vmatprep.subr.mxu0 0.0
    %7109 = vmatpush1.msra.mxu0 0.0
    %7110 = vmatprep.subr.mxu0 0.0
    %7111 = vmatpush1.msra.mxu0 0.0
    %7112 = vmatprep.subr.mxu0 0.0
    %7113 = vmatpush1.msra.mxu0 0.0
    %7114 = vmatprep.subr.mxu0 0.0
    %7115 = vmatpush1.msra.mxu0 0.0
    %7116 = vmatprep.subr.mxu0 0.0
    %7117 = vmatpush1.msra.mxu0 0.0
    %7118 = vmatprep.subr.mxu0 0.0
    %7119 = vmatpush1.msra.mxu0 0.0
    %7120 = vmatprep.subr.mxu0 0.0
    %7121 = vmatpush1.msra.mxu0 0.0
    %7122 = vmatprep.subr.mxu0 0.0
    %7123 = vmatpush1.msra.mxu0 0.0
    %7124 = vmatprep.subr.mxu0 0.0
    %7125 = vmatpush1.msra.mxu0 0.0
    %7126 = vmatprep.subr.mxu0 0.0
    %7127 = vmatpush1.msra.mxu0 0.0
    %7128 = vmatprep.subr.mxu0 0.0
    %7129 = vmatpush1.msra.mxu0 0.0
    %7130 = vmatprep.subr.mxu0 0.0
    %7131 = vmatpush1.msra.mxu0 0.0
    %7132 = vmatprep.subr.mxu0 0.0
    %7133 = vmatpush1.msra.mxu0 0.0
    %7134 = vmatprep.subr.mxu0 0.0
    %7135 = vmatpush1.msra.mxu0 0.0
    %7136 = vmatprep.subr.mxu0 0.0
    %7137 = vmatpush1.msra.mxu0 0.0
    %7138 = vmatprep.subr.mxu0 0.0
    %7139 = vmatpush1.msra.mxu0 0.0
    %7140 = vmatprep.subr.mxu0 0.0
    %7141 = vmatpush1.msra.mxu0 0.0
    %7142 = vmatprep.subr.mxu0 0.0
    %7143 = vmatpush1.msra.mxu0 0.0
    %7144 = vmatprep.subr.mxu0 0.0
    %7145 = vmatpush1.msra.mxu0 0.0
    %7146 = vmatprep.subr.mxu0 0.0
    %7147 = vmatpush1.msra.mxu0 0.0
    %7148 = vmatprep.subr.mxu0 0.0
    %7149 = vmatpush1.msra.mxu0 0.0
    %7150 = vmatprep.subr.mxu0 0.0
    %7151 = vmatpush1.msra.mxu0 0.0
    %7152 = vmatprep.subr.mxu0 0.0
    %7153 = vmatpush1.msra.mxu0 0.0
    %7154 = vmatprep.subr.mxu0 0.0
    %7155 = vmatpush1.msra.mxu0 0.0
    %7156 = vmatprep.subr.mxu0 0.0
    %7157 = vmatpush1.msra.mxu0 0.0
    %7158 = vmatprep.subr.mxu0 0.0
    %7159 = vmatpush1.msra.mxu0 0.0
    %7160 = vmatprep.subr.mxu0 0.0
    %7161 = vmatpush1.msra.mxu0 0.0
    %7162 = vmatprep.subr.mxu0 0.0
    %7163 = vmatpush1.msra.mxu0 0.0
    %7164 = vmatprep.mubr.f32.mxu0 0.0
    %7165 = vmatmul.mubr.f32.gmra.mrb[0].mxu0 %v7098
    %v7166 = vpop.f32.mrb[0].mxu0
    %v7167 = vadd.f32 0.0, %v7166
    %v7168 = vpop.f32.mrb[0].mxu0
    %7169 = vdwg.mxu0
    %v7171 = vsel %vm1335, %v6802, 0
    %7173 = vmatprep.subr.mxu0 0.0
    %7174 = vmatpush1.msra.mxu0 %v6100
    %7175 = vmatprep.subr.mxu0 0.0
    %7176 = vmatpush1.msra.mxu0 0.0
    %7177 = vmatprep.subr.mxu0 0.0
    %7178 = vmatpush1.msra.mxu0 0.0
    %7179 = vmatprep.subr.mxu0 0.0
    %7180 = vmatpush1.msra.mxu0 0.0
    %7181 = vmatprep.subr.mxu0 0.0
    %7182 = vmatpush1.msra.mxu0 0.0
    %7183 = vmatprep.subr.mxu0 0.0
    %7184 = vmatpush1.msra.mxu0 0.0
    %7185 = vmatprep.subr.mxu0 0.0
    %7186 = vmatpush1.msra.mxu0 0.0
    %7187 = vmatprep.subr.mxu0 0.0
    %7188 = vmatpush1.msra.mxu0 0.0
    %7189 = vmatprep.subr.mxu0 0.0
    %7190 = vmatpush1.msra.mxu0 0.0
    %7191 = vmatprep.subr.mxu0 0.0
    %7192 = vmatpush1.msra.mxu0 0.0
    %7193 = vmatprep.subr.mxu0 0.0
    %7194 = vmatpush1.msra.mxu0 0.0
    %7195 = vmatprep.subr.mxu0 0.0
    %7196 = vmatpush1.msra.mxu0 0.0
    %7197 = vmatprep.subr.mxu0 0.0
    %7198 = vmatpush1.msra.mxu0 0.0
    %7199 = vmatprep.subr.mxu0 0.0
    %7200 = vmatpush1.msra.mxu0 0.0
    %7201 = vmatprep.subr.mxu0 0.0
    %7202 = vmatpush1.msra.mxu0 0.0
    %7203 = vmatprep.subr.mxu0 0.0
    %7204 = vmatpush1.msra.mxu0 0.0
    %7205 = vmatprep.subr.mxu0 0.0
    %7206 = vmatpush1.msra.mxu0 0.0
    %7207 = vmatprep.subr.mxu0 0.0
    %7208 = vmatpush1.msra.mxu0 0.0
    %7209 = vmatprep.subr.mxu0 0.0
    %7210 = vmatpush1.msra.mxu0 0.0
    %7211 = vmatprep.subr.mxu0 0.0
    %7212 = vmatpush1.msra.mxu0 0.0
    %7213 = vmatprep.subr.mxu0 0.0
    %7214 = vmatpush1.msra.mxu0 0.0
    %7215 = vmatprep.subr.mxu0 0.0
    %7216 = vmatpush1.msra.mxu0 0.0
    %7217 = vmatprep.subr.mxu0 0.0
    %7218 = vmatpush1.msra.mxu0 0.0
    %7219 = vmatprep.subr.mxu0 0.0
    %7220 = vmatpush1.msra.mxu0 0.0
    %7221 = vmatprep.subr.mxu0 0.0
    %7222 = vmatpush1.msra.mxu0 0.0
    %7223 = vmatprep.subr.mxu0 0.0
    %7224 = vmatpush1.msra.mxu0 0.0
    %7225 = vmatprep.subr.mxu0 0.0
    %7226 = vmatpush1.msra.mxu0 0.0
    %7227 = vmatprep.subr.mxu0 0.0
    %7228 = vmatpush1.msra.mxu0 0.0
    %7229 = vmatprep.subr.mxu0 0.0
    %7230 = vmatpush1.msra.mxu0 0.0
    %7231 = vmatprep.subr.mxu0 0.0
    %7232 = vmatpush1.msra.mxu0 0.0
    %7233 = vmatprep.subr.mxu0 0.0
    %7234 = vmatpush1.msra.mxu0 0.0
    %7235 = vmatprep.subr.mxu0 0.0
    %7236 = vmatpush1.msra.mxu0 0.0
    %7237 = vmatprep.mubr.f32.mxu0 0.0
    %7238 = vmatmul.mubr.f32.gmra.mrb[0].mxu0 %v7171
    %v7239 = vpop.f32.mrb[0].mxu0
    %v7240 = vadd.f32 0.0, %v7239
    %v7241 = vpop.f32.mrb[0].mxu0
    %7242 = vdwg.mxu0
    %v7244 = vsel %vm1335, %v6803, 0
    %7246 = vmatprep.subr.mxu0 0.0
    %7247 = vmatpush1.msra.mxu0 %v6104
    %7248 = vmatprep.subr.mxu0 0.0
    %7249 = vmatpush1.msra.mxu0 0.0
    %7250 = vmatprep.subr.mxu0 0.0
    %7251 = vmatpush1.msra.mxu0 0.0
    %7252 = vmatprep.subr.mxu0 0.0
    %7253 = vmatpush1.msra.mxu0 0.0
    %7254 = vmatprep.subr.mxu0 0.0
    %7255 = vmatpush1.msra.mxu0 0.0
    %7256 = vmatprep.subr.mxu0 0.0
    %7257 = vmatpush1.msra.mxu0 0.0
    %7258 = vmatprep.subr.mxu0 0.0
    %7259 = vmatpush1.msra.mxu0 0.0
    %7260 = vmatprep.subr.mxu0 0.0
    %7261 = vmatpush1.msra.mxu0 0.0
    %7262 = vmatprep.subr.mxu0 0.0
    %7263 = vmatpush1.msra.mxu0 0.0
    %7264 = vmatprep.subr.mxu0 0.0
    %7265 = vmatpush1.msra.mxu0 0.0
    %7266 = vmatprep.subr.mxu0 0.0
    %7267 = vmatpush1.msra.mxu0 0.0
    %7268 = vmatprep.subr.mxu0 0.0
    %7269 = vmatpush1.msra.mxu0 0.0
    %7270 = vmatprep.subr.mxu0 0.0
    %7271 = vmatpush1.msra.mxu0 0.0
    %7272 = vmatprep.subr.mxu0 0.0
    %7273 = vmatpush1.msra.mxu0 0.0
    %7274 = vmatprep.subr.mxu0 0.0
    %7275 = vmatpush1.msra.mxu0 0.0
    %7276 = vmatprep.subr.mxu0 0.0
    %7277 = vmatpush1.msra.mxu0 0.0
    %7278 = vmatprep.subr.mxu0 0.0
    %7279 = vmatpush1.msra.mxu0 0.0
    %7280 = vmatprep.subr.mxu0 0.0
    %7281 = vmatpush1.msra.mxu0 0.0
    %7282 = vmatprep.subr.mxu0 0.0
    %7283 = vmatpush1.msra.mxu0 0.0
    %7284 = vmatprep.subr.mxu0 0.0
    %7285 = vmatpush1.msra.mxu0 0.0
    %7286 = vmatprep.subr.mxu0 0.0
    %7287 = vmatpush1.msra.mxu0 0.0
    %7288 = vmatprep.subr.mxu0 0.0
    %7289 = vmatpush1.msra.mxu0 0.0
    %7290 = vmatprep.subr.mxu0 0.0
    %7291 = vmatpush1.msra.mxu0 0.0
    %7292 = vmatprep.subr.mxu0 0.0
    %7293 = vmatpush1.msra.mxu0 0.0
    %7294 = vmatprep.subr.mxu0 0.0
    %7295 = vmatpush1.msra.mxu0 0.0
    %7296 = vmatprep.subr.mxu0 0.0
    %7297 = vmatpush1.msra.mxu0 0.0
    %7298 = vmatprep.subr.mxu0 0.0
    %7299 = vmatpush1.msra.mxu0 0.0
    %7300 = vmatprep.subr.mxu0 0.0
    %7301 = vmatpush1.msra.mxu0 0.0
    %7302 = vmatprep.subr.mxu0 0.0
    %7303 = vmatpush1.msra.mxu0 0.0
    %7304 = vmatprep.subr.mxu0 0.0
    %7305 = vmatpush1.msra.mxu0 0.0
    %7306 = vmatprep.subr.mxu0 0.0
    %7307 = vmatpush1.msra.mxu0 0.0
    %7308 = vmatprep.subr.mxu0 0.0
    %7309 = vmatpush1.msra.mxu0 0.0
    %7310 = vmatprep.mubr.f32.mxu0 0.0
    %7311 = vmatmul.mubr.f32.gmra.mrb[0].mxu0 %v7244
    %v7312 = vpop.f32.mrb[0].mxu0
    %v7313 = vadd.f32 0.0, %v7312
    %v7314 = vpop.f32.mrb[0].mxu0
    %7315 = vdwg.mxu0
    %v7317 = vsel %vm1335, %v6804, 0
    %7319 = vmatprep.subr.mxu0 0.0
    %7320 = vmatpush1.msra.mxu0 %v6106
    %7321 = vmatprep.subr.mxu0 0.0
    %7322 = vmatpush1.msra.mxu0 0.0
    %7323 = vmatprep.subr.mxu0 0.0
    %7324 = vmatpush1.msra.mxu0 0.0
    %7325 = vmatprep.subr.mxu0 0.0
    %7326 = vmatpush1.msra.mxu0 0.0
    %7327 = vmatprep.subr.mxu0 0.0
    %7328 = vmatpush1.msra.mxu0 0.0
    %7329 = vmatprep.subr.mxu0 0.0
    %7330 = vmatpush1.msra.mxu0 0.0
    %7331 = vmatprep.subr.mxu0 0.0
    %7332 = vmatpush1.msra.mxu0 0.0
    %7333 = vmatprep.subr.mxu0 0.0
    %7334 = vmatpush1.msra.mxu0 0.0
    %7335 = vmatprep.subr.mxu0 0.0
    %7336 = vmatpush1.msra.mxu0 0.0
    %7337 = vmatprep.subr.mxu0 0.0
    %7338 = vmatpush1.msra.mxu0 0.0
    %7339 = vmatprep.subr.mxu0 0.0
    %7340 = vmatpush1.msra.mxu0 0.0
    %7341 = vmatprep.subr.mxu0 0.0
    %7342 = vmatpush1.msra.mxu0 0.0
    %7343 = vmatprep.subr.mxu0 0.0
    %7344 = vmatpush1.msra.mxu0 0.0
    %7345 = vmatprep.subr.mxu0 0.0
    %7346 = vmatpush1.msra.mxu0 0.0
    %7347 = vmatprep.subr.mxu0 0.0
    %7348 = vmatpush1.msra.mxu0 0.0
    %7349 = vmatprep.subr.mxu0 0.0
    %7350 = vmatpush1.msra.mxu0 0.0
    %7351 = vmatprep.subr.mxu0 0.0
    %7352 = vmatpush1.msra.mxu0 0.0
    %7353 = vmatprep.subr.mxu0 0.0
    %7354 = vmatpush1.msra.mxu0 0.0
    %7355 = vmatprep.subr.mxu0 0.0
    %7356 = vmatpush1.msra.mxu0 0.0
    %7357 = vmatprep.subr.mxu0 0.0
    %7358 = vmatpush1.msra.mxu0 0.0
    %7359 = vmatprep.subr.mxu0 0.0
    %7360 = vmatpush1.msra.mxu0 0.0
    %7361 = vmatprep.subr.mxu0 0.0
    %7362 = vmatpush1.msra.mxu0 0.0
    %7363 = vmatprep.subr.mxu0 0.0
    %7364 = vmatpush1.msra.mxu0 0.0
    %7365 = vmatprep.subr.mxu0 0.0
    %7366 = vmatpush1.msra.mxu0 0.0
    %7367 = vmatprep.subr.mxu0 0.0
    %7368 = vmatpush1.msra.mxu0 0.0
    %7369 = vmatprep.subr.mxu0 0.0
    %7370 = vmatpush1.msra.mxu0 0.0
    %7371 = vmatprep.subr.mxu0 0.0
    %7372 = vmatpush1.msra.mxu0 0.0
    %7373 = vmatprep.subr.mxu0 0.0
    %7374 = vmatpush1.msra.mxu0 0.0
    %7375 = vmatprep.subr.mxu0 0.0
    %7376 = vmatpush1.msra.mxu0 0.0
    %7377 = vmatprep.subr.mxu0 0.0
    %7378 = vmatpush1.msra.mxu0 0.0
    %7379 = vmatprep.subr.mxu0 0.0
    %7380 = vmatpush1.msra.mxu0 0.0
    %7381 = vmatprep.subr.mxu0 0.0
    %7382 = vmatpush1.msra.mxu0 0.0
    %7383 = vmatprep.mubr.f32.mxu0 0.0
    %7384 = vmatmul.mubr.f32.gmra.mrb[0].mxu0 %v7317
    %v7385 = vpop.f32.mrb[0].mxu0
    %v7386 = vadd.f32 0.0, %v7385
    %v7387 = vpop.f32.mrb[0].mxu0
    %7388 = vdwg.mxu0
    %7391 = vrot.lane.b32.xlu0 %v7021, 32
    %v7392 = vpop.permute.xlu0 %7391
    %7393 = vrot.lane.b32.xlu0 %v7094, 32
    %v7394 = vpop.permute.xlu0 %7393
    %7399 = vrot.lane.b32.xlu0 %v7167, 64
    %v7400 = vpop.permute.xlu0 %7399
    %7401 = vrot.lane.b32.xlu0 %v7240, 64
    %v7402 = vpop.permute.xlu0 %7401
    %7407 = vrot.lane.b32.xlu0 %v7313, 96
    %v7408 = vpop.permute.xlu0 %7407
    %7409 = vrot.lane.b32.xlu0 %v7386, 96
    %v7410 = vpop.permute.xlu0 %7409
    %v7413 = vsel %vm726, %v6875, %v7392
    %v7414 = vsel %vm726, %v6948, %v7394
    %v7415 = vsel %vm2034, %v7413, %v7400
    %v7416 = vsel %vm2034, %v7414, %v7402
    %v7417 = vsel %vm2037, %v7415, %v7408
    %v7418 = vsel %vm2037, %v7416, %v7410
    %v7420 = vlaneseq
    %v7421 = vshrl.u32 %v7420, 7
    %v7422 = vsub.s32 0, %v7421
    %v7423 = vrot.slane %v4136, %v7422
    %7425 = vmatprep.subr.mxu0 0.0
    %7426 = vmatpush1.msra.mxu0 %v4119
    %7427 = vmatprep.subr.mxu0 0.0
    %7428 = vmatpush1.msra.mxu0 %v4120
    %7429 = vmatprep.subr.mxu0 0.0
    %7430 = vmatpush1.msra.mxu0 %v4121
    %7431 = vmatprep.subr.mxu0 0.0
    %7432 = vmatpush1.msra.mxu0 %v4122
    %7433 = vmatprep.subr.mxu0 0.0
    %7434 = vmatpush1.msra.mxu0 %v4123
    %7435 = vmatprep.subr.mxu0 0.0
    %7436 = vmatpush1.msra.mxu0 %v4124
    %7437 = vmatprep.subr.mxu0 0.0
    %7438 = vmatpush1.msra.mxu0 %v4125
    %7439 = vmatprep.subr.mxu0 0.0
    %7440 = vmatpush1.msra.mxu0 %v4126
    %7441 = vmatprep.subr.mxu0 0.0
    %7442 = vmatpush1.msra.mxu0 %v4127
    %7443 = vmatprep.subr.mxu0 0.0
    %7444 = vmatpush1.msra.mxu0 %v4128
    %7445 = vmatprep.subr.mxu0 0.0
    %7446 = vmatpush1.msra.mxu0 %v4129
    %7447 = vmatprep.subr.mxu0 0.0
    %7448 = vmatpush1.msra.mxu0 %v4130
    %7449 = vmatprep.subr.mxu0 0.0
    %7450 = vmatpush1.msra.mxu0 %v4131
    %7451 = vmatprep.subr.mxu0 0.0
    %7452 = vmatpush1.msra.mxu0 %v4132
    %7453 = vmatprep.subr.mxu0 0.0
    %7454 = vmatpush1.msra.mxu0 %v4133
    %7455 = vmatprep.subr.mxu0 0.0
    %7456 = vmatpush1.msra.mxu0 %v4134
    %7457 = vmatprep.subr.mxu0 0.0
    %7458 = vmatpush1.msra.mxu0 0.0
    %7459 = vmatprep.subr.mxu0 0.0
    %7460 = vmatpush1.msra.mxu0 0.0
    %7461 = vmatprep.subr.mxu0 0.0
    %7462 = vmatpush1.msra.mxu0 0.0
    %7463 = vmatprep.subr.mxu0 0.0
    %7464 = vmatpush1.msra.mxu0 0.0
    %7465 = vmatprep.subr.mxu0 0.0
    %7466 = vmatpush1.msra.mxu0 0.0
    %7467 = vmatprep.subr.mxu0 0.0
    %7468 = vmatpush1.msra.mxu0 0.0
    %7469 = vmatprep.subr.mxu0 0.0
    %7470 = vmatpush1.msra.mxu0 0.0
    %7471 = vmatprep.subr.mxu0 0.0
    %7472 = vmatpush1.msra.mxu0 0.0
    %7473 = vmatprep.subr.mxu0 0.0
    %7474 = vmatpush1.msra.mxu0 0.0
    %7475 = vmatprep.subr.mxu0 0.0
    %7476 = vmatpush1.msra.mxu0 0.0
    %7477 = vmatprep.subr.mxu0 0.0
    %7478 = vmatpush1.msra.mxu0 0.0
    %7479 = vmatprep.subr.mxu0 0.0
    %7480 = vmatpush1.msra.mxu0 0.0
    %7481 = vmatprep.subr.mxu0 0.0
    %7482 = vmatpush1.msra.mxu0 0.0
    %7483 = vmatprep.subr.mxu0 0.0
    %7484 = vmatpush1.msra.mxu0 0.0
    %7485 = vmatprep.subr.mxu0 0.0
    %7486 = vmatpush1.msra.mxu0 0.0
    %7487 = vmatprep.subr.mxu0 0.0
    %7488 = vmatpush1.msra.mxu0 0.0
    %7489 = vmatprep.mubr.f32.mxu0 0.0
    %7490 = vmatmul.mubr.f32.gmra.mrb[0].mxu0 %v7417
    %v7491 = vpop.f32.mrb[0].mxu0
    %v7492 = vadd.f32 %v7423, %v7491
    %v7493 = vpop.f32.mrb[0].mxu0
    %7494 = vmatprep.mubr.f32.mxu0 0.0
    %7495 = vmatmul.mubr.f32.gmra.mrb[0].mxu0 %v7418
    %v7496 = vpop.f32.mrb[0].mxu0
    %v7497 = vadd.f32 %v7423, %v7496
    %v7498 = vpop.f32.mrb[0].mxu0
    %7499 = vdwg.mxu0
    %v7500 = vadd.f32 %v5852, %v7492
    %v7501 = vadd.f32 %v5853, %v7497
    %7502 = vadd.xlane.f32.xlu0 %v7500
    %v7503 = vpop.xlane.xlu0 %7502
    %7504 = vadd.xlane.f32.xlu0 %v7501
    %v7505 = vpop.xlane.xlu0 %7504
    %v7506 = vmul.f32 %v7503, %v475
    %v7507 = vmul.f32 %v7505, %v475
    %v7508 = vsub.f32 %v7500, %v7506
    %v7509 = vsub.f32 %v7501, %v7507
    %v7510 = vmul.f32 %v7508, %v7508
    %v7511 = vmul.f32 %v7509, %v7509
    %7512 = vadd.xlane.f32.xlu0 %v7510
    %v7513 = vpop.xlane.xlu0 %7512
    %7514 = vadd.xlane.f32.xlu0 %v7511
    %v7515 = vpop.xlane.xlu0 %7514
    %v7516 = vmul.f32 %v7513, %v475
    %v7517 = vmul.f32 %v7515, %v475
    %v7518 = vadd.f32 %v7516, 1e-05
    %v7519 = vadd.f32 %v7517, 1e-05
    %v7520 = vrsqrt.pop %v7518
    %v7521 = vrsqrt.pop %v7519
    %v7522 = vmul.f32 %v7508, %v7520
    %v7523 = vmul.f32 %v7509, %v7521
    %v7525 = vlaneseq
    %v7526 = vshrl.u32 %v7525, 7
    %v7527 = vsub.s32 0, %v7526
    %v7528 = vrot.slane %v3989, %v7527
    %v7530 = vmul.f32 %v7522, %v7528
    %v7531 = vmul.f32 %v7523, %v7528
    %v7533 = vlaneseq
    %v7534 = vshrl.u32 %v7533, 7
    %v7535 = vsub.s32 0, %v7534
    %v7536 = vrot.slane %v3993, %v7535
    %v7538 = vadd.f32 %v7530, %v7536
    %v7539 = vadd.f32 %v7531, %v7536
    %v7541 = vlaneseq
    %v7542 = vshrl.u32 %v7541, 7
    %v7543 = vsub.s32 0, %v7542
    %v7544 = vrot.slane %v4171, %v7543
    %v7545 = vlaneseq
    %v7546 = vshrl.u32 %v7545, 7
    %v7547 = vsub.s32 1, %v7546
    %v7548 = vrot.slane %v4171, %v7547
    %7551 = vmatprep.subr.mxu0 %v4139
    %7552 = vmatpush1.msra.mxu0 %v4138
    %7553 = vmatprep.subr.mxu0 %v4141
    %7554 = vmatpush1.msra.mxu0 %v4140
    %7555 = vmatprep.subr.mxu0 %v4143
    %7556 = vmatpush1.msra.mxu0 %v4142
    %7557 = vmatprep.subr.mxu0 %v4145
    %7558 = vmatpush1.msra.mxu0 %v4144
    %7559 = vmatprep.subr.mxu0 %v4147
    %7560 = vmatpush1.msra.mxu0 %v4146
    %7561 = vmatprep.subr.mxu0 %v4149
    %7562 = vmatpush1.msra.mxu0 %v4148
    %7563 = vmatprep.subr.mxu0 %v4151
    %7564 = vmatpush1.msra.mxu0 %v4150
    %7565 = vmatprep.subr.mxu0 %v4153
    %7566 = vmatpush1.msra.mxu0 %v4152
    %7567 = vmatprep.subr.mxu0 %v4155
    %7568 = vmatpush1.msra.mxu0 %v4154
    %7569 = vmatprep.subr.mxu0 %v4157
    %7570 = vmatpush1.msra.mxu0 %v4156
    %7571 = vmatprep.subr.mxu0 %v4159
    %7572 = vmatpush1.msra.mxu0 %v4158
    %7573 = vmatprep.subr.mxu0 %v4161
    %7574 = vmatpush1.msra.mxu0 %v4160
    %7575 = vmatprep.subr.mxu0 %v4163
    %7576 = vmatpush1.msra.mxu0 %v4162
    %7577 = vmatprep.subr.mxu0 %v4165
    %7578 = vmatpush1.msra.mxu0 %v4164
    %7579 = vmatprep.subr.mxu0 %v4167
    %7580 = vmatpush1.msra.mxu0 %v4166
    %7581 = vmatprep.subr.mxu0 %v4169
    %7582 = vmatpush1.msra.mxu0 %v4168
    %7583 = vmatprep.subr.mxu0 0.0
    %7584 = vmatpush1.msra.mxu0 0.0
    %7585 = vmatprep.subr.mxu0 0.0
    %7586 = vmatpush1.msra.mxu0 0.0
    %7587 = vmatprep.subr.mxu0 0.0
    %7588 = vmatpush1.msra.mxu0 0.0
    %7589 = vmatprep.subr.mxu0 0.0
    %7590 = vmatpush1.msra.mxu0 0.0
    %7591 = vmatprep.subr.mxu0 0.0
    %7592 = vmatpush1.msra.mxu0 0.0
    %7593 = vmatprep.subr.mxu0 0.0
    %7594 = vmatpush1.msra.mxu0 0.0
    %7595 = vmatprep.subr.mxu0 0.0
    %7596 = vmatpush1.msra.mxu0 0.0
    %7597 = vmatprep.subr.mxu0 0.0
    %7598 = vmatpush1.msra.mxu0 0.0
    %7599 = vmatprep.subr.mxu0 0.0
    %7600 = vmatpush1.msra.mxu0 0.0
    %7601 = vmatprep.subr.mxu0 0.0
    %7602 = vmatpush1.msra.mxu0 0.0
    %7603 = vmatprep.subr.mxu0 0.0
    %7604 = vmatpush1.msra.mxu0 0.0
    %7605 = vmatprep.subr.mxu0 0.0
    %7606 = vmatpush1.msra.mxu0 0.0
    %7607 = vmatprep.subr.mxu0 0.0
    %7608 = vmatpush1.msra.mxu0 0.0
    %7609 = vmatprep.subr.mxu0 0.0
    %7610 = vmatpush1.msra.mxu0 0.0
    %7611 = vmatprep.subr.mxu0 0.0
    %7612 = vmatpush1.msra.mxu0 0.0
    %7613 = vmatprep.subr.mxu0 0.0
    %7614 = vmatpush1.msra.mxu0 0.0
    %7615 = vmatprep.mubr.f32.mxu0 0.0
    %7616 = vmatmul.mubr.f32.gmra.mrb[0].mxu0 %v7538
    %v7617 = vpop.f32.mrb[0].mxu0
    %v7618 = vadd.f32 %v7544, %v7617
    %v7619 = vpop.f32.mrb[0].mxu0
    %v7620 = vadd.f32 %v7548, %v7619
    %7621 = vmatprep.mubr.f32.mxu0 0.0
    %7622 = vmatmul.mubr.f32.gmra.mrb[0].mxu0 %v7539
    %v7623 = vpop.f32.mrb[0].mxu0
    %v7624 = vadd.f32 %v7544, %v7623
    %v7625 = vpop.f32.mrb[0].mxu0
    %v7626 = vadd.f32 %v7548, %v7625
    %7627 = vdwg.mxu0
    %v7628 = vmax.f32 %v7618, 0.0
    %v7629 = vmax.f32 %v7620, 0.0
    %v7630 = vmax.f32 %v7624, 0.0
    %v7631 = vmax.f32 %v7626, 0.0
    %7632 = vmatprep.subr.mxu0 0.0
    %7633 = vmatpush1.msra.mxu0 %v4173
    %7634 = vmatprep.subr.mxu0 0.0
    %7635 = vmatpush1.msra.mxu0 %v4174
    %7636 = vmatprep.subr.mxu0 0.0
    %7637 = vmatpush1.msra.mxu0 %v4175
    %7638 = vmatprep.subr.mxu0 0.0
    %7639 = vmatpush1.msra.mxu0 %v4176
    %7640 = vmatprep.subr.mxu0 0.0
    %7641 = vmatpush1.msra.mxu0 %v4177
    %7642 = vmatprep.subr.mxu0 0.0
    %7643 = vmatpush1.msra.mxu0 %v4178
    %7644 = vmatprep.subr.mxu0 0.0
    %7645 = vmatpush1.msra.mxu0 %v4179
    %7646 = vmatprep.subr.mxu0 0.0
    %7647 = vmatpush1.msra.mxu0 %v4180
    %7648 = vmatprep.subr.mxu0 0.0
    %7649 = vmatpush1.msra.mxu0 %v4181
    %7650 = vmatprep.subr.mxu0 0.0
    %7651 = vmatpush1.msra.mxu0 %v4182
    %7652 = vmatprep.subr.mxu0 0.0
    %7653 = vmatpush1.msra.mxu0 %v4183
    %7654 = vmatprep.subr.mxu0 0.0
    %7655 = vmatpush1.msra.mxu0 %v4184
    %7656 = vmatprep.subr.mxu0 0.0
    %7657 = vmatpush1.msra.mxu0 %v4185
    %7658 = vmatprep.subr.mxu0 0.0
    %7659 = vmatpush1.msra.mxu0 %v4186
    %7660 = vmatprep.subr.mxu0 0.0
    %7661 = vmatpush1.msra.mxu0 %v4187
    %7662 = vmatprep.subr.mxu0 0.0
    %7663 = vmatpush1.msra.mxu0 %v4188
    %7664 = vmatprep.subr.mxu0 0.0
    %7665 = vmatpush1.msra.mxu0 %v4189
    %7666 = vmatprep.subr.mxu0 0.0
    %7667 = vmatpush1.msra.mxu0 %v4190
    %7668 = vmatprep.subr.mxu0 0.0
    %7669 = vmatpush1.msra.mxu0 %v4191
    %7670 = vmatprep.subr.mxu0 0.0
    %7671 = vmatpush1.msra.mxu0 %v4192
    %7672 = vmatprep.subr.mxu0 0.0
    %7673 = vmatpush1.msra.mxu0 %v4193
    %7674 = vmatprep.subr.mxu0 0.0
    %7675 = vmatpush1.msra.mxu0 %v4194
    %7676 = vmatprep.subr.mxu0 0.0
    %7677 = vmatpush1.msra.mxu0 %v4195
    %7678 = vmatprep.subr.mxu0 0.0
    %7679 = vmatpush1.msra.mxu0 %v4196
    %7680 = vmatprep.subr.mxu0 0.0
    %7681 = vmatpush1.msra.mxu0 %v4197
    %7682 = vmatprep.subr.mxu0 0.0
    %7683 = vmatpush1.msra.mxu0 %v4198
    %7684 = vmatprep.subr.mxu0 0.0
    %7685 = vmatpush1.msra.mxu0 %v4199
    %7686 = vmatprep.subr.mxu0 0.0
    %7687 = vmatpush1.msra.mxu0 %v4200
    %7688 = vmatprep.subr.mxu0 0.0
    %7689 = vmatpush1.msra.mxu0 %v4201
    %7690 = vmatprep.subr.mxu0 0.0
    %7691 = vmatpush1.msra.mxu0 %v4202
    %7692 = vmatprep.subr.mxu0 0.0
    %7693 = vmatpush1.msra.mxu0 %v4203
    %7694 = vmatprep.subr.mxu0 0.0
    %7695 = vmatpush1.msra.mxu0 %v4204
    %7696 = vmatprep.mubr.f32.mxu0 %v7629
    %7697 = vmatmul.mubr.f32.gmra.mrb[0].mxu0 %v7628
    %v7698 = vpop.f32.mrb[0].mxu0
    %v7699 = vadd.f32 0.0, %v7698
    %v7700 = vpop.f32.mrb[0].mxu0
    %7701 = vmatprep.mubr.f32.mxu0 %v7631
    %7702 = vmatmul.mubr.f32.gmra.mrb[0].mxu0 %v7630
    %v7703 = vpop.f32.mrb[0].mxu0
    %v7704 = vadd.f32 0.0, %v7703
    %v7705 = vpop.f32.mrb[0].mxu0
    %7706 = vdwg.mxu0
    %v7707 = vadd.f32 %v7500, %v7699
    %v7708 = vadd.f32 %v7501, %v7704
    %v7710 = vlaneseq
    %v7711 = vshrl.u32 %v7710, 7
    %v7712 = vsub.s32 0, %v7711
    %v7713 = vrot.slane %v4206, %v7712
    %v7715 = vadd.f32 %v7707, %v7713
    %v7716 = vadd.f32 %v7708, %v7713
    %v7717 = vld [vmem:[%s20] sm:$0x1]
    %v7718 = vld [vmem:[#allocation22] sm:$0x1]
    %7719 = vadd.xlane.f32.xlu0 %v7715
    %v7720 = vpop.xlane.xlu0 %7719
    %7721 = vadd.xlane.f32.xlu0 %v7716
    %v7722 = vpop.xlane.xlu0 %7721
    %v7723 = vmul.f32 %v7720, %v475
    %v7724 = vmul.f32 %v7722, %v475
    %v7725 = vsub.f32 %v7715, %v7723
    %v7726 = vsub.f32 %v7716, %v7724
    %v7727 = vmul.f32 %v7725, %v7725
    %v7728 = vmul.f32 %v7726, %v7726
    %7729 = vadd.xlane.f32.xlu0 %v7727
    %v7730 = vpop.xlane.xlu0 %7729
    %7731 = vadd.xlane.f32.xlu0 %v7728
    %v7732 = vpop.xlane.xlu0 %7731
    %v7733 = vmul.f32 %v7730, %v475
    %v7734 = vmul.f32 %v7732, %v475
    %v7735 = vadd.f32 %v7733, 1e-05
    %v7736 = vadd.f32 %v7734, 1e-05
    %v7737 = vrsqrt.pop %v7735
    %v7738 = vrsqrt.pop %v7736
    %v7739 = vmul.f32 %v7725, %v7737
    %v7740 = vmul.f32 %v7726, %v7738
    %v7742 = vlaneseq
    %v7743 = vshrl.u32 %v7742, 7
    %v7744 = vsub.s32 0, %v7743
    %v7745 = vrot.slane %v7717, %v7744
    %v7747 = vmul.f32 %v7739, %v7745
    %v7748 = vmul.f32 %v7740, %v7745
    %v7750 = vlaneseq
    %v7751 = vshrl.u32 %v7750, 7
    %v7752 = vsub.s32 0, %v7751
    %v7753 = vrot.slane %v7718, %v7752
    %v7755 = vadd.f32 %v7747, %v7753
    %v7756 = vadd.f32 %v7748, %v7753
    %7757 = vst [vmem:[#allocation23] sm:$0xff] %v7755
    %7758 = vst [vmem:[#allocation23 + $0x8] sm:$0xff] %v7756
    // Predicated region
    $region142: #{transformer_decoder.1} parent=1 // pred_check
      _
    $region143: #{transformer_decoder.1} parent=1 // pred_check_branch
      %7760 = sbr.rel (0) target = $region145
    $region144: #{transformer_decoder.1} parent=1 // pred_region
      %s7762 = ssub.s32 256, 256
      %7763 = vsyncadd [#allocation4], %s7762
      %s7764 = sshll.u32 [#allocation23], 4
      %s7765 = int_to_ptr.vmem [resolvable:$true] %s7764
      %7770 = dma.vmem_to_hbm [thread:$0]  %s7765, 256, %s22, [#allocation4], 128, 128, 8
    $region145: #{transformer_decoder.1} parent=1 // pred_fallthru
      _
    // Predicated region
    $region146: #{transformer_decoder.1} parent=1 // pred_check
      _
    $region147: #{transformer_decoder.1} parent=1 // pred_check_branch
      %7772 = sbr.rel (0) target = $region149
    $region148: #{transformer_decoder.1} parent=1 // pred_region
      %7773 = dma.done [#allocation4], 256
    $region149: #{transformer_decoder.1} parent=1 // pred_fallthru
      _
    %7774 = vsyncpa [#allocation3], 1
    %7775 = vsyncpa [#allocation6], 1
    %7776 = vsyncpa [#allocation9], 1
    %7777 = vsyncpa [#allocation12], 1
    %7778 = vsyncpa [#allocation15], 1
    %7779 = vsyncpa [#allocation18], 1
    %7780 = vsyncpa [#allocation21], 1
    %7781 = vsyncpa [#allocation4], 1

</llo_original>
